<compile_context>
chip_gen: v7x
topology: tpu7x:2x2x1
jax: 0.10.0
libtpu: 0.0.40
codegen_flags: <defaults>
</compile_context>

<pallas_src>
import functools

import jax
import jax.numpy as jnp
from jax import lax
from jax.experimental import pallas as pl
from jax.experimental.pallas import tpu as pltpu


def conv2d_size_out(size, kernel_size=5, stride=2):
    return (size - (kernel_size - 1) - 1) // stride + 1


_VMEM_LIMIT = 32 * 1024 * 1024  # explicit scoped-VMEM limit, safe on v5e/v6e/v7x


def _vmem():
    return pl.BlockSpec(memory_space=pltpu.MemorySpace.VMEM)


# ----------------------------------------------------------------------------
# Kernel 1: fused conv1..conv4 (+ReLU), one image per grid step.
# Activations are kept as flattened [H*W, C] refs; the im2col patch block for
# each layer is gathered into VMEM scratch with static row/col slices, then a
# single bf16 matmul per layer feeds the MXU.
# ----------------------------------------------------------------------------
def _conv_stack_kernel(x_ref, w1, b1, w2, b2, w3, b3, w4, b4, o_ref,
                       p1, p2, p3, p4, a1, a2, a3, *, layer_dims):
    srcs = [x_ref, a1, a2, a3]
    pats = [p1, p2, p3, p4]
    dsts = [a1, a2, a3, o_ref]
    ws = [w1, w2, w3, w4]
    bs = [b1, b2, b3, b4]
    for li, (hin, win, cin, oh_n, ow_n, stride) in enumerate(layer_dims):
        src, pat, w, b, dst = srcs[li], pats[li], ws[li], bs[li], dsts[li]
        # Build the im2col patch block in VMEM (no HBM round trip, no 9x blowup
        # through HBM).  One [OW, Cin] copy per (output row, tap); all slice
        # starts are static Python ints so lowering stays fully static.
        for oh in range(oh_n):
            m0 = oh * ow_n
            for i in range(3):
                for j in range(3):
                    r0 = (oh * stride + i) * win + j
                    c0 = (i * 3 + j) * cin
                    if stride == 1 or ow_n == 1:
                        row = src[pl.ds(r0, ow_n), :]
                    else:
                        row = src[pl.ds(r0, ow_n, stride=stride), :]
                    pat[pl.ds(m0, ow_n), c0:c0 + cin] = row
        # One MXU matmul per conv layer, bf16 operands, f32 accumulation.
        acc = jnp.dot(pat[...].astype(jnp.bfloat16), w[...],
                      preferred_element_type=jnp.float32)
        dst[...] = jnp.maximum(acc + b[...], 0.0)


def conv_stack(params, state_nchw):
    B, c_in, H, W = state_nchw.shape
    strides = (1, 2, 1, 2)
    cins = (c_in, 128, 128, 128)        # channels padded to 128 after conv1
    sizes = [(H, W)]
    for s in strides:
        h, w = sizes[-1]
        sizes.append((conv2d_size_out(h, 3, s), conv2d_size_out(w, 3, s)))
    layer_dims = tuple(
        (sizes[i][0], sizes[i][1], cins[i],
         sizes[i + 1][0], sizes[i + 1][1], strides[i])
        for i in range(4))
    convh, convw = sizes[4]
    S = convh * convw

    # NCHW -> NHWC, spatial flattened so every ref inside the kernel is 2-D.
    x = jnp.transpose(state_nchw, (0, 2, 3, 1)).reshape(B, H * W, c_in)

    scratch = []
    for (_, _, cin, oh_n, ow_n, _) in layer_dims:
        scratch.append(pltpu.VMEM((oh_n * ow_n, 9 * cin), jnp.float32))  # patches
    for li in range(3):
        oh_n, ow_n = sizes[li + 1]
        scratch.append(pltpu.VMEM((oh_n * ow_n, 128), jnp.float32))      # activations

    in_specs = [pl.BlockSpec((None, H * W, c_in), lambda b: (b, 0, 0))]
    weight_args = []
    for name in ("conv1", "conv2", "conv3", "conv4"):
        w = params[name + "_w"]
        bvec = params[name + "_b"]
        # Constant block index across the grid => weights stay resident in
        # VMEM, no per-image re-DMA.
        in_specs.append(pl.BlockSpec(w.shape, lambda b: (0, 0)))
        in_specs.append(pl.BlockSpec(bvec.shape, lambda b: (0, 0)))
        weight_args += [w, bvec]

    out = pl.pallas_call(
        functools.partial(_conv_stack_kernel, layer_dims=layer_dims),
        out_shape=jax.ShapeDtypeStruct((B, S, 128), jnp.float32),
        grid=(B,),
        in_specs=in_specs,
        out_specs=pl.BlockSpec((None, S, 128), lambda b: (b, 0, 0)),
        scratch_shapes=scratch,
        compiler_params=pltpu.CompilerParams(
            dimension_semantics=("parallel",),       # v7x: 2 TCs split the batch
            vmem_limit_bytes=_VMEM_LIMIT),
    )(x, *weight_args)
    return out, convh, convw


# ----------------------------------------------------------------------------
# Kernel 2: LSTM (hoisted input projection, unrolled recurrence) + attention
# sigmoid + gating + l1 (ReLU) + l_action, all fused in one pallas_call.
# ----------------------------------------------------------------------------
def _lstm_attn_head_kernel(emb_ref, img_ref, wih_ref, whh_ref, lb_ref,
                           aw_ref, ab_ref, l1w_ref, l1b_ref, law_ref, lab_ref,
                           o_ref, xg_ref, *, seq_len, batch_pad, spatial):
    bp = batch_pad
    hs = whh_ref.shape[0]                     # 128

    # Hoisted input projection: one [T*Bp, 32] x [32, 4H] matmul (bias folded
    # in), staged into VMEM scratch so the recurrence only does h @ W_hh.
    xg = jnp.dot(emb_ref[...].astype(jnp.bfloat16), wih_ref[...],
                 preferred_element_type=jnp.float32) + lb_ref[...]
    for t in range(seq_len):                  # tile-aligned static stores
        xg_ref[t] = xg[t * bp:(t + 1) * bp, :]

    def step(t, carry):
        h, c = carry
        gates = xg_ref[t] + jnp.dot(h.astype(jnp.bfloat16), whh_ref[...],
                                    preferred_element_type=jnp.float32)
        gi = jax.nn.sigmoid(gates[:, 0 * hs:1 * hs])
        gf = jax.nn.sigmoid(gates[:, 1 * hs:2 * hs])
        gg = jnp.tanh(gates[:, 2 * hs:3 * hs])
        go = jax.nn.sigmoid(gates[:, 3 * hs:4 * hs])
        c_new = gf * c + gi * gg
        h_new = go * jnp.tanh(c_new)
        return h_new, c_new

    h0 = jnp.zeros((bp, hs), jnp.float32)
    c0 = jnp.zeros((bp, hs), jnp.float32)
    h_fin, _ = lax.fori_loop(0, seq_len, step, (h0, c0), unroll=True)

    # advice attention -> per-channel gating -> l1 (ReLU) -> l_action, all on
    # VMEM-resident data.
    attn = jax.nn.sigmoid(
        jnp.dot(h_fin.astype(jnp.bfloat16), aw_ref[...],
                preferred_element_type=jnp.float32) + ab_ref[...])        # [Bp, 128]
    if spatial > 1:
        attn = jnp.tile(attn, (1, spatial))                               # [Bp, S*128]
    gated = img_ref[...] * attn                                           # lane-dense
    h1 = jnp.maximum(
        jnp.dot(gated.astype(jnp.bfloat16), l1w_ref[...],
                preferred_element_type=jnp.float32) + l1b_ref[...], 0.0)  # [Bp, 256]
    o_ref[...] = jnp.dot(h1.astype(jnp.bfloat16), law_ref[...],
                         preferred_element_type=jnp.float32) + lab_ref[...]


# ----------------------------------------------------------------------------
# Parameters + forward pass
# ----------------------------------------------------------------------------
def init_params(key, channel_in, action_dim, input_size, convh, convw):
    hid = 128
    emb_dim = 32
    S = convh * convw
    ks = iter(jax.random.split(key, 24))

    def nrm(shape, scale, dtype=jnp.float32):
        return (jax.random.normal(next(ks), shape, jnp.float32) * scale).astype(dtype)

    def conv_w(cin_true, cin_pad, cout_true, cout_pad, scale):
        # Per-tap layout: row = tap*cin_pad + ci, matching the in-kernel patch
        # columns.  Padded in/out channels are zero so semantics match the
        # unpadded PyTorch conv exactly.
        w = jax.random.normal(next(ks), (9, cin_true, cout_true), jnp.float32) * scale
        wf = jnp.zeros((9, cin_pad, cout_pad), jnp.float32)
        wf = wf.at[:, :cin_true, :cout_true].set(w)
        return wf.reshape(9 * cin_pad, cout_pad).astype(jnp.bfloat16)

    def conv_b(cout_true, cout_pad, scale):
        bv = jax.random.normal(next(ks), (cout_true,), jnp.float32) * scale
        return jnp.zeros((1, cout_pad), jnp.float32).at[0, :cout_true].set(bv)

    p = {}
    p["conv1_w"] = conv_w(channel_in, channel_in, 32, 128, 0.1)
    p["conv1_b"] = conv_b(32, 128, 0.1)
    p["conv2_w"] = conv_w(32, 128, 64, 128, 0.05)
    p["conv2_b"] = conv_b(64, 128, 0.05)
    p["conv3_w"] = conv_w(64, 128, 64, 128, 0.05)
    p["conv3_b"] = conv_b(64, 128, 0.05)
    p["conv4_w"] = conv_w(64, 128, 128, 128, 0.05)
    p["conv4_b"] = conv_b(128, 128, 0.05)
    # Embedding + LSTM (PyTorch gate order i,f,g,o; weights stored [in, 4H]).
    p["emb"] = nrm((input_size, emb_dim), 0.1)
    p["lstm_w_ih"] = nrm((emb_dim, 4 * hid), 0.05, jnp.bfloat16)
    p["lstm_w_hh"] = nrm((hid, 4 * hid), 0.05, jnp.bfloat16)
    p["lstm_b"] = nrm((1, 4 * hid), 0.05)            # b_ih + b_hh combined
    # Attention + head.  l1_w rows are in NHWC flatten order (h, w, c); porting
    # NCHW-flattened PyTorch weights would need a one-time row permutation.
    p["attn_w"] = nrm((hid, 128), 0.05, jnp.bfloat16)
    p["attn_b"] = jnp.zeros((1, 128), jnp.float32)
    p["l1_w"] = nrm((S * 128, 256), 0.05, jnp.bfloat16)
    p["l1_b"] = nrm((1, 256), 0.05)
    p["la_w"] = nrm((256, 128), 0.05, jnp.bfloat16)  # action dim padded to 128 lanes
    p["la_b"] = jnp.zeros((1, 128), jnp.float32)
    return p


def dqn_forward(params, state_nchw, advice_bt, *, action_dim):
    """state: [B, C, H, W] float32 (NCHW like PyTorch); advice: [B, T] int32."""
    B = state_nchw.shape[0]
    T = advice_bt.shape[1]

    image_rep, convh, convw = conv_stack(params, state_nchw)        # [B, S, 128]
    S = convh * convw
    img_flat = image_rep.reshape(B, S * 128)                        # NHWC flatten (C-last)

    # Pad batch to a full sublane group for the LSTM / head matmuls.
    bp = max(8, ((B + 7) // 8) * 8)
    img_p = jnp.zeros((bp, S * 128), jnp.float32).at[:B].set(img_flat)

    # Embedding lookup (gather) + time-major layout; equal-length advice means
    # pad_sequence is just a stack.  TODO(synk): ragged-length packed-sequence
    # LSTM semantics (length masking) are not modeled.
    emb = params["emb"][advice_bt]                                  # [B, T, 32]
    emb = jnp.transpose(emb, (1, 0, 2))                             # [T, B, 32]
    emb_p = jnp.zeros((T, bp, emb.shape[2]), jnp.float32).at[:, :B].set(emb)
    emb_p = emb_p.reshape(T * bp, emb.shape[2])                     # [T*Bp, 32]

    out = pl.pallas_call(
        functools.partial(_lstm_attn_head_kernel,
                          seq_len=T, batch_pad=bp, spatial=S),
        out_shape=jax.ShapeDtypeStruct((bp, 128), jnp.float32),
        in_specs=[_vmem()] * 11,
        out_specs=_vmem(),
        scratch_shapes=[pltpu.VMEM((T, bp, 4 * 128), jnp.float32)],
        compiler_params=pltpu.CompilerParams(vmem_limit_bytes=_VMEM_LIMIT),
    )(emb_p, img_p, params["lstm_w_ih"], params["lstm_w_hh"], params["lstm_b"],
      params["attn_w"], params["attn_b"], params["l1_w"], params["l1_b"],
      params["la_w"], params["la_b"])
    return out[:B, :action_dim]


if __name__ == "__main__":
    B, C_IN, H, W = 2, 4, 16, 16
    ACTION_DIM = 4
    INPUT_SIZE = 32          # embedding vocab size
    T = 8                    # advice sequence length (equal lengths)

    convw = conv2d_size_out(conv2d_size_out(conv2d_size_out(
        conv2d_size_out(W, 3, 1), 3, 2), 3, 1), 3, 2)
    convh = conv2d_size_out(conv2d_size_out(conv2d_size_out(
        conv2d_size_out(H, 3, 1), 3, 2), 3, 1), 3, 2)

    key = jax.random.PRNGKey(0)
    k_param, k_state, k_adv = jax.random.split(key, 3)
    params = init_params(k_param, C_IN, ACTION_DIM, INPUT_SIZE, convh, convw)

    state = jax.random.normal(k_state, (B, C_IN, H, W), jnp.float32)
    advice = jax.random.randint(k_adv, (B, T), 0, INPUT_SIZE, jnp.int32)

    fwd = jax.jit(functools.partial(dqn_forward, action_dim=ACTION_DIM))
    out = fwd(params, state, advice)
    out = jax.block_until_ready(out)
    assert out.shape == (B, ACTION_DIM), out.shape
    assert bool(jnp.all(jnp.isfinite(out)))
    print("KERNEL_OK")
</pallas_src>

<mosaic_0001>
module attributes {stable_mosaic.version = 11 : i64} {
  func.func @_lstm_attn_head_kernel(%arg0: memref<64x32xf32, #tpu.memory_space<vmem>>, %arg1: memref<8x128xf32, #tpu.memory_space<vmem>>, %arg2: memref<32x512xbf16, #tpu.memory_space<vmem>>, %arg3: memref<128x512xbf16, #tpu.memory_space<vmem>>, %arg4: memref<1x512xf32, #tpu.memory_space<vmem>>, %arg5: memref<128x128xbf16, #tpu.memory_space<vmem>>, %arg6: memref<1x128xf32, #tpu.memory_space<vmem>>, %arg7: memref<128x256xbf16, #tpu.memory_space<vmem>>, %arg8: memref<1x256xf32, #tpu.memory_space<vmem>>, %arg9: memref<256x128xbf16, #tpu.memory_space<vmem>>, %arg10: memref<1x128xf32, #tpu.memory_space<vmem>>, %arg11: memref<8x128xf32, #tpu.memory_space<vmem>>, %arg12: memref<8x8x512xf32, #tpu.memory_space<vmem>>) attributes {dimension_semantics = [], scalar_prefetch = 0 : i64, scratch_operands = 1 : i64, tpu.core_type = #tpu.core_type<tc>} {
    %c0 = arith.constant 0 : index
    %c0_0 = arith.constant 0 : index
    %0 = vector.load %arg0[%c0, %c0_0] : memref<64x32xf32, #tpu.memory_space<vmem>>, vector<64x32xf32>
    %1 = arith.truncf %0 : vector<64x32xf32> to vector<64x32xbf16>
    %c0_1 = arith.constant 0 : index
    %c0_2 = arith.constant 0 : index
    %2 = vector.load %arg2[%c0_1, %c0_2] : memref<32x512xbf16, #tpu.memory_space<vmem>>, vector<32x512xbf16>
    %cst = arith.constant dense<0.000000e+00> : vector<64x512xf32>
    %3 = tpu.matmul %1, %2, %cst {dimension_numbers = #tpu.dot_dimension_numbers<[1], [0], [0], [1], [0, 0, 1, 1], [], []>} : vector<64x32xbf16>, vector<32x512xbf16>, vector<64x512xf32> -> vector<64x512xf32>
    %c0_3 = arith.constant 0 : index
    %c0_4 = arith.constant 0 : index
    %4 = vector.load %arg4[%c0_3, %c0_4] : memref<1x512xf32, #tpu.memory_space<vmem>>, vector<1x512xf32>
    %5 = vector.broadcast %4 : vector<1x512xf32> to vector<64x512xf32>
    %6 = arith.addf %3, %5 : vector<64x512xf32>
    %7 = vector.extract_strided_slice %6 {offsets = [0, 0], sizes = [8, 512], strides = [1, 1]} : vector<64x512xf32> to vector<8x512xf32>
    %c0_5 = arith.constant 0 : index
    %c0_6 = arith.constant 0 : index
    %c0_7 = arith.constant 0 : index
    %8 = vector.load %arg12[%c0_5, %c0_6, %c0_7] : memref<8x8x512xf32, #tpu.memory_space<vmem>>, vector<1x8x512xf32>
    %9 = vector.shape_cast %8 : vector<1x8x512xf32> to vector<8x512xf32>
    %10 = vector.shape_cast %7 : vector<8x512xf32> to vector<1x8x512xf32>
    tpu.vector_store %arg12[%c0_5, %c0_6, %c0_7], %10 {strides = array<i32>} : memref<8x8x512xf32, #tpu.memory_space<vmem>>, vector<1x8x512xf32>,
    %11 = vector.extract_strided_slice %6 {offsets = [8, 0], sizes = [8, 512], strides = [1, 1]} : vector<64x512xf32> to vector<8x512xf32>
    %c1 = arith.constant 1 : index
    %c0_8 = arith.constant 0 : index
    %c0_9 = arith.constant 0 : index
    %12 = vector.load %arg12[%c1, %c0_8, %c0_9] : memref<8x8x512xf32, #tpu.memory_space<vmem>>, vector<1x8x512xf32>
    %13 = vector.shape_cast %12 : vector<1x8x512xf32> to vector<8x512xf32>
    %14 = vector.shape_cast %11 : vector<8x512xf32> to vector<1x8x512xf32>
    tpu.vector_store %arg12[%c1, %c0_8, %c0_9], %14 {strides = array<i32>} : memref<8x8x512xf32, #tpu.memory_space<vmem>>, vector<1x8x512xf32>,
    %15 = vector.extract_strided_slice %6 {offsets = [16, 0], sizes = [8, 512], strides = [1, 1]} : vector<64x512xf32> to vector<8x512xf32>
    %c2 = arith.constant 2 : index
    %c0_10 = arith.constant 0 : index
    %c0_11 = arith.constant 0 : index
    %16 = vector.load %arg12[%c2, %c0_10, %c0_11] : memref<8x8x512xf32, #tpu.memory_space<vmem>>, vector<1x8x512xf32>
    %17 = vector.shape_cast %16 : vector<1x8x512xf32> to vector<8x512xf32>
    %18 = vector.shape_cast %15 : vector<8x512xf32> to vector<1x8x512xf32>
    tpu.vector_store %arg12[%c2, %c0_10, %c0_11], %18 {strides = array<i32>} : memref<8x8x512xf32, #tpu.memory_space<vmem>>, vector<1x8x512xf32>,
    %19 = vector.extract_strided_slice %6 {offsets = [24, 0], sizes = [8, 512], strides = [1, 1]} : vector<64x512xf32> to vector<8x512xf32>
    %c3 = arith.constant 3 : index
    %c0_12 = arith.constant 0 : index
    %c0_13 = arith.constant 0 : index
    %20 = vector.load %arg12[%c3, %c0_12, %c0_13] : memref<8x8x512xf32, #tpu.memory_space<vmem>>, vector<1x8x512xf32>
    %21 = vector.shape_cast %20 : vector<1x8x512xf32> to vector<8x512xf32>
    %22 = vector.shape_cast %19 : vector<8x512xf32> to vector<1x8x512xf32>
    tpu.vector_store %arg12[%c3, %c0_12, %c0_13], %22 {strides = array<i32>} : memref<8x8x512xf32, #tpu.memory_space<vmem>>, vector<1x8x512xf32>,
    %23 = vector.extract_strided_slice %6 {offsets = [32, 0], sizes = [8, 512], strides = [1, 1]} : vector<64x512xf32> to vector<8x512xf32>
    %c4 = arith.constant 4 : index
    %c0_14 = arith.constant 0 : index
    %c0_15 = arith.constant 0 : index
    %24 = vector.load %arg12[%c4, %c0_14, %c0_15] : memref<8x8x512xf32, #tpu.memory_space<vmem>>, vector<1x8x512xf32>
    %25 = vector.shape_cast %24 : vector<1x8x512xf32> to vector<8x512xf32>
    %26 = vector.shape_cast %23 : vector<8x512xf32> to vector<1x8x512xf32>
    tpu.vector_store %arg12[%c4, %c0_14, %c0_15], %26 {strides = array<i32>} : memref<8x8x512xf32, #tpu.memory_space<vmem>>, vector<1x8x512xf32>,
    %27 = vector.extract_strided_slice %6 {offsets = [40, 0], sizes = [8, 512], strides = [1, 1]} : vector<64x512xf32> to vector<8x512xf32>
    %c5 = arith.constant 5 : index
    %c0_16 = arith.constant 0 : index
    %c0_17 = arith.constant 0 : index
    %28 = vector.load %arg12[%c5, %c0_16, %c0_17] : memref<8x8x512xf32, #tpu.memory_space<vmem>>, vector<1x8x512xf32>
    %29 = vector.shape_cast %28 : vector<1x8x512xf32> to vector<8x512xf32>
    %30 = vector.shape_cast %27 : vector<8x512xf32> to vector<1x8x512xf32>
    tpu.vector_store %arg12[%c5, %c0_16, %c0_17], %30 {strides = array<i32>} : memref<8x8x512xf32, #tpu.memory_space<vmem>>, vector<1x8x512xf32>,
    %31 = vector.extract_strided_slice %6 {offsets = [48, 0], sizes = [8, 512], strides = [1, 1]} : vector<64x512xf32> to vector<8x512xf32>
    %c6 = arith.constant 6 : index
    %c0_18 = arith.constant 0 : index
    %c0_19 = arith.constant 0 : index
    %32 = vector.load %arg12[%c6, %c0_18, %c0_19] : memref<8x8x512xf32, #tpu.memory_space<vmem>>, vector<1x8x512xf32>
    %33 = vector.shape_cast %32 : vector<1x8x512xf32> to vector<8x512xf32>
    %34 = vector.shape_cast %31 : vector<8x512xf32> to vector<1x8x512xf32>
    tpu.vector_store %arg12[%c6, %c0_18, %c0_19], %34 {strides = array<i32>} : memref<8x8x512xf32, #tpu.memory_space<vmem>>, vector<1x8x512xf32>,
    %35 = vector.extract_strided_slice %6 {offsets = [56, 0], sizes = [8, 512], strides = [1, 1]} : vector<64x512xf32> to vector<8x512xf32>
    %c7 = arith.constant 7 : index
    %c0_20 = arith.constant 0 : index
    %c0_21 = arith.constant 0 : index
    %36 = vector.load %arg12[%c7, %c0_20, %c0_21] : memref<8x8x512xf32, #tpu.memory_space<vmem>>, vector<1x8x512xf32>
    %37 = vector.shape_cast %36 : vector<1x8x512xf32> to vector<8x512xf32>
    %38 = vector.shape_cast %35 : vector<8x512xf32> to vector<1x8x512xf32>
    tpu.vector_store %arg12[%c7, %c0_20, %c0_21], %38 {strides = array<i32>} : memref<8x8x512xf32, #tpu.memory_space<vmem>>, vector<1x8x512xf32>,
    %cst_22 = arith.constant 0.000000e+00 : f32
    %39 = vector.broadcast %cst_22 : f32 to vector<8x128xf32>
    %cst_23 = arith.constant 0.000000e+00 : f32
    %40 = vector.broadcast %cst_23 : f32 to vector<8x128xf32>
    %c0_i32 = arith.constant 0 : i32
    %41 = arith.index_cast %c0_i32 : i32 to index
    %c0_24 = arith.constant 0 : index
    %c0_25 = arith.constant 0 : index
    %42 = vector.load %arg12[%41, %c0_24, %c0_25] : memref<8x8x512xf32, #tpu.memory_space<vmem>>, vector<1x8x512xf32>
    %43 = vector.shape_cast %42 : vector<1x8x512xf32> to vector<8x512xf32>
    %44 = arith.truncf %39 : vector<8x128xf32> to vector<8x128xbf16>
    %c0_26 = arith.constant 0 : index
    %c0_27 = arith.constant 0 : index
    %45 = vector.load %arg3[%c0_26, %c0_27] : memref<128x512xbf16, #tpu.memory_space<vmem>>, vector<128x512xbf16>
    %cst_28 = arith.constant dense<0.000000e+00> : vector<8x512xf32>
    %46 = tpu.matmul %44, %45, %cst_28 {dimension_numbers = #tpu.dot_dimension_numbers<[1], [0], [0], [1], [0, 0, 1, 1], [], []>} : vector<8x128xbf16>, vector<128x512xbf16>, vector<8x512xf32> -> vector<8x512xf32>
    %47 = arith.addf %43, %46 : vector<8x512xf32>
    %48 = vector.extract_strided_slice %47 {offsets = [0, 0], sizes = [8, 128], strides = [1, 1]} : vector<8x512xf32> to vector<8x128xf32>
    %49 = arith.negf %48 : vector<8x128xf32>
    %50 = math.exp %49 : vector<8x128xf32>
    %cst_29 = arith.constant 1.000000e+00 : f32
    %51 = vector.broadcast %cst_29 : f32 to vector<8x128xf32>
    %52 = arith.addf %51, %50 : vector<8x128xf32>
    %53 = arith.divf %51, %52 : vector<8x128xf32>
    %54 = vector.extract_strided_slice %47 {offsets = [0, 128], sizes = [8, 128], strides = [1, 1]} : vector<8x512xf32> to vector<8x128xf32>
    %55 = arith.negf %54 : vector<8x128xf32>
    %56 = math.exp %55 : vector<8x128xf32>
    %cst_30 = arith.constant 1.000000e+00 : f32
    %57 = vector.broadcast %cst_30 : f32 to vector<8x128xf32>
    %58 = arith.addf %57, %56 : vector<8x128xf32>
    %59 = arith.divf %57, %58 : vector<8x128xf32>
    %60 = vector.extract_strided_slice %47 {offsets = [0, 256], sizes = [8, 128], strides = [1, 1]} : vector<8x512xf32> to vector<8x128xf32>
    %61 = math.tanh %60 : vector<8x128xf32>
    %62 = vector.extract_strided_slice %47 {offsets = [0, 384], sizes = [8, 128], strides = [1, 1]} : vector<8x512xf32> to vector<8x128xf32>
    %63 = arith.negf %62 : vector<8x128xf32>
    %64 = math.exp %63 : vector<8x128xf32>
    %cst_31 = arith.constant 1.000000e+00 : f32
    %65 = vector.broadcast %cst_31 : f32 to vector<8x128xf32>
    %66 = arith.addf %65, %64 : vector<8x128xf32>
    %67 = arith.divf %65, %66 : vector<8x128xf32>
    %68 = arith.mulf %59, %40 : vector<8x128xf32>
    %69 = arith.mulf %53, %61 : vector<8x128xf32>
    %70 = arith.addf %68, %69 : vector<8x128xf32>
    %71 = math.tanh %70 : vector<8x128xf32>
    %72 = arith.mulf %67, %71 : vector<8x128xf32>
    %c1_i32 = arith.constant 1 : i32
    %73 = arith.index_cast %c1_i32 : i32 to index
    %c0_32 = arith.constant 0 : index
    %c0_33 = arith.constant 0 : index
    %74 = vector.load %arg12[%73, %c0_32, %c0_33] : memref<8x8x512xf32, #tpu.memory_space<vmem>>, vector<1x8x512xf32>
    %75 = vector.shape_cast %74 : vector<1x8x512xf32> to vector<8x512xf32>
    %76 = arith.truncf %72 : vector<8x128xf32> to vector<8x128xbf16>
    %c0_34 = arith.constant 0 : index
    %c0_35 = arith.constant 0 : index
    %77 = vector.load %arg3[%c0_34, %c0_35] : memref<128x512xbf16, #tpu.memory_space<vmem>>, vector<128x512xbf16>
    %cst_36 = arith.constant dense<0.000000e+00> : vector<8x512xf32>
    %78 = tpu.matmul %76, %77, %cst_36 {dimension_numbers = #tpu.dot_dimension_numbers<[1], [0], [0], [1], [0, 0, 1, 1], [], []>} : vector<8x128xbf16>, vector<128x512xbf16>, vector<8x512xf32> -> vector<8x512xf32>
    %79 = arith.addf %75, %78 : vector<8x512xf32>
    %80 = vector.extract_strided_slice %79 {offsets = [0, 0], sizes = [8, 128], strides = [1, 1]} : vector<8x512xf32> to vector<8x128xf32>
    %81 = arith.negf %80 : vector<8x128xf32>
    %82 = math.exp %81 : vector<8x128xf32>
    %cst_37 = arith.constant 1.000000e+00 : f32
    %83 = vector.broadcast %cst_37 : f32 to vector<8x128xf32>
    %84 = arith.addf %83, %82 : vector<8x128xf32>
    %85 = arith.divf %83, %84 : vector<8x128xf32>
    %86 = vector.extract_strided_slice %79 {offsets = [0, 128], sizes = [8, 128], strides = [1, 1]} : vector<8x512xf32> to vector<8x128xf32>
    %87 = arith.negf %86 : vector<8x128xf32>
    %88 = math.exp %87 : vector<8x128xf32>
    %cst_38 = arith.constant 1.000000e+00 : f32
    %89 = vector.broadcast %cst_38 : f32 to vector<8x128xf32>
    %90 = arith.addf %89, %88 : vector<8x128xf32>
    %91 = arith.divf %89, %90 : vector<8x128xf32>
    %92 = vector.extract_strided_slice %79 {offsets = [0, 256], sizes = [8, 128], strides = [1, 1]} : vector<8x512xf32> to vector<8x128xf32>
    %93 = math.tanh %92 : vector<8x128xf32>
    %94 = vector.extract_strided_slice %79 {offsets = [0, 384], sizes = [8, 128], strides = [1, 1]} : vector<8x512xf32> to vector<8x128xf32>
    %95 = arith.negf %94 : vector<8x128xf32>
    %96 = math.exp %95 : vector<8x128xf32>
    %cst_39 = arith.constant 1.000000e+00 : f32
    %97 = vector.broadcast %cst_39 : f32 to vector<8x128xf32>
    %98 = arith.addf %97, %96 : vector<8x128xf32>
    %99 = arith.divf %97, %98 : vector<8x128xf32>
    %100 = arith.mulf %91, %70 : vector<8x128xf32>
    %101 = arith.mulf %85, %93 : vector<8x128xf32>
    %102 = arith.addf %100, %101 : vector<8x128xf32>
    %103 = math.tanh %102 : vector<8x128xf32>
    %104 = arith.mulf %99, %103 : vector<8x128xf32>
    %c2_i32 = arith.constant 2 : i32
    %105 = arith.index_cast %c2_i32 : i32 to index
    %c0_40 = arith.constant 0 : index
    %c0_41 = arith.constant 0 : index
    %106 = vector.load %arg12[%105, %c0_40, %c0_41] : memref<8x8x512xf32, #tpu.memory_space<vmem>>, vector<1x8x512xf32>
    %107 = vector.shape_cast %106 : vector<1x8x512xf32> to vector<8x512xf32>
    %108 = arith.truncf %104 : vector<8x128xf32> to vector<8x128xbf16>
    %c0_42 = arith.constant 0 : index
    %c0_43 = arith.constant 0 : index
    %109 = vector.load %arg3[%c0_42, %c0_43] : memref<128x512xbf16, #tpu.memory_space<vmem>>, vector<128x512xbf16>
    %cst_44 = arith.constant dense<0.000000e+00> : vector<8x512xf32>
    %110 = tpu.matmul %108, %109, %cst_44 {dimension_numbers = #tpu.dot_dimension_numbers<[1], [0], [0], [1], [0, 0, 1, 1], [], []>} : vector<8x128xbf16>, vector<128x512xbf16>, vector<8x512xf32> -> vector<8x512xf32>
    %111 = arith.addf %107, %110 : vector<8x512xf32>
    %112 = vector.extract_strided_slice %111 {offsets = [0, 0], sizes = [8, 128], strides = [1, 1]} : vector<8x512xf32> to vector<8x128xf32>
    %113 = arith.negf %112 : vector<8x128xf32>
    %114 = math.exp %113 : vector<8x128xf32>
    %cst_45 = arith.constant 1.000000e+00 : f32
    %115 = vector.broadcast %cst_45 : f32 to vector<8x128xf32>
    %116 = arith.addf %115, %114 : vector<8x128xf32>
    %117 = arith.divf %115, %116 : vector<8x128xf32>
    %118 = vector.extract_strided_slice %111 {offsets = [0, 128], sizes = [8, 128], strides = [1, 1]} : vector<8x512xf32> to vector<8x128xf32>
    %119 = arith.negf %118 : vector<8x128xf32>
    %120 = math.exp %119 : vector<8x128xf32>
    %cst_46 = arith.constant 1.000000e+00 : f32
    %121 = vector.broadcast %cst_46 : f32 to vector<8x128xf32>
    %122 = arith.addf %121, %120 : vector<8x128xf32>
    %123 = arith.divf %121, %122 : vector<8x128xf32>
    %124 = vector.extract_strided_slice %111 {offsets = [0, 256], sizes = [8, 128], strides = [1, 1]} : vector<8x512xf32> to vector<8x128xf32>
    %125 = math.tanh %124 : vector<8x128xf32>
    %126 = vector.extract_strided_slice %111 {offsets = [0, 384], sizes = [8, 128], strides = [1, 1]} : vector<8x512xf32> to vector<8x128xf32>
    %127 = arith.negf %126 : vector<8x128xf32>
    %128 = math.exp %127 : vector<8x128xf32>
    %cst_47 = arith.constant 1.000000e+00 : f32
    %129 = vector.broadcast %cst_47 : f32 to vector<8x128xf32>
    %130 = arith.addf %129, %128 : vector<8x128xf32>
    %131 = arith.divf %129, %130 : vector<8x128xf32>
    %132 = arith.mulf %123, %102 : vector<8x128xf32>
    %133 = arith.mulf %117, %125 : vector<8x128xf32>
    %134 = arith.addf %132, %133 : vector<8x128xf32>
    %135 = math.tanh %134 : vector<8x128xf32>
    %136 = arith.mulf %131, %135 : vector<8x128xf32>
    %c3_i32 = arith.constant 3 : i32
    %137 = arith.index_cast %c3_i32 : i32 to index
    %c0_48 = arith.constant 0 : index
    %c0_49 = arith.constant 0 : index
    %138 = vector.load %arg12[%137, %c0_48, %c0_49] : memref<8x8x512xf32, #tpu.memory_space<vmem>>, vector<1x8x512xf32>
    %139 = vector.shape_cast %138 : vector<1x8x512xf32> to vector<8x512xf32>
    %140 = arith.truncf %136 : vector<8x128xf32> to vector<8x128xbf16>
    %c0_50 = arith.constant 0 : index
    %c0_51 = arith.constant 0 : index
    %141 = vector.load %arg3[%c0_50, %c0_51] : memref<128x512xbf16, #tpu.memory_space<vmem>>, vector<128x512xbf16>
    %cst_52 = arith.constant dense<0.000000e+00> : vector<8x512xf32>
    %142 = tpu.matmul %140, %141, %cst_52 {dimension_numbers = #tpu.dot_dimension_numbers<[1], [0], [0], [1], [0, 0, 1, 1], [], []>} : vector<8x128xbf16>, vector<128x512xbf16>, vector<8x512xf32> -> vector<8x512xf32>
    %143 = arith.addf %139, %142 : vector<8x512xf32>
    %144 = vector.extract_strided_slice %143 {offsets = [0, 0], sizes = [8, 128], strides = [1, 1]} : vector<8x512xf32> to vector<8x128xf32>
    %145 = arith.negf %144 : vector<8x128xf32>
    %146 = math.exp %145 : vector<8x128xf32>
    %cst_53 = arith.constant 1.000000e+00 : f32
    %147 = vector.broadcast %cst_53 : f32 to vector<8x128xf32>
    %148 = arith.addf %147, %146 : vector<8x128xf32>
    %149 = arith.divf %147, %148 : vector<8x128xf32>
    %150 = vector.extract_strided_slice %143 {offsets = [0, 128], sizes = [8, 128], strides = [1, 1]} : vector<8x512xf32> to vector<8x128xf32>
    %151 = arith.negf %150 : vector<8x128xf32>
    %152 = math.exp %151 : vector<8x128xf32>
    %cst_54 = arith.constant 1.000000e+00 : f32
    %153 = vector.broadcast %cst_54 : f32 to vector<8x128xf32>
    %154 = arith.addf %153, %152 : vector<8x128xf32>
    %155 = arith.divf %153, %154 : vector<8x128xf32>
    %156 = vector.extract_strided_slice %143 {offsets = [0, 256], sizes = [8, 128], strides = [1, 1]} : vector<8x512xf32> to vector<8x128xf32>
    %157 = math.tanh %156 : vector<8x128xf32>
    %158 = vector.extract_strided_slice %143 {offsets = [0, 384], sizes = [8, 128], strides = [1, 1]} : vector<8x512xf32> to vector<8x128xf32>
    %159 = arith.negf %158 : vector<8x128xf32>
    %160 = math.exp %159 : vector<8x128xf32>
    %cst_55 = arith.constant 1.000000e+00 : f32
    %161 = vector.broadcast %cst_55 : f32 to vector<8x128xf32>
    %162 = arith.addf %161, %160 : vector<8x128xf32>
    %163 = arith.divf %161, %162 : vector<8x128xf32>
    %164 = arith.mulf %155, %134 : vector<8x128xf32>
    %165 = arith.mulf %149, %157 : vector<8x128xf32>
    %166 = arith.addf %164, %165 : vector<8x128xf32>
    %167 = math.tanh %166 : vector<8x128xf32>
    %168 = arith.mulf %163, %167 : vector<8x128xf32>
    %c4_i32 = arith.constant 4 : i32
    %169 = arith.index_cast %c4_i32 : i32 to index
    %c0_56 = arith.constant 0 : index
    %c0_57 = arith.constant 0 : index
    %170 = vector.load %arg12[%169, %c0_56, %c0_57] : memref<8x8x512xf32, #tpu.memory_space<vmem>>, vector<1x8x512xf32>
    %171 = vector.shape_cast %170 : vector<1x8x512xf32> to vector<8x512xf32>
    %172 = arith.truncf %168 : vector<8x128xf32> to vector<8x128xbf16>
    %c0_58 = arith.constant 0 : index
    %c0_59 = arith.constant 0 : index
    %173 = vector.load %arg3[%c0_58, %c0_59] : memref<128x512xbf16, #tpu.memory_space<vmem>>, vector<128x512xbf16>
    %cst_60 = arith.constant dense<0.000000e+00> : vector<8x512xf32>
    %174 = tpu.matmul %172, %173, %cst_60 {dimension_numbers = #tpu.dot_dimension_numbers<[1], [0], [0], [1], [0, 0, 1, 1], [], []>} : vector<8x128xbf16>, vector<128x512xbf16>, vector<8x512xf32> -> vector<8x512xf32>
    %175 = arith.addf %171, %174 : vector<8x512xf32>
    %176 = vector.extract_strided_slice %175 {offsets = [0, 0], sizes = [8, 128], strides = [1, 1]} : vector<8x512xf32> to vector<8x128xf32>
    %177 = arith.negf %176 : vector<8x128xf32>
    %178 = math.exp %177 : vector<8x128xf32>
    %cst_61 = arith.constant 1.000000e+00 : f32
    %179 = vector.broadcast %cst_61 : f32 to vector<8x128xf32>
    %180 = arith.addf %179, %178 : vector<8x128xf32>
    %181 = arith.divf %179, %180 : vector<8x128xf32>
    %182 = vector.extract_strided_slice %175 {offsets = [0, 128], sizes = [8, 128], strides = [1, 1]} : vector<8x512xf32> to vector<8x128xf32>
    %183 = arith.negf %182 : vector<8x128xf32>
    %184 = math.exp %183 : vector<8x128xf32>
    %cst_62 = arith.constant 1.000000e+00 : f32
    %185 = vector.broadcast %cst_62 : f32 to vector<8x128xf32>
    %186 = arith.addf %185, %184 : vector<8x128xf32>
    %187 = arith.divf %185, %186 : vector<8x128xf32>
    %188 = vector.extract_strided_slice %175 {offsets = [0, 256], sizes = [8, 128], strides = [1, 1]} : vector<8x512xf32> to vector<8x128xf32>
    %189 = math.tanh %188 : vector<8x128xf32>
    %190 = vector.extract_strided_slice %175 {offsets = [0, 384], sizes = [8, 128], strides = [1, 1]} : vector<8x512xf32> to vector<8x128xf32>
    %191 = arith.negf %190 : vector<8x128xf32>
    %192 = math.exp %191 : vector<8x128xf32>
    %cst_63 = arith.constant 1.000000e+00 : f32
    %193 = vector.broadcast %cst_63 : f32 to vector<8x128xf32>
    %194 = arith.addf %193, %192 : vector<8x128xf32>
    %195 = arith.divf %193, %194 : vector<8x128xf32>
    %196 = arith.mulf %187, %166 : vector<8x128xf32>
    %197 = arith.mulf %181, %189 : vector<8x128xf32>
    %198 = arith.addf %196, %197 : vector<8x128xf32>
    %199 = math.tanh %198 : vector<8x128xf32>
    %200 = arith.mulf %195, %199 : vector<8x128xf32>
    %c5_i32 = arith.constant 5 : i32
    %201 = arith.index_cast %c5_i32 : i32 to index
    %c0_64 = arith.constant 0 : index
    %c0_65 = arith.constant 0 : index
    %202 = vector.load %arg12[%201, %c0_64, %c0_65] : memref<8x8x512xf32, #tpu.memory_space<vmem>>, vector<1x8x512xf32>
    %203 = vector.shape_cast %202 : vector<1x8x512xf32> to vector<8x512xf32>
    %204 = arith.truncf %200 : vector<8x128xf32> to vector<8x128xbf16>
    %c0_66 = arith.constant 0 : index
    %c0_67 = arith.constant 0 : index
    %205 = vector.load %arg3[%c0_66, %c0_67] : memref<128x512xbf16, #tpu.memory_space<vmem>>, vector<128x512xbf16>
    %cst_68 = arith.constant dense<0.000000e+00> : vector<8x512xf32>
    %206 = tpu.matmul %204, %205, %cst_68 {dimension_numbers = #tpu.dot_dimension_numbers<[1], [0], [0], [1], [0, 0, 1, 1], [], []>} : vector<8x128xbf16>, vector<128x512xbf16>, vector<8x512xf32> -> vector<8x512xf32>
    %207 = arith.addf %203, %206 : vector<8x512xf32>
    %208 = vector.extract_strided_slice %207 {offsets = [0, 0], sizes = [8, 128], strides = [1, 1]} : vector<8x512xf32> to vector<8x128xf32>
    %209 = arith.negf %208 : vector<8x128xf32>
    %210 = math.exp %209 : vector<8x128xf32>
    %cst_69 = arith.constant 1.000000e+00 : f32
    %211 = vector.broadcast %cst_69 : f32 to vector<8x128xf32>
    %212 = arith.addf %211, %210 : vector<8x128xf32>
    %213 = arith.divf %211, %212 : vector<8x128xf32>
    %214 = vector.extract_strided_slice %207 {offsets = [0, 128], sizes = [8, 128], strides = [1, 1]} : vector<8x512xf32> to vector<8x128xf32>
    %215 = arith.negf %214 : vector<8x128xf32>
    %216 = math.exp %215 : vector<8x128xf32>
    %cst_70 = arith.constant 1.000000e+00 : f32
    %217 = vector.broadcast %cst_70 : f32 to vector<8x128xf32>
    %218 = arith.addf %217, %216 : vector<8x128xf32>
    %219 = arith.divf %217, %218 : vector<8x128xf32>
    %220 = vector.extract_strided_slice %207 {offsets = [0, 256], sizes = [8, 128], strides = [1, 1]} : vector<8x512xf32> to vector<8x128xf32>
    %221 = math.tanh %220 : vector<8x128xf32>
    %222 = vector.extract_strided_slice %207 {offsets = [0, 384], sizes = [8, 128], strides = [1, 1]} : vector<8x512xf32> to vector<8x128xf32>
    %223 = arith.negf %222 : vector<8x128xf32>
    %224 = math.exp %223 : vector<8x128xf32>
    %cst_71 = arith.constant 1.000000e+00 : f32
    %225 = vector.broadcast %cst_71 : f32 to vector<8x128xf32>
    %226 = arith.addf %225, %224 : vector<8x128xf32>
    %227 = arith.divf %225, %226 : vector<8x128xf32>
    %228 = arith.mulf %219, %198 : vector<8x128xf32>
    %229 = arith.mulf %213, %221 : vector<8x128xf32>
    %230 = arith.addf %228, %229 : vector<8x128xf32>
    %231 = math.tanh %230 : vector<8x128xf32>
    %232 = arith.mulf %227, %231 : vector<8x128xf32>
    %c6_i32 = arith.constant 6 : i32
    %233 = arith.index_cast %c6_i32 : i32 to index
    %c0_72 = arith.constant 0 : index
    %c0_73 = arith.constant 0 : index
    %234 = vector.load %arg12[%233, %c0_72, %c0_73] : memref<8x8x512xf32, #tpu.memory_space<vmem>>, vector<1x8x512xf32>
    %235 = vector.shape_cast %234 : vector<1x8x512xf32> to vector<8x512xf32>
    %236 = arith.truncf %232 : vector<8x128xf32> to vector<8x128xbf16>
    %c0_74 = arith.constant 0 : index
    %c0_75 = arith.constant 0 : index
    %237 = vector.load %arg3[%c0_74, %c0_75] : memref<128x512xbf16, #tpu.memory_space<vmem>>, vector<128x512xbf16>
    %cst_76 = arith.constant dense<0.000000e+00> : vector<8x512xf32>
    %238 = tpu.matmul %236, %237, %cst_76 {dimension_numbers = #tpu.dot_dimension_numbers<[1], [0], [0], [1], [0, 0, 1, 1], [], []>} : vector<8x128xbf16>, vector<128x512xbf16>, vector<8x512xf32> -> vector<8x512xf32>
    %239 = arith.addf %235, %238 : vector<8x512xf32>
    %240 = vector.extract_strided_slice %239 {offsets = [0, 0], sizes = [8, 128], strides = [1, 1]} : vector<8x512xf32> to vector<8x128xf32>
    %241 = arith.negf %240 : vector<8x128xf32>
    %242 = math.exp %241 : vector<8x128xf32>
    %cst_77 = arith.constant 1.000000e+00 : f32
    %243 = vector.broadcast %cst_77 : f32 to vector<8x128xf32>
    %244 = arith.addf %243, %242 : vector<8x128xf32>
    %245 = arith.divf %243, %244 : vector<8x128xf32>
    %246 = vector.extract_strided_slice %239 {offsets = [0, 128], sizes = [8, 128], strides = [1, 1]} : vector<8x512xf32> to vector<8x128xf32>
    %247 = arith.negf %246 : vector<8x128xf32>
    %248 = math.exp %247 : vector<8x128xf32>
    %cst_78 = arith.constant 1.000000e+00 : f32
    %249 = vector.broadcast %cst_78 : f32 to vector<8x128xf32>
    %250 = arith.addf %249, %248 : vector<8x128xf32>
    %251 = arith.divf %249, %250 : vector<8x128xf32>
    %252 = vector.extract_strided_slice %239 {offsets = [0, 256], sizes = [8, 128], strides = [1, 1]} : vector<8x512xf32> to vector<8x128xf32>
    %253 = math.tanh %252 : vector<8x128xf32>
    %254 = vector.extract_strided_slice %239 {offsets = [0, 384], sizes = [8, 128], strides = [1, 1]} : vector<8x512xf32> to vector<8x128xf32>
    %255 = arith.negf %254 : vector<8x128xf32>
    %256 = math.exp %255 : vector<8x128xf32>
    %cst_79 = arith.constant 1.000000e+00 : f32
    %257 = vector.broadcast %cst_79 : f32 to vector<8x128xf32>
    %258 = arith.addf %257, %256 : vector<8x128xf32>
    %259 = arith.divf %257, %258 : vector<8x128xf32>
    %260 = arith.mulf %251, %230 : vector<8x128xf32>
    %261 = arith.mulf %245, %253 : vector<8x128xf32>
    %262 = arith.addf %260, %261 : vector<8x128xf32>
    %263 = math.tanh %262 : vector<8x128xf32>
    %264 = arith.mulf %259, %263 : vector<8x128xf32>
    %c7_i32 = arith.constant 7 : i32
    %265 = arith.index_cast %c7_i32 : i32 to index
    %c0_80 = arith.constant 0 : index
    %c0_81 = arith.constant 0 : index
    %266 = vector.load %arg12[%265, %c0_80, %c0_81] : memref<8x8x512xf32, #tpu.memory_space<vmem>>, vector<1x8x512xf32>
    %267 = vector.shape_cast %266 : vector<1x8x512xf32> to vector<8x512xf32>
    %268 = arith.truncf %264 : vector<8x128xf32> to vector<8x128xbf16>
    %c0_82 = arith.constant 0 : index
    %c0_83 = arith.constant 0 : index
    %269 = vector.load %arg3[%c0_82, %c0_83] : memref<128x512xbf16, #tpu.memory_space<vmem>>, vector<128x512xbf16>
    %cst_84 = arith.constant dense<0.000000e+00> : vector<8x512xf32>
    %270 = tpu.matmul %268, %269, %cst_84 {dimension_numbers = #tpu.dot_dimension_numbers<[1], [0], [0], [1], [0, 0, 1, 1], [], []>} : vector<8x128xbf16>, vector<128x512xbf16>, vector<8x512xf32> -> vector<8x512xf32>
    %271 = arith.addf %267, %270 : vector<8x512xf32>
    %272 = vector.extract_strided_slice %271 {offsets = [0, 0], sizes = [8, 128], strides = [1, 1]} : vector<8x512xf32> to vector<8x128xf32>
    %273 = arith.negf %272 : vector<8x128xf32>
    %274 = math.exp %273 : vector<8x128xf32>
    %cst_85 = arith.constant 1.000000e+00 : f32
    %275 = vector.broadcast %cst_85 : f32 to vector<8x128xf32>
    %276 = arith.addf %275, %274 : vector<8x128xf32>
    %277 = arith.divf %275, %276 : vector<8x128xf32>
    %278 = vector.extract_strided_slice %271 {offsets = [0, 128], sizes = [8, 128], strides = [1, 1]} : vector<8x512xf32> to vector<8x128xf32>
    %279 = arith.negf %278 : vector<8x128xf32>
    %280 = math.exp %279 : vector<8x128xf32>
    %cst_86 = arith.constant 1.000000e+00 : f32
    %281 = vector.broadcast %cst_86 : f32 to vector<8x128xf32>
    %282 = arith.addf %281, %280 : vector<8x128xf32>
    %283 = arith.divf %281, %282 : vector<8x128xf32>
    %284 = vector.extract_strided_slice %271 {offsets = [0, 256], sizes = [8, 128], strides = [1, 1]} : vector<8x512xf32> to vector<8x128xf32>
    %285 = math.tanh %284 : vector<8x128xf32>
    %286 = vector.extract_strided_slice %271 {offsets = [0, 384], sizes = [8, 128], strides = [1, 1]} : vector<8x512xf32> to vector<8x128xf32>
    %287 = arith.negf %286 : vector<8x128xf32>
    %288 = math.exp %287 : vector<8x128xf32>
    %cst_87 = arith.constant 1.000000e+00 : f32
    %289 = vector.broadcast %cst_87 : f32 to vector<8x128xf32>
    %290 = arith.addf %289, %288 : vector<8x128xf32>
    %291 = arith.divf %289, %290 : vector<8x128xf32>
    %292 = arith.mulf %283, %262 : vector<8x128xf32>
    %293 = arith.mulf %277, %285 : vector<8x128xf32>
    %294 = arith.addf %292, %293 : vector<8x128xf32>
    %295 = math.tanh %294 : vector<8x128xf32>
    %296 = arith.mulf %291, %295 : vector<8x128xf32>
    %c8_i32 = arith.constant 8 : i32
    %297 = arith.truncf %296 : vector<8x128xf32> to vector<8x128xbf16>
    %c0_88 = arith.constant 0 : index
    %c0_89 = arith.constant 0 : index
    %298 = vector.load %arg5[%c0_88, %c0_89] : memref<128x128xbf16, #tpu.memory_space<vmem>>, vector<128x128xbf16>
    %cst_90 = arith.constant dense<0.000000e+00> : vector<8x128xf32>
    %299 = tpu.matmul %297, %298, %cst_90 {dimension_numbers = #tpu.dot_dimension_numbers<[1], [0], [0], [1], [0, 0, 1, 1], [], []>} : vector<8x128xbf16>, vector<128x128xbf16>, vector<8x128xf32> -> vector<8x128xf32>
    %c0_91 = arith.constant 0 : index
    %c0_92 = arith.constant 0 : index
    %300 = vector.load %arg6[%c0_91, %c0_92] : memref<1x128xf32, #tpu.memory_space<vmem>>, vector<1x128xf32>
    %301 = vector.broadcast %300 : vector<1x128xf32> to vector<8x128xf32>
    %302 = arith.addf %299, %301 : vector<8x128xf32>
    %303 = arith.negf %302 : vector<8x128xf32>
    %304 = math.exp %303 : vector<8x128xf32>
    %cst_93 = arith.constant 1.000000e+00 : f32
    %305 = vector.broadcast %cst_93 : f32 to vector<8x128xf32>
    %306 = arith.addf %305, %304 : vector<8x128xf32>
    %307 = arith.divf %305, %306 : vector<8x128xf32>
    %c0_94 = arith.constant 0 : index
    %c0_95 = arith.constant 0 : index
    %308 = vector.load %arg1[%c0_94, %c0_95] : memref<8x128xf32, #tpu.memory_space<vmem>>, vector<8x128xf32>
    %309 = arith.mulf %308, %307 : vector<8x128xf32>
    %310 = arith.truncf %309 : vector<8x128xf32> to vector<8x128xbf16>
    %c0_96 = arith.constant 0 : index
    %c0_97 = arith.constant 0 : index
    %311 = vector.load %arg7[%c0_96, %c0_97] : memref<128x256xbf16, #tpu.memory_space<vmem>>, vector<128x256xbf16>
    %cst_98 = arith.constant dense<0.000000e+00> : vector<8x256xf32>
    %312 = tpu.matmul %310, %311, %cst_98 {dimension_numbers = #tpu.dot_dimension_numbers<[1], [0], [0], [1], [0, 0, 1, 1], [], []>} : vector<8x128xbf16>, vector<128x256xbf16>, vector<8x256xf32> -> vector<8x256xf32>
    %c0_99 = arith.constant 0 : index
    %c0_100 = arith.constant 0 : index
    %313 = vector.load %arg8[%c0_99, %c0_100] : memref<1x256xf32, #tpu.memory_space<vmem>>, vector<1x256xf32>
    %314 = vector.broadcast %313 : vector<1x256xf32> to vector<8x256xf32>
    %315 = arith.addf %312, %314 : vector<8x256xf32>
    %cst_101 = arith.constant 0.000000e+00 : f32
    %316 = vector.broadcast %cst_101 : f32 to vector<8x256xf32>
    %317 = arith.maximumf %315, %316 : vector<8x256xf32>
    %318 = arith.truncf %317 : vector<8x256xf32> to vector<8x256xbf16>
    %c0_102 = arith.constant 0 : index
    %c0_103 = arith.constant 0 : index
    %319 = vector.load %arg9[%c0_102, %c0_103] : memref<256x128xbf16, #tpu.memory_space<vmem>>, vector<256x128xbf16>
    %cst_104 = arith.constant dense<0.000000e+00> : vector<8x128xf32>
    %320 = tpu.matmul %318, %319, %cst_104 {dimension_numbers = #tpu.dot_dimension_numbers<[1], [0], [0], [1], [0, 0, 1, 1], [], []>} : vector<8x256xbf16>, vector<256x128xbf16>, vector<8x128xf32> -> vector<8x128xf32>
    %c0_105 = arith.constant 0 : index
    %c0_106 = arith.constant 0 : index
    %321 = vector.load %arg10[%c0_105, %c0_106] : memref<1x128xf32, #tpu.memory_space<vmem>>, vector<1x128xf32>
    %322 = vector.broadcast %321 : vector<1x128xf32> to vector<8x128xf32>
    %323 = arith.addf %320, %322 : vector<8x128xf32>
    %c0_107 = arith.constant 0 : index
    %c0_108 = arith.constant 0 : index
    %324 = vector.load %arg11[%c0_107, %c0_108] : memref<8x128xf32, #tpu.memory_space<vmem>>, vector<8x128xf32>
    tpu.vector_store %arg11[%c0_107, %c0_108], %323 {strides = array<i32>} : memref<8x128xf32, #tpu.memory_space<vmem>>, vector<8x128xf32>,
    return
  }
}

module attributes {stable_mosaic.version = 11 : i64} {
  func.func @_conv_stack_kernel(%arg0: i32, %arg1: memref<1x256x4xf32, #tpu.memory_space<vmem>>, %arg2: memref<36x128xbf16, #tpu.memory_space<vmem>>, %arg3: memref<1x128xf32, #tpu.memory_space<vmem>>, %arg4: memref<1152x128xbf16, #tpu.memory_space<vmem>>, %arg5: memref<1x128xf32, #tpu.memory_space<vmem>>, %arg6: memref<1152x128xbf16, #tpu.memory_space<vmem>>, %arg7: memref<1x128xf32, #tpu.memory_space<vmem>>, %arg8: memref<1152x128xbf16, #tpu.memory_space<vmem>>, %arg9: memref<1x128xf32, #tpu.memory_space<vmem>>, %arg10: memref<1x1x128xf32, #tpu.memory_space<vmem>>, %arg11: memref<196x36xf32, #tpu.memory_space<vmem>>, %arg12: memref<36x1152xf32, #tpu.memory_space<vmem>>, %arg13: memref<16x1152xf32, #tpu.memory_space<vmem>>, %arg14: memref<1x1152xf32, #tpu.memory_space<vmem>>, %arg15: memref<196x128xf32, #tpu.memory_space<vmem>>, %arg16: memref<36x128xf32, #tpu.memory_space<vmem>>, %arg17: memref<16x128xf32, #tpu.memory_space<vmem>>) attributes {dimension_semantics = [#tpu.dimension_semantics<parallel>], iteration_bounds = array<i64: 2>, scalar_prefetch = 0 : i64, scratch_operands = 7 : i64, tpu.core_type = #tpu.core_type<tc>, window_params = [{transform_indices = @transform_0, window_bounds = array<i64: 1, 256, 4>}, {pipeline_mode = #tpu.pipeline_mode<synchronous>, transform_indices = @transform_1, window_bounds = array<i64: 36, 128>}, {pipeline_mode = #tpu.pipeline_mode<synchronous>, transform_indices = @transform_2, window_bounds = array<i64: 1, 128>}, {pipeline_mode = #tpu.pipeline_mode<synchronous>, transform_indices = @transform_3, window_bounds = array<i64: 1152, 128>}, {pipeline_mode = #tpu.pipeline_mode<synchronous>, transform_indices = @transform_4, window_bounds = array<i64: 1, 128>}, {pipeline_mode = #tpu.pipeline_mode<synchronous>, transform_indices = @transform_5, window_bounds = array<i64: 1152, 128>}, {pipeline_mode = #tpu.pipeline_mode<synchronous>, transform_indices = @transform_6, window_bounds = array<i64: 1, 128>}, {pipeline_mode = #tpu.pipeline_mode<synchronous>, transform_indices = @transform_7, window_bounds = array<i64: 1152, 128>}, {pipeline_mode = #tpu.pipeline_mode<synchronous>, transform_indices = @transform_8, window_bounds = array<i64: 1, 128>}, {transform_indices = @transform_9, window_bounds = array<i64: 1, 1, 128>}]} {
    %c0 = arith.constant 0 : index
    %c0_0 = arith.constant 0 : index
    %c0_1 = arith.constant 0 : index
    %0 = vector.load %arg1[%c0, %c0_0, %c0_1] : memref<1x256x4xf32, #tpu.memory_space<vmem>>, vector<1x14x4xf32>
    %1 = vector.shape_cast %0 : vector<1x14x4xf32> to vector<14x4xf32>
    %c0_2 = arith.constant 0 : index
    %c0_3 = arith.constant 0 : index
    %2 = vector.load %arg11[%c0_2, %c0_3] : memref<196x36xf32, #tpu.memory_space<vmem>>, vector<14x4xf32>
    tpu.vector_store %arg11[%c0_2, %c0_3], %1 {strides = array<i32>} : memref<196x36xf32, #tpu.memory_space<vmem>>, vector<14x4xf32>,
    %c0_4 = arith.constant 0 : index
    %c1 = arith.constant 1 : index
    %c0_5 = arith.constant 0 : index
    %3 = vector.load %arg1[%c0_4, %c1, %c0_5] : memref<1x256x4xf32, #tpu.memory_space<vmem>>, vector<1x14x4xf32>
    %4 = vector.shape_cast %3 : vector<1x14x4xf32> to vector<14x4xf32>
    %c0_6 = arith.constant 0 : index
    %c4 = arith.constant 4 : index
    %5 = vector.load %arg11[%c0_6, %c4] : memref<196x36xf32, #tpu.memory_space<vmem>>, vector<14x4xf32>
    tpu.vector_store %arg11[%c0_6, %c4], %4 {strides = array<i32>} : memref<196x36xf32, #tpu.memory_space<vmem>>, vector<14x4xf32>,
    %c0_7 = arith.constant 0 : index
    %c2 = arith.constant 2 : index
    %c0_8 = arith.constant 0 : index
    %6 = vector.load %arg1[%c0_7, %c2, %c0_8] : memref<1x256x4xf32, #tpu.memory_space<vmem>>, vector<1x14x4xf32>
    %7 = vector.shape_cast %6 : vector<1x14x4xf32> to vector<14x4xf32>
    %c0_9 = arith.constant 0 : index
    %c8 = arith.constant 8 : index
    %8 = vector.load %arg11[%c0_9, %c8] : memref<196x36xf32, #tpu.memory_space<vmem>>, vector<14x4xf32>
    tpu.vector_store %arg11[%c0_9, %c8], %7 {strides = array<i32>} : memref<196x36xf32, #tpu.memory_space<vmem>>, vector<14x4xf32>,
    %c0_10 = arith.constant 0 : index
    %c16 = arith.constant 16 : index
    %c0_11 = arith.constant 0 : index
    %9 = vector.load %arg1[%c0_10, %c16, %c0_11] : memref<1x256x4xf32, #tpu.memory_space<vmem>>, vector<1x14x4xf32>
    %10 = vector.shape_cast %9 : vector<1x14x4xf32> to vector<14x4xf32>
    %c0_12 = arith.constant 0 : index
    %c12 = arith.constant 12 : index
    %11 = vector.load %arg11[%c0_12, %c12] : memref<196x36xf32, #tpu.memory_space<vmem>>, vector<14x4xf32>
    tpu.vector_store %arg11[%c0_12, %c12], %10 {strides = array<i32>} : memref<196x36xf32, #tpu.memory_space<vmem>>, vector<14x4xf32>,
    %c0_13 = arith.constant 0 : index
    %c17 = arith.constant 17 : index
    %c0_14 = arith.constant 0 : index
    %12 = vector.load %arg1[%c0_13, %c17, %c0_14] : memref<1x256x4xf32, #tpu.memory_space<vmem>>, vector<1x14x4xf32>
    %13 = vector.shape_cast %12 : vector<1x14x4xf32> to vector<14x4xf32>
    %c0_15 = arith.constant 0 : index
    %c16_16 = arith.constant 16 : index
    %14 = vector.load %arg11[%c0_15, %c16_16] : memref<196x36xf32, #tpu.memory_space<vmem>>, vector<14x4xf32>
    tpu.vector_store %arg11[%c0_15, %c16_16], %13 {strides = array<i32>} : memref<196x36xf32, #tpu.memory_space<vmem>>, vector<14x4xf32>,
    %c0_17 = arith.constant 0 : index
    %c18 = arith.constant 18 : index
    %c0_18 = arith.constant 0 : index
    %15 = vector.load %arg1[%c0_17, %c18, %c0_18] : memref<1x256x4xf32, #tpu.memory_space<vmem>>, vector<1x14x4xf32>
    %16 = vector.shape_cast %15 : vector<1x14x4xf32> to vector<14x4xf32>
    %c0_19 = arith.constant 0 : index
    %c20 = arith.constant 20 : index
    %17 = vector.load %arg11[%c0_19, %c20] : memref<196x36xf32, #tpu.memory_space<vmem>>, vector<14x4xf32>
    tpu.vector_store %arg11[%c0_19, %c20], %16 {strides = array<i32>} : memref<196x36xf32, #tpu.memory_space<vmem>>, vector<14x4xf32>,
    %c0_20 = arith.constant 0 : index
    %c32 = arith.constant 32 : index
    %c0_21 = arith.constant 0 : index
    %18 = vector.load %arg1[%c0_20, %c32, %c0_21] : memref<1x256x4xf32, #tpu.memory_space<vmem>>, vector<1x14x4xf32>
    %19 = vector.shape_cast %18 : vector<1x14x4xf32> to vector<14x4xf32>
    %c0_22 = arith.constant 0 : index
    %c24 = arith.constant 24 : index
    %20 = vector.load %arg11[%c0_22, %c24] : memref<196x36xf32, #tpu.memory_space<vmem>>, vector<14x4xf32>
    tpu.vector_store %arg11[%c0_22, %c24], %19 {strides = array<i32>} : memref<196x36xf32, #tpu.memory_space<vmem>>, vector<14x4xf32>,
    %c0_23 = arith.constant 0 : index
    %c33 = arith.constant 33 : index
    %c0_24 = arith.constant 0 : index
    %21 = vector.load %arg1[%c0_23, %c33, %c0_24] : memref<1x256x4xf32, #tpu.memory_space<vmem>>, vector<1x14x4xf32>
    %22 = vector.shape_cast %21 : vector<1x14x4xf32> to vector<14x4xf32>
    %c0_25 = arith.constant 0 : index
    %c28 = arith.constant 28 : index
    %23 = vector.load %arg11[%c0_25, %c28] : memref<196x36xf32, #tpu.memory_space<vmem>>, vector<14x4xf32>
    tpu.vector_store %arg11[%c0_25, %c28], %22 {strides = array<i32>} : memref<196x36xf32, #tpu.memory_space<vmem>>, vector<14x4xf32>,
    %c0_26 = arith.constant 0 : index
    %c34 = arith.constant 34 : index
    %c0_27 = arith.constant 0 : index
    %24 = vector.load %arg1[%c0_26, %c34, %c0_27] : memref<1x256x4xf32, #tpu.memory_space<vmem>>, vector<1x14x4xf32>
    %25 = vector.shape_cast %24 : vector<1x14x4xf32> to vector<14x4xf32>
    %c0_28 = arith.constant 0 : index
    %c32_29 = arith.constant 32 : index
    %26 = vector.load %arg11[%c0_28, %c32_29] : memref<196x36xf32, #tpu.memory_space<vmem>>, vector<14x4xf32>
    tpu.vector_store %arg11[%c0_28, %c32_29], %25 {strides = array<i32>} : memref<196x36xf32, #tpu.memory_space<vmem>>, vector<14x4xf32>,
    %c0_30 = arith.constant 0 : index
    %c16_31 = arith.constant 16 : index
    %c0_32 = arith.constant 0 : index
    %27 = vector.load %arg1[%c0_30, %c16_31, %c0_32] : memref<1x256x4xf32, #tpu.memory_space<vmem>>, vector<1x14x4xf32>
    %28 = vector.shape_cast %27 : vector<1x14x4xf32> to vector<14x4xf32>
    %c14 = arith.constant 14 : index
    %c0_33 = arith.constant 0 : index
    %29 = vector.load %arg11[%c14, %c0_33] : memref<196x36xf32, #tpu.memory_space<vmem>>, vector<14x4xf32>
    tpu.vector_store %arg11[%c14, %c0_33], %28 {strides = array<i32>} : memref<196x36xf32, #tpu.memory_space<vmem>>, vector<14x4xf32>,
    %c0_34 = arith.constant 0 : index
    %c17_35 = arith.constant 17 : index
    %c0_36 = arith.constant 0 : index
    %30 = vector.load %arg1[%c0_34, %c17_35, %c0_36] : memref<1x256x4xf32, #tpu.memory_space<vmem>>, vector<1x14x4xf32>
    %31 = vector.shape_cast %30 : vector<1x14x4xf32> to vector<14x4xf32>
    %c14_37 = arith.constant 14 : index
    %c4_38 = arith.constant 4 : index
    %32 = vector.load %arg11[%c14_37, %c4_38] : memref<196x36xf32, #tpu.memory_space<vmem>>, vector<14x4xf32>
    tpu.vector_store %arg11[%c14_37, %c4_38], %31 {strides = array<i32>} : memref<196x36xf32, #tpu.memory_space<vmem>>, vector<14x4xf32>,
    %c0_39 = arith.constant 0 : index
    %c18_40 = arith.constant 18 : index
    %c0_41 = arith.constant 0 : index
    %33 = vector.load %arg1[%c0_39, %c18_40, %c0_41] : memref<1x256x4xf32, #tpu.memory_space<vmem>>, vector<1x14x4xf32>
    %34 = vector.shape_cast %33 : vector<1x14x4xf32> to vector<14x4xf32>
    %c14_42 = arith.constant 14 : index
    %c8_43 = arith.constant 8 : index
    %35 = vector.load %arg11[%c14_42, %c8_43] : memref<196x36xf32, #tpu.memory_space<vmem>>, vector<14x4xf32>
    tpu.vector_store %arg11[%c14_42, %c8_43], %34 {strides = array<i32>} : memref<196x36xf32, #tpu.memory_space<vmem>>, vector<14x4xf32>,
    %c0_44 = arith.constant 0 : index
    %c32_45 = arith.constant 32 : index
    %c0_46 = arith.constant 0 : index
    %36 = vector.load %arg1[%c0_44, %c32_45, %c0_46] : memref<1x256x4xf32, #tpu.memory_space<vmem>>, vector<1x14x4xf32>
    %37 = vector.shape_cast %36 : vector<1x14x4xf32> to vector<14x4xf32>
    %c14_47 = arith.constant 14 : index
    %c12_48 = arith.constant 12 : index
    %38 = vector.load %arg11[%c14_47, %c12_48] : memref<196x36xf32, #tpu.memory_space<vmem>>, vector<14x4xf32>
    tpu.vector_store %arg11[%c14_47, %c12_48], %37 {strides = array<i32>} : memref<196x36xf32, #tpu.memory_space<vmem>>, vector<14x4xf32>,
    %c0_49 = arith.constant 0 : index
    %c33_50 = arith.constant 33 : index
    %c0_51 = arith.constant 0 : index
    %39 = vector.load %arg1[%c0_49, %c33_50, %c0_51] : memref<1x256x4xf32, #tpu.memory_space<vmem>>, vector<1x14x4xf32>
    %40 = vector.shape_cast %39 : vector<1x14x4xf32> to vector<14x4xf32>
    %c14_52 = arith.constant 14 : index
    %c16_53 = arith.constant 16 : index
    %41 = vector.load %arg11[%c14_52, %c16_53] : memref<196x36xf32, #tpu.memory_space<vmem>>, vector<14x4xf32>
    tpu.vector_store %arg11[%c14_52, %c16_53], %40 {strides = array<i32>} : memref<196x36xf32, #tpu.memory_space<vmem>>, vector<14x4xf32>,
    %c0_54 = arith.constant 0 : index
    %c34_55 = arith.constant 34 : index
    %c0_56 = arith.constant 0 : index
    %42 = vector.load %arg1[%c0_54, %c34_55, %c0_56] : memref<1x256x4xf32, #tpu.memory_space<vmem>>, vector<1x14x4xf32>
    %43 = vector.shape_cast %42 : vector<1x14x4xf32> to vector<14x4xf32>
    %c14_57 = arith.constant 14 : index
    %c20_58 = arith.constant 20 : index
    %44 = vector.load %arg11[%c14_57, %c20_58] : memref<196x36xf32, #tpu.memory_space<vmem>>, vector<14x4xf32>
    tpu.vector_store %arg11[%c14_57, %c20_58], %43 {strides = array<i32>} : memref<196x36xf32, #tpu.memory_space<vmem>>, vector<14x4xf32>,
    %c0_59 = arith.constant 0 : index
    %c48 = arith.constant 48 : index
    %c0_60 = arith.constant 0 : index
    %45 = vector.load %arg1[%c0_59, %c48, %c0_60] : memref<1x256x4xf32, #tpu.memory_space<vmem>>, vector<1x14x4xf32>
    %46 = vector.shape_cast %45 : vector<1x14x4xf32> to vector<14x4xf32>
    %c14_61 = arith.constant 14 : index
    %c24_62 = arith.constant 24 : index
    %47 = vector.load %arg11[%c14_61, %c24_62] : memref<196x36xf32, #tpu.memory_space<vmem>>, vector<14x4xf32>
    tpu.vector_store %arg11[%c14_61, %c24_62], %46 {strides = array<i32>} : memref<196x36xf32, #tpu.memory_space<vmem>>, vector<14x4xf32>,
    %c0_63 = arith.constant 0 : index
    %c49 = arith.constant 49 : index
    %c0_64 = arith.constant 0 : index
    %48 = vector.load %arg1[%c0_63, %c49, %c0_64] : memref<1x256x4xf32, #tpu.memory_space<vmem>>, vector<1x14x4xf32>
    %49 = vector.shape_cast %48 : vector<1x14x4xf32> to vector<14x4xf32>
    %c14_65 = arith.constant 14 : index
    %c28_66 = arith.constant 28 : index
    %50 = vector.load %arg11[%c14_65, %c28_66] : memref<196x36xf32, #tpu.memory_space<vmem>>, vector<14x4xf32>
    tpu.vector_store %arg11[%c14_65, %c28_66], %49 {strides = array<i32>} : memref<196x36xf32, #tpu.memory_space<vmem>>, vector<14x4xf32>,
    %c0_67 = arith.constant 0 : index
    %c50 = arith.constant 50 : index
    %c0_68 = arith.constant 0 : index
    %51 = vector.load %arg1[%c0_67, %c50, %c0_68] : memref<1x256x4xf32, #tpu.memory_space<vmem>>, vector<1x14x4xf32>
    %52 = vector.shape_cast %51 : vector<1x14x4xf32> to vector<14x4xf32>
    %c14_69 = arith.constant 14 : index
    %c32_70 = arith.constant 32 : index
    %53 = vector.load %arg11[%c14_69, %c32_70] : memref<196x36xf32, #tpu.memory_space<vmem>>, vector<14x4xf32>
    tpu.vector_store %arg11[%c14_69, %c32_70], %52 {strides = array<i32>} : memref<196x36xf32, #tpu.memory_space<vmem>>, vector<14x4xf32>,
    %c0_71 = arith.constant 0 : index
    %c32_72 = arith.constant 32 : index
    %c0_73 = arith.constant 0 : index
    %54 = vector.load %arg1[%c0_71, %c32_72, %c0_73] : memref<1x256x4xf32, #tpu.memory_space<vmem>>, vector<1x14x4xf32>
    %55 = vector.shape_cast %54 : vector<1x14x4xf32> to vector<14x4xf32>
    %c28_74 = arith.constant 28 : index
    %c0_75 = arith.constant 0 : index
    %56 = vector.load %arg11[%c28_74, %c0_75] : memref<196x36xf32, #tpu.memory_space<vmem>>, vector<14x4xf32>
    tpu.vector_store %arg11[%c28_74, %c0_75], %55 {strides = array<i32>} : memref<196x36xf32, #tpu.memory_space<vmem>>, vector<14x4xf32>,
    %c0_76 = arith.constant 0 : index
    %c33_77 = arith.constant 33 : index
    %c0_78 = arith.constant 0 : index
    %57 = vector.load %arg1[%c0_76, %c33_77, %c0_78] : memref<1x256x4xf32, #tpu.memory_space<vmem>>, vector<1x14x4xf32>
    %58 = vector.shape_cast %57 : vector<1x14x4xf32> to vector<14x4xf32>
    %c28_79 = arith.constant 28 : index
    %c4_80 = arith.constant 4 : index
    %59 = vector.load %arg11[%c28_79, %c4_80] : memref<196x36xf32, #tpu.memory_space<vmem>>, vector<14x4xf32>
    tpu.vector_store %arg11[%c28_79, %c4_80], %58 {strides = array<i32>} : memref<196x36xf32, #tpu.memory_space<vmem>>, vector<14x4xf32>,
    %c0_81 = arith.constant 0 : index
    %c34_82 = arith.constant 34 : index
    %c0_83 = arith.constant 0 : index
    %60 = vector.load %arg1[%c0_81, %c34_82, %c0_83] : memref<1x256x4xf32, #tpu.memory_space<vmem>>, vector<1x14x4xf32>
    %61 = vector.shape_cast %60 : vector<1x14x4xf32> to vector<14x4xf32>
    %c28_84 = arith.constant 28 : index
    %c8_85 = arith.constant 8 : index
    %62 = vector.load %arg11[%c28_84, %c8_85] : memref<196x36xf32, #tpu.memory_space<vmem>>, vector<14x4xf32>
    tpu.vector_store %arg11[%c28_84, %c8_85], %61 {strides = array<i32>} : memref<196x36xf32, #tpu.memory_space<vmem>>, vector<14x4xf32>,
    %c0_86 = arith.constant 0 : index
    %c48_87 = arith.constant 48 : index
    %c0_88 = arith.constant 0 : index
    %63 = vector.load %arg1[%c0_86, %c48_87, %c0_88] : memref<1x256x4xf32, #tpu.memory_space<vmem>>, vector<1x14x4xf32>
    %64 = vector.shape_cast %63 : vector<1x14x4xf32> to vector<14x4xf32>
    %c28_89 = arith.constant 28 : index
    %c12_90 = arith.constant 12 : index
    %65 = vector.load %arg11[%c28_89, %c12_90] : memref<196x36xf32, #tpu.memory_space<vmem>>, vector<14x4xf32>
    tpu.vector_store %arg11[%c28_89, %c12_90], %64 {strides = array<i32>} : memref<196x36xf32, #tpu.memory_space<vmem>>, vector<14x4xf32>,
    %c0_91 = arith.constant 0 : index
    %c49_92 = arith.constant 49 : index
    %c0_93 = arith.constant 0 : index
    %66 = vector.load %arg1[%c0_91, %c49_92, %c0_93] : memref<1x256x4xf32, #tpu.memory_space<vmem>>, vector<1x14x4xf32>
    %67 = vector.shape_cast %66 : vector<1x14x4xf32> to vector<14x4xf32>
    %c28_94 = arith.constant 28 : index
    %c16_95 = arith.constant 16 : index
    %68 = vector.load %arg11[%c28_94, %c16_95] : memref<196x36xf32, #tpu.memory_space<vmem>>, vector<14x4xf32>
    tpu.vector_store %arg11[%c28_94, %c16_95], %67 {strides = array<i32>} : memref<196x36xf32, #tpu.memory_space<vmem>>, vector<14x4xf32>,
    %c0_96 = arith.constant 0 : index
    %c50_97 = arith.constant 50 : index
    %c0_98 = arith.constant 0 : index
    %69 = vector.load %arg1[%c0_96, %c50_97, %c0_98] : memref<1x256x4xf32, #tpu.memory_space<vmem>>, vector<1x14x4xf32>
    %70 = vector.shape_cast %69 : vector<1x14x4xf32> to vector<14x4xf32>
    %c28_99 = arith.constant 28 : index
    %c20_100 = arith.constant 20 : index
    %71 = vector.load %arg11[%c28_99, %c20_100] : memref<196x36xf32, #tpu.memory_space<vmem>>, vector<14x4xf32>
    tpu.vector_store %arg11[%c28_99, %c20_100], %70 {strides = array<i32>} : memref<196x36xf32, #tpu.memory_space<vmem>>, vector<14x4xf32>,
    %c0_101 = arith.constant 0 : index
    %c64 = arith.constant 64 : index
    %c0_102 = arith.constant 0 : index
    %72 = vector.load %arg1[%c0_101, %c64, %c0_102] : memref<1x256x4xf32, #tpu.memory_space<vmem>>, vector<1x14x4xf32>
    %73 = vector.shape_cast %72 : vector<1x14x4xf32> to vector<14x4xf32>
    %c28_103 = arith.constant 28 : index
    %c24_104 = arith.constant 24 : index
    %74 = vector.load %arg11[%c28_103, %c24_104] : memref<196x36xf32, #tpu.memory_space<vmem>>, vector<14x4xf32>
    tpu.vector_store %arg11[%c28_103, %c24_104], %73 {strides = array<i32>} : memref<196x36xf32, #tpu.memory_space<vmem>>, vector<14x4xf32>,
    %c0_105 = arith.constant 0 : index
    %c65 = arith.constant 65 : index
    %c0_106 = arith.constant 0 : index
    %75 = vector.load %arg1[%c0_105, %c65, %c0_106] : memref<1x256x4xf32, #tpu.memory_space<vmem>>, vector<1x14x4xf32>
    %76 = vector.shape_cast %75 : vector<1x14x4xf32> to vector<14x4xf32>
    %c28_107 = arith.constant 28 : index
    %c28_108 = arith.constant 28 : index
    %77 = vector.load %arg11[%c28_107, %c28_108] : memref<196x36xf32, #tpu.memory_space<vmem>>, vector<14x4xf32>
    tpu.vector_store %arg11[%c28_107, %c28_108], %76 {strides = array<i32>} : memref<196x36xf32, #tpu.memory_space<vmem>>, vector<14x4xf32>,
    %c0_109 = arith.constant 0 : index
    %c66 = arith.constant 66 : index
    %c0_110 = arith.constant 0 : index
    %78 = vector.load %arg1[%c0_109, %c66, %c0_110] : memref<1x256x4xf32, #tpu.memory_space<vmem>>, vector<1x14x4xf32>
    %79 = vector.shape_cast %78 : vector<1x14x4xf32> to vector<14x4xf32>
    %c28_111 = arith.constant 28 : index
    %c32_112 = arith.constant 32 : index
    %80 = vector.load %arg11[%c28_111, %c32_112] : memref<196x36xf32, #tpu.memory_space<vmem>>, vector<14x4xf32>
    tpu.vector_store %arg11[%c28_111, %c32_112], %79 {strides = array<i32>} : memref<196x36xf32, #tpu.memory_space<vmem>>, vector<14x4xf32>,
    %c0_113 = arith.constant 0 : index
    %c48_114 = arith.constant 48 : index
    %c0_115 = arith.constant 0 : index
    %81 = vector.load %arg1[%c0_113, %c48_114, %c0_115] : memref<1x256x4xf32, #tpu.memory_space<vmem>>, vector<1x14x4xf32>
    %82 = vector.shape_cast %81 : vector<1x14x4xf32> to vector<14x4xf32>
    %c42 = arith.constant 42 : index
    %c0_116 = arith.constant 0 : index
    %83 = vector.load %arg11[%c42, %c0_116] : memref<196x36xf32, #tpu.memory_space<vmem>>, vector<14x4xf32>
    tpu.vector_store %arg11[%c42, %c0_116], %82 {strides = array<i32>} : memref<196x36xf32, #tpu.memory_space<vmem>>, vector<14x4xf32>,
    %c0_117 = arith.constant 0 : index
    %c49_118 = arith.constant 49 : index
    %c0_119 = arith.constant 0 : index
    %84 = vector.load %arg1[%c0_117, %c49_118, %c0_119] : memref<1x256x4xf32, #tpu.memory_space<vmem>>, vector<1x14x4xf32>
    %85 = vector.shape_cast %84 : vector<1x14x4xf32> to vector<14x4xf32>
    %c42_120 = arith.constant 42 : index
    %c4_121 = arith.constant 4 : index
    %86 = vector.load %arg11[%c42_120, %c4_121] : memref<196x36xf32, #tpu.memory_space<vmem>>, vector<14x4xf32>
    tpu.vector_store %arg11[%c42_120, %c4_121], %85 {strides = array<i32>} : memref<196x36xf32, #tpu.memory_space<vmem>>, vector<14x4xf32>,
    %c0_122 = arith.constant 0 : index
    %c50_123 = arith.constant 50 : index
    %c0_124 = arith.constant 0 : index
    %87 = vector.load %arg1[%c0_122, %c50_123, %c0_124] : memref<1x256x4xf32, #tpu.memory_space<vmem>>, vector<1x14x4xf32>
    %88 = vector.shape_cast %87 : vector<1x14x4xf32> to vector<14x4xf32>
    %c42_125 = arith.constant 42 : index
    %c8_126 = arith.constant 8 : index
    %89 = vector.load %arg11[%c42_125, %c8_126] : memref<196x36xf32, #tpu.memory_space<vmem>>, vector<14x4xf32>
    tpu.vector_store %arg11[%c42_125, %c8_126], %88 {strides = array<i32>} : memref<196x36xf32, #tpu.memory_space<vmem>>, vector<14x4xf32>,
    %c0_127 = arith.constant 0 : index
    %c64_128 = arith.constant 64 : index
    %c0_129 = arith.constant 0 : index
    %90 = vector.load %arg1[%c0_127, %c64_128, %c0_129] : memref<1x256x4xf32, #tpu.memory_space<vmem>>, vector<1x14x4xf32>
    %91 = vector.shape_cast %90 : vector<1x14x4xf32> to vector<14x4xf32>
    %c42_130 = arith.constant 42 : index
    %c12_131 = arith.constant 12 : index
    %92 = vector.load %arg11[%c42_130, %c12_131] : memref<196x36xf32, #tpu.memory_space<vmem>>, vector<14x4xf32>
    tpu.vector_store %arg11[%c42_130, %c12_131], %91 {strides = array<i32>} : memref<196x36xf32, #tpu.memory_space<vmem>>, vector<14x4xf32>,
    %c0_132 = arith.constant 0 : index
    %c65_133 = arith.constant 65 : index
    %c0_134 = arith.constant 0 : index
    %93 = vector.load %arg1[%c0_132, %c65_133, %c0_134] : memref<1x256x4xf32, #tpu.memory_space<vmem>>, vector<1x14x4xf32>
    %94 = vector.shape_cast %93 : vector<1x14x4xf32> to vector<14x4xf32>
    %c42_135 = arith.constant 42 : index
    %c16_136 = arith.constant 16 : index
    %95 = vector.load %arg11[%c42_135, %c16_136] : memref<196x36xf32, #tpu.memory_space<vmem>>, vector<14x4xf32>
    tpu.vector_store %arg11[%c42_135, %c16_136], %94 {strides = array<i32>} : memref<196x36xf32, #tpu.memory_space<vmem>>, vector<14x4xf32>,
    %c0_137 = arith.constant 0 : index
    %c66_138 = arith.constant 66 : index
    %c0_139 = arith.constant 0 : index
    %96 = vector.load %arg1[%c0_137, %c66_138, %c0_139] : memref<1x256x4xf32, #tpu.memory_space<vmem>>, vector<1x14x4xf32>
    %97 = vector.shape_cast %96 : vector<1x14x4xf32> to vector<14x4xf32>
    %c42_140 = arith.constant 42 : index
    %c20_141 = arith.constant 20 : index
    %98 = vector.load %arg11[%c42_140, %c20_141] : memref<196x36xf32, #tpu.memory_space<vmem>>, vector<14x4xf32>
    tpu.vector_store %arg11[%c42_140, %c20_141], %97 {strides = array<i32>} : memref<196x36xf32, #tpu.memory_space<vmem>>, vector<14x4xf32>,
    %c0_142 = arith.constant 0 : index
    %c80 = arith.constant 80 : index
    %c0_143 = arith.constant 0 : index
    %99 = vector.load %arg1[%c0_142, %c80, %c0_143] : memref<1x256x4xf32, #tpu.memory_space<vmem>>, vector<1x14x4xf32>
    %100 = vector.shape_cast %99 : vector<1x14x4xf32> to vector<14x4xf32>
    %c42_144 = arith.constant 42 : index
    %c24_145 = arith.constant 24 : index
    %101 = vector.load %arg11[%c42_144, %c24_145] : memref<196x36xf32, #tpu.memory_space<vmem>>, vector<14x4xf32>
    tpu.vector_store %arg11[%c42_144, %c24_145], %100 {strides = array<i32>} : memref<196x36xf32, #tpu.memory_space<vmem>>, vector<14x4xf32>,
    %c0_146 = arith.constant 0 : index
    %c81 = arith.constant 81 : index
    %c0_147 = arith.constant 0 : index
    %102 = vector.load %arg1[%c0_146, %c81, %c0_147] : memref<1x256x4xf32, #tpu.memory_space<vmem>>, vector<1x14x4xf32>
    %103 = vector.shape_cast %102 : vector<1x14x4xf32> to vector<14x4xf32>
    %c42_148 = arith.constant 42 : index
    %c28_149 = arith.constant 28 : index
    %104 = vector.load %arg11[%c42_148, %c28_149] : memref<196x36xf32, #tpu.memory_space<vmem>>, vector<14x4xf32>
    tpu.vector_store %arg11[%c42_148, %c28_149], %103 {strides = array<i32>} : memref<196x36xf32, #tpu.memory_space<vmem>>, vector<14x4xf32>,
    %c0_150 = arith.constant 0 : index
    %c82 = arith.constant 82 : index
    %c0_151 = arith.constant 0 : index
    %105 = vector.load %arg1[%c0_150, %c82, %c0_151] : memref<1x256x4xf32, #tpu.memory_space<vmem>>, vector<1x14x4xf32>
    %106 = vector.shape_cast %105 : vector<1x14x4xf32> to vector<14x4xf32>
    %c42_152 = arith.constant 42 : index
    %c32_153 = arith.constant 32 : index
    %107 = vector.load %arg11[%c42_152, %c32_153] : memref<196x36xf32, #tpu.memory_space<vmem>>, vector<14x4xf32>
    tpu.vector_store %arg11[%c42_152, %c32_153], %106 {strides = array<i32>} : memref<196x36xf32, #tpu.memory_space<vmem>>, vector<14x4xf32>,
    %c0_154 = arith.constant 0 : index
    %c64_155 = arith.constant 64 : index
    %c0_156 = arith.constant 0 : index
    %108 = vector.load %arg1[%c0_154, %c64_155, %c0_156] : memref<1x256x4xf32, #tpu.memory_space<vmem>>, vector<1x14x4xf32>
    %109 = vector.shape_cast %108 : vector<1x14x4xf32> to vector<14x4xf32>
    %c56 = arith.constant 56 : index
    %c0_157 = arith.constant 0 : index
    %110 = vector.load %arg11[%c56, %c0_157] : memref<196x36xf32, #tpu.memory_space<vmem>>, vector<14x4xf32>
    tpu.vector_store %arg11[%c56, %c0_157], %109 {strides = array<i32>} : memref<196x36xf32, #tpu.memory_space<vmem>>, vector<14x4xf32>,
    %c0_158 = arith.constant 0 : index
    %c65_159 = arith.constant 65 : index
    %c0_160 = arith.constant 0 : index
    %111 = vector.load %arg1[%c0_158, %c65_159, %c0_160] : memref<1x256x4xf32, #tpu.memory_space<vmem>>, vector<1x14x4xf32>
    %112 = vector.shape_cast %111 : vector<1x14x4xf32> to vector<14x4xf32>
    %c56_161 = arith.constant 56 : index
    %c4_162 = arith.constant 4 : index
    %113 = vector.load %arg11[%c56_161, %c4_162] : memref<196x36xf32, #tpu.memory_space<vmem>>, vector<14x4xf32>
    tpu.vector_store %arg11[%c56_161, %c4_162], %112 {strides = array<i32>} : memref<196x36xf32, #tpu.memory_space<vmem>>, vector<14x4xf32>,
    %c0_163 = arith.constant 0 : index
    %c66_164 = arith.constant 66 : index
    %c0_165 = arith.constant 0 : index
    %114 = vector.load %arg1[%c0_163, %c66_164, %c0_165] : memref<1x256x4xf32, #tpu.memory_space<vmem>>, vector<1x14x4xf32>
    %115 = vector.shape_cast %114 : vector<1x14x4xf32> to vector<14x4xf32>
    %c56_166 = arith.constant 56 : index
    %c8_167 = arith.constant 8 : index
    %116 = vector.load %arg11[%c56_166, %c8_167] : memref<196x36xf32, #tpu.memory_space<vmem>>, vector<14x4xf32>
    tpu.vector_store %arg11[%c56_166, %c8_167], %115 {strides = array<i32>} : memref<196x36xf32, #tpu.memory_space<vmem>>, vector<14x4xf32>,
    %c0_168 = arith.constant 0 : index
    %c80_169 = arith.constant 80 : index
    %c0_170 = arith.constant 0 : index
    %117 = vector.load %arg1[%c0_168, %c80_169, %c0_170] : memref<1x256x4xf32, #tpu.memory_space<vmem>>, vector<1x14x4xf32>
    %118 = vector.shape_cast %117 : vector<1x14x4xf32> to vector<14x4xf32>
    %c56_171 = arith.constant 56 : index
    %c12_172 = arith.constant 12 : index
    %119 = vector.load %arg11[%c56_171, %c12_172] : memref<196x36xf32, #tpu.memory_space<vmem>>, vector<14x4xf32>
    tpu.vector_store %arg11[%c56_171, %c12_172], %118 {strides = array<i32>} : memref<196x36xf32, #tpu.memory_space<vmem>>, vector<14x4xf32>,
    %c0_173 = arith.constant 0 : index
    %c81_174 = arith.constant 81 : index
    %c0_175 = arith.constant 0 : index
    %120 = vector.load %arg1[%c0_173, %c81_174, %c0_175] : memref<1x256x4xf32, #tpu.memory_space<vmem>>, vector<1x14x4xf32>
    %121 = vector.shape_cast %120 : vector<1x14x4xf32> to vector<14x4xf32>
    %c56_176 = arith.constant 56 : index
    %c16_177 = arith.constant 16 : index
    %122 = vector.load %arg11[%c56_176, %c16_177] : memref<196x36xf32, #tpu.memory_space<vmem>>, vector<14x4xf32>
    tpu.vector_store %arg11[%c56_176, %c16_177], %121 {strides = array<i32>} : memref<196x36xf32, #tpu.memory_space<vmem>>, vector<14x4xf32>,
    %c0_178 = arith.constant 0 : index
    %c82_179 = arith.constant 82 : index
    %c0_180 = arith.constant 0 : index
    %123 = vector.load %arg1[%c0_178, %c82_179, %c0_180] : memref<1x256x4xf32, #tpu.memory_space<vmem>>, vector<1x14x4xf32>
    %124 = vector.shape_cast %123 : vector<1x14x4xf32> to vector<14x4xf32>
    %c56_181 = arith.constant 56 : index
    %c20_182 = arith.constant 20 : index
    %125 = vector.load %arg11[%c56_181, %c20_182] : memref<196x36xf32, #tpu.memory_space<vmem>>, vector<14x4xf32>
    tpu.vector_store %arg11[%c56_181, %c20_182], %124 {strides = array<i32>} : memref<196x36xf32, #tpu.memory_space<vmem>>, vector<14x4xf32>,
    %c0_183 = arith.constant 0 : index
    %c96 = arith.constant 96 : index
    %c0_184 = arith.constant 0 : index
    %126 = vector.load %arg1[%c0_183, %c96, %c0_184] : memref<1x256x4xf32, #tpu.memory_space<vmem>>, vector<1x14x4xf32>
    %127 = vector.shape_cast %126 : vector<1x14x4xf32> to vector<14x4xf32>
    %c56_185 = arith.constant 56 : index
    %c24_186 = arith.constant 24 : index
    %128 = vector.load %arg11[%c56_185, %c24_186] : memref<196x36xf32, #tpu.memory_space<vmem>>, vector<14x4xf32>
    tpu.vector_store %arg11[%c56_185, %c24_186], %127 {strides = array<i32>} : memref<196x36xf32, #tpu.memory_space<vmem>>, vector<14x4xf32>,
    %c0_187 = arith.constant 0 : index
    %c97 = arith.constant 97 : index
    %c0_188 = arith.constant 0 : index
    %129 = vector.load %arg1[%c0_187, %c97, %c0_188] : memref<1x256x4xf32, #tpu.memory_space<vmem>>, vector<1x14x4xf32>
    %130 = vector.shape_cast %129 : vector<1x14x4xf32> to vector<14x4xf32>
    %c56_189 = arith.constant 56 : index
    %c28_190 = arith.constant 28 : index
    %131 = vector.load %arg11[%c56_189, %c28_190] : memref<196x36xf32, #tpu.memory_space<vmem>>, vector<14x4xf32>
    tpu.vector_store %arg11[%c56_189, %c28_190], %130 {strides = array<i32>} : memref<196x36xf32, #tpu.memory_space<vmem>>, vector<14x4xf32>,
    %c0_191 = arith.constant 0 : index
    %c98 = arith.constant 98 : index
    %c0_192 = arith.constant 0 : index
    %132 = vector.load %arg1[%c0_191, %c98, %c0_192] : memref<1x256x4xf32, #tpu.memory_space<vmem>>, vector<1x14x4xf32>
    %133 = vector.shape_cast %132 : vector<1x14x4xf32> to vector<14x4xf32>
    %c56_193 = arith.constant 56 : index
    %c32_194 = arith.constant 32 : index
    %134 = vector.load %arg11[%c56_193, %c32_194] : memref<196x36xf32, #tpu.memory_space<vmem>>, vector<14x4xf32>
    tpu.vector_store %arg11[%c56_193, %c32_194], %133 {strides = array<i32>} : memref<196x36xf32, #tpu.memory_space<vmem>>, vector<14x4xf32>,
    %c0_195 = arith.constant 0 : index
    %c80_196 = arith.constant 80 : index
    %c0_197 = arith.constant 0 : index
    %135 = vector.load %arg1[%c0_195, %c80_196, %c0_197] : memref<1x256x4xf32, #tpu.memory_space<vmem>>, vector<1x14x4xf32>
    %136 = vector.shape_cast %135 : vector<1x14x4xf32> to vector<14x4xf32>
    %c70 = arith.constant 70 : index
    %c0_198 = arith.constant 0 : index
    %137 = vector.load %arg11[%c70, %c0_198] : memref<196x36xf32, #tpu.memory_space<vmem>>, vector<14x4xf32>
    tpu.vector_store %arg11[%c70, %c0_198], %136 {strides = array<i32>} : memref<196x36xf32, #tpu.memory_space<vmem>>, vector<14x4xf32>,
    %c0_199 = arith.constant 0 : index
    %c81_200 = arith.constant 81 : index
    %c0_201 = arith.constant 0 : index
    %138 = vector.load %arg1[%c0_199, %c81_200, %c0_201] : memref<1x256x4xf32, #tpu.memory_space<vmem>>, vector<1x14x4xf32>
    %139 = vector.shape_cast %138 : vector<1x14x4xf32> to vector<14x4xf32>
    %c70_202 = arith.constant 70 : index
    %c4_203 = arith.constant 4 : index
    %140 = vector.load %arg11[%c70_202, %c4_203] : memref<196x36xf32, #tpu.memory_space<vmem>>, vector<14x4xf32>
    tpu.vector_store %arg11[%c70_202, %c4_203], %139 {strides = array<i32>} : memref<196x36xf32, #tpu.memory_space<vmem>>, vector<14x4xf32>,
    %c0_204 = arith.constant 0 : index
    %c82_205 = arith.constant 82 : index
    %c0_206 = arith.constant 0 : index
    %141 = vector.load %arg1[%c0_204, %c82_205, %c0_206] : memref<1x256x4xf32, #tpu.memory_space<vmem>>, vector<1x14x4xf32>
    %142 = vector.shape_cast %141 : vector<1x14x4xf32> to vector<14x4xf32>
    %c70_207 = arith.constant 70 : index
    %c8_208 = arith.constant 8 : index
    %143 = vector.load %arg11[%c70_207, %c8_208] : memref<196x36xf32, #tpu.memory_space<vmem>>, vector<14x4xf32>
    tpu.vector_store %arg11[%c70_207, %c8_208], %142 {strides = array<i32>} : memref<196x36xf32, #tpu.memory_space<vmem>>, vector<14x4xf32>,
    %c0_209 = arith.constant 0 : index
    %c96_210 = arith.constant 96 : index
    %c0_211 = arith.constant 0 : index
    %144 = vector.load %arg1[%c0_209, %c96_210, %c0_211] : memref<1x256x4xf32, #tpu.memory_space<vmem>>, vector<1x14x4xf32>
    %145 = vector.shape_cast %144 : vector<1x14x4xf32> to vector<14x4xf32>
    %c70_212 = arith.constant 70 : index
    %c12_213 = arith.constant 12 : index
    %146 = vector.load %arg11[%c70_212, %c12_213] : memref<196x36xf32, #tpu.memory_space<vmem>>, vector<14x4xf32>
    tpu.vector_store %arg11[%c70_212, %c12_213], %145 {strides = array<i32>} : memref<196x36xf32, #tpu.memory_space<vmem>>, vector<14x4xf32>,
    %c0_214 = arith.constant 0 : index
    %c97_215 = arith.constant 97 : index
    %c0_216 = arith.constant 0 : index
    %147 = vector.load %arg1[%c0_214, %c97_215, %c0_216] : memref<1x256x4xf32, #tpu.memory_space<vmem>>, vector<1x14x4xf32>
    %148 = vector.shape_cast %147 : vector<1x14x4xf32> to vector<14x4xf32>
    %c70_217 = arith.constant 70 : index
    %c16_218 = arith.constant 16 : index
    %149 = vector.load %arg11[%c70_217, %c16_218] : memref<196x36xf32, #tpu.memory_space<vmem>>, vector<14x4xf32>
    tpu.vector_store %arg11[%c70_217, %c16_218], %148 {strides = array<i32>} : memref<196x36xf32, #tpu.memory_space<vmem>>, vector<14x4xf32>,
    %c0_219 = arith.constant 0 : index
    %c98_220 = arith.constant 98 : index
    %c0_221 = arith.constant 0 : index
    %150 = vector.load %arg1[%c0_219, %c98_220, %c0_221] : memref<1x256x4xf32, #tpu.memory_space<vmem>>, vector<1x14x4xf32>
    %151 = vector.shape_cast %150 : vector<1x14x4xf32> to vector<14x4xf32>
    %c70_222 = arith.constant 70 : index
    %c20_223 = arith.constant 20 : index
    %152 = vector.load %arg11[%c70_222, %c20_223] : memref<196x36xf32, #tpu.memory_space<vmem>>, vector<14x4xf32>
    tpu.vector_store %arg11[%c70_222, %c20_223], %151 {strides = array<i32>} : memref<196x36xf32, #tpu.memory_space<vmem>>, vector<14x4xf32>,
    %c0_224 = arith.constant 0 : index
    %c112 = arith.constant 112 : index
    %c0_225 = arith.constant 0 : index
    %153 = vector.load %arg1[%c0_224, %c112, %c0_225] : memref<1x256x4xf32, #tpu.memory_space<vmem>>, vector<1x14x4xf32>
    %154 = vector.shape_cast %153 : vector<1x14x4xf32> to vector<14x4xf32>
    %c70_226 = arith.constant 70 : index
    %c24_227 = arith.constant 24 : index
    %155 = vector.load %arg11[%c70_226, %c24_227] : memref<196x36xf32, #tpu.memory_space<vmem>>, vector<14x4xf32>
    tpu.vector_store %arg11[%c70_226, %c24_227], %154 {strides = array<i32>} : memref<196x36xf32, #tpu.memory_space<vmem>>, vector<14x4xf32>,
    %c0_228 = arith.constant 0 : index
    %c113 = arith.constant 113 : index
    %c0_229 = arith.constant 0 : index
    %156 = vector.load %arg1[%c0_228, %c113, %c0_229] : memref<1x256x4xf32, #tpu.memory_space<vmem>>, vector<1x14x4xf32>
    %157 = vector.shape_cast %156 : vector<1x14x4xf32> to vector<14x4xf32>
    %c70_230 = arith.constant 70 : index
    %c28_231 = arith.constant 28 : index
    %158 = vector.load %arg11[%c70_230, %c28_231] : memref<196x36xf32, #tpu.memory_space<vmem>>, vector<14x4xf32>
    tpu.vector_store %arg11[%c70_230, %c28_231], %157 {strides = array<i32>} : memref<196x36xf32, #tpu.memory_space<vmem>>, vector<14x4xf32>,
    %c0_232 = arith.constant 0 : index
    %c114 = arith.constant 114 : index
    %c0_233 = arith.constant 0 : index
    %159 = vector.load %arg1[%c0_232, %c114, %c0_233] : memref<1x256x4xf32, #tpu.memory_space<vmem>>, vector<1x14x4xf32>
    %160 = vector.shape_cast %159 : vector<1x14x4xf32> to vector<14x4xf32>
    %c70_234 = arith.constant 70 : index
    %c32_235 = arith.constant 32 : index
    %161 = vector.load %arg11[%c70_234, %c32_235] : memref<196x36xf32, #tpu.memory_space<vmem>>, vector<14x4xf32>
    tpu.vector_store %arg11[%c70_234, %c32_235], %160 {strides = array<i32>} : memref<196x36xf32, #tpu.memory_space<vmem>>, vector<14x4xf32>,
    %c0_236 = arith.constant 0 : index
    %c96_237 = arith.constant 96 : index
    %c0_238 = arith.constant 0 : index
    %162 = vector.load %arg1[%c0_236, %c96_237, %c0_238] : memref<1x256x4xf32, #tpu.memory_space<vmem>>, vector<1x14x4xf32>
    %163 = vector.shape_cast %162 : vector<1x14x4xf32> to vector<14x4xf32>
    %c84 = arith.constant 84 : index
    %c0_239 = arith.constant 0 : index
    %164 = vector.load %arg11[%c84, %c0_239] : memref<196x36xf32, #tpu.memory_space<vmem>>, vector<14x4xf32>
    tpu.vector_store %arg11[%c84, %c0_239], %163 {strides = array<i32>} : memref<196x36xf32, #tpu.memory_space<vmem>>, vector<14x4xf32>,
    %c0_240 = arith.constant 0 : index
    %c97_241 = arith.constant 97 : index
    %c0_242 = arith.constant 0 : index
    %165 = vector.load %arg1[%c0_240, %c97_241, %c0_242] : memref<1x256x4xf32, #tpu.memory_space<vmem>>, vector<1x14x4xf32>
    %166 = vector.shape_cast %165 : vector<1x14x4xf32> to vector<14x4xf32>
    %c84_243 = arith.constant 84 : index
    %c4_244 = arith.constant 4 : index
    %167 = vector.load %arg11[%c84_243, %c4_244] : memref<196x36xf32, #tpu.memory_space<vmem>>, vector<14x4xf32>
    tpu.vector_store %arg11[%c84_243, %c4_244], %166 {strides = array<i32>} : memref<196x36xf32, #tpu.memory_space<vmem>>, vector<14x4xf32>,
    %c0_245 = arith.constant 0 : index
    %c98_246 = arith.constant 98 : index
    %c0_247 = arith.constant 0 : index
    %168 = vector.load %arg1[%c0_245, %c98_246, %c0_247] : memref<1x256x4xf32, #tpu.memory_space<vmem>>, vector<1x14x4xf32>
    %169 = vector.shape_cast %168 : vector<1x14x4xf32> to vector<14x4xf32>
    %c84_248 = arith.constant 84 : index
    %c8_249 = arith.constant 8 : index
    %170 = vector.load %arg11[%c84_248, %c8_249] : memref<196x36xf32, #tpu.memory_space<vmem>>, vector<14x4xf32>
    tpu.vector_store %arg11[%c84_248, %c8_249], %169 {strides = array<i32>} : memref<196x36xf32, #tpu.memory_space<vmem>>, vector<14x4xf32>,
    %c0_250 = arith.constant 0 : index
    %c112_251 = arith.constant 112 : index
    %c0_252 = arith.constant 0 : index
    %171 = vector.load %arg1[%c0_250, %c112_251, %c0_252] : memref<1x256x4xf32, #tpu.memory_space<vmem>>, vector<1x14x4xf32>
    %172 = vector.shape_cast %171 : vector<1x14x4xf32> to vector<14x4xf32>
    %c84_253 = arith.constant 84 : index
    %c12_254 = arith.constant 12 : index
    %173 = vector.load %arg11[%c84_253, %c12_254] : memref<196x36xf32, #tpu.memory_space<vmem>>, vector<14x4xf32>
    tpu.vector_store %arg11[%c84_253, %c12_254], %172 {strides = array<i32>} : memref<196x36xf32, #tpu.memory_space<vmem>>, vector<14x4xf32>,
    %c0_255 = arith.constant 0 : index
    %c113_256 = arith.constant 113 : index
    %c0_257 = arith.constant 0 : index
    %174 = vector.load %arg1[%c0_255, %c113_256, %c0_257] : memref<1x256x4xf32, #tpu.memory_space<vmem>>, vector<1x14x4xf32>
    %175 = vector.shape_cast %174 : vector<1x14x4xf32> to vector<14x4xf32>
    %c84_258 = arith.constant 84 : index
    %c16_259 = arith.constant 16 : index
    %176 = vector.load %arg11[%c84_258, %c16_259] : memref<196x36xf32, #tpu.memory_space<vmem>>, vector<14x4xf32>
    tpu.vector_store %arg11[%c84_258, %c16_259], %175 {strides = array<i32>} : memref<196x36xf32, #tpu.memory_space<vmem>>, vector<14x4xf32>,
    %c0_260 = arith.constant 0 : index
    %c114_261 = arith.constant 114 : index
    %c0_262 = arith.constant 0 : index
    %177 = vector.load %arg1[%c0_260, %c114_261, %c0_262] : memref<1x256x4xf32, #tpu.memory_space<vmem>>, vector<1x14x4xf32>
    %178 = vector.shape_cast %177 : vector<1x14x4xf32> to vector<14x4xf32>
    %c84_263 = arith.constant 84 : index
    %c20_264 = arith.constant 20 : index
    %179 = vector.load %arg11[%c84_263, %c20_264] : memref<196x36xf32, #tpu.memory_space<vmem>>, vector<14x4xf32>
    tpu.vector_store %arg11[%c84_263, %c20_264], %178 {strides = array<i32>} : memref<196x36xf32, #tpu.memory_space<vmem>>, vector<14x4xf32>,
    %c0_265 = arith.constant 0 : index
    %c128 = arith.constant 128 : index
    %c0_266 = arith.constant 0 : index
    %180 = vector.load %arg1[%c0_265, %c128, %c0_266] : memref<1x256x4xf32, #tpu.memory_space<vmem>>, vector<1x14x4xf32>
    %181 = vector.shape_cast %180 : vector<1x14x4xf32> to vector<14x4xf32>
    %c84_267 = arith.constant 84 : index
    %c24_268 = arith.constant 24 : index
    %182 = vector.load %arg11[%c84_267, %c24_268] : memref<196x36xf32, #tpu.memory_space<vmem>>, vector<14x4xf32>
    tpu.vector_store %arg11[%c84_267, %c24_268], %181 {strides = array<i32>} : memref<196x36xf32, #tpu.memory_space<vmem>>, vector<14x4xf32>,
    %c0_269 = arith.constant 0 : index
    %c129 = arith.constant 129 : index
    %c0_270 = arith.constant 0 : index
    %183 = vector.load %arg1[%c0_269, %c129, %c0_270] : memref<1x256x4xf32, #tpu.memory_space<vmem>>, vector<1x14x4xf32>
    %184 = vector.shape_cast %183 : vector<1x14x4xf32> to vector<14x4xf32>
    %c84_271 = arith.constant 84 : index
    %c28_272 = arith.constant 28 : index
    %185 = vector.load %arg11[%c84_271, %c28_272] : memref<196x36xf32, #tpu.memory_space<vmem>>, vector<14x4xf32>
    tpu.vector_store %arg11[%c84_271, %c28_272], %184 {strides = array<i32>} : memref<196x36xf32, #tpu.memory_space<vmem>>, vector<14x4xf32>,
    %c0_273 = arith.constant 0 : index
    %c130 = arith.constant 130 : index
    %c0_274 = arith.constant 0 : index
    %186 = vector.load %arg1[%c0_273, %c130, %c0_274] : memref<1x256x4xf32, #tpu.memory_space<vmem>>, vector<1x14x4xf32>
    %187 = vector.shape_cast %186 : vector<1x14x4xf32> to vector<14x4xf32>
    %c84_275 = arith.constant 84 : index
    %c32_276 = arith.constant 32 : index
    %188 = vector.load %arg11[%c84_275, %c32_276] : memref<196x36xf32, #tpu.memory_space<vmem>>, vector<14x4xf32>
    tpu.vector_store %arg11[%c84_275, %c32_276], %187 {strides = array<i32>} : memref<196x36xf32, #tpu.memory_space<vmem>>, vector<14x4xf32>,
    %c0_277 = arith.constant 0 : index
    %c112_278 = arith.constant 112 : index
    %c0_279 = arith.constant 0 : index
    %189 = vector.load %arg1[%c0_277, %c112_278, %c0_279] : memref<1x256x4xf32, #tpu.memory_space<vmem>>, vector<1x14x4xf32>
    %190 = vector.shape_cast %189 : vector<1x14x4xf32> to vector<14x4xf32>
    %c98_280 = arith.constant 98 : index
    %c0_281 = arith.constant 0 : index
    %191 = vector.load %arg11[%c98_280, %c0_281] : memref<196x36xf32, #tpu.memory_space<vmem>>, vector<14x4xf32>
    tpu.vector_store %arg11[%c98_280, %c0_281], %190 {strides = array<i32>} : memref<196x36xf32, #tpu.memory_space<vmem>>, vector<14x4xf32>,
    %c0_282 = arith.constant 0 : index
    %c113_283 = arith.constant 113 : index
    %c0_284 = arith.constant 0 : index
    %192 = vector.load %arg1[%c0_282, %c113_283, %c0_284] : memref<1x256x4xf32, #tpu.memory_space<vmem>>, vector<1x14x4xf32>
    %193 = vector.shape_cast %192 : vector<1x14x4xf32> to vector<14x4xf32>
    %c98_285 = arith.constant 98 : index
    %c4_286 = arith.constant 4 : index
    %194 = vector.load %arg11[%c98_285, %c4_286] : memref<196x36xf32, #tpu.memory_space<vmem>>, vector<14x4xf32>
    tpu.vector_store %arg11[%c98_285, %c4_286], %193 {strides = array<i32>} : memref<196x36xf32, #tpu.memory_space<vmem>>, vector<14x4xf32>,
    %c0_287 = arith.constant 0 : index
    %c114_288 = arith.constant 114 : index
    %c0_289 = arith.constant 0 : index
    %195 = vector.load %arg1[%c0_287, %c114_288, %c0_289] : memref<1x256x4xf32, #tpu.memory_space<vmem>>, vector<1x14x4xf32>
    %196 = vector.shape_cast %195 : vector<1x14x4xf32> to vector<14x4xf32>
    %c98_290 = arith.constant 98 : index
    %c8_291 = arith.constant 8 : index
    %197 = vector.load %arg11[%c98_290, %c8_291] : memref<196x36xf32, #tpu.memory_space<vmem>>, vector<14x4xf32>
    tpu.vector_store %arg11[%c98_290, %c8_291], %196 {strides = array<i32>} : memref<196x36xf32, #tpu.memory_space<vmem>>, vector<14x4xf32>,
    %c0_292 = arith.constant 0 : index
    %c128_293 = arith.constant 128 : index
    %c0_294 = arith.constant 0 : index
    %198 = vector.load %arg1[%c0_292, %c128_293, %c0_294] : memref<1x256x4xf32, #tpu.memory_space<vmem>>, vector<1x14x4xf32>
    %199 = vector.shape_cast %198 : vector<1x14x4xf32> to vector<14x4xf32>
    %c98_295 = arith.constant 98 : index
    %c12_296 = arith.constant 12 : index
    %200 = vector.load %arg11[%c98_295, %c12_296] : memref<196x36xf32, #tpu.memory_space<vmem>>, vector<14x4xf32>
    tpu.vector_store %arg11[%c98_295, %c12_296], %199 {strides = array<i32>} : memref<196x36xf32, #tpu.memory_space<vmem>>, vector<14x4xf32>,
    %c0_297 = arith.constant 0 : index
    %c129_298 = arith.constant 129 : index
    %c0_299 = arith.constant 0 : index
    %201 = vector.load %arg1[%c0_297, %c129_298, %c0_299] : memref<1x256x4xf32, #tpu.memory_space<vmem>>, vector<1x14x4xf32>
    %202 = vector.shape_cast %201 : vector<1x14x4xf32> to vector<14x4xf32>
    %c98_300 = arith.constant 98 : index
    %c16_301 = arith.constant 16 : index
    %203 = vector.load %arg11[%c98_300, %c16_301] : memref<196x36xf32, #tpu.memory_space<vmem>>, vector<14x4xf32>
    tpu.vector_store %arg11[%c98_300, %c16_301], %202 {strides = array<i32>} : memref<196x36xf32, #tpu.memory_space<vmem>>, vector<14x4xf32>,
    %c0_302 = arith.constant 0 : index
    %c130_303 = arith.constant 130 : index
    %c0_304 = arith.constant 0 : index
    %204 = vector.load %arg1[%c0_302, %c130_303, %c0_304] : memref<1x256x4xf32, #tpu.memory_space<vmem>>, vector<1x14x4xf32>
    %205 = vector.shape_cast %204 : vector<1x14x4xf32> to vector<14x4xf32>
    %c98_305 = arith.constant 98 : index
    %c20_306 = arith.constant 20 : index
    %206 = vector.load %arg11[%c98_305, %c20_306] : memref<196x36xf32, #tpu.memory_space<vmem>>, vector<14x4xf32>
    tpu.vector_store %arg11[%c98_305, %c20_306], %205 {strides = array<i32>} : memref<196x36xf32, #tpu.memory_space<vmem>>, vector<14x4xf32>,
    %c0_307 = arith.constant 0 : index
    %c144 = arith.constant 144 : index
    %c0_308 = arith.constant 0 : index
    %207 = vector.load %arg1[%c0_307, %c144, %c0_308] : memref<1x256x4xf32, #tpu.memory_space<vmem>>, vector<1x14x4xf32>
    %208 = vector.shape_cast %207 : vector<1x14x4xf32> to vector<14x4xf32>
    %c98_309 = arith.constant 98 : index
    %c24_310 = arith.constant 24 : index
    %209 = vector.load %arg11[%c98_309, %c24_310] : memref<196x36xf32, #tpu.memory_space<vmem>>, vector<14x4xf32>
    tpu.vector_store %arg11[%c98_309, %c24_310], %208 {strides = array<i32>} : memref<196x36xf32, #tpu.memory_space<vmem>>, vector<14x4xf32>,
    %c0_311 = arith.constant 0 : index
    %c145 = arith.constant 145 : index
    %c0_312 = arith.constant 0 : index
    %210 = vector.load %arg1[%c0_311, %c145, %c0_312] : memref<1x256x4xf32, #tpu.memory_space<vmem>>, vector<1x14x4xf32>
    %211 = vector.shape_cast %210 : vector<1x14x4xf32> to vector<14x4xf32>
    %c98_313 = arith.constant 98 : index
    %c28_314 = arith.constant 28 : index
    %212 = vector.load %arg11[%c98_313, %c28_314] : memref<196x36xf32, #tpu.memory_space<vmem>>, vector<14x4xf32>
    tpu.vector_store %arg11[%c98_313, %c28_314], %211 {strides = array<i32>} : memref<196x36xf32, #tpu.memory_space<vmem>>, vector<14x4xf32>,
    %c0_315 = arith.constant 0 : index
    %c146 = arith.constant 146 : index
    %c0_316 = arith.constant 0 : index
    %213 = vector.load %arg1[%c0_315, %c146, %c0_316] : memref<1x256x4xf32, #tpu.memory_space<vmem>>, vector<1x14x4xf32>
    %214 = vector.shape_cast %213 : vector<1x14x4xf32> to vector<14x4xf32>
    %c98_317 = arith.constant 98 : index
    %c32_318 = arith.constant 32 : index
    %215 = vector.load %arg11[%c98_317, %c32_318] : memref<196x36xf32, #tpu.memory_space<vmem>>, vector<14x4xf32>
    tpu.vector_store %arg11[%c98_317, %c32_318], %214 {strides = array<i32>} : memref<196x36xf32, #tpu.memory_space<vmem>>, vector<14x4xf32>,
    %c0_319 = arith.constant 0 : index
    %c128_320 = arith.constant 128 : index
    %c0_321 = arith.constant 0 : index
    %216 = vector.load %arg1[%c0_319, %c128_320, %c0_321] : memref<1x256x4xf32, #tpu.memory_space<vmem>>, vector<1x14x4xf32>
    %217 = vector.shape_cast %216 : vector<1x14x4xf32> to vector<14x4xf32>
    %c112_322 = arith.constant 112 : index
    %c0_323 = arith.constant 0 : index
    %218 = vector.load %arg11[%c112_322, %c0_323] : memref<196x36xf32, #tpu.memory_space<vmem>>, vector<14x4xf32>
    tpu.vector_store %arg11[%c112_322, %c0_323], %217 {strides = array<i32>} : memref<196x36xf32, #tpu.memory_space<vmem>>, vector<14x4xf32>,
    %c0_324 = arith.constant 0 : index
    %c129_325 = arith.constant 129 : index
    %c0_326 = arith.constant 0 : index
    %219 = vector.load %arg1[%c0_324, %c129_325, %c0_326] : memref<1x256x4xf32, #tpu.memory_space<vmem>>, vector<1x14x4xf32>
    %220 = vector.shape_cast %219 : vector<1x14x4xf32> to vector<14x4xf32>
    %c112_327 = arith.constant 112 : index
    %c4_328 = arith.constant 4 : index
    %221 = vector.load %arg11[%c112_327, %c4_328] : memref<196x36xf32, #tpu.memory_space<vmem>>, vector<14x4xf32>
    tpu.vector_store %arg11[%c112_327, %c4_328], %220 {strides = array<i32>} : memref<196x36xf32, #tpu.memory_space<vmem>>, vector<14x4xf32>,
    %c0_329 = arith.constant 0 : index
    %c130_330 = arith.constant 130 : index
    %c0_331 = arith.constant 0 : index
    %222 = vector.load %arg1[%c0_329, %c130_330, %c0_331] : memref<1x256x4xf32, #tpu.memory_space<vmem>>, vector<1x14x4xf32>
    %223 = vector.shape_cast %222 : vector<1x14x4xf32> to vector<14x4xf32>
    %c112_332 = arith.constant 112 : index
    %c8_333 = arith.constant 8 : index
    %224 = vector.load %arg11[%c112_332, %c8_333] : memref<196x36xf32, #tpu.memory_space<vmem>>, vector<14x4xf32>
    tpu.vector_store %arg11[%c112_332, %c8_333], %223 {strides = array<i32>} : memref<196x36xf32, #tpu.memory_space<vmem>>, vector<14x4xf32>,
    %c0_334 = arith.constant 0 : index
    %c144_335 = arith.constant 144 : index
    %c0_336 = arith.constant 0 : index
    %225 = vector.load %arg1[%c0_334, %c144_335, %c0_336] : memref<1x256x4xf32, #tpu.memory_space<vmem>>, vector<1x14x4xf32>
    %226 = vector.shape_cast %225 : vector<1x14x4xf32> to vector<14x4xf32>
    %c112_337 = arith.constant 112 : index
    %c12_338 = arith.constant 12 : index
    %227 = vector.load %arg11[%c112_337, %c12_338] : memref<196x36xf32, #tpu.memory_space<vmem>>, vector<14x4xf32>
    tpu.vector_store %arg11[%c112_337, %c12_338], %226 {strides = array<i32>} : memref<196x36xf32, #tpu.memory_space<vmem>>, vector<14x4xf32>,
    %c0_339 = arith.constant 0 : index
    %c145_340 = arith.constant 145 : index
    %c0_341 = arith.constant 0 : index
    %228 = vector.load %arg1[%c0_339, %c145_340, %c0_341] : memref<1x256x4xf32, #tpu.memory_space<vmem>>, vector<1x14x4xf32>
    %229 = vector.shape_cast %228 : vector<1x14x4xf32> to vector<14x4xf32>
    %c112_342 = arith.constant 112 : index
    %c16_343 = arith.constant 16 : index
    %230 = vector.load %arg11[%c112_342, %c16_343] : memref<196x36xf32, #tpu.memory_space<vmem>>, vector<14x4xf32>
    tpu.vector_store %arg11[%c112_342, %c16_343], %229 {strides = array<i32>} : memref<196x36xf32, #tpu.memory_space<vmem>>, vector<14x4xf32>,
    %c0_344 = arith.constant 0 : index
    %c146_345 = arith.constant 146 : index
    %c0_346 = arith.constant 0 : index
    %231 = vector.load %arg1[%c0_344, %c146_345, %c0_346] : memref<1x256x4xf32, #tpu.memory_space<vmem>>, vector<1x14x4xf32>
    %232 = vector.shape_cast %231 : vector<1x14x4xf32> to vector<14x4xf32>
    %c112_347 = arith.constant 112 : index
    %c20_348 = arith.constant 20 : index
    %233 = vector.load %arg11[%c112_347, %c20_348] : memref<196x36xf32, #tpu.memory_space<vmem>>, vector<14x4xf32>
    tpu.vector_store %arg11[%c112_347, %c20_348], %232 {strides = array<i32>} : memref<196x36xf32, #tpu.memory_space<vmem>>, vector<14x4xf32>,
    %c0_349 = arith.constant 0 : index
    %c160 = arith.constant 160 : index
    %c0_350 = arith.constant 0 : index
    %234 = vector.load %arg1[%c0_349, %c160, %c0_350] : memref<1x256x4xf32, #tpu.memory_space<vmem>>, vector<1x14x4xf32>
    %235 = vector.shape_cast %234 : vector<1x14x4xf32> to vector<14x4xf32>
    %c112_351 = arith.constant 112 : index
    %c24_352 = arith.constant 24 : index
    %236 = vector.load %arg11[%c112_351, %c24_352] : memref<196x36xf32, #tpu.memory_space<vmem>>, vector<14x4xf32>
    tpu.vector_store %arg11[%c112_351, %c24_352], %235 {strides = array<i32>} : memref<196x36xf32, #tpu.memory_space<vmem>>, vector<14x4xf32>,
    %c0_353 = arith.constant 0 : index
    %c161 = arith.constant 161 : index
    %c0_354 = arith.constant 0 : index
    %237 = vector.load %arg1[%c0_353, %c161, %c0_354] : memref<1x256x4xf32, #tpu.memory_space<vmem>>, vector<1x14x4xf32>
    %238 = vector.shape_cast %237 : vector<1x14x4xf32> to vector<14x4xf32>
    %c112_355 = arith.constant 112 : index
    %c28_356 = arith.constant 28 : index
    %239 = vector.load %arg11[%c112_355, %c28_356] : memref<196x36xf32, #tpu.memory_space<vmem>>, vector<14x4xf32>
    tpu.vector_store %arg11[%c112_355, %c28_356], %238 {strides = array<i32>} : memref<196x36xf32, #tpu.memory_space<vmem>>, vector<14x4xf32>,
    %c0_357 = arith.constant 0 : index
    %c162 = arith.constant 162 : index
    %c0_358 = arith.constant 0 : index
    %240 = vector.load %arg1[%c0_357, %c162, %c0_358] : memref<1x256x4xf32, #tpu.memory_space<vmem>>, vector<1x14x4xf32>
    %241 = vector.shape_cast %240 : vector<1x14x4xf32> to vector<14x4xf32>
    %c112_359 = arith.constant 112 : index
    %c32_360 = arith.constant 32 : index
    %242 = vector.load %arg11[%c112_359, %c32_360] : memref<196x36xf32, #tpu.memory_space<vmem>>, vector<14x4xf32>
    tpu.vector_store %arg11[%c112_359, %c32_360], %241 {strides = array<i32>} : memref<196x36xf32, #tpu.memory_space<vmem>>, vector<14x4xf32>,
    %c0_361 = arith.constant 0 : index
    %c144_362 = arith.constant 144 : index
    %c0_363 = arith.constant 0 : index
    %243 = vector.load %arg1[%c0_361, %c144_362, %c0_363] : memref<1x256x4xf32, #tpu.memory_space<vmem>>, vector<1x14x4xf32>
    %244 = vector.shape_cast %243 : vector<1x14x4xf32> to vector<14x4xf32>
    %c126 = arith.constant 126 : index
    %c0_364 = arith.constant 0 : index
    %245 = vector.load %arg11[%c126, %c0_364] : memref<196x36xf32, #tpu.memory_space<vmem>>, vector<14x4xf32>
    tpu.vector_store %arg11[%c126, %c0_364], %244 {strides = array<i32>} : memref<196x36xf32, #tpu.memory_space<vmem>>, vector<14x4xf32>,
    %c0_365 = arith.constant 0 : index
    %c145_366 = arith.constant 145 : index
    %c0_367 = arith.constant 0 : index
    %246 = vector.load %arg1[%c0_365, %c145_366, %c0_367] : memref<1x256x4xf32, #tpu.memory_space<vmem>>, vector<1x14x4xf32>
    %247 = vector.shape_cast %246 : vector<1x14x4xf32> to vector<14x4xf32>
    %c126_368 = arith.constant 126 : index
    %c4_369 = arith.constant 4 : index
    %248 = vector.load %arg11[%c126_368, %c4_369] : memref<196x36xf32, #tpu.memory_space<vmem>>, vector<14x4xf32>
    tpu.vector_store %arg11[%c126_368, %c4_369], %247 {strides = array<i32>} : memref<196x36xf32, #tpu.memory_space<vmem>>, vector<14x4xf32>,
    %c0_370 = arith.constant 0 : index
    %c146_371 = arith.constant 146 : index
    %c0_372 = arith.constant 0 : index
    %249 = vector.load %arg1[%c0_370, %c146_371, %c0_372] : memref<1x256x4xf32, #tpu.memory_space<vmem>>, vector<1x14x4xf32>
    %250 = vector.shape_cast %249 : vector<1x14x4xf32> to vector<14x4xf32>
    %c126_373 = arith.constant 126 : index
    %c8_374 = arith.constant 8 : index
    %251 = vector.load %arg11[%c126_373, %c8_374] : memref<196x36xf32, #tpu.memory_space<vmem>>, vector<14x4xf32>
    tpu.vector_store %arg11[%c126_373, %c8_374], %250 {strides = array<i32>} : memref<196x36xf32, #tpu.memory_space<vmem>>, vector<14x4xf32>,
    %c0_375 = arith.constant 0 : index
    %c160_376 = arith.constant 160 : index
    %c0_377 = arith.constant 0 : index
    %252 = vector.load %arg1[%c0_375, %c160_376, %c0_377] : memref<1x256x4xf32, #tpu.memory_space<vmem>>, vector<1x14x4xf32>
    %253 = vector.shape_cast %252 : vector<1x14x4xf32> to vector<14x4xf32>
    %c126_378 = arith.constant 126 : index
    %c12_379 = arith.constant 12 : index
    %254 = vector.load %arg11[%c126_378, %c12_379] : memref<196x36xf32, #tpu.memory_space<vmem>>, vector<14x4xf32>
    tpu.vector_store %arg11[%c126_378, %c12_379], %253 {strides = array<i32>} : memref<196x36xf32, #tpu.memory_space<vmem>>, vector<14x4xf32>,
    %c0_380 = arith.constant 0 : index
    %c161_381 = arith.constant 161 : index
    %c0_382 = arith.constant 0 : index
    %255 = vector.load %arg1[%c0_380, %c161_381, %c0_382] : memref<1x256x4xf32, #tpu.memory_space<vmem>>, vector<1x14x4xf32>
    %256 = vector.shape_cast %255 : vector<1x14x4xf32> to vector<14x4xf32>
    %c126_383 = arith.constant 126 : index
    %c16_384 = arith.constant 16 : index
    %257 = vector.load %arg11[%c126_383, %c16_384] : memref<196x36xf32, #tpu.memory_space<vmem>>, vector<14x4xf32>
    tpu.vector_store %arg11[%c126_383, %c16_384], %256 {strides = array<i32>} : memref<196x36xf32, #tpu.memory_space<vmem>>, vector<14x4xf32>,
    %c0_385 = arith.constant 0 : index
    %c162_386 = arith.constant 162 : index
    %c0_387 = arith.constant 0 : index
    %258 = vector.load %arg1[%c0_385, %c162_386, %c0_387] : memref<1x256x4xf32, #tpu.memory_space<vmem>>, vector<1x14x4xf32>
    %259 = vector.shape_cast %258 : vector<1x14x4xf32> to vector<14x4xf32>
    %c126_388 = arith.constant 126 : index
    %c20_389 = arith.constant 20 : index
    %260 = vector.load %arg11[%c126_388, %c20_389] : memref<196x36xf32, #tpu.memory_space<vmem>>, vector<14x4xf32>
    tpu.vector_store %arg11[%c126_388, %c20_389], %259 {strides = array<i32>} : memref<196x36xf32, #tpu.memory_space<vmem>>, vector<14x4xf32>,
    %c0_390 = arith.constant 0 : index
    %c176 = arith.constant 176 : index
    %c0_391 = arith.constant 0 : index
    %261 = vector.load %arg1[%c0_390, %c176, %c0_391] : memref<1x256x4xf32, #tpu.memory_space<vmem>>, vector<1x14x4xf32>
    %262 = vector.shape_cast %261 : vector<1x14x4xf32> to vector<14x4xf32>
    %c126_392 = arith.constant 126 : index
    %c24_393 = arith.constant 24 : index
    %263 = vector.load %arg11[%c126_392, %c24_393] : memref<196x36xf32, #tpu.memory_space<vmem>>, vector<14x4xf32>
    tpu.vector_store %arg11[%c126_392, %c24_393], %262 {strides = array<i32>} : memref<196x36xf32, #tpu.memory_space<vmem>>, vector<14x4xf32>,
    %c0_394 = arith.constant 0 : index
    %c177 = arith.constant 177 : index
    %c0_395 = arith.constant 0 : index
    %264 = vector.load %arg1[%c0_394, %c177, %c0_395] : memref<1x256x4xf32, #tpu.memory_space<vmem>>, vector<1x14x4xf32>
    %265 = vector.shape_cast %264 : vector<1x14x4xf32> to vector<14x4xf32>
    %c126_396 = arith.constant 126 : index
    %c28_397 = arith.constant 28 : index
    %266 = vector.load %arg11[%c126_396, %c28_397] : memref<196x36xf32, #tpu.memory_space<vmem>>, vector<14x4xf32>
    tpu.vector_store %arg11[%c126_396, %c28_397], %265 {strides = array<i32>} : memref<196x36xf32, #tpu.memory_space<vmem>>, vector<14x4xf32>,
    %c0_398 = arith.constant 0 : index
    %c178 = arith.constant 178 : index
    %c0_399 = arith.constant 0 : index
    %267 = vector.load %arg1[%c0_398, %c178, %c0_399] : memref<1x256x4xf32, #tpu.memory_space<vmem>>, vector<1x14x4xf32>
    %268 = vector.shape_cast %267 : vector<1x14x4xf32> to vector<14x4xf32>
    %c126_400 = arith.constant 126 : index
    %c32_401 = arith.constant 32 : index
    %269 = vector.load %arg11[%c126_400, %c32_401] : memref<196x36xf32, #tpu.memory_space<vmem>>, vector<14x4xf32>
    tpu.vector_store %arg11[%c126_400, %c32_401], %268 {strides = array<i32>} : memref<196x36xf32, #tpu.memory_space<vmem>>, vector<14x4xf32>,
    %c0_402 = arith.constant 0 : index
    %c160_403 = arith.constant 160 : index
    %c0_404 = arith.constant 0 : index
    %270 = vector.load %arg1[%c0_402, %c160_403, %c0_404] : memref<1x256x4xf32, #tpu.memory_space<vmem>>, vector<1x14x4xf32>
    %271 = vector.shape_cast %270 : vector<1x14x4xf32> to vector<14x4xf32>
    %c140 = arith.constant 140 : index
    %c0_405 = arith.constant 0 : index
    %272 = vector.load %arg11[%c140, %c0_405] : memref<196x36xf32, #tpu.memory_space<vmem>>, vector<14x4xf32>
    tpu.vector_store %arg11[%c140, %c0_405], %271 {strides = array<i32>} : memref<196x36xf32, #tpu.memory_space<vmem>>, vector<14x4xf32>,
    %c0_406 = arith.constant 0 : index
    %c161_407 = arith.constant 161 : index
    %c0_408 = arith.constant 0 : index
    %273 = vector.load %arg1[%c0_406, %c161_407, %c0_408] : memref<1x256x4xf32, #tpu.memory_space<vmem>>, vector<1x14x4xf32>
    %274 = vector.shape_cast %273 : vector<1x14x4xf32> to vector<14x4xf32>
    %c140_409 = arith.constant 140 : index
    %c4_410 = arith.constant 4 : index
    %275 = vector.load %arg11[%c140_409, %c4_410] : memref<196x36xf32, #tpu.memory_space<vmem>>, vector<14x4xf32>
    tpu.vector_store %arg11[%c140_409, %c4_410], %274 {strides = array<i32>} : memref<196x36xf32, #tpu.memory_space<vmem>>, vector<14x4xf32>,
    %c0_411 = arith.constant 0 : index
    %c162_412 = arith.constant 162 : index
    %c0_413 = arith.constant 0 : index
    %276 = vector.load %arg1[%c0_411, %c162_412, %c0_413] : memref<1x256x4xf32, #tpu.memory_space<vmem>>, vector<1x14x4xf32>
    %277 = vector.shape_cast %276 : vector<1x14x4xf32> to vector<14x4xf32>
    %c140_414 = arith.constant 140 : index
    %c8_415 = arith.constant 8 : index
    %278 = vector.load %arg11[%c140_414, %c8_415] : memref<196x36xf32, #tpu.memory_space<vmem>>, vector<14x4xf32>
    tpu.vector_store %arg11[%c140_414, %c8_415], %277 {strides = array<i32>} : memref<196x36xf32, #tpu.memory_space<vmem>>, vector<14x4xf32>,
    %c0_416 = arith.constant 0 : index
    %c176_417 = arith.constant 176 : index
    %c0_418 = arith.constant 0 : index
    %279 = vector.load %arg1[%c0_416, %c176_417, %c0_418] : memref<1x256x4xf32, #tpu.memory_space<vmem>>, vector<1x14x4xf32>
    %280 = vector.shape_cast %279 : vector<1x14x4xf32> to vector<14x4xf32>
    %c140_419 = arith.constant 140 : index
    %c12_420 = arith.constant 12 : index
    %281 = vector.load %arg11[%c140_419, %c12_420] : memref<196x36xf32, #tpu.memory_space<vmem>>, vector<14x4xf32>
    tpu.vector_store %arg11[%c140_419, %c12_420], %280 {strides = array<i32>} : memref<196x36xf32, #tpu.memory_space<vmem>>, vector<14x4xf32>,
    %c0_421 = arith.constant 0 : index
    %c177_422 = arith.constant 177 : index
    %c0_423 = arith.constant 0 : index
    %282 = vector.load %arg1[%c0_421, %c177_422, %c0_423] : memref<1x256x4xf32, #tpu.memory_space<vmem>>, vector<1x14x4xf32>
    %283 = vector.shape_cast %282 : vector<1x14x4xf32> to vector<14x4xf32>
    %c140_424 = arith.constant 140 : index
    %c16_425 = arith.constant 16 : index
    %284 = vector.load %arg11[%c140_424, %c16_425] : memref<196x36xf32, #tpu.memory_space<vmem>>, vector<14x4xf32>
    tpu.vector_store %arg11[%c140_424, %c16_425], %283 {strides = array<i32>} : memref<196x36xf32, #tpu.memory_space<vmem>>, vector<14x4xf32>,
    %c0_426 = arith.constant 0 : index
    %c178_427 = arith.constant 178 : index
    %c0_428 = arith.constant 0 : index
    %285 = vector.load %arg1[%c0_426, %c178_427, %c0_428] : memref<1x256x4xf32, #tpu.memory_space<vmem>>, vector<1x14x4xf32>
    %286 = vector.shape_cast %285 : vector<1x14x4xf32> to vector<14x4xf32>
    %c140_429 = arith.constant 140 : index
    %c20_430 = arith.constant 20 : index
    %287 = vector.load %arg11[%c140_429, %c20_430] : memref<196x36xf32, #tpu.memory_space<vmem>>, vector<14x4xf32>
    tpu.vector_store %arg11[%c140_429, %c20_430], %286 {strides = array<i32>} : memref<196x36xf32, #tpu.memory_space<vmem>>, vector<14x4xf32>,
    %c0_431 = arith.constant 0 : index
    %c192 = arith.constant 192 : index
    %c0_432 = arith.constant 0 : index
    %288 = vector.load %arg1[%c0_431, %c192, %c0_432] : memref<1x256x4xf32, #tpu.memory_space<vmem>>, vector<1x14x4xf32>
    %289 = vector.shape_cast %288 : vector<1x14x4xf32> to vector<14x4xf32>
    %c140_433 = arith.constant 140 : index
    %c24_434 = arith.constant 24 : index
    %290 = vector.load %arg11[%c140_433, %c24_434] : memref<196x36xf32, #tpu.memory_space<vmem>>, vector<14x4xf32>
    tpu.vector_store %arg11[%c140_433, %c24_434], %289 {strides = array<i32>} : memref<196x36xf32, #tpu.memory_space<vmem>>, vector<14x4xf32>,
    %c0_435 = arith.constant 0 : index
    %c193 = arith.constant 193 : index
    %c0_436 = arith.constant 0 : index
    %291 = vector.load %arg1[%c0_435, %c193, %c0_436] : memref<1x256x4xf32, #tpu.memory_space<vmem>>, vector<1x14x4xf32>
    %292 = vector.shape_cast %291 : vector<1x14x4xf32> to vector<14x4xf32>
    %c140_437 = arith.constant 140 : index
    %c28_438 = arith.constant 28 : index
    %293 = vector.load %arg11[%c140_437, %c28_438] : memref<196x36xf32, #tpu.memory_space<vmem>>, vector<14x4xf32>
    tpu.vector_store %arg11[%c140_437, %c28_438], %292 {strides = array<i32>} : memref<196x36xf32, #tpu.memory_space<vmem>>, vector<14x4xf32>,
    %c0_439 = arith.constant 0 : index
    %c194 = arith.constant 194 : index
    %c0_440 = arith.constant 0 : index
    %294 = vector.load %arg1[%c0_439, %c194, %c0_440] : memref<1x256x4xf32, #tpu.memory_space<vmem>>, vector<1x14x4xf32>
    %295 = vector.shape_cast %294 : vector<1x14x4xf32> to vector<14x4xf32>
    %c140_441 = arith.constant 140 : index
    %c32_442 = arith.constant 32 : index
    %296 = vector.load %arg11[%c140_441, %c32_442] : memref<196x36xf32, #tpu.memory_space<vmem>>, vector<14x4xf32>
    tpu.vector_store %arg11[%c140_441, %c32_442], %295 {strides = array<i32>} : memref<196x36xf32, #tpu.memory_space<vmem>>, vector<14x4xf32>,
    %c0_443 = arith.constant 0 : index
    %c176_444 = arith.constant 176 : index
    %c0_445 = arith.constant 0 : index
    %297 = vector.load %arg1[%c0_443, %c176_444, %c0_445] : memref<1x256x4xf32, #tpu.memory_space<vmem>>, vector<1x14x4xf32>
    %298 = vector.shape_cast %297 : vector<1x14x4xf32> to vector<14x4xf32>
    %c154 = arith.constant 154 : index
    %c0_446 = arith.constant 0 : index
    %299 = vector.load %arg11[%c154, %c0_446] : memref<196x36xf32, #tpu.memory_space<vmem>>, vector<14x4xf32>
    tpu.vector_store %arg11[%c154, %c0_446], %298 {strides = array<i32>} : memref<196x36xf32, #tpu.memory_space<vmem>>, vector<14x4xf32>,
    %c0_447 = arith.constant 0 : index
    %c177_448 = arith.constant 177 : index
    %c0_449 = arith.constant 0 : index
    %300 = vector.load %arg1[%c0_447, %c177_448, %c0_449] : memref<1x256x4xf32, #tpu.memory_space<vmem>>, vector<1x14x4xf32>
    %301 = vector.shape_cast %300 : vector<1x14x4xf32> to vector<14x4xf32>
    %c154_450 = arith.constant 154 : index
    %c4_451 = arith.constant 4 : index
    %302 = vector.load %arg11[%c154_450, %c4_451] : memref<196x36xf32, #tpu.memory_space<vmem>>, vector<14x4xf32>
    tpu.vector_store %arg11[%c154_450, %c4_451], %301 {strides = array<i32>} : memref<196x36xf32, #tpu.memory_space<vmem>>, vector<14x4xf32>,
    %c0_452 = arith.constant 0 : index
    %c178_453 = arith.constant 178 : index
    %c0_454 = arith.constant 0 : index
    %303 = vector.load %arg1[%c0_452, %c178_453, %c0_454] : memref<1x256x4xf32, #tpu.memory_space<vmem>>, vector<1x14x4xf32>
    %304 = vector.shape_cast %303 : vector<1x14x4xf32> to vector<14x4xf32>
    %c154_455 = arith.constant 154 : index
    %c8_456 = arith.constant 8 : index
    %305 = vector.load %arg11[%c154_455, %c8_456] : memref<196x36xf32, #tpu.memory_space<vmem>>, vector<14x4xf32>
    tpu.vector_store %arg11[%c154_455, %c8_456], %304 {strides = array<i32>} : memref<196x36xf32, #tpu.memory_space<vmem>>, vector<14x4xf32>,
    %c0_457 = arith.constant 0 : index
    %c192_458 = arith.constant 192 : index
    %c0_459 = arith.constant 0 : index
    %306 = vector.load %arg1[%c0_457, %c192_458, %c0_459] : memref<1x256x4xf32, #tpu.memory_space<vmem>>, vector<1x14x4xf32>
    %307 = vector.shape_cast %306 : vector<1x14x4xf32> to vector<14x4xf32>
    %c154_460 = arith.constant 154 : index
    %c12_461 = arith.constant 12 : index
    %308 = vector.load %arg11[%c154_460, %c12_461] : memref<196x36xf32, #tpu.memory_space<vmem>>, vector<14x4xf32>
    tpu.vector_store %arg11[%c154_460, %c12_461], %307 {strides = array<i32>} : memref<196x36xf32, #tpu.memory_space<vmem>>, vector<14x4xf32>,
    %c0_462 = arith.constant 0 : index
    %c193_463 = arith.constant 193 : index
    %c0_464 = arith.constant 0 : index
    %309 = vector.load %arg1[%c0_462, %c193_463, %c0_464] : memref<1x256x4xf32, #tpu.memory_space<vmem>>, vector<1x14x4xf32>
    %310 = vector.shape_cast %309 : vector<1x14x4xf32> to vector<14x4xf32>
    %c154_465 = arith.constant 154 : index
    %c16_466 = arith.constant 16 : index
    %311 = vector.load %arg11[%c154_465, %c16_466] : memref<196x36xf32, #tpu.memory_space<vmem>>, vector<14x4xf32>
    tpu.vector_store %arg11[%c154_465, %c16_466], %310 {strides = array<i32>} : memref<196x36xf32, #tpu.memory_space<vmem>>, vector<14x4xf32>,
    %c0_467 = arith.constant 0 : index
    %c194_468 = arith.constant 194 : index
    %c0_469 = arith.constant 0 : index
    %312 = vector.load %arg1[%c0_467, %c194_468, %c0_469] : memref<1x256x4xf32, #tpu.memory_space<vmem>>, vector<1x14x4xf32>
    %313 = vector.shape_cast %312 : vector<1x14x4xf32> to vector<14x4xf32>
    %c154_470 = arith.constant 154 : index
    %c20_471 = arith.constant 20 : index
    %314 = vector.load %arg11[%c154_470, %c20_471] : memref<196x36xf32, #tpu.memory_space<vmem>>, vector<14x4xf32>
    tpu.vector_store %arg11[%c154_470, %c20_471], %313 {strides = array<i32>} : memref<196x36xf32, #tpu.memory_space<vmem>>, vector<14x4xf32>,
    %c0_472 = arith.constant 0 : index
    %c208 = arith.constant 208 : index
    %c0_473 = arith.constant 0 : index
    %315 = vector.load %arg1[%c0_472, %c208, %c0_473] : memref<1x256x4xf32, #tpu.memory_space<vmem>>, vector<1x14x4xf32>
    %316 = vector.shape_cast %315 : vector<1x14x4xf32> to vector<14x4xf32>
    %c154_474 = arith.constant 154 : index
    %c24_475 = arith.constant 24 : index
    %317 = vector.load %arg11[%c154_474, %c24_475] : memref<196x36xf32, #tpu.memory_space<vmem>>, vector<14x4xf32>
    tpu.vector_store %arg11[%c154_474, %c24_475], %316 {strides = array<i32>} : memref<196x36xf32, #tpu.memory_space<vmem>>, vector<14x4xf32>,
    %c0_476 = arith.constant 0 : index
    %c209 = arith.constant 209 : index
    %c0_477 = arith.constant 0 : index
    %318 = vector.load %arg1[%c0_476, %c209, %c0_477] : memref<1x256x4xf32, #tpu.memory_space<vmem>>, vector<1x14x4xf32>
    %319 = vector.shape_cast %318 : vector<1x14x4xf32> to vector<14x4xf32>
    %c154_478 = arith.constant 154 : index
    %c28_479 = arith.constant 28 : index
    %320 = vector.load %arg11[%c154_478, %c28_479] : memref<196x36xf32, #tpu.memory_space<vmem>>, vector<14x4xf32>
    tpu.vector_store %arg11[%c154_478, %c28_479], %319 {strides = array<i32>} : memref<196x36xf32, #tpu.memory_space<vmem>>, vector<14x4xf32>,
    %c0_480 = arith.constant 0 : index
    %c210 = arith.constant 210 : index
    %c0_481 = arith.constant 0 : index
    %321 = vector.load %arg1[%c0_480, %c210, %c0_481] : memref<1x256x4xf32, #tpu.memory_space<vmem>>, vector<1x14x4xf32>
    %322 = vector.shape_cast %321 : vector<1x14x4xf32> to vector<14x4xf32>
    %c154_482 = arith.constant 154 : index
    %c32_483 = arith.constant 32 : index
    %323 = vector.load %arg11[%c154_482, %c32_483] : memref<196x36xf32, #tpu.memory_space<vmem>>, vector<14x4xf32>
    tpu.vector_store %arg11[%c154_482, %c32_483], %322 {strides = array<i32>} : memref<196x36xf32, #tpu.memory_space<vmem>>, vector<14x4xf32>,
    %c0_484 = arith.constant 0 : index
    %c192_485 = arith.constant 192 : index
    %c0_486 = arith.constant 0 : index
    %324 = vector.load %arg1[%c0_484, %c192_485, %c0_486] : memref<1x256x4xf32, #tpu.memory_space<vmem>>, vector<1x14x4xf32>
    %325 = vector.shape_cast %324 : vector<1x14x4xf32> to vector<14x4xf32>
    %c168 = arith.constant 168 : index
    %c0_487 = arith.constant 0 : index
    %326 = vector.load %arg11[%c168, %c0_487] : memref<196x36xf32, #tpu.memory_space<vmem>>, vector<14x4xf32>
    tpu.vector_store %arg11[%c168, %c0_487], %325 {strides = array<i32>} : memref<196x36xf32, #tpu.memory_space<vmem>>, vector<14x4xf32>,
    %c0_488 = arith.constant 0 : index
    %c193_489 = arith.constant 193 : index
    %c0_490 = arith.constant 0 : index
    %327 = vector.load %arg1[%c0_488, %c193_489, %c0_490] : memref<1x256x4xf32, #tpu.memory_space<vmem>>, vector<1x14x4xf32>
    %328 = vector.shape_cast %327 : vector<1x14x4xf32> to vector<14x4xf32>
    %c168_491 = arith.constant 168 : index
    %c4_492 = arith.constant 4 : index
    %329 = vector.load %arg11[%c168_491, %c4_492] : memref<196x36xf32, #tpu.memory_space<vmem>>, vector<14x4xf32>
    tpu.vector_store %arg11[%c168_491, %c4_492], %328 {strides = array<i32>} : memref<196x36xf32, #tpu.memory_space<vmem>>, vector<14x4xf32>,
    %c0_493 = arith.constant 0 : index
    %c194_494 = arith.constant 194 : index
    %c0_495 = arith.constant 0 : index
    %330 = vector.load %arg1[%c0_493, %c194_494, %c0_495] : memref<1x256x4xf32, #tpu.memory_space<vmem>>, vector<1x14x4xf32>
    %331 = vector.shape_cast %330 : vector<1x14x4xf32> to vector<14x4xf32>
    %c168_496 = arith.constant 168 : index
    %c8_497 = arith.constant 8 : index
    %332 = vector.load %arg11[%c168_496, %c8_497] : memref<196x36xf32, #tpu.memory_space<vmem>>, vector<14x4xf32>
    tpu.vector_store %arg11[%c168_496, %c8_497], %331 {strides = array<i32>} : memref<196x36xf32, #tpu.memory_space<vmem>>, vector<14x4xf32>,
    %c0_498 = arith.constant 0 : index
    %c208_499 = arith.constant 208 : index
    %c0_500 = arith.constant 0 : index
    %333 = vector.load %arg1[%c0_498, %c208_499, %c0_500] : memref<1x256x4xf32, #tpu.memory_space<vmem>>, vector<1x14x4xf32>
    %334 = vector.shape_cast %333 : vector<1x14x4xf32> to vector<14x4xf32>
    %c168_501 = arith.constant 168 : index
    %c12_502 = arith.constant 12 : index
    %335 = vector.load %arg11[%c168_501, %c12_502] : memref<196x36xf32, #tpu.memory_space<vmem>>, vector<14x4xf32>
    tpu.vector_store %arg11[%c168_501, %c12_502], %334 {strides = array<i32>} : memref<196x36xf32, #tpu.memory_space<vmem>>, vector<14x4xf32>,
    %c0_503 = arith.constant 0 : index
    %c209_504 = arith.constant 209 : index
    %c0_505 = arith.constant 0 : index
    %336 = vector.load %arg1[%c0_503, %c209_504, %c0_505] : memref<1x256x4xf32, #tpu.memory_space<vmem>>, vector<1x14x4xf32>
    %337 = vector.shape_cast %336 : vector<1x14x4xf32> to vector<14x4xf32>
    %c168_506 = arith.constant 168 : index
    %c16_507 = arith.constant 16 : index
    %338 = vector.load %arg11[%c168_506, %c16_507] : memref<196x36xf32, #tpu.memory_space<vmem>>, vector<14x4xf32>
    tpu.vector_store %arg11[%c168_506, %c16_507], %337 {strides = array<i32>} : memref<196x36xf32, #tpu.memory_space<vmem>>, vector<14x4xf32>,
    %c0_508 = arith.constant 0 : index
    %c210_509 = arith.constant 210 : index
    %c0_510 = arith.constant 0 : index
    %339 = vector.load %arg1[%c0_508, %c210_509, %c0_510] : memref<1x256x4xf32, #tpu.memory_space<vmem>>, vector<1x14x4xf32>
    %340 = vector.shape_cast %339 : vector<1x14x4xf32> to vector<14x4xf32>
    %c168_511 = arith.constant 168 : index
    %c20_512 = arith.constant 20 : index
    %341 = vector.load %arg11[%c168_511, %c20_512] : memref<196x36xf32, #tpu.memory_space<vmem>>, vector<14x4xf32>
    tpu.vector_store %arg11[%c168_511, %c20_512], %340 {strides = array<i32>} : memref<196x36xf32, #tpu.memory_space<vmem>>, vector<14x4xf32>,
    %c0_513 = arith.constant 0 : index
    %c224 = arith.constant 224 : index
    %c0_514 = arith.constant 0 : index
    %342 = vector.load %arg1[%c0_513, %c224, %c0_514] : memref<1x256x4xf32, #tpu.memory_space<vmem>>, vector<1x14x4xf32>
    %343 = vector.shape_cast %342 : vector<1x14x4xf32> to vector<14x4xf32>
    %c168_515 = arith.constant 168 : index
    %c24_516 = arith.constant 24 : index
    %344 = vector.load %arg11[%c168_515, %c24_516] : memref<196x36xf32, #tpu.memory_space<vmem>>, vector<14x4xf32>
    tpu.vector_store %arg11[%c168_515, %c24_516], %343 {strides = array<i32>} : memref<196x36xf32, #tpu.memory_space<vmem>>, vector<14x4xf32>,
    %c0_517 = arith.constant 0 : index
    %c225 = arith.constant 225 : index
    %c0_518 = arith.constant 0 : index
    %345 = vector.load %arg1[%c0_517, %c225, %c0_518] : memref<1x256x4xf32, #tpu.memory_space<vmem>>, vector<1x14x4xf32>
    %346 = vector.shape_cast %345 : vector<1x14x4xf32> to vector<14x4xf32>
    %c168_519 = arith.constant 168 : index
    %c28_520 = arith.constant 28 : index
    %347 = vector.load %arg11[%c168_519, %c28_520] : memref<196x36xf32, #tpu.memory_space<vmem>>, vector<14x4xf32>
    tpu.vector_store %arg11[%c168_519, %c28_520], %346 {strides = array<i32>} : memref<196x36xf32, #tpu.memory_space<vmem>>, vector<14x4xf32>,
    %c0_521 = arith.constant 0 : index
    %c226 = arith.constant 226 : index
    %c0_522 = arith.constant 0 : index
    %348 = vector.load %arg1[%c0_521, %c226, %c0_522] : memref<1x256x4xf32, #tpu.memory_space<vmem>>, vector<1x14x4xf32>
    %349 = vector.shape_cast %348 : vector<1x14x4xf32> to vector<14x4xf32>
    %c168_523 = arith.constant 168 : index
    %c32_524 = arith.constant 32 : index
    %350 = vector.load %arg11[%c168_523, %c32_524] : memref<196x36xf32, #tpu.memory_space<vmem>>, vector<14x4xf32>
    tpu.vector_store %arg11[%c168_523, %c32_524], %349 {strides = array<i32>} : memref<196x36xf32, #tpu.memory_space<vmem>>, vector<14x4xf32>,
    %c0_525 = arith.constant 0 : index
    %c208_526 = arith.constant 208 : index
    %c0_527 = arith.constant 0 : index
    %351 = vector.load %arg1[%c0_525, %c208_526, %c0_527] : memref<1x256x4xf32, #tpu.memory_space<vmem>>, vector<1x14x4xf32>
    %352 = vector.shape_cast %351 : vector<1x14x4xf32> to vector<14x4xf32>
    %c182 = arith.constant 182 : index
    %c0_528 = arith.constant 0 : index
    %353 = vector.load %arg11[%c182, %c0_528] : memref<196x36xf32, #tpu.memory_space<vmem>>, vector<14x4xf32>
    tpu.vector_store %arg11[%c182, %c0_528], %352 {strides = array<i32>} : memref<196x36xf32, #tpu.memory_space<vmem>>, vector<14x4xf32>,
    %c0_529 = arith.constant 0 : index
    %c209_530 = arith.constant 209 : index
    %c0_531 = arith.constant 0 : index
    %354 = vector.load %arg1[%c0_529, %c209_530, %c0_531] : memref<1x256x4xf32, #tpu.memory_space<vmem>>, vector<1x14x4xf32>
    %355 = vector.shape_cast %354 : vector<1x14x4xf32> to vector<14x4xf32>
    %c182_532 = arith.constant 182 : index
    %c4_533 = arith.constant 4 : index
    %356 = vector.load %arg11[%c182_532, %c4_533] : memref<196x36xf32, #tpu.memory_space<vmem>>, vector<14x4xf32>
    tpu.vector_store %arg11[%c182_532, %c4_533], %355 {strides = array<i32>} : memref<196x36xf32, #tpu.memory_space<vmem>>, vector<14x4xf32>,
    %c0_534 = arith.constant 0 : index
    %c210_535 = arith.constant 210 : index
    %c0_536 = arith.constant 0 : index
    %357 = vector.load %arg1[%c0_534, %c210_535, %c0_536] : memref<1x256x4xf32, #tpu.memory_space<vmem>>, vector<1x14x4xf32>
    %358 = vector.shape_cast %357 : vector<1x14x4xf32> to vector<14x4xf32>
    %c182_537 = arith.constant 182 : index
    %c8_538 = arith.constant 8 : index
    %359 = vector.load %arg11[%c182_537, %c8_538] : memref<196x36xf32, #tpu.memory_space<vmem>>, vector<14x4xf32>
    tpu.vector_store %arg11[%c182_537, %c8_538], %358 {strides = array<i32>} : memref<196x36xf32, #tpu.memory_space<vmem>>, vector<14x4xf32>,
    %c0_539 = arith.constant 0 : index
    %c224_540 = arith.constant 224 : index
    %c0_541 = arith.constant 0 : index
    %360 = vector.load %arg1[%c0_539, %c224_540, %c0_541] : memref<1x256x4xf32, #tpu.memory_space<vmem>>, vector<1x14x4xf32>
    %361 = vector.shape_cast %360 : vector<1x14x4xf32> to vector<14x4xf32>
    %c182_542 = arith.constant 182 : index
    %c12_543 = arith.constant 12 : index
    %362 = vector.load %arg11[%c182_542, %c12_543] : memref<196x36xf32, #tpu.memory_space<vmem>>, vector<14x4xf32>
    tpu.vector_store %arg11[%c182_542, %c12_543], %361 {strides = array<i32>} : memref<196x36xf32, #tpu.memory_space<vmem>>, vector<14x4xf32>,
    %c0_544 = arith.constant 0 : index
    %c225_545 = arith.constant 225 : index
    %c0_546 = arith.constant 0 : index
    %363 = vector.load %arg1[%c0_544, %c225_545, %c0_546] : memref<1x256x4xf32, #tpu.memory_space<vmem>>, vector<1x14x4xf32>
    %364 = vector.shape_cast %363 : vector<1x14x4xf32> to vector<14x4xf32>
    %c182_547 = arith.constant 182 : index
    %c16_548 = arith.constant 16 : index
    %365 = vector.load %arg11[%c182_547, %c16_548] : memref<196x36xf32, #tpu.memory_space<vmem>>, vector<14x4xf32>
    tpu.vector_store %arg11[%c182_547, %c16_548], %364 {strides = array<i32>} : memref<196x36xf32, #tpu.memory_space<vmem>>, vector<14x4xf32>,
    %c0_549 = arith.constant 0 : index
    %c226_550 = arith.constant 226 : index
    %c0_551 = arith.constant 0 : index
    %366 = vector.load %arg1[%c0_549, %c226_550, %c0_551] : memref<1x256x4xf32, #tpu.memory_space<vmem>>, vector<1x14x4xf32>
    %367 = vector.shape_cast %366 : vector<1x14x4xf32> to vector<14x4xf32>
    %c182_552 = arith.constant 182 : index
    %c20_553 = arith.constant 20 : index
    %368 = vector.load %arg11[%c182_552, %c20_553] : memref<196x36xf32, #tpu.memory_space<vmem>>, vector<14x4xf32>
    tpu.vector_store %arg11[%c182_552, %c20_553], %367 {strides = array<i32>} : memref<196x36xf32, #tpu.memory_space<vmem>>, vector<14x4xf32>,
    %c0_554 = arith.constant 0 : index
    %c240 = arith.constant 240 : index
    %c0_555 = arith.constant 0 : index
    %369 = vector.load %arg1[%c0_554, %c240, %c0_555] : memref<1x256x4xf32, #tpu.memory_space<vmem>>, vector<1x14x4xf32>
    %370 = vector.shape_cast %369 : vector<1x14x4xf32> to vector<14x4xf32>
    %c182_556 = arith.constant 182 : index
    %c24_557 = arith.constant 24 : index
    %371 = vector.load %arg11[%c182_556, %c24_557] : memref<196x36xf32, #tpu.memory_space<vmem>>, vector<14x4xf32>
    tpu.vector_store %arg11[%c182_556, %c24_557], %370 {strides = array<i32>} : memref<196x36xf32, #tpu.memory_space<vmem>>, vector<14x4xf32>,
    %c0_558 = arith.constant 0 : index
    %c241 = arith.constant 241 : index
    %c0_559 = arith.constant 0 : index
    %372 = vector.load %arg1[%c0_558, %c241, %c0_559] : memref<1x256x4xf32, #tpu.memory_space<vmem>>, vector<1x14x4xf32>
    %373 = vector.shape_cast %372 : vector<1x14x4xf32> to vector<14x4xf32>
    %c182_560 = arith.constant 182 : index
    %c28_561 = arith.constant 28 : index
    %374 = vector.load %arg11[%c182_560, %c28_561] : memref<196x36xf32, #tpu.memory_space<vmem>>, vector<14x4xf32>
    tpu.vector_store %arg11[%c182_560, %c28_561], %373 {strides = array<i32>} : memref<196x36xf32, #tpu.memory_space<vmem>>, vector<14x4xf32>,
    %c0_562 = arith.constant 0 : index
    %c242 = arith.constant 242 : index
    %c0_563 = arith.constant 0 : index
    %375 = vector.load %arg1[%c0_562, %c242, %c0_563] : memref<1x256x4xf32, #tpu.memory_space<vmem>>, vector<1x14x4xf32>
    %376 = vector.shape_cast %375 : vector<1x14x4xf32> to vector<14x4xf32>
    %c182_564 = arith.constant 182 : index
    %c32_565 = arith.constant 32 : index
    %377 = vector.load %arg11[%c182_564, %c32_565] : memref<196x36xf32, #tpu.memory_space<vmem>>, vector<14x4xf32>
    tpu.vector_store %arg11[%c182_564, %c32_565], %376 {strides = array<i32>} : memref<196x36xf32, #tpu.memory_space<vmem>>, vector<14x4xf32>,
    %c0_566 = arith.constant 0 : index
    %c0_567 = arith.constant 0 : index
    %378 = vector.load %arg11[%c0_566, %c0_567] : memref<196x36xf32, #tpu.memory_space<vmem>>, vector<196x36xf32>
    %379 = arith.truncf %378 : vector<196x36xf32> to vector<196x36xbf16>
    %c0_568 = arith.constant 0 : index
    %c0_569 = arith.constant 0 : index
    %380 = vector.load %arg2[%c0_568, %c0_569] : memref<36x128xbf16, #tpu.memory_space<vmem>>, vector<36x128xbf16>
    %cst = arith.constant dense<0.000000e+00> : vector<196x128xf32>
    %381 = tpu.matmul %379, %380, %cst {dimension_numbers = #tpu.dot_dimension_numbers<[1], [0], [0], [1], [0, 0, 1, 1], [], []>} : vector<196x36xbf16>, vector<36x128xbf16>, vector<196x128xf32> -> vector<196x128xf32>
    %c0_570 = arith.constant 0 : index
    %c0_571 = arith.constant 0 : index
    %382 = vector.load %arg3[%c0_570, %c0_571] : memref<1x128xf32, #tpu.memory_space<vmem>>, vector<1x128xf32>
    %383 = vector.broadcast %382 : vector<1x128xf32> to vector<196x128xf32>
    %384 = arith.addf %381, %383 : vector<196x128xf32>
    %cst_572 = arith.constant 0.000000e+00 : f32
    %385 = vector.broadcast %cst_572 : f32 to vector<196x128xf32>
    %386 = arith.maximumf %384, %385 : vector<196x128xf32>
    %c0_573 = arith.constant 0 : index
    %c0_574 = arith.constant 0 : index
    %387 = vector.load %arg15[%c0_573, %c0_574] : memref<196x128xf32, #tpu.memory_space<vmem>>, vector<196x128xf32>
    tpu.vector_store %arg15[%c0_573, %c0_574], %386 {strides = array<i32>} : memref<196x128xf32, #tpu.memory_space<vmem>>, vector<196x128xf32>,
    %c0_575 = arith.constant 0 : index
    %c0_576 = arith.constant 0 : index
    %388 = tpu.strided_load %arg15[%c0_575, %c0_576] {strides = array<i32: 2, 1>} : memref<196x128xf32, #tpu.memory_space<vmem>>, vector<6x128xf32>
    %c0_577 = arith.constant 0 : index
    %c0_578 = arith.constant 0 : index
    %389 = vector.load %arg12[%c0_577, %c0_578] : memref<36x1152xf32, #tpu.memory_space<vmem>>, vector<6x128xf32>
    tpu.vector_store %arg12[%c0_577, %c0_578], %388 {strides = array<i32>} : memref<36x1152xf32, #tpu.memory_space<vmem>>, vector<6x128xf32>,
    %c1_579 = arith.constant 1 : index
    %c0_580 = arith.constant 0 : index
    %390 = tpu.strided_load %arg15[%c1_579, %c0_580] {strides = array<i32: 2, 1>} : memref<196x128xf32, #tpu.memory_space<vmem>>, vector<6x128xf32>
    %c0_581 = arith.constant 0 : index
    %c128_582 = arith.constant 128 : index
    %391 = vector.load %arg12[%c0_581, %c128_582] : memref<36x1152xf32, #tpu.memory_space<vmem>>, vector<6x128xf32>
    tpu.vector_store %arg12[%c0_581, %c128_582], %390 {strides = array<i32>} : memref<36x1152xf32, #tpu.memory_space<vmem>>, vector<6x128xf32>,
    %c2_583 = arith.constant 2 : index
    %c0_584 = arith.constant 0 : index
    %392 = tpu.strided_load %arg15[%c2_583, %c0_584] {strides = array<i32: 2, 1>} : memref<196x128xf32, #tpu.memory_space<vmem>>, vector<6x128xf32>
    %c0_585 = arith.constant 0 : index
    %c256 = arith.constant 256 : index
    %393 = vector.load %arg12[%c0_585, %c256] : memref<36x1152xf32, #tpu.memory_space<vmem>>, vector<6x128xf32>
    tpu.vector_store %arg12[%c0_585, %c256], %392 {strides = array<i32>} : memref<36x1152xf32, #tpu.memory_space<vmem>>, vector<6x128xf32>,
    %c14_586 = arith.constant 14 : index
    %c0_587 = arith.constant 0 : index
    %394 = tpu.strided_load %arg15[%c14_586, %c0_587] {strides = array<i32: 2, 1>} : memref<196x128xf32, #tpu.memory_space<vmem>>, vector<6x128xf32>
    %c0_588 = arith.constant 0 : index
    %c384 = arith.constant 384 : index
    %395 = vector.load %arg12[%c0_588, %c384] : memref<36x1152xf32, #tpu.memory_space<vmem>>, vector<6x128xf32>
    tpu.vector_store %arg12[%c0_588, %c384], %394 {strides = array<i32>} : memref<36x1152xf32, #tpu.memory_space<vmem>>, vector<6x128xf32>,
    %c15 = arith.constant 15 : index
    %c0_589 = arith.constant 0 : index
    %396 = tpu.strided_load %arg15[%c15, %c0_589] {strides = array<i32: 2, 1>} : memref<196x128xf32, #tpu.memory_space<vmem>>, vector<6x128xf32>
    %c0_590 = arith.constant 0 : index
    %c512 = arith.constant 512 : index
    %397 = vector.load %arg12[%c0_590, %c512] : memref<36x1152xf32, #tpu.memory_space<vmem>>, vector<6x128xf32>
    tpu.vector_store %arg12[%c0_590, %c512], %396 {strides = array<i32>} : memref<36x1152xf32, #tpu.memory_space<vmem>>, vector<6x128xf32>,
    %c16_591 = arith.constant 16 : index
    %c0_592 = arith.constant 0 : index
    %398 = tpu.strided_load %arg15[%c16_591, %c0_592] {strides = array<i32: 2, 1>} : memref<196x128xf32, #tpu.memory_space<vmem>>, vector<6x128xf32>
    %c0_593 = arith.constant 0 : index
    %c640 = arith.constant 640 : index
    %399 = vector.load %arg12[%c0_593, %c640] : memref<36x1152xf32, #tpu.memory_space<vmem>>, vector<6x128xf32>
    tpu.vector_store %arg12[%c0_593, %c640], %398 {strides = array<i32>} : memref<36x1152xf32, #tpu.memory_space<vmem>>, vector<6x128xf32>,
    %c28_594 = arith.constant 28 : index
    %c0_595 = arith.constant 0 : index
    %400 = tpu.strided_load %arg15[%c28_594, %c0_595] {strides = array<i32: 2, 1>} : memref<196x128xf32, #tpu.memory_space<vmem>>, vector<6x128xf32>
    %c0_596 = arith.constant 0 : index
    %c768 = arith.constant 768 : index
    %401 = vector.load %arg12[%c0_596, %c768] : memref<36x1152xf32, #tpu.memory_space<vmem>>, vector<6x128xf32>
    tpu.vector_store %arg12[%c0_596, %c768], %400 {strides = array<i32>} : memref<36x1152xf32, #tpu.memory_space<vmem>>, vector<6x128xf32>,
    %c29 = arith.constant 29 : index
    %c0_597 = arith.constant 0 : index
    %402 = tpu.strided_load %arg15[%c29, %c0_597] {strides = array<i32: 2, 1>} : memref<196x128xf32, #tpu.memory_space<vmem>>, vector<6x128xf32>
    %c0_598 = arith.constant 0 : index
    %c896 = arith.constant 896 : index
    %403 = vector.load %arg12[%c0_598, %c896] : memref<36x1152xf32, #tpu.memory_space<vmem>>, vector<6x128xf32>
    tpu.vector_store %arg12[%c0_598, %c896], %402 {strides = array<i32>} : memref<36x1152xf32, #tpu.memory_space<vmem>>, vector<6x128xf32>,
    %c30 = arith.constant 30 : index
    %c0_599 = arith.constant 0 : index
    %404 = tpu.strided_load %arg15[%c30, %c0_599] {strides = array<i32: 2, 1>} : memref<196x128xf32, #tpu.memory_space<vmem>>, vector<6x128xf32>
    %c0_600 = arith.constant 0 : index
    %c1024 = arith.constant 1024 : index
    %405 = vector.load %arg12[%c0_600, %c1024] : memref<36x1152xf32, #tpu.memory_space<vmem>>, vector<6x128xf32>
    tpu.vector_store %arg12[%c0_600, %c1024], %404 {strides = array<i32>} : memref<36x1152xf32, #tpu.memory_space<vmem>>, vector<6x128xf32>,
    %c28_601 = arith.constant 28 : index
    %c0_602 = arith.constant 0 : index
    %406 = tpu.strided_load %arg15[%c28_601, %c0_602] {strides = array<i32: 2, 1>} : memref<196x128xf32, #tpu.memory_space<vmem>>, vector<6x128xf32>
    %c6 = arith.constant 6 : index
    %c0_603 = arith.constant 0 : index
    %407 = vector.load %arg12[%c6, %c0_603] : memref<36x1152xf32, #tpu.memory_space<vmem>>, vector<6x128xf32>
    tpu.vector_store %arg12[%c6, %c0_603], %406 {strides = array<i32>} : memref<36x1152xf32, #tpu.memory_space<vmem>>, vector<6x128xf32>,
    %c29_604 = arith.constant 29 : index
    %c0_605 = arith.constant 0 : index
    %408 = tpu.strided_load %arg15[%c29_604, %c0_605] {strides = array<i32: 2, 1>} : memref<196x128xf32, #tpu.memory_space<vmem>>, vector<6x128xf32>
    %c6_606 = arith.constant 6 : index
    %c128_607 = arith.constant 128 : index
    %409 = vector.load %arg12[%c6_606, %c128_607] : memref<36x1152xf32, #tpu.memory_space<vmem>>, vector<6x128xf32>
    tpu.vector_store %arg12[%c6_606, %c128_607], %408 {strides = array<i32>} : memref<36x1152xf32, #tpu.memory_space<vmem>>, vector<6x128xf32>,
    %c30_608 = arith.constant 30 : index
    %c0_609 = arith.constant 0 : index
    %410 = tpu.strided_load %arg15[%c30_608, %c0_609] {strides = array<i32: 2, 1>} : memref<196x128xf32, #tpu.memory_space<vmem>>, vector<6x128xf32>
    %c6_610 = arith.constant 6 : index
    %c256_611 = arith.constant 256 : index
    %411 = vector.load %arg12[%c6_610, %c256_611] : memref<36x1152xf32, #tpu.memory_space<vmem>>, vector<6x128xf32>
    tpu.vector_store %arg12[%c6_610, %c256_611], %410 {strides = array<i32>} : memref<36x1152xf32, #tpu.memory_space<vmem>>, vector<6x128xf32>,
    %c42_612 = arith.constant 42 : index
    %c0_613 = arith.constant 0 : index
    %412 = tpu.strided_load %arg15[%c42_612, %c0_613] {strides = array<i32: 2, 1>} : memref<196x128xf32, #tpu.memory_space<vmem>>, vector<6x128xf32>
    %c6_614 = arith.constant 6 : index
    %c384_615 = arith.constant 384 : index
    %413 = vector.load %arg12[%c6_614, %c384_615] : memref<36x1152xf32, #tpu.memory_space<vmem>>, vector<6x128xf32>
    tpu.vector_store %arg12[%c6_614, %c384_615], %412 {strides = array<i32>} : memref<36x1152xf32, #tpu.memory_space<vmem>>, vector<6x128xf32>,
    %c43 = arith.constant 43 : index
    %c0_616 = arith.constant 0 : index
    %414 = tpu.strided_load %arg15[%c43, %c0_616] {strides = array<i32: 2, 1>} : memref<196x128xf32, #tpu.memory_space<vmem>>, vector<6x128xf32>
    %c6_617 = arith.constant 6 : index
    %c512_618 = arith.constant 512 : index
    %415 = vector.load %arg12[%c6_617, %c512_618] : memref<36x1152xf32, #tpu.memory_space<vmem>>, vector<6x128xf32>
    tpu.vector_store %arg12[%c6_617, %c512_618], %414 {strides = array<i32>} : memref<36x1152xf32, #tpu.memory_space<vmem>>, vector<6x128xf32>,
    %c44 = arith.constant 44 : index
    %c0_619 = arith.constant 0 : index
    %416 = tpu.strided_load %arg15[%c44, %c0_619] {strides = array<i32: 2, 1>} : memref<196x128xf32, #tpu.memory_space<vmem>>, vector<6x128xf32>
    %c6_620 = arith.constant 6 : index
    %c640_621 = arith.constant 640 : index
    %417 = vector.load %arg12[%c6_620, %c640_621] : memref<36x1152xf32, #tpu.memory_space<vmem>>, vector<6x128xf32>
    tpu.vector_store %arg12[%c6_620, %c640_621], %416 {strides = array<i32>} : memref<36x1152xf32, #tpu.memory_space<vmem>>, vector<6x128xf32>,
    %c56_622 = arith.constant 56 : index
    %c0_623 = arith.constant 0 : index
    %418 = tpu.strided_load %arg15[%c56_622, %c0_623] {strides = array<i32: 2, 1>} : memref<196x128xf32, #tpu.memory_space<vmem>>, vector<6x128xf32>
    %c6_624 = arith.constant 6 : index
    %c768_625 = arith.constant 768 : index
    %419 = vector.load %arg12[%c6_624, %c768_625] : memref<36x1152xf32, #tpu.memory_space<vmem>>, vector<6x128xf32>
    tpu.vector_store %arg12[%c6_624, %c768_625], %418 {strides = array<i32>} : memref<36x1152xf32, #tpu.memory_space<vmem>>, vector<6x128xf32>,
    %c57 = arith.constant 57 : index
    %c0_626 = arith.constant 0 : index
    %420 = tpu.strided_load %arg15[%c57, %c0_626] {strides = array<i32: 2, 1>} : memref<196x128xf32, #tpu.memory_space<vmem>>, vector<6x128xf32>
    %c6_627 = arith.constant 6 : index
    %c896_628 = arith.constant 896 : index
    %421 = vector.load %arg12[%c6_627, %c896_628] : memref<36x1152xf32, #tpu.memory_space<vmem>>, vector<6x128xf32>
    tpu.vector_store %arg12[%c6_627, %c896_628], %420 {strides = array<i32>} : memref<36x1152xf32, #tpu.memory_space<vmem>>, vector<6x128xf32>,
    %c58 = arith.constant 58 : index
    %c0_629 = arith.constant 0 : index
    %422 = tpu.strided_load %arg15[%c58, %c0_629] {strides = array<i32: 2, 1>} : memref<196x128xf32, #tpu.memory_space<vmem>>, vector<6x128xf32>
    %c6_630 = arith.constant 6 : index
    %c1024_631 = arith.constant 1024 : index
    %423 = vector.load %arg12[%c6_630, %c1024_631] : memref<36x1152xf32, #tpu.memory_space<vmem>>, vector<6x128xf32>
    tpu.vector_store %arg12[%c6_630, %c1024_631], %422 {strides = array<i32>} : memref<36x1152xf32, #tpu.memory_space<vmem>>, vector<6x128xf32>,
    %c56_632 = arith.constant 56 : index
    %c0_633 = arith.constant 0 : index
    %424 = tpu.strided_load %arg15[%c56_632, %c0_633] {strides = array<i32: 2, 1>} : memref<196x128xf32, #tpu.memory_space<vmem>>, vector<6x128xf32>
    %c12_634 = arith.constant 12 : index
    %c0_635 = arith.constant 0 : index
    %425 = vector.load %arg12[%c12_634, %c0_635] : memref<36x1152xf32, #tpu.memory_space<vmem>>, vector<6x128xf32>
    tpu.vector_store %arg12[%c12_634, %c0_635], %424 {strides = array<i32>} : memref<36x1152xf32, #tpu.memory_space<vmem>>, vector<6x128xf32>,
    %c57_636 = arith.constant 57 : index
    %c0_637 = arith.constant 0 : index
    %426 = tpu.strided_load %arg15[%c57_636, %c0_637] {strides = array<i32: 2, 1>} : memref<196x128xf32, #tpu.memory_space<vmem>>, vector<6x128xf32>
    %c12_638 = arith.constant 12 : index
    %c128_639 = arith.constant 128 : index
    %427 = vector.load %arg12[%c12_638, %c128_639] : memref<36x1152xf32, #tpu.memory_space<vmem>>, vector<6x128xf32>
    tpu.vector_store %arg12[%c12_638, %c128_639], %426 {strides = array<i32>} : memref<36x1152xf32, #tpu.memory_space<vmem>>, vector<6x128xf32>,
    %c58_640 = arith.constant 58 : index
    %c0_641 = arith.constant 0 : index
    %428 = tpu.strided_load %arg15[%c58_640, %c0_641] {strides = array<i32: 2, 1>} : memref<196x128xf32, #tpu.memory_space<vmem>>, vector<6x128xf32>
    %c12_642 = arith.constant 12 : index
    %c256_643 = arith.constant 256 : index
    %429 = vector.load %arg12[%c12_642, %c256_643] : memref<36x1152xf32, #tpu.memory_space<vmem>>, vector<6x128xf32>
    tpu.vector_store %arg12[%c12_642, %c256_643], %428 {strides = array<i32>} : memref<36x1152xf32, #tpu.memory_space<vmem>>, vector<6x128xf32>,
    %c70_644 = arith.constant 70 : index
    %c0_645 = arith.constant 0 : index
    %430 = tpu.strided_load %arg15[%c70_644, %c0_645] {strides = array<i32: 2, 1>} : memref<196x128xf32, #tpu.memory_space<vmem>>, vector<6x128xf32>
    %c12_646 = arith.constant 12 : index
    %c384_647 = arith.constant 384 : index
    %431 = vector.load %arg12[%c12_646, %c384_647] : memref<36x1152xf32, #tpu.memory_space<vmem>>, vector<6x128xf32>
    tpu.vector_store %arg12[%c12_646, %c384_647], %430 {strides = array<i32>} : memref<36x1152xf32, #tpu.memory_space<vmem>>, vector<6x128xf32>,
    %c71 = arith.constant 71 : index
    %c0_648 = arith.constant 0 : index
    %432 = tpu.strided_load %arg15[%c71, %c0_648] {strides = array<i32: 2, 1>} : memref<196x128xf32, #tpu.memory_space<vmem>>, vector<6x128xf32>
    %c12_649 = arith.constant 12 : index
    %c512_650 = arith.constant 512 : index
    %433 = vector.load %arg12[%c12_649, %c512_650] : memref<36x1152xf32, #tpu.memory_space<vmem>>, vector<6x128xf32>
    tpu.vector_store %arg12[%c12_649, %c512_650], %432 {strides = array<i32>} : memref<36x1152xf32, #tpu.memory_space<vmem>>, vector<6x128xf32>,
    %c72 = arith.constant 72 : index
    %c0_651 = arith.constant 0 : index
    %434 = tpu.strided_load %arg15[%c72, %c0_651] {strides = array<i32: 2, 1>} : memref<196x128xf32, #tpu.memory_space<vmem>>, vector<6x128xf32>
    %c12_652 = arith.constant 12 : index
    %c640_653 = arith.constant 640 : index
    %435 = vector.load %arg12[%c12_652, %c640_653] : memref<36x1152xf32, #tpu.memory_space<vmem>>, vector<6x128xf32>
    tpu.vector_store %arg12[%c12_652, %c640_653], %434 {strides = array<i32>} : memref<36x1152xf32, #tpu.memory_space<vmem>>, vector<6x128xf32>,
    %c84_654 = arith.constant 84 : index
    %c0_655 = arith.constant 0 : index
    %436 = tpu.strided_load %arg15[%c84_654, %c0_655] {strides = array<i32: 2, 1>} : memref<196x128xf32, #tpu.memory_space<vmem>>, vector<6x128xf32>
    %c12_656 = arith.constant 12 : index
    %c768_657 = arith.constant 768 : index
    %437 = vector.load %arg12[%c12_656, %c768_657] : memref<36x1152xf32, #tpu.memory_space<vmem>>, vector<6x128xf32>
    tpu.vector_store %arg12[%c12_656, %c768_657], %436 {strides = array<i32>} : memref<36x1152xf32, #tpu.memory_space<vmem>>, vector<6x128xf32>,
    %c85 = arith.constant 85 : index
    %c0_658 = arith.constant 0 : index
    %438 = tpu.strided_load %arg15[%c85, %c0_658] {strides = array<i32: 2, 1>} : memref<196x128xf32, #tpu.memory_space<vmem>>, vector<6x128xf32>
    %c12_659 = arith.constant 12 : index
    %c896_660 = arith.constant 896 : index
    %439 = vector.load %arg12[%c12_659, %c896_660] : memref<36x1152xf32, #tpu.memory_space<vmem>>, vector<6x128xf32>
    tpu.vector_store %arg12[%c12_659, %c896_660], %438 {strides = array<i32>} : memref<36x1152xf32, #tpu.memory_space<vmem>>, vector<6x128xf32>,
    %c86 = arith.constant 86 : index
    %c0_661 = arith.constant 0 : index
    %440 = tpu.strided_load %arg15[%c86, %c0_661] {strides = array<i32: 2, 1>} : memref<196x128xf32, #tpu.memory_space<vmem>>, vector<6x128xf32>
    %c12_662 = arith.constant 12 : index
    %c1024_663 = arith.constant 1024 : index
    %441 = vector.load %arg12[%c12_662, %c1024_663] : memref<36x1152xf32, #tpu.memory_space<vmem>>, vector<6x128xf32>
    tpu.vector_store %arg12[%c12_662, %c1024_663], %440 {strides = array<i32>} : memref<36x1152xf32, #tpu.memory_space<vmem>>, vector<6x128xf32>,
    %c84_664 = arith.constant 84 : index
    %c0_665 = arith.constant 0 : index
    %442 = tpu.strided_load %arg15[%c84_664, %c0_665] {strides = array<i32: 2, 1>} : memref<196x128xf32, #tpu.memory_space<vmem>>, vector<6x128xf32>
    %c18_666 = arith.constant 18 : index
    %c0_667 = arith.constant 0 : index
    %443 = vector.load %arg12[%c18_666, %c0_667] : memref<36x1152xf32, #tpu.memory_space<vmem>>, vector<6x128xf32>
    tpu.vector_store %arg12[%c18_666, %c0_667], %442 {strides = array<i32>} : memref<36x1152xf32, #tpu.memory_space<vmem>>, vector<6x128xf32>,
    %c85_668 = arith.constant 85 : index
    %c0_669 = arith.constant 0 : index
    %444 = tpu.strided_load %arg15[%c85_668, %c0_669] {strides = array<i32: 2, 1>} : memref<196x128xf32, #tpu.memory_space<vmem>>, vector<6x128xf32>
    %c18_670 = arith.constant 18 : index
    %c128_671 = arith.constant 128 : index
    %445 = vector.load %arg12[%c18_670, %c128_671] : memref<36x1152xf32, #tpu.memory_space<vmem>>, vector<6x128xf32>
    tpu.vector_store %arg12[%c18_670, %c128_671], %444 {strides = array<i32>} : memref<36x1152xf32, #tpu.memory_space<vmem>>, vector<6x128xf32>,
    %c86_672 = arith.constant 86 : index
    %c0_673 = arith.constant 0 : index
    %446 = tpu.strided_load %arg15[%c86_672, %c0_673] {strides = array<i32: 2, 1>} : memref<196x128xf32, #tpu.memory_space<vmem>>, vector<6x128xf32>
    %c18_674 = arith.constant 18 : index
    %c256_675 = arith.constant 256 : index
    %447 = vector.load %arg12[%c18_674, %c256_675] : memref<36x1152xf32, #tpu.memory_space<vmem>>, vector<6x128xf32>
    tpu.vector_store %arg12[%c18_674, %c256_675], %446 {strides = array<i32>} : memref<36x1152xf32, #tpu.memory_space<vmem>>, vector<6x128xf32>,
    %c98_676 = arith.constant 98 : index
    %c0_677 = arith.constant 0 : index
    %448 = tpu.strided_load %arg15[%c98_676, %c0_677] {strides = array<i32: 2, 1>} : memref<196x128xf32, #tpu.memory_space<vmem>>, vector<6x128xf32>
    %c18_678 = arith.constant 18 : index
    %c384_679 = arith.constant 384 : index
    %449 = vector.load %arg12[%c18_678, %c384_679] : memref<36x1152xf32, #tpu.memory_space<vmem>>, vector<6x128xf32>
    tpu.vector_store %arg12[%c18_678, %c384_679], %448 {strides = array<i32>} : memref<36x1152xf32, #tpu.memory_space<vmem>>, vector<6x128xf32>,
    %c99 = arith.constant 99 : index
    %c0_680 = arith.constant 0 : index
    %450 = tpu.strided_load %arg15[%c99, %c0_680] {strides = array<i32: 2, 1>} : memref<196x128xf32, #tpu.memory_space<vmem>>, vector<6x128xf32>
    %c18_681 = arith.constant 18 : index
    %c512_682 = arith.constant 512 : index
    %451 = vector.load %arg12[%c18_681, %c512_682] : memref<36x1152xf32, #tpu.memory_space<vmem>>, vector<6x128xf32>
    tpu.vector_store %arg12[%c18_681, %c512_682], %450 {strides = array<i32>} : memref<36x1152xf32, #tpu.memory_space<vmem>>, vector<6x128xf32>,
    %c100 = arith.constant 100 : index
    %c0_683 = arith.constant 0 : index
    %452 = tpu.strided_load %arg15[%c100, %c0_683] {strides = array<i32: 2, 1>} : memref<196x128xf32, #tpu.memory_space<vmem>>, vector<6x128xf32>
    %c18_684 = arith.constant 18 : index
    %c640_685 = arith.constant 640 : index
    %453 = vector.load %arg12[%c18_684, %c640_685] : memref<36x1152xf32, #tpu.memory_space<vmem>>, vector<6x128xf32>
    tpu.vector_store %arg12[%c18_684, %c640_685], %452 {strides = array<i32>} : memref<36x1152xf32, #tpu.memory_space<vmem>>, vector<6x128xf32>,
    %c112_686 = arith.constant 112 : index
    %c0_687 = arith.constant 0 : index
    %454 = tpu.strided_load %arg15[%c112_686, %c0_687] {strides = array<i32: 2, 1>} : memref<196x128xf32, #tpu.memory_space<vmem>>, vector<6x128xf32>
    %c18_688 = arith.constant 18 : index
    %c768_689 = arith.constant 768 : index
    %455 = vector.load %arg12[%c18_688, %c768_689] : memref<36x1152xf32, #tpu.memory_space<vmem>>, vector<6x128xf32>
    tpu.vector_store %arg12[%c18_688, %c768_689], %454 {strides = array<i32>} : memref<36x1152xf32, #tpu.memory_space<vmem>>, vector<6x128xf32>,
    %c113_690 = arith.constant 113 : index
    %c0_691 = arith.constant 0 : index
    %456 = tpu.strided_load %arg15[%c113_690, %c0_691] {strides = array<i32: 2, 1>} : memref<196x128xf32, #tpu.memory_space<vmem>>, vector<6x128xf32>
    %c18_692 = arith.constant 18 : index
    %c896_693 = arith.constant 896 : index
    %457 = vector.load %arg12[%c18_692, %c896_693] : memref<36x1152xf32, #tpu.memory_space<vmem>>, vector<6x128xf32>
    tpu.vector_store %arg12[%c18_692, %c896_693], %456 {strides = array<i32>} : memref<36x1152xf32, #tpu.memory_space<vmem>>, vector<6x128xf32>,
    %c114_694 = arith.constant 114 : index
    %c0_695 = arith.constant 0 : index
    %458 = tpu.strided_load %arg15[%c114_694, %c0_695] {strides = array<i32: 2, 1>} : memref<196x128xf32, #tpu.memory_space<vmem>>, vector<6x128xf32>
    %c18_696 = arith.constant 18 : index
    %c1024_697 = arith.constant 1024 : index
    %459 = vector.load %arg12[%c18_696, %c1024_697] : memref<36x1152xf32, #tpu.memory_space<vmem>>, vector<6x128xf32>
    tpu.vector_store %arg12[%c18_696, %c1024_697], %458 {strides = array<i32>} : memref<36x1152xf32, #tpu.memory_space<vmem>>, vector<6x128xf32>,
    %c112_698 = arith.constant 112 : index
    %c0_699 = arith.constant 0 : index
    %460 = tpu.strided_load %arg15[%c112_698, %c0_699] {strides = array<i32: 2, 1>} : memref<196x128xf32, #tpu.memory_space<vmem>>, vector<6x128xf32>
    %c24_700 = arith.constant 24 : index
    %c0_701 = arith.constant 0 : index
    %461 = vector.load %arg12[%c24_700, %c0_701] : memref<36x1152xf32, #tpu.memory_space<vmem>>, vector<6x128xf32>
    tpu.vector_store %arg12[%c24_700, %c0_701], %460 {strides = array<i32>} : memref<36x1152xf32, #tpu.memory_space<vmem>>, vector<6x128xf32>,
    %c113_702 = arith.constant 113 : index
    %c0_703 = arith.constant 0 : index
    %462 = tpu.strided_load %arg15[%c113_702, %c0_703] {strides = array<i32: 2, 1>} : memref<196x128xf32, #tpu.memory_space<vmem>>, vector<6x128xf32>
    %c24_704 = arith.constant 24 : index
    %c128_705 = arith.constant 128 : index
    %463 = vector.load %arg12[%c24_704, %c128_705] : memref<36x1152xf32, #tpu.memory_space<vmem>>, vector<6x128xf32>
    tpu.vector_store %arg12[%c24_704, %c128_705], %462 {strides = array<i32>} : memref<36x1152xf32, #tpu.memory_space<vmem>>, vector<6x128xf32>,
    %c114_706 = arith.constant 114 : index
    %c0_707 = arith.constant 0 : index
    %464 = tpu.strided_load %arg15[%c114_706, %c0_707] {strides = array<i32: 2, 1>} : memref<196x128xf32, #tpu.memory_space<vmem>>, vector<6x128xf32>
    %c24_708 = arith.constant 24 : index
    %c256_709 = arith.constant 256 : index
    %465 = vector.load %arg12[%c24_708, %c256_709] : memref<36x1152xf32, #tpu.memory_space<vmem>>, vector<6x128xf32>
    tpu.vector_store %arg12[%c24_708, %c256_709], %464 {strides = array<i32>} : memref<36x1152xf32, #tpu.memory_space<vmem>>, vector<6x128xf32>,
    %c126_710 = arith.constant 126 : index
    %c0_711 = arith.constant 0 : index
    %466 = tpu.strided_load %arg15[%c126_710, %c0_711] {strides = array<i32: 2, 1>} : memref<196x128xf32, #tpu.memory_space<vmem>>, vector<6x128xf32>
    %c24_712 = arith.constant 24 : index
    %c384_713 = arith.constant 384 : index
    %467 = vector.load %arg12[%c24_712, %c384_713] : memref<36x1152xf32, #tpu.memory_space<vmem>>, vector<6x128xf32>
    tpu.vector_store %arg12[%c24_712, %c384_713], %466 {strides = array<i32>} : memref<36x1152xf32, #tpu.memory_space<vmem>>, vector<6x128xf32>,
    %c127 = arith.constant 127 : index
    %c0_714 = arith.constant 0 : index
    %468 = tpu.strided_load %arg15[%c127, %c0_714] {strides = array<i32: 2, 1>} : memref<196x128xf32, #tpu.memory_space<vmem>>, vector<6x128xf32>
    %c24_715 = arith.constant 24 : index
    %c512_716 = arith.constant 512 : index
    %469 = vector.load %arg12[%c24_715, %c512_716] : memref<36x1152xf32, #tpu.memory_space<vmem>>, vector<6x128xf32>
    tpu.vector_store %arg12[%c24_715, %c512_716], %468 {strides = array<i32>} : memref<36x1152xf32, #tpu.memory_space<vmem>>, vector<6x128xf32>,
    %c128_717 = arith.constant 128 : index
    %c0_718 = arith.constant 0 : index
    %470 = tpu.strided_load %arg15[%c128_717, %c0_718] {strides = array<i32: 2, 1>} : memref<196x128xf32, #tpu.memory_space<vmem>>, vector<6x128xf32>
    %c24_719 = arith.constant 24 : index
    %c640_720 = arith.constant 640 : index
    %471 = vector.load %arg12[%c24_719, %c640_720] : memref<36x1152xf32, #tpu.memory_space<vmem>>, vector<6x128xf32>
    tpu.vector_store %arg12[%c24_719, %c640_720], %470 {strides = array<i32>} : memref<36x1152xf32, #tpu.memory_space<vmem>>, vector<6x128xf32>,
    %c140_721 = arith.constant 140 : index
    %c0_722 = arith.constant 0 : index
    %472 = tpu.strided_load %arg15[%c140_721, %c0_722] {strides = array<i32: 2, 1>} : memref<196x128xf32, #tpu.memory_space<vmem>>, vector<6x128xf32>
    %c24_723 = arith.constant 24 : index
    %c768_724 = arith.constant 768 : index
    %473 = vector.load %arg12[%c24_723, %c768_724] : memref<36x1152xf32, #tpu.memory_space<vmem>>, vector<6x128xf32>
    tpu.vector_store %arg12[%c24_723, %c768_724], %472 {strides = array<i32>} : memref<36x1152xf32, #tpu.memory_space<vmem>>, vector<6x128xf32>,
    %c141 = arith.constant 141 : index
    %c0_725 = arith.constant 0 : index
    %474 = tpu.strided_load %arg15[%c141, %c0_725] {strides = array<i32: 2, 1>} : memref<196x128xf32, #tpu.memory_space<vmem>>, vector<6x128xf32>
    %c24_726 = arith.constant 24 : index
    %c896_727 = arith.constant 896 : index
    %475 = vector.load %arg12[%c24_726, %c896_727] : memref<36x1152xf32, #tpu.memory_space<vmem>>, vector<6x128xf32>
    tpu.vector_store %arg12[%c24_726, %c896_727], %474 {strides = array<i32>} : memref<36x1152xf32, #tpu.memory_space<vmem>>, vector<6x128xf32>,
    %c142 = arith.constant 142 : index
    %c0_728 = arith.constant 0 : index
    %476 = tpu.strided_load %arg15[%c142, %c0_728] {strides = array<i32: 2, 1>} : memref<196x128xf32, #tpu.memory_space<vmem>>, vector<6x128xf32>
    %c24_729 = arith.constant 24 : index
    %c1024_730 = arith.constant 1024 : index
    %477 = vector.load %arg12[%c24_729, %c1024_730] : memref<36x1152xf32, #tpu.memory_space<vmem>>, vector<6x128xf32>
    tpu.vector_store %arg12[%c24_729, %c1024_730], %476 {strides = array<i32>} : memref<36x1152xf32, #tpu.memory_space<vmem>>, vector<6x128xf32>,
    %c140_731 = arith.constant 140 : index
    %c0_732 = arith.constant 0 : index
    %478 = tpu.strided_load %arg15[%c140_731, %c0_732] {strides = array<i32: 2, 1>} : memref<196x128xf32, #tpu.memory_space<vmem>>, vector<6x128xf32>
    %c30_733 = arith.constant 30 : index
    %c0_734 = arith.constant 0 : index
    %479 = vector.load %arg12[%c30_733, %c0_734] : memref<36x1152xf32, #tpu.memory_space<vmem>>, vector<6x128xf32>
    tpu.vector_store %arg12[%c30_733, %c0_734], %478 {strides = array<i32>} : memref<36x1152xf32, #tpu.memory_space<vmem>>, vector<6x128xf32>,
    %c141_735 = arith.constant 141 : index
    %c0_736 = arith.constant 0 : index
    %480 = tpu.strided_load %arg15[%c141_735, %c0_736] {strides = array<i32: 2, 1>} : memref<196x128xf32, #tpu.memory_space<vmem>>, vector<6x128xf32>
    %c30_737 = arith.constant 30 : index
    %c128_738 = arith.constant 128 : index
    %481 = vector.load %arg12[%c30_737, %c128_738] : memref<36x1152xf32, #tpu.memory_space<vmem>>, vector<6x128xf32>
    tpu.vector_store %arg12[%c30_737, %c128_738], %480 {strides = array<i32>} : memref<36x1152xf32, #tpu.memory_space<vmem>>, vector<6x128xf32>,
    %c142_739 = arith.constant 142 : index
    %c0_740 = arith.constant 0 : index
    %482 = tpu.strided_load %arg15[%c142_739, %c0_740] {strides = array<i32: 2, 1>} : memref<196x128xf32, #tpu.memory_space<vmem>>, vector<6x128xf32>
    %c30_741 = arith.constant 30 : index
    %c256_742 = arith.constant 256 : index
    %483 = vector.load %arg12[%c30_741, %c256_742] : memref<36x1152xf32, #tpu.memory_space<vmem>>, vector<6x128xf32>
    tpu.vector_store %arg12[%c30_741, %c256_742], %482 {strides = array<i32>} : memref<36x1152xf32, #tpu.memory_space<vmem>>, vector<6x128xf32>,
    %c154_743 = arith.constant 154 : index
    %c0_744 = arith.constant 0 : index
    %484 = tpu.strided_load %arg15[%c154_743, %c0_744] {strides = array<i32: 2, 1>} : memref<196x128xf32, #tpu.memory_space<vmem>>, vector<6x128xf32>
    %c30_745 = arith.constant 30 : index
    %c384_746 = arith.constant 384 : index
    %485 = vector.load %arg12[%c30_745, %c384_746] : memref<36x1152xf32, #tpu.memory_space<vmem>>, vector<6x128xf32>
    tpu.vector_store %arg12[%c30_745, %c384_746], %484 {strides = array<i32>} : memref<36x1152xf32, #tpu.memory_space<vmem>>, vector<6x128xf32>,
    %c155 = arith.constant 155 : index
    %c0_747 = arith.constant 0 : index
    %486 = tpu.strided_load %arg15[%c155, %c0_747] {strides = array<i32: 2, 1>} : memref<196x128xf32, #tpu.memory_space<vmem>>, vector<6x128xf32>
    %c30_748 = arith.constant 30 : index
    %c512_749 = arith.constant 512 : index
    %487 = vector.load %arg12[%c30_748, %c512_749] : memref<36x1152xf32, #tpu.memory_space<vmem>>, vector<6x128xf32>
    tpu.vector_store %arg12[%c30_748, %c512_749], %486 {strides = array<i32>} : memref<36x1152xf32, #tpu.memory_space<vmem>>, vector<6x128xf32>,
    %c156 = arith.constant 156 : index
    %c0_750 = arith.constant 0 : index
    %488 = tpu.strided_load %arg15[%c156, %c0_750] {strides = array<i32: 2, 1>} : memref<196x128xf32, #tpu.memory_space<vmem>>, vector<6x128xf32>
    %c30_751 = arith.constant 30 : index
    %c640_752 = arith.constant 640 : index
    %489 = vector.load %arg12[%c30_751, %c640_752] : memref<36x1152xf32, #tpu.memory_space<vmem>>, vector<6x128xf32>
    tpu.vector_store %arg12[%c30_751, %c640_752], %488 {strides = array<i32>} : memref<36x1152xf32, #tpu.memory_space<vmem>>, vector<6x128xf32>,
    %c168_753 = arith.constant 168 : index
    %c0_754 = arith.constant 0 : index
    %490 = tpu.strided_load %arg15[%c168_753, %c0_754] {strides = array<i32: 2, 1>} : memref<196x128xf32, #tpu.memory_space<vmem>>, vector<6x128xf32>
    %c30_755 = arith.constant 30 : index
    %c768_756 = arith.constant 768 : index
    %491 = vector.load %arg12[%c30_755, %c768_756] : memref<36x1152xf32, #tpu.memory_space<vmem>>, vector<6x128xf32>
    tpu.vector_store %arg12[%c30_755, %c768_756], %490 {strides = array<i32>} : memref<36x1152xf32, #tpu.memory_space<vmem>>, vector<6x128xf32>,
    %c169 = arith.constant 169 : index
    %c0_757 = arith.constant 0 : index
    %492 = tpu.strided_load %arg15[%c169, %c0_757] {strides = array<i32: 2, 1>} : memref<196x128xf32, #tpu.memory_space<vmem>>, vector<6x128xf32>
    %c30_758 = arith.constant 30 : index
    %c896_759 = arith.constant 896 : index
    %493 = vector.load %arg12[%c30_758, %c896_759] : memref<36x1152xf32, #tpu.memory_space<vmem>>, vector<6x128xf32>
    tpu.vector_store %arg12[%c30_758, %c896_759], %492 {strides = array<i32>} : memref<36x1152xf32, #tpu.memory_space<vmem>>, vector<6x128xf32>,
    %c170 = arith.constant 170 : index
    %c0_760 = arith.constant 0 : index
    %494 = tpu.strided_load %arg15[%c170, %c0_760] {strides = array<i32: 2, 1>} : memref<196x128xf32, #tpu.memory_space<vmem>>, vector<6x128xf32>
    %c30_761 = arith.constant 30 : index
    %c1024_762 = arith.constant 1024 : index
    %495 = vector.load %arg12[%c30_761, %c1024_762] : memref<36x1152xf32, #tpu.memory_space<vmem>>, vector<6x128xf32>
    tpu.vector_store %arg12[%c30_761, %c1024_762], %494 {strides = array<i32>} : memref<36x1152xf32, #tpu.memory_space<vmem>>, vector<6x128xf32>,
    %c0_763 = arith.constant 0 : index
    %c0_764 = arith.constant 0 : index
    %496 = vector.load %arg12[%c0_763, %c0_764] : memref<36x1152xf32, #tpu.memory_space<vmem>>, vector<36x1152xf32>
    %497 = arith.truncf %496 : vector<36x1152xf32> to vector<36x1152xbf16>
    %c0_765 = arith.constant 0 : index
    %c0_766 = arith.constant 0 : index
    %498 = vector.load %arg4[%c0_765, %c0_766] : memref<1152x128xbf16, #tpu.memory_space<vmem>>, vector<1152x128xbf16>
    %cst_767 = arith.constant dense<0.000000e+00> : vector<36x128xf32>
    %499 = tpu.matmul %497, %498, %cst_767 {dimension_numbers = #tpu.dot_dimension_numbers<[1], [0], [0], [1], [0, 0, 1, 1], [], []>} : vector<36x1152xbf16>, vector<1152x128xbf16>, vector<36x128xf32> -> vector<36x128xf32>
    %c0_768 = arith.constant 0 : index
    %c0_769 = arith.constant 0 : index
    %500 = vector.load %arg5[%c0_768, %c0_769] : memref<1x128xf32, #tpu.memory_space<vmem>>, vector<1x128xf32>
    %501 = vector.broadcast %500 : vector<1x128xf32> to vector<36x128xf32>
    %502 = arith.addf %499, %501 : vector<36x128xf32>
    %cst_770 = arith.constant 0.000000e+00 : f32
    %503 = vector.broadcast %cst_770 : f32 to vector<36x128xf32>
    %504 = arith.maximumf %502, %503 : vector<36x128xf32>
    %c0_771 = arith.constant 0 : index
    %c0_772 = arith.constant 0 : index
    %505 = vector.load %arg16[%c0_771, %c0_772] : memref<36x128xf32, #tpu.memory_space<vmem>>, vector<36x128xf32>
    tpu.vector_store %arg16[%c0_771, %c0_772], %504 {strides = array<i32>} : memref<36x128xf32, #tpu.memory_space<vmem>>, vector<36x128xf32>,
    %c0_773 = arith.constant 0 : index
    %c0_774 = arith.constant 0 : index
    %506 = vector.load %arg16[%c0_773, %c0_774] : memref<36x128xf32, #tpu.memory_space<vmem>>, vector<4x128xf32>
    %c0_775 = arith.constant 0 : index
    %c0_776 = arith.constant 0 : index
    %507 = vector.load %arg13[%c0_775, %c0_776] : memref<16x1152xf32, #tpu.memory_space<vmem>>, vector<4x128xf32>
    tpu.vector_store %arg13[%c0_775, %c0_776], %506 {strides = array<i32>} : memref<16x1152xf32, #tpu.memory_space<vmem>>, vector<4x128xf32>,
    %c1_777 = arith.constant 1 : index
    %c0_778 = arith.constant 0 : index
    %508 = vector.load %arg16[%c1_777, %c0_778] : memref<36x128xf32, #tpu.memory_space<vmem>>, vector<4x128xf32>
    %c0_779 = arith.constant 0 : index
    %c128_780 = arith.constant 128 : index
    %509 = vector.load %arg13[%c0_779, %c128_780] : memref<16x1152xf32, #tpu.memory_space<vmem>>, vector<4x128xf32>
    tpu.vector_store %arg13[%c0_779, %c128_780], %508 {strides = array<i32>} : memref<16x1152xf32, #tpu.memory_space<vmem>>, vector<4x128xf32>,
    %c2_781 = arith.constant 2 : index
    %c0_782 = arith.constant 0 : index
    %510 = vector.load %arg16[%c2_781, %c0_782] : memref<36x128xf32, #tpu.memory_space<vmem>>, vector<4x128xf32>
    %c0_783 = arith.constant 0 : index
    %c256_784 = arith.constant 256 : index
    %511 = vector.load %arg13[%c0_783, %c256_784] : memref<16x1152xf32, #tpu.memory_space<vmem>>, vector<4x128xf32>
    tpu.vector_store %arg13[%c0_783, %c256_784], %510 {strides = array<i32>} : memref<16x1152xf32, #tpu.memory_space<vmem>>, vector<4x128xf32>,
    %c6_785 = arith.constant 6 : index
    %c0_786 = arith.constant 0 : index
    %512 = vector.load %arg16[%c6_785, %c0_786] : memref<36x128xf32, #tpu.memory_space<vmem>>, vector<4x128xf32>
    %c0_787 = arith.constant 0 : index
    %c384_788 = arith.constant 384 : index
    %513 = vector.load %arg13[%c0_787, %c384_788] : memref<16x1152xf32, #tpu.memory_space<vmem>>, vector<4x128xf32>
    tpu.vector_store %arg13[%c0_787, %c384_788], %512 {strides = array<i32>} : memref<16x1152xf32, #tpu.memory_space<vmem>>, vector<4x128xf32>,
    %c7 = arith.constant 7 : index
    %c0_789 = arith.constant 0 : index
    %514 = vector.load %arg16[%c7, %c0_789] : memref<36x128xf32, #tpu.memory_space<vmem>>, vector<4x128xf32>
    %c0_790 = arith.constant 0 : index
    %c512_791 = arith.constant 512 : index
    %515 = vector.load %arg13[%c0_790, %c512_791] : memref<16x1152xf32, #tpu.memory_space<vmem>>, vector<4x128xf32>
    tpu.vector_store %arg13[%c0_790, %c512_791], %514 {strides = array<i32>} : memref<16x1152xf32, #tpu.memory_space<vmem>>, vector<4x128xf32>,
    %c8_792 = arith.constant 8 : index
    %c0_793 = arith.constant 0 : index
    %516 = vector.load %arg16[%c8_792, %c0_793] : memref<36x128xf32, #tpu.memory_space<vmem>>, vector<4x128xf32>
    %c0_794 = arith.constant 0 : index
    %c640_795 = arith.constant 640 : index
    %517 = vector.load %arg13[%c0_794, %c640_795] : memref<16x1152xf32, #tpu.memory_space<vmem>>, vector<4x128xf32>
    tpu.vector_store %arg13[%c0_794, %c640_795], %516 {strides = array<i32>} : memref<16x1152xf32, #tpu.memory_space<vmem>>, vector<4x128xf32>,
    %c12_796 = arith.constant 12 : index
    %c0_797 = arith.constant 0 : index
    %518 = vector.load %arg16[%c12_796, %c0_797] : memref<36x128xf32, #tpu.memory_space<vmem>>, vector<4x128xf32>
    %c0_798 = arith.constant 0 : index
    %c768_799 = arith.constant 768 : index
    %519 = vector.load %arg13[%c0_798, %c768_799] : memref<16x1152xf32, #tpu.memory_space<vmem>>, vector<4x128xf32>
    tpu.vector_store %arg13[%c0_798, %c768_799], %518 {strides = array<i32>} : memref<16x1152xf32, #tpu.memory_space<vmem>>, vector<4x128xf32>,
    %c13 = arith.constant 13 : index
    %c0_800 = arith.constant 0 : index
    %520 = vector.load %arg16[%c13, %c0_800] : memref<36x128xf32, #tpu.memory_space<vmem>>, vector<4x128xf32>
    %c0_801 = arith.constant 0 : index
    %c896_802 = arith.constant 896 : index
    %521 = vector.load %arg13[%c0_801, %c896_802] : memref<16x1152xf32, #tpu.memory_space<vmem>>, vector<4x128xf32>
    tpu.vector_store %arg13[%c0_801, %c896_802], %520 {strides = array<i32>} : memref<16x1152xf32, #tpu.memory_space<vmem>>, vector<4x128xf32>,
    %c14_803 = arith.constant 14 : index
    %c0_804 = arith.constant 0 : index
    %522 = vector.load %arg16[%c14_803, %c0_804] : memref<36x128xf32, #tpu.memory_space<vmem>>, vector<4x128xf32>
    %c0_805 = arith.constant 0 : index
    %c1024_806 = arith.constant 1024 : index
    %523 = vector.load %arg13[%c0_805, %c1024_806] : memref<16x1152xf32, #tpu.memory_space<vmem>>, vector<4x128xf32>
    tpu.vector_store %arg13[%c0_805, %c1024_806], %522 {strides = array<i32>} : memref<16x1152xf32, #tpu.memory_space<vmem>>, vector<4x128xf32>,
    %c6_807 = arith.constant 6 : index
    %c0_808 = arith.constant 0 : index
    %524 = vector.load %arg16[%c6_807, %c0_808] : memref<36x128xf32, #tpu.memory_space<vmem>>, vector<4x128xf32>
    %c4_809 = arith.constant 4 : index
    %c0_810 = arith.constant 0 : index
    %525 = vector.load %arg13[%c4_809, %c0_810] : memref<16x1152xf32, #tpu.memory_space<vmem>>, vector<4x128xf32>
    tpu.vector_store %arg13[%c4_809, %c0_810], %524 {strides = array<i32>} : memref<16x1152xf32, #tpu.memory_space<vmem>>, vector<4x128xf32>,
    %c7_811 = arith.constant 7 : index
    %c0_812 = arith.constant 0 : index
    %526 = vector.load %arg16[%c7_811, %c0_812] : memref<36x128xf32, #tpu.memory_space<vmem>>, vector<4x128xf32>
    %c4_813 = arith.constant 4 : index
    %c128_814 = arith.constant 128 : index
    %527 = vector.load %arg13[%c4_813, %c128_814] : memref<16x1152xf32, #tpu.memory_space<vmem>>, vector<4x128xf32>
    tpu.vector_store %arg13[%c4_813, %c128_814], %526 {strides = array<i32>} : memref<16x1152xf32, #tpu.memory_space<vmem>>, vector<4x128xf32>,
    %c8_815 = arith.constant 8 : index
    %c0_816 = arith.constant 0 : index
    %528 = vector.load %arg16[%c8_815, %c0_816] : memref<36x128xf32, #tpu.memory_space<vmem>>, vector<4x128xf32>
    %c4_817 = arith.constant 4 : index
    %c256_818 = arith.constant 256 : index
    %529 = vector.load %arg13[%c4_817, %c256_818] : memref<16x1152xf32, #tpu.memory_space<vmem>>, vector<4x128xf32>
    tpu.vector_store %arg13[%c4_817, %c256_818], %528 {strides = array<i32>} : memref<16x1152xf32, #tpu.memory_space<vmem>>, vector<4x128xf32>,
    %c12_819 = arith.constant 12 : index
    %c0_820 = arith.constant 0 : index
    %530 = vector.load %arg16[%c12_819, %c0_820] : memref<36x128xf32, #tpu.memory_space<vmem>>, vector<4x128xf32>
    %c4_821 = arith.constant 4 : index
    %c384_822 = arith.constant 384 : index
    %531 = vector.load %arg13[%c4_821, %c384_822] : memref<16x1152xf32, #tpu.memory_space<vmem>>, vector<4x128xf32>
    tpu.vector_store %arg13[%c4_821, %c384_822], %530 {strides = array<i32>} : memref<16x1152xf32, #tpu.memory_space<vmem>>, vector<4x128xf32>,
    %c13_823 = arith.constant 13 : index
    %c0_824 = arith.constant 0 : index
    %532 = vector.load %arg16[%c13_823, %c0_824] : memref<36x128xf32, #tpu.memory_space<vmem>>, vector<4x128xf32>
    %c4_825 = arith.constant 4 : index
    %c512_826 = arith.constant 512 : index
    %533 = vector.load %arg13[%c4_825, %c512_826] : memref<16x1152xf32, #tpu.memory_space<vmem>>, vector<4x128xf32>
    tpu.vector_store %arg13[%c4_825, %c512_826], %532 {strides = array<i32>} : memref<16x1152xf32, #tpu.memory_space<vmem>>, vector<4x128xf32>,
    %c14_827 = arith.constant 14 : index
    %c0_828 = arith.constant 0 : index
    %534 = vector.load %arg16[%c14_827, %c0_828] : memref<36x128xf32, #tpu.memory_space<vmem>>, vector<4x128xf32>
    %c4_829 = arith.constant 4 : index
    %c640_830 = arith.constant 640 : index
    %535 = vector.load %arg13[%c4_829, %c640_830] : memref<16x1152xf32, #tpu.memory_space<vmem>>, vector<4x128xf32>
    tpu.vector_store %arg13[%c4_829, %c640_830], %534 {strides = array<i32>} : memref<16x1152xf32, #tpu.memory_space<vmem>>, vector<4x128xf32>,
    %c18_831 = arith.constant 18 : index
    %c0_832 = arith.constant 0 : index
    %536 = vector.load %arg16[%c18_831, %c0_832] : memref<36x128xf32, #tpu.memory_space<vmem>>, vector<4x128xf32>
    %c4_833 = arith.constant 4 : index
    %c768_834 = arith.constant 768 : index
    %537 = vector.load %arg13[%c4_833, %c768_834] : memref<16x1152xf32, #tpu.memory_space<vmem>>, vector<4x128xf32>
    tpu.vector_store %arg13[%c4_833, %c768_834], %536 {strides = array<i32>} : memref<16x1152xf32, #tpu.memory_space<vmem>>, vector<4x128xf32>,
    %c19 = arith.constant 19 : index
    %c0_835 = arith.constant 0 : index
    %538 = vector.load %arg16[%c19, %c0_835] : memref<36x128xf32, #tpu.memory_space<vmem>>, vector<4x128xf32>
    %c4_836 = arith.constant 4 : index
    %c896_837 = arith.constant 896 : index
    %539 = vector.load %arg13[%c4_836, %c896_837] : memref<16x1152xf32, #tpu.memory_space<vmem>>, vector<4x128xf32>
    tpu.vector_store %arg13[%c4_836, %c896_837], %538 {strides = array<i32>} : memref<16x1152xf32, #tpu.memory_space<vmem>>, vector<4x128xf32>,
    %c20_838 = arith.constant 20 : index
    %c0_839 = arith.constant 0 : index
    %540 = vector.load %arg16[%c20_838, %c0_839] : memref<36x128xf32, #tpu.memory_space<vmem>>, vector<4x128xf32>
    %c4_840 = arith.constant 4 : index
    %c1024_841 = arith.constant 1024 : index
    %541 = vector.load %arg13[%c4_840, %c1024_841] : memref<16x1152xf32, #tpu.memory_space<vmem>>, vector<4x128xf32>
    tpu.vector_store %arg13[%c4_840, %c1024_841], %540 {strides = array<i32>} : memref<16x1152xf32, #tpu.memory_space<vmem>>, vector<4x128xf32>,
    %c12_842 = arith.constant 12 : index
    %c0_843 = arith.constant 0 : index
    %542 = vector.load %arg16[%c12_842, %c0_843] : memref<36x128xf32, #tpu.memory_space<vmem>>, vector<4x128xf32>
    %c8_844 = arith.constant 8 : index
    %c0_845 = arith.constant 0 : index
    %543 = vector.load %arg13[%c8_844, %c0_845] : memref<16x1152xf32, #tpu.memory_space<vmem>>, vector<4x128xf32>
    tpu.vector_store %arg13[%c8_844, %c0_845], %542 {strides = array<i32>} : memref<16x1152xf32, #tpu.memory_space<vmem>>, vector<4x128xf32>,
    %c13_846 = arith.constant 13 : index
    %c0_847 = arith.constant 0 : index
    %544 = vector.load %arg16[%c13_846, %c0_847] : memref<36x128xf32, #tpu.memory_space<vmem>>, vector<4x128xf32>
    %c8_848 = arith.constant 8 : index
    %c128_849 = arith.constant 128 : index
    %545 = vector.load %arg13[%c8_848, %c128_849] : memref<16x1152xf32, #tpu.memory_space<vmem>>, vector<4x128xf32>
    tpu.vector_store %arg13[%c8_848, %c128_849], %544 {strides = array<i32>} : memref<16x1152xf32, #tpu.memory_space<vmem>>, vector<4x128xf32>,
    %c14_850 = arith.constant 14 : index
    %c0_851 = arith.constant 0 : index
    %546 = vector.load %arg16[%c14_850, %c0_851] : memref<36x128xf32, #tpu.memory_space<vmem>>, vector<4x128xf32>
    %c8_852 = arith.constant 8 : index
    %c256_853 = arith.constant 256 : index
    %547 = vector.load %arg13[%c8_852, %c256_853] : memref<16x1152xf32, #tpu.memory_space<vmem>>, vector<4x128xf32>
    tpu.vector_store %arg13[%c8_852, %c256_853], %546 {strides = array<i32>} : memref<16x1152xf32, #tpu.memory_space<vmem>>, vector<4x128xf32>,
    %c18_854 = arith.constant 18 : index
    %c0_855 = arith.constant 0 : index
    %548 = vector.load %arg16[%c18_854, %c0_855] : memref<36x128xf32, #tpu.memory_space<vmem>>, vector<4x128xf32>
    %c8_856 = arith.constant 8 : index
    %c384_857 = arith.constant 384 : index
    %549 = vector.load %arg13[%c8_856, %c384_857] : memref<16x1152xf32, #tpu.memory_space<vmem>>, vector<4x128xf32>
    tpu.vector_store %arg13[%c8_856, %c384_857], %548 {strides = array<i32>} : memref<16x1152xf32, #tpu.memory_space<vmem>>, vector<4x128xf32>,
    %c19_858 = arith.constant 19 : index
    %c0_859 = arith.constant 0 : index
    %550 = vector.load %arg16[%c19_858, %c0_859] : memref<36x128xf32, #tpu.memory_space<vmem>>, vector<4x128xf32>
    %c8_860 = arith.constant 8 : index
    %c512_861 = arith.constant 512 : index
    %551 = vector.load %arg13[%c8_860, %c512_861] : memref<16x1152xf32, #tpu.memory_space<vmem>>, vector<4x128xf32>
    tpu.vector_store %arg13[%c8_860, %c512_861], %550 {strides = array<i32>} : memref<16x1152xf32, #tpu.memory_space<vmem>>, vector<4x128xf32>,
    %c20_862 = arith.constant 20 : index
    %c0_863 = arith.constant 0 : index
    %552 = vector.load %arg16[%c20_862, %c0_863] : memref<36x128xf32, #tpu.memory_space<vmem>>, vector<4x128xf32>
    %c8_864 = arith.constant 8 : index
    %c640_865 = arith.constant 640 : index
    %553 = vector.load %arg13[%c8_864, %c640_865] : memref<16x1152xf32, #tpu.memory_space<vmem>>, vector<4x128xf32>
    tpu.vector_store %arg13[%c8_864, %c640_865], %552 {strides = array<i32>} : memref<16x1152xf32, #tpu.memory_space<vmem>>, vector<4x128xf32>,
    %c24_866 = arith.constant 24 : index
    %c0_867 = arith.constant 0 : index
    %554 = vector.load %arg16[%c24_866, %c0_867] : memref<36x128xf32, #tpu.memory_space<vmem>>, vector<4x128xf32>
    %c8_868 = arith.constant 8 : index
    %c768_869 = arith.constant 768 : index
    %555 = vector.load %arg13[%c8_868, %c768_869] : memref<16x1152xf32, #tpu.memory_space<vmem>>, vector<4x128xf32>
    tpu.vector_store %arg13[%c8_868, %c768_869], %554 {strides = array<i32>} : memref<16x1152xf32, #tpu.memory_space<vmem>>, vector<4x128xf32>,
    %c25 = arith.constant 25 : index
    %c0_870 = arith.constant 0 : index
    %556 = vector.load %arg16[%c25, %c0_870] : memref<36x128xf32, #tpu.memory_space<vmem>>, vector<4x128xf32>
    %c8_871 = arith.constant 8 : index
    %c896_872 = arith.constant 896 : index
    %557 = vector.load %arg13[%c8_871, %c896_872] : memref<16x1152xf32, #tpu.memory_space<vmem>>, vector<4x128xf32>
    tpu.vector_store %arg13[%c8_871, %c896_872], %556 {strides = array<i32>} : memref<16x1152xf32, #tpu.memory_space<vmem>>, vector<4x128xf32>,
    %c26 = arith.constant 26 : index
    %c0_873 = arith.constant 0 : index
    %558 = vector.load %arg16[%c26, %c0_873] : memref<36x128xf32, #tpu.memory_space<vmem>>, vector<4x128xf32>
    %c8_874 = arith.constant 8 : index
    %c1024_875 = arith.constant 1024 : index
    %559 = vector.load %arg13[%c8_874, %c1024_875] : memref<16x1152xf32, #tpu.memory_space<vmem>>, vector<4x128xf32>
    tpu.vector_store %arg13[%c8_874, %c1024_875], %558 {strides = array<i32>} : memref<16x1152xf32, #tpu.memory_space<vmem>>, vector<4x128xf32>,
    %c18_876 = arith.constant 18 : index
    %c0_877 = arith.constant 0 : index
    %560 = vector.load %arg16[%c18_876, %c0_877] : memref<36x128xf32, #tpu.memory_space<vmem>>, vector<4x128xf32>
    %c12_878 = arith.constant 12 : index
    %c0_879 = arith.constant 0 : index
    %561 = vector.load %arg13[%c12_878, %c0_879] : memref<16x1152xf32, #tpu.memory_space<vmem>>, vector<4x128xf32>
    tpu.vector_store %arg13[%c12_878, %c0_879], %560 {strides = array<i32>} : memref<16x1152xf32, #tpu.memory_space<vmem>>, vector<4x128xf32>,
    %c19_880 = arith.constant 19 : index
    %c0_881 = arith.constant 0 : index
    %562 = vector.load %arg16[%c19_880, %c0_881] : memref<36x128xf32, #tpu.memory_space<vmem>>, vector<4x128xf32>
    %c12_882 = arith.constant 12 : index
    %c128_883 = arith.constant 128 : index
    %563 = vector.load %arg13[%c12_882, %c128_883] : memref<16x1152xf32, #tpu.memory_space<vmem>>, vector<4x128xf32>
    tpu.vector_store %arg13[%c12_882, %c128_883], %562 {strides = array<i32>} : memref<16x1152xf32, #tpu.memory_space<vmem>>, vector<4x128xf32>,
    %c20_884 = arith.constant 20 : index
    %c0_885 = arith.constant 0 : index
    %564 = vector.load %arg16[%c20_884, %c0_885] : memref<36x128xf32, #tpu.memory_space<vmem>>, vector<4x128xf32>
    %c12_886 = arith.constant 12 : index
    %c256_887 = arith.constant 256 : index
    %565 = vector.load %arg13[%c12_886, %c256_887] : memref<16x1152xf32, #tpu.memory_space<vmem>>, vector<4x128xf32>
    tpu.vector_store %arg13[%c12_886, %c256_887], %564 {strides = array<i32>} : memref<16x1152xf32, #tpu.memory_space<vmem>>, vector<4x128xf32>,
    %c24_888 = arith.constant 24 : index
    %c0_889 = arith.constant 0 : index
    %566 = vector.load %arg16[%c24_888, %c0_889] : memref<36x128xf32, #tpu.memory_space<vmem>>, vector<4x128xf32>
    %c12_890 = arith.constant 12 : index
    %c384_891 = arith.constant 384 : index
    %567 = vector.load %arg13[%c12_890, %c384_891] : memref<16x1152xf32, #tpu.memory_space<vmem>>, vector<4x128xf32>
    tpu.vector_store %arg13[%c12_890, %c384_891], %566 {strides = array<i32>} : memref<16x1152xf32, #tpu.memory_space<vmem>>, vector<4x128xf32>,
    %c25_892 = arith.constant 25 : index
    %c0_893 = arith.constant 0 : index
    %568 = vector.load %arg16[%c25_892, %c0_893] : memref<36x128xf32, #tpu.memory_space<vmem>>, vector<4x128xf32>
    %c12_894 = arith.constant 12 : index
    %c512_895 = arith.constant 512 : index
    %569 = vector.load %arg13[%c12_894, %c512_895] : memref<16x1152xf32, #tpu.memory_space<vmem>>, vector<4x128xf32>
    tpu.vector_store %arg13[%c12_894, %c512_895], %568 {strides = array<i32>} : memref<16x1152xf32, #tpu.memory_space<vmem>>, vector<4x128xf32>,
    %c26_896 = arith.constant 26 : index
    %c0_897 = arith.constant 0 : index
    %570 = vector.load %arg16[%c26_896, %c0_897] : memref<36x128xf32, #tpu.memory_space<vmem>>, vector<4x128xf32>
    %c12_898 = arith.constant 12 : index
    %c640_899 = arith.constant 640 : index
    %571 = vector.load %arg13[%c12_898, %c640_899] : memref<16x1152xf32, #tpu.memory_space<vmem>>, vector<4x128xf32>
    tpu.vector_store %arg13[%c12_898, %c640_899], %570 {strides = array<i32>} : memref<16x1152xf32, #tpu.memory_space<vmem>>, vector<4x128xf32>,
    %c30_900 = arith.constant 30 : index
    %c0_901 = arith.constant 0 : index
    %572 = vector.load %arg16[%c30_900, %c0_901] : memref<36x128xf32, #tpu.memory_space<vmem>>, vector<4x128xf32>
    %c12_902 = arith.constant 12 : index
    %c768_903 = arith.constant 768 : index
    %573 = vector.load %arg13[%c12_902, %c768_903] : memref<16x1152xf32, #tpu.memory_space<vmem>>, vector<4x128xf32>
    tpu.vector_store %arg13[%c12_902, %c768_903], %572 {strides = array<i32>} : memref<16x1152xf32, #tpu.memory_space<vmem>>, vector<4x128xf32>,
    %c31 = arith.constant 31 : index
    %c0_904 = arith.constant 0 : index
    %574 = vector.load %arg16[%c31, %c0_904] : memref<36x128xf32, #tpu.memory_space<vmem>>, vector<4x128xf32>
    %c12_905 = arith.constant 12 : index
    %c896_906 = arith.constant 896 : index
    %575 = vector.load %arg13[%c12_905, %c896_906] : memref<16x1152xf32, #tpu.memory_space<vmem>>, vector<4x128xf32>
    tpu.vector_store %arg13[%c12_905, %c896_906], %574 {strides = array<i32>} : memref<16x1152xf32, #tpu.memory_space<vmem>>, vector<4x128xf32>,
    %c32_907 = arith.constant 32 : index
    %c0_908 = arith.constant 0 : index
    %576 = vector.load %arg16[%c32_907, %c0_908] : memref<36x128xf32, #tpu.memory_space<vmem>>, vector<4x128xf32>
    %c12_909 = arith.constant 12 : index
    %c1024_910 = arith.constant 1024 : index
    %577 = vector.load %arg13[%c12_909, %c1024_910] : memref<16x1152xf32, #tpu.memory_space<vmem>>, vector<4x128xf32>
    tpu.vector_store %arg13[%c12_909, %c1024_910], %576 {strides = array<i32>} : memref<16x1152xf32, #tpu.memory_space<vmem>>, vector<4x128xf32>,
    %c0_911 = arith.constant 0 : index
    %c0_912 = arith.constant 0 : index
    %578 = vector.load %arg13[%c0_911, %c0_912] : memref<16x1152xf32, #tpu.memory_space<vmem>>, vector<16x1152xf32>
    %579 = arith.truncf %578 : vector<16x1152xf32> to vector<16x1152xbf16>
    %c0_913 = arith.constant 0 : index
    %c0_914 = arith.constant 0 : index
    %580 = vector.load %arg6[%c0_913, %c0_914] : memref<1152x128xbf16, #tpu.memory_space<vmem>>, vector<1152x128xbf16>
    %cst_915 = arith.constant dense<0.000000e+00> : vector<16x128xf32>
    %581 = tpu.matmul %579, %580, %cst_915 {dimension_numbers = #tpu.dot_dimension_numbers<[1], [0], [0], [1], [0, 0, 1, 1], [], []>} : vector<16x1152xbf16>, vector<1152x128xbf16>, vector<16x128xf32> -> vector<16x128xf32>
    %c0_916 = arith.constant 0 : index
    %c0_917 = arith.constant 0 : index
    %582 = vector.load %arg7[%c0_916, %c0_917] : memref<1x128xf32, #tpu.memory_space<vmem>>, vector<1x128xf32>
    %583 = vector.broadcast %582 : vector<1x128xf32> to vector<16x128xf32>
    %584 = arith.addf %581, %583 : vector<16x128xf32>
    %cst_918 = arith.constant 0.000000e+00 : f32
    %585 = vector.broadcast %cst_918 : f32 to vector<16x128xf32>
    %586 = arith.maximumf %584, %585 : vector<16x128xf32>
    %c0_919 = arith.constant 0 : index
    %c0_920 = arith.constant 0 : index
    %587 = vector.load %arg17[%c0_919, %c0_920] : memref<16x128xf32, #tpu.memory_space<vmem>>, vector<16x128xf32>
    tpu.vector_store %arg17[%c0_919, %c0_920], %586 {strides = array<i32>} : memref<16x128xf32, #tpu.memory_space<vmem>>, vector<16x128xf32>,
    %c0_921 = arith.constant 0 : index
    %c0_922 = arith.constant 0 : index
    %588 = vector.load %arg17[%c0_921, %c0_922] : memref<16x128xf32, #tpu.memory_space<vmem>>, vector<1x128xf32>
    %c0_923 = arith.constant 0 : index
    %c0_924 = arith.constant 0 : index
    %589 = vector.load %arg14[%c0_923, %c0_924] : memref<1x1152xf32, #tpu.memory_space<vmem>>, vector<1x128xf32>
    tpu.vector_store %arg14[%c0_923, %c0_924], %588 {strides = array<i32>} : memref<1x1152xf32, #tpu.memory_space<vmem>>, vector<1x128xf32>,
    %c1_925 = arith.constant 1 : index
    %c0_926 = arith.constant 0 : index
    %590 = vector.load %arg17[%c1_925, %c0_926] : memref<16x128xf32, #tpu.memory_space<vmem>>, vector<1x128xf32>
    %c0_927 = arith.constant 0 : index
    %c128_928 = arith.constant 128 : index
    %591 = vector.load %arg14[%c0_927, %c128_928] : memref<1x1152xf32, #tpu.memory_space<vmem>>, vector<1x128xf32>
    tpu.vector_store %arg14[%c0_927, %c128_928], %590 {strides = array<i32>} : memref<1x1152xf32, #tpu.memory_space<vmem>>, vector<1x128xf32>,
    %c2_929 = arith.constant 2 : index
    %c0_930 = arith.constant 0 : index
    %592 = vector.load %arg17[%c2_929, %c0_930] : memref<16x128xf32, #tpu.memory_space<vmem>>, vector<1x128xf32>
    %c0_931 = arith.constant 0 : index
    %c256_932 = arith.constant 256 : index
    %593 = vector.load %arg14[%c0_931, %c256_932] : memref<1x1152xf32, #tpu.memory_space<vmem>>, vector<1x128xf32>
    tpu.vector_store %arg14[%c0_931, %c256_932], %592 {strides = array<i32>} : memref<1x1152xf32, #tpu.memory_space<vmem>>, vector<1x128xf32>,
    %c4_933 = arith.constant 4 : index
    %c0_934 = arith.constant 0 : index
    %594 = vector.load %arg17[%c4_933, %c0_934] : memref<16x128xf32, #tpu.memory_space<vmem>>, vector<1x128xf32>
    %c0_935 = arith.constant 0 : index
    %c384_936 = arith.constant 384 : index
    %595 = vector.load %arg14[%c0_935, %c384_936] : memref<1x1152xf32, #tpu.memory_space<vmem>>, vector<1x128xf32>
    tpu.vector_store %arg14[%c0_935, %c384_936], %594 {strides = array<i32>} : memref<1x1152xf32, #tpu.memory_space<vmem>>, vector<1x128xf32>,
    %c5 = arith.constant 5 : index
    %c0_937 = arith.constant 0 : index
    %596 = vector.load %arg17[%c5, %c0_937] : memref<16x128xf32, #tpu.memory_space<vmem>>, vector<1x128xf32>
    %c0_938 = arith.constant 0 : index
    %c512_939 = arith.constant 512 : index
    %597 = vector.load %arg14[%c0_938, %c512_939] : memref<1x1152xf32, #tpu.memory_space<vmem>>, vector<1x128xf32>
    tpu.vector_store %arg14[%c0_938, %c512_939], %596 {strides = array<i32>} : memref<1x1152xf32, #tpu.memory_space<vmem>>, vector<1x128xf32>,
    %c6_940 = arith.constant 6 : index
    %c0_941 = arith.constant 0 : index
    %598 = vector.load %arg17[%c6_940, %c0_941] : memref<16x128xf32, #tpu.memory_space<vmem>>, vector<1x128xf32>
    %c0_942 = arith.constant 0 : index
    %c640_943 = arith.constant 640 : index
    %599 = vector.load %arg14[%c0_942, %c640_943] : memref<1x1152xf32, #tpu.memory_space<vmem>>, vector<1x128xf32>
    tpu.vector_store %arg14[%c0_942, %c640_943], %598 {strides = array<i32>} : memref<1x1152xf32, #tpu.memory_space<vmem>>, vector<1x128xf32>,
    %c8_944 = arith.constant 8 : index
    %c0_945 = arith.constant 0 : index
    %600 = vector.load %arg17[%c8_944, %c0_945] : memref<16x128xf32, #tpu.memory_space<vmem>>, vector<1x128xf32>
    %c0_946 = arith.constant 0 : index
    %c768_947 = arith.constant 768 : index
    %601 = vector.load %arg14[%c0_946, %c768_947] : memref<1x1152xf32, #tpu.memory_space<vmem>>, vector<1x128xf32>
    tpu.vector_store %arg14[%c0_946, %c768_947], %600 {strides = array<i32>} : memref<1x1152xf32, #tpu.memory_space<vmem>>, vector<1x128xf32>,
    %c9 = arith.constant 9 : index
    %c0_948 = arith.constant 0 : index
    %602 = vector.load %arg17[%c9, %c0_948] : memref<16x128xf32, #tpu.memory_space<vmem>>, vector<1x128xf32>
    %c0_949 = arith.constant 0 : index
    %c896_950 = arith.constant 896 : index
    %603 = vector.load %arg14[%c0_949, %c896_950] : memref<1x1152xf32, #tpu.memory_space<vmem>>, vector<1x128xf32>
    tpu.vector_store %arg14[%c0_949, %c896_950], %602 {strides = array<i32>} : memref<1x1152xf32, #tpu.memory_space<vmem>>, vector<1x128xf32>,
    %c10 = arith.constant 10 : index
    %c0_951 = arith.constant 0 : index
    %604 = vector.load %arg17[%c10, %c0_951] : memref<16x128xf32, #tpu.memory_space<vmem>>, vector<1x128xf32>
    %c0_952 = arith.constant 0 : index
    %c1024_953 = arith.constant 1024 : index
    %605 = vector.load %arg14[%c0_952, %c1024_953] : memref<1x1152xf32, #tpu.memory_space<vmem>>, vector<1x128xf32>
    tpu.vector_store %arg14[%c0_952, %c1024_953], %604 {strides = array<i32>} : memref<1x1152xf32, #tpu.memory_space<vmem>>, vector<1x128xf32>,
    %c0_954 = arith.constant 0 : index
    %c0_955 = arith.constant 0 : index
    %606 = vector.load %arg14[%c0_954, %c0_955] : memref<1x1152xf32, #tpu.memory_space<vmem>>, vector<1x1152xf32>
    %607 = arith.truncf %606 : vector<1x1152xf32> to vector<1x1152xbf16>
    %c0_956 = arith.constant 0 : index
    %c0_957 = arith.constant 0 : index
    %608 = vector.load %arg8[%c0_956, %c0_957] : memref<1152x128xbf16, #tpu.memory_space<vmem>>, vector<1152x128xbf16>
    %cst_958 = arith.constant dense<0.000000e+00> : vector<1x128xf32>
    %609 = tpu.matmul %607, %608, %cst_958 {dimension_numbers = #tpu.dot_dimension_numbers<[1], [0], [0], [1], [0, 0, 1, 1], [], []>} : vector<1x1152xbf16>, vector<1152x128xbf16>, vector<1x128xf32> -> vector<1x128xf32>
    %c0_959 = arith.constant 0 : index
    %c0_960 = arith.constant 0 : index
    %610 = vector.load %arg9[%c0_959, %c0_960] : memref<1x128xf32, #tpu.memory_space<vmem>>, vector<1x128xf32>
    %611 = arith.addf %609, %610 : vector<1x128xf32>
    %cst_961 = arith.constant 0.000000e+00 : f32
    %612 = vector.broadcast %cst_961 : f32 to vector<1x128xf32>
    %613 = arith.maximumf %611, %612 : vector<1x128xf32>
    %c0_962 = arith.constant 0 : index
    %c0_963 = arith.constant 0 : index
    %c0_964 = arith.constant 0 : index
    %614 = vector.load %arg10[%c0_962, %c0_963, %c0_964] : memref<1x1x128xf32, #tpu.memory_space<vmem>>, vector<1x1x128xf32>
    %615 = vector.shape_cast %614 : vector<1x1x128xf32> to vector<1x128xf32>
    %616 = vector.shape_cast %613 : vector<1x128xf32> to vector<1x1x128xf32>
    tpu.vector_store %arg10[%c0_962, %c0_963, %c0_964], %616 {strides = array<i32>} : memref<1x1x128xf32, #tpu.memory_space<vmem>>, vector<1x1x128xf32>,
    return
  }
  func.func @transform_0(%arg0: i32) -> (i32, i32, i32) {
    %c0_i32 = arith.constant 0 : i32
    %c0_i32_0 = arith.constant 0 : i32
    %c0_i32_1 = arith.constant 0 : i32
    return %arg0, %c0_i32, %c0_i32_0 : i32, i32, i32
  }
  func.func @transform_1(%arg0: i32) -> (i32, i32) {
    %c0_i32 = arith.constant 0 : i32
    %c0_i32_0 = arith.constant 0 : i32
    %c0_i32_1 = arith.constant 0 : i32
    return %c0_i32, %c0_i32_0 : i32, i32
  }
  func.func @transform_2(%arg0: i32) -> (i32, i32) {
    %c0_i32 = arith.constant 0 : i32
    %c0_i32_0 = arith.constant 0 : i32
    %c0_i32_1 = arith.constant 0 : i32
    return %c0_i32, %c0_i32_0 : i32, i32
  }
  func.func @transform_3(%arg0: i32) -> (i32, i32) {
    %c0_i32 = arith.constant 0 : i32
    %c0_i32_0 = arith.constant 0 : i32
    %c0_i32_1 = arith.constant 0 : i32
    return %c0_i32, %c0_i32_0 : i32, i32
  }
  func.func @transform_4(%arg0: i32) -> (i32, i32) {
    %c0_i32 = arith.constant 0 : i32
    %c0_i32_0 = arith.constant 0 : i32
    %c0_i32_1 = arith.constant 0 : i32
    return %c0_i32, %c0_i32_0 : i32, i32
  }
  func.func @transform_5(%arg0: i32) -> (i32, i32) {
    %c0_i32 = arith.constant 0 : i32
    %c0_i32_0 = arith.constant 0 : i32
    %c0_i32_1 = arith.constant 0 : i32
    return %c0_i32, %c0_i32_0 : i32, i32
  }
  func.func @transform_6(%arg0: i32) -> (i32, i32) {
    %c0_i32 = arith.constant 0 : i32
    %c0_i32_0 = arith.constant 0 : i32
    %c0_i32_1 = arith.constant 0 : i32
    return %c0_i32, %c0_i32_0 : i32, i32
  }
  func.func @transform_7(%arg0: i32) -> (i32, i32) {
    %c0_i32 = arith.constant 0 : i32
    %c0_i32_0 = arith.constant 0 : i32
    %c0_i32_1 = arith.constant 0 : i32
    return %c0_i32, %c0_i32_0 : i32, i32
  }
  func.func @transform_8(%arg0: i32) -> (i32, i32) {
    %c0_i32 = arith.constant 0 : i32
    %c0_i32_0 = arith.constant 0 : i32
    %c0_i32_1 = arith.constant 0 : i32
    return %c0_i32, %c0_i32_0 : i32, i32
  }
  func.func @transform_9(%arg0: i32) -> (i32, i32, i32) {
    %c0_i32 = arith.constant 0 : i32
    %c0_i32_0 = arith.constant 0 : i32
    %c0_i32_1 = arith.constant 0 : i32
    return %arg0, %c0_i32, %c0_i32_0 : i32, i32, i32
  }
}

</mosaic_0001>

<llo_original>
// kernel: dqn_forward.3
$region0: #{dqn_forward.3}
  #allocation0 [shape = 'u32[]', space=smem, size = 0x4, offset = 0x4, fixed_abs, tag = 'smem constant byte address 0x4 - core index']
  #allocation1 [shape = 'u32[144,128]{1,0:T(1,128)}', space=vmem, size = 0x12000, scoped, tag = 'internal scratch']
  #allocation2 [shape = 'f32[8,8,512]{2,1,0:T(8,128)}', space=vmem, size = 0x20000, scoped, tag = 'scratch operand']
  %s0 = inlined_call_operand.vmem [shape: f32[64,32], index: 0, kind: input, shape index: {}]
  %s1 = inlined_call_operand.vmem [shape: f32[8,128], index: 1, kind: input, shape index: {}]
  %s2 = inlined_call_operand.vmem [shape: bf16[32,512], index: 2, kind: input, shape index: {}]
  %s3 = inlined_call_operand.vmem [shape: bf16[128,512], index: 3, kind: input, shape index: {}]
  %s4 = inlined_call_operand.vmem [shape: f32[1,512], index: 4, kind: input, shape index: {}]
  %s5 = inlined_call_operand.vmem [shape: bf16[128,128], index: 5, kind: input, shape index: {}]
  %s6 = inlined_call_operand.vmem [shape: f32[1,128], index: 6, kind: input, shape index: {}]
  %s7 = inlined_call_operand.vmem [shape: bf16[128,256], index: 7, kind: input, shape index: {}]
  %s8 = inlined_call_operand.vmem [shape: f32[1,256], index: 8, kind: input, shape index: {}]
  %s9 = inlined_call_operand.vmem [shape: bf16[256,128], index: 9, kind: input, shape index: {}]
  %s10 = inlined_call_operand.vmem [shape: f32[1,128], index: 10, kind: input, shape index: {}]
  %s11 = inlined_call_operand.vmem [shape: f32[8,128], index: 11, kind: output, shape index: {}]
  %s12 = sld [smem:[#allocation0]]
  $region54: #{dqn_forward.3} parent=0
    _
  %s14 = ssub.s32 1, %s12
  %s15 = scalar_select 0, %s14, %s12
  // Predicated region
  $region2: #{dqn_forward.3} parent=0 // pred_check
    _
  $region3: #{dqn_forward.3} parent=0 // pred_check_branch
    %17 = sbr.rel (0) target = $region5
  $region4: #{dqn_forward.3} parent=0 // pred_region
    _
  $region5: #{dqn_forward.3} parent=0 // pred_fallthru
    _
  // Predicated region
  $region6: #{dqn_forward.3} parent=0 // pred_check
    _
  $region7: #{dqn_forward.3} parent=0 // pred_check_branch
    %19 = sbr.rel (0) target = $region9
  $region8: #{dqn_forward.3} parent=0 // pred_region
    _
  $region9: #{dqn_forward.3} parent=0 // pred_fallthru
    _
  // Predicated region
  $region10: #{dqn_forward.3} parent=0 // pred_check
    _
  $region11: #{dqn_forward.3} parent=0 // pred_check_branch
    %21 = sbr.rel (0) target = $region13
  $region12: #{dqn_forward.3} parent=0 // pred_region
    _
  $region13: #{dqn_forward.3} parent=0 // pred_fallthru
    _
  // Predicated region
  $region14: #{dqn_forward.3} parent=0 // pred_check
    _
  $region15: #{dqn_forward.3} parent=0 // pred_check_branch
    %23 = sbr.rel (0) target = $region17
  $region16: #{dqn_forward.3} parent=0 // pred_region
    _
  $region17: #{dqn_forward.3} parent=0 // pred_fallthru
    _
  // Predicated region
  $region18: #{dqn_forward.3} parent=0 // pred_check
    _
  $region19: #{dqn_forward.3} parent=0 // pred_check_branch
    %25 = sbr.rel (0) target = $region21
  $region20: #{dqn_forward.3} parent=0 // pred_region
    _
  $region21: #{dqn_forward.3} parent=0 // pred_fallthru
    _
  // Predicated region
  $region22: #{dqn_forward.3} parent=0 // pred_check
    _
  $region23: #{dqn_forward.3} parent=0 // pred_check_branch
    %27 = sbr.rel (0) target = $region25
  $region24: #{dqn_forward.3} parent=0 // pred_region
    _
  $region25: #{dqn_forward.3} parent=0 // pred_fallthru
    _
  // Predicated region
  $region26: #{dqn_forward.3} parent=0 // pred_check
    _
  $region27: #{dqn_forward.3} parent=0 // pred_check_branch
    %29 = sbr.rel (0) target = $region29
  $region28: #{dqn_forward.3} parent=0 // pred_region
    _
  $region29: #{dqn_forward.3} parent=0 // pred_fallthru
    _
  // Predicated region
  $region30: #{dqn_forward.3} parent=0 // pred_check
    _
  $region31: #{dqn_forward.3} parent=0 // pred_check_branch
    %31 = sbr.rel (0) target = $region33
  $region32: #{dqn_forward.3} parent=0 // pred_region
    _
  $region33: #{dqn_forward.3} parent=0 // pred_fallthru
    _
  // Predicated region
  $region34: #{dqn_forward.3} parent=0 // pred_check
    _
  $region35: #{dqn_forward.3} parent=0 // pred_check_branch
    %33 = sbr.rel (0) target = $region37
  $region36: #{dqn_forward.3} parent=0 // pred_region
    _
  $region37: #{dqn_forward.3} parent=0 // pred_fallthru
    _
  // Predicated region
  $region38: #{dqn_forward.3} parent=0 // pred_check
    _
  $region39: #{dqn_forward.3} parent=0 // pred_check_branch
    %35 = sbr.rel (0) target = $region41
  $region40: #{dqn_forward.3} parent=0 // pred_region
    _
  $region41: #{dqn_forward.3} parent=0 // pred_fallthru
    _
  // Predicated region
  $region42: #{dqn_forward.3} parent=0 // pred_check
    _
  $region43: #{dqn_forward.3} parent=0 // pred_check_branch
    %37 = sbr.rel (0) target = $region45
  $region44: #{dqn_forward.3} parent=0 // pred_region
    _
  $region45: #{dqn_forward.3} parent=0 // pred_fallthru
    _
  %v39 = vld [vmem:[%s0] sm:$0xff]
  %v40 = vld [vmem:[%s0 + $0x8] sm:$0xff]
  %v41 = vld [vmem:[%s0 + $0x10] sm:$0xff]
  %v42 = vld [vmem:[%s0 + $0x18] sm:$0xff]
  %v43 = vld [vmem:[%s0 + $0x20] sm:$0xff]
  %v44 = vld [vmem:[%s0 + $0x28] sm:$0xff]
  %v45 = vld [vmem:[%s0 + $0x30] sm:$0xff]
  %v46 = vld [vmem:[%s0 + $0x38] sm:$0xff]
  %v47 = vpack.c.bf16 %v40, %v39
  %v48 = vpack.c.bf16 %v42, %v41
  %v49 = vpack.c.bf16 %v44, %v43
  %v50 = vpack.c.bf16 %v46, %v45
  %v51 = vld [vmem:[%s2] sm:$0xff]
  %v52 = vld [vmem:[%s2 + $0x8] sm:$0xff]
  %v53 = vld [vmem:[%s2 + $0x10] sm:$0xff]
  %v54 = vld [vmem:[%s2 + $0x18] sm:$0xff]
  %v55 = vld [vmem:[%s2 + $0x20] sm:$0xff]
  %v56 = vld [vmem:[%s2 + $0x28] sm:$0xff]
  %v57 = vld [vmem:[%s2 + $0x30] sm:$0xff]
  %v58 = vld [vmem:[%s2 + $0x38] sm:$0xff]
  %v59 = vld [vmem:[%s4] sm:$0xf]
  %v61 = vlaneseq
  %v62 = vshrl.u32 %v61, 7
  %v63 = vsub.s32 0, %v62
  %v64 = vrot.slane %v59, %v63
  %v65 = vlaneseq
  %v66 = vshrl.u32 %v65, 7
  %v67 = vsub.s32 1, %v66
  %v68 = vrot.slane %v59, %v67
  %v69 = vlaneseq
  %v70 = vshrl.u32 %v69, 7
  %v71 = vsub.s32 2, %v70
  %v72 = vrot.slane %v59, %v71
  %v73 = vlaneseq
  %v74 = vshrl.u32 %v73, 7
  %v75 = vsub.s32 3, %v74
  %v76 = vrot.slane %v59, %v75
  %v89 = vunpack.c.l.b16 %v51
  %v90 = vunpack.c.h.b16 %v51
  %v91 = vunpack.c.l.b16 %v52
  %v92 = vunpack.c.h.b16 %v52
  %v93 = vunpack.c.l.b16 %v53
  %v94 = vunpack.c.h.b16 %v53
  %v95 = vunpack.c.l.b16 %v54
  %v96 = vunpack.c.h.b16 %v54
  %v97 = vunpack.c.l.b16 %v55
  %v98 = vunpack.c.h.b16 %v55
  %v99 = vunpack.c.l.b16 %v56
  %v100 = vunpack.c.h.b16 %v56
  %v101 = vunpack.c.l.b16 %v57
  %v102 = vunpack.c.h.b16 %v57
  %v103 = vunpack.c.l.b16 %v58
  %v104 = vunpack.c.h.b16 %v58
  %v105 = vpack.c.b16 %v93, %v89
  %v106 = vpack.c.b16 %v94, %v90
  %v107 = vpack.c.b16 %v95, %v91
  %v108 = vpack.c.b16 %v96, %v92
  %v109 = vpack.c.b16 %v101, %v97
  %v110 = vpack.c.b16 %v102, %v98
  %v111 = vpack.c.b16 %v103, %v99
  %v112 = vpack.c.b16 %v104, %v100
  %vm121 = vcmask 261120
  %v123 = vsel %vm121, %v47, 0
  %v126 = vsel %vm121, %v48, 0
  %v129 = vsel %vm121, %v49, 0
  %v132 = vsel %vm121, %v50, 0
  %134 = vmatprep.subr.bf16.mxu0 %v106
  %135 = vmatpush1.bf16.msra.mxu0 %v105
  %136 = vmatprep.subr.bf16.mxu0 %v110
  %137 = vmatpush1.bf16.msra.mxu0 %v109
  %138 = vmatprep.subr.bf16.mxu0 0
  %139 = vmatpush1.bf16.msra.mxu0 0
  %140 = vmatprep.subr.bf16.mxu0 0
  %141 = vmatpush1.bf16.msra.mxu0 0
  %142 = vmatprep.subr.bf16.mxu0 0
  %143 = vmatpush1.bf16.msra.mxu0 0
  %144 = vmatprep.subr.bf16.mxu0 0
  %145 = vmatpush1.bf16.msra.mxu0 0
  %146 = vmatprep.subr.bf16.mxu0 0
  %147 = vmatpush1.bf16.msra.mxu0 0
  %148 = vmatprep.subr.bf16.mxu0 0
  %149 = vmatpush1.bf16.msra.mxu0 0
  %150 = vmatprep.subr.bf16.mxu0 0
  %151 = vmatpush1.bf16.msra.mxu0 0
  %152 = vmatprep.subr.bf16.mxu0 0
  %153 = vmatpush1.bf16.msra.mxu0 0
  %154 = vmatprep.subr.bf16.mxu0 0
  %155 = vmatpush1.bf16.msra.mxu0 0
  %156 = vmatprep.subr.bf16.mxu0 0
  %157 = vmatpush1.bf16.msra.mxu0 0
  %158 = vmatprep.subr.bf16.mxu0 0
  %159 = vmatpush1.bf16.msra.mxu0 0
  %160 = vmatprep.subr.bf16.mxu0 0
  %161 = vmatpush1.bf16.msra.mxu0 0
  %162 = vmatprep.subr.bf16.mxu0 0
  %163 = vmatpush1.bf16.msra.mxu0 0
  %164 = vmatprep.subr.bf16.mxu0 0
  %165 = vmatpush1.bf16.msra.mxu0 0
  %166 = vmatprep.mubr.bf16.mxu0 0
  %167 = vmatmul.mubr.bf16.gmra.mrb[0].mxu0 %v123
  %v168 = vpop.f32.mrb[0].mxu0
  %v169 = vadd.f32 %v64, %v168
  %v170 = vpop.f32.mrb[0].mxu0
  %v171 = vadd.f32 %v68, %v170
  %v172 = vpop.f32.mrb[0].mxu0
  %v173 = vadd.f32 %v64, %v172
  %v174 = vpop.f32.mrb[0].mxu0
  %v175 = vadd.f32 %v68, %v174
  %176 = vmatprep.mubr.bf16.mxu0 0
  %177 = vmatmul.mubr.bf16.gmra.mrb[0].mxu0 %v126
  %v178 = vpop.f32.mrb[0].mxu0
  %v179 = vadd.f32 %v64, %v178
  %v180 = vpop.f32.mrb[0].mxu0
  %v181 = vadd.f32 %v68, %v180
  %v182 = vpop.f32.mrb[0].mxu0
  %v183 = vadd.f32 %v64, %v182
  %v184 = vpop.f32.mrb[0].mxu0
  %v185 = vadd.f32 %v68, %v184
  %186 = vmatprep.mubr.bf16.mxu0 0
  %187 = vmatmul.mubr.bf16.gmra.mrb[0].mxu0 %v129
  %v188 = vpop.f32.mrb[0].mxu0
  %v189 = vadd.f32 %v64, %v188
  %v190 = vpop.f32.mrb[0].mxu0
  %v191 = vadd.f32 %v68, %v190
  %v192 = vpop.f32.mrb[0].mxu0
  %v193 = vadd.f32 %v64, %v192
  %v194 = vpop.f32.mrb[0].mxu0
  %v195 = vadd.f32 %v68, %v194
  %196 = vmatprep.mubr.bf16.mxu0 0
  %197 = vmatmul.mubr.bf16.gmra.mrb[0].mxu0 %v132
  %v198 = vpop.f32.mrb[0].mxu0
  %v199 = vadd.f32 %v64, %v198
  %v200 = vpop.f32.mrb[0].mxu0
  %v201 = vadd.f32 %v68, %v200
  %v202 = vpop.f32.mrb[0].mxu0
  %v203 = vadd.f32 %v64, %v202
  %v204 = vpop.f32.mrb[0].mxu0
  %v205 = vadd.f32 %v68, %v204
  %206 = vdwg.mxu0
  %207 = vmatprep.subr.bf16.mxu0 %v108
  %208 = vmatpush1.bf16.msra.mxu0 %v107
  %209 = vmatprep.subr.bf16.mxu0 %v112
  %210 = vmatpush1.bf16.msra.mxu0 %v111
  %211 = vmatprep.subr.bf16.mxu0 0
  %212 = vmatpush1.bf16.msra.mxu0 0
  %213 = vmatprep.subr.bf16.mxu0 0
  %214 = vmatpush1.bf16.msra.mxu0 0
  %215 = vmatprep.subr.bf16.mxu0 0
  %216 = vmatpush1.bf16.msra.mxu0 0
  %217 = vmatprep.subr.bf16.mxu0 0
  %218 = vmatpush1.bf16.msra.mxu0 0
  %219 = vmatprep.subr.bf16.mxu0 0
  %220 = vmatpush1.bf16.msra.mxu0 0
  %221 = vmatprep.subr.bf16.mxu0 0
  %222 = vmatpush1.bf16.msra.mxu0 0
  %223 = vmatprep.subr.bf16.mxu0 0
  %224 = vmatpush1.bf16.msra.mxu0 0
  %225 = vmatprep.subr.bf16.mxu0 0
  %226 = vmatpush1.bf16.msra.mxu0 0
  %227 = vmatprep.subr.bf16.mxu0 0
  %228 = vmatpush1.bf16.msra.mxu0 0
  %229 = vmatprep.subr.bf16.mxu0 0
  %230 = vmatpush1.bf16.msra.mxu0 0
  %231 = vmatprep.subr.bf16.mxu0 0
  %232 = vmatpush1.bf16.msra.mxu0 0
  %233 = vmatprep.subr.bf16.mxu0 0
  %234 = vmatpush1.bf16.msra.mxu0 0
  %235 = vmatprep.subr.bf16.mxu0 0
  %236 = vmatpush1.bf16.msra.mxu0 0
  %237 = vmatprep.subr.bf16.mxu0 0
  %238 = vmatpush1.bf16.msra.mxu0 0
  %239 = vmatprep.mubr.bf16.mxu0 0
  %240 = vmatmul.mubr.bf16.gmra.mrb[0].mxu0 %v123
  %v241 = vpop.f32.mrb[0].mxu0
  %v242 = vadd.f32 %v72, %v241
  %v243 = vpop.f32.mrb[0].mxu0
  %v244 = vadd.f32 %v76, %v243
  %v245 = vpop.f32.mrb[0].mxu0
  %v246 = vadd.f32 %v72, %v245
  %v247 = vpop.f32.mrb[0].mxu0
  %v248 = vadd.f32 %v76, %v247
  %249 = vmatprep.mubr.bf16.mxu0 0
  %250 = vmatmul.mubr.bf16.gmra.mrb[0].mxu0 %v126
  %v251 = vpop.f32.mrb[0].mxu0
  %v252 = vadd.f32 %v72, %v251
  %v253 = vpop.f32.mrb[0].mxu0
  %v254 = vadd.f32 %v76, %v253
  %v255 = vpop.f32.mrb[0].mxu0
  %v256 = vadd.f32 %v72, %v255
  %v257 = vpop.f32.mrb[0].mxu0
  %v258 = vadd.f32 %v76, %v257
  %259 = vmatprep.mubr.bf16.mxu0 0
  %260 = vmatmul.mubr.bf16.gmra.mrb[0].mxu0 %v129
  %v261 = vpop.f32.mrb[0].mxu0
  %v262 = vadd.f32 %v72, %v261
  %v263 = vpop.f32.mrb[0].mxu0
  %v264 = vadd.f32 %v76, %v263
  %v265 = vpop.f32.mrb[0].mxu0
  %v266 = vadd.f32 %v72, %v265
  %v267 = vpop.f32.mrb[0].mxu0
  %v268 = vadd.f32 %v76, %v267
  %269 = vmatprep.mubr.bf16.mxu0 0
  %270 = vmatmul.mubr.bf16.gmra.mrb[0].mxu0 %v132
  %v271 = vpop.f32.mrb[0].mxu0
  %v272 = vadd.f32 %v72, %v271
  %v273 = vpop.f32.mrb[0].mxu0
  %v274 = vadd.f32 %v76, %v273
  %v275 = vpop.f32.mrb[0].mxu0
  %v276 = vadd.f32 %v72, %v275
  %v277 = vpop.f32.mrb[0].mxu0
  %v278 = vadd.f32 %v76, %v277
  %279 = vdwg.mxu0
  %280 = vst [vmem:[#allocation2] sm:$0xff] %v169
  %281 = vst [vmem:[#allocation2 + $0x8] sm:$0xff] %v171
  %282 = vst [vmem:[#allocation2 + $0x10] sm:$0xff] %v242
  %283 = vst [vmem:[#allocation2 + $0x18] sm:$0xff] %v244
  %s284 = scalar_lea.vmem [#allocation2], 32
  %285 = vst [vmem:[%s284] sm:$0xff] %v173
  %286 = vst [vmem:[%s284 + $0x8] sm:$0xff] %v175
  %287 = vst [vmem:[%s284 + $0x10] sm:$0xff] %v246
  %288 = vst [vmem:[%s284 + $0x18] sm:$0xff] %v248
  %s289 = scalar_lea.vmem [#allocation2], 64
  %290 = vst [vmem:[%s289] sm:$0xff] %v179
  %291 = vst [vmem:[%s289 + $0x8] sm:$0xff] %v181
  %292 = vst [vmem:[%s289 + $0x10] sm:$0xff] %v252
  %293 = vst [vmem:[%s289 + $0x18] sm:$0xff] %v254
  %s294 = scalar_lea.vmem [#allocation2], 96
  %295 = vst [vmem:[%s294] sm:$0xff] %v183
  %296 = vst [vmem:[%s294 + $0x8] sm:$0xff] %v185
  %297 = vst [vmem:[%s294 + $0x10] sm:$0xff] %v256
  %298 = vst [vmem:[%s294 + $0x18] sm:$0xff] %v258
  %s299 = scalar_lea.vmem [#allocation2], 128
  %300 = vst [vmem:[%s299] sm:$0xff] %v189
  %301 = vst [vmem:[%s299 + $0x8] sm:$0xff] %v191
  %302 = vst [vmem:[%s299 + $0x10] sm:$0xff] %v262
  %303 = vst [vmem:[%s299 + $0x18] sm:$0xff] %v264
  %s304 = scalar_lea.vmem [#allocation2], 160
  %305 = vst [vmem:[%s304] sm:$0xff] %v193
  %306 = vst [vmem:[%s304 + $0x8] sm:$0xff] %v195
  %307 = vst [vmem:[%s304 + $0x10] sm:$0xff] %v266
  %308 = vst [vmem:[%s304 + $0x18] sm:$0xff] %v268
  %s309 = scalar_lea.vmem [#allocation2], 192
  %310 = vst [vmem:[%s309] sm:$0xff] %v199
  %311 = vst [vmem:[%s309 + $0x8] sm:$0xff] %v201
  %312 = vst [vmem:[%s309 + $0x10] sm:$0xff] %v272
  %313 = vst [vmem:[%s309 + $0x18] sm:$0xff] %v274
  %s314 = scalar_lea.vmem [#allocation2], 224
  %315 = vst [vmem:[%s314] sm:$0xff] %v203
  %316 = vst [vmem:[%s314 + $0x8] sm:$0xff] %v205
  %317 = vst [vmem:[%s314 + $0x10] sm:$0xff] %v276
  %318 = vst [vmem:[%s314 + $0x18] sm:$0xff] %v278
  %v319 = vld [vmem:[#allocation2] sm:$0xff]
  %v320 = vld [vmem:[#allocation2 + $0x8] sm:$0xff]
  %v321 = vld [vmem:[#allocation2 + $0x10] sm:$0xff]
  %v322 = vld [vmem:[#allocation2 + $0x18] sm:$0xff]
  %v323 = vld [vmem:[%s3] sm:$0xff]
  %v324 = vld [vmem:[%s3 + $0x8] sm:$0xff]
  %v325 = vld [vmem:[%s3 + $0x10] sm:$0xff]
  %v326 = vld [vmem:[%s3 + $0x18] sm:$0xff]
  %v327 = vld [vmem:[%s3 + $0x20] sm:$0xff]
  %v328 = vld [vmem:[%s3 + $0x28] sm:$0xff]
  %v329 = vld [vmem:[%s3 + $0x30] sm:$0xff]
  %v330 = vld [vmem:[%s3 + $0x38] sm:$0xff]
  %v331 = vld [vmem:[%s3 + $0x40] sm:$0xff]
  %v332 = vld [vmem:[%s3 + $0x48] sm:$0xff]
  %v333 = vld [vmem:[%s3 + $0x50] sm:$0xff]
  %v334 = vld [vmem:[%s3 + $0x58] sm:$0xff]
  %v335 = vld [vmem:[%s3 + $0x60] sm:$0xff]
  %v336 = vld [vmem:[%s3 + $0x68] sm:$0xff]
  %v337 = vld [vmem:[%s3 + $0x70] sm:$0xff]
  %v338 = vld [vmem:[%s3 + $0x78] sm:$0xff]
  %v339 = vld [vmem:[%s3 + $0x80] sm:$0xff]
  %v340 = vld [vmem:[%s3 + $0x88] sm:$0xff]
  %v341 = vld [vmem:[%s3 + $0x90] sm:$0xff]
  %v342 = vld [vmem:[%s3 + $0x98] sm:$0xff]
  %v343 = vld [vmem:[%s3 + $0xa0] sm:$0xff]
  %v344 = vld [vmem:[%s3 + $0xa8] sm:$0xff]
  %v345 = vld [vmem:[%s3 + $0xb0] sm:$0xff]
  %v346 = vld [vmem:[%s3 + $0xb8] sm:$0xff]
  %v347 = vld [vmem:[%s3 + $0xc0] sm:$0xff]
  %v348 = vld [vmem:[%s3 + $0xc8] sm:$0xff]
  %v349 = vld [vmem:[%s3 + $0xd0] sm:$0xff]
  %v350 = vld [vmem:[%s3 + $0xd8] sm:$0xff]
  %v351 = vld [vmem:[%s3 + $0xe0] sm:$0xff]
  %v352 = vld [vmem:[%s3 + $0xe8] sm:$0xff]
  %v353 = vld [vmem:[%s3 + $0xf0] sm:$0xff]
  %v354 = vld [vmem:[%s3 + $0xf8] sm:$0xff]
  %v387 = vunpack.c.l.b16 %v323
  %v388 = vunpack.c.h.b16 %v323
  %v389 = vunpack.c.l.b16 %v324
  %v390 = vunpack.c.h.b16 %v324
  %v391 = vunpack.c.l.b16 %v325
  %v392 = vunpack.c.h.b16 %v325
  %v393 = vunpack.c.l.b16 %v326
  %v394 = vunpack.c.h.b16 %v326
  %v395 = vunpack.c.l.b16 %v327
  %v396 = vunpack.c.h.b16 %v327
  %v397 = vunpack.c.l.b16 %v328
  %v398 = vunpack.c.h.b16 %v328
  %v399 = vunpack.c.l.b16 %v329
  %v400 = vunpack.c.h.b16 %v329
  %v401 = vunpack.c.l.b16 %v330
  %v402 = vunpack.c.h.b16 %v330
  %v403 = vunpack.c.l.b16 %v331
  %v404 = vunpack.c.h.b16 %v331
  %v405 = vunpack.c.l.b16 %v332
  %v406 = vunpack.c.h.b16 %v332
  %v407 = vunpack.c.l.b16 %v333
  %v408 = vunpack.c.h.b16 %v333
  %v409 = vunpack.c.l.b16 %v334
  %v410 = vunpack.c.h.b16 %v334
  %v411 = vunpack.c.l.b16 %v335
  %v412 = vunpack.c.h.b16 %v335
  %v413 = vunpack.c.l.b16 %v336
  %v414 = vunpack.c.h.b16 %v336
  %v415 = vunpack.c.l.b16 %v337
  %v416 = vunpack.c.h.b16 %v337
  %v417 = vunpack.c.l.b16 %v338
  %v418 = vunpack.c.h.b16 %v338
  %v419 = vunpack.c.l.b16 %v339
  %v420 = vunpack.c.h.b16 %v339
  %v421 = vunpack.c.l.b16 %v340
  %v422 = vunpack.c.h.b16 %v340
  %v423 = vunpack.c.l.b16 %v341
  %v424 = vunpack.c.h.b16 %v341
  %v425 = vunpack.c.l.b16 %v342
  %v426 = vunpack.c.h.b16 %v342
  %v427 = vunpack.c.l.b16 %v343
  %v428 = vunpack.c.h.b16 %v343
  %v429 = vunpack.c.l.b16 %v344
  %v430 = vunpack.c.h.b16 %v344
  %v431 = vunpack.c.l.b16 %v345
  %v432 = vunpack.c.h.b16 %v345
  %v433 = vunpack.c.l.b16 %v346
  %v434 = vunpack.c.h.b16 %v346
  %v435 = vunpack.c.l.b16 %v347
  %v436 = vunpack.c.h.b16 %v347
  %v437 = vunpack.c.l.b16 %v348
  %v438 = vunpack.c.h.b16 %v348
  %v439 = vunpack.c.l.b16 %v349
  %v440 = vunpack.c.h.b16 %v349
  %v441 = vunpack.c.l.b16 %v350
  %v442 = vunpack.c.h.b16 %v350
  %v443 = vunpack.c.l.b16 %v351
  %v444 = vunpack.c.h.b16 %v351
  %v445 = vunpack.c.l.b16 %v352
  %v446 = vunpack.c.h.b16 %v352
  %v447 = vunpack.c.l.b16 %v353
  %v448 = vunpack.c.h.b16 %v353
  %v449 = vunpack.c.l.b16 %v354
  %v450 = vunpack.c.h.b16 %v354
  %v451 = vpack.c.b16 %v391, %v387
  %v452 = vpack.c.b16 %v392, %v388
  %v453 = vpack.c.b16 %v393, %v389
  %v454 = vpack.c.b16 %v394, %v390
  %v455 = vpack.c.b16 %v399, %v395
  %v456 = vpack.c.b16 %v400, %v396
  %v457 = vpack.c.b16 %v401, %v397
  %v458 = vpack.c.b16 %v402, %v398
  %v459 = vpack.c.b16 %v407, %v403
  %v460 = vpack.c.b16 %v408, %v404
  %v461 = vpack.c.b16 %v409, %v405
  %v462 = vpack.c.b16 %v410, %v406
  %v463 = vpack.c.b16 %v415, %v411
  %v464 = vpack.c.b16 %v416, %v412
  %v465 = vpack.c.b16 %v417, %v413
  %v466 = vpack.c.b16 %v418, %v414
  %v467 = vpack.c.b16 %v423, %v419
  %v468 = vpack.c.b16 %v424, %v420
  %v469 = vpack.c.b16 %v425, %v421
  %v470 = vpack.c.b16 %v426, %v422
  %v471 = vpack.c.b16 %v431, %v427
  %v472 = vpack.c.b16 %v432, %v428
  %v473 = vpack.c.b16 %v433, %v429
  %v474 = vpack.c.b16 %v434, %v430
  %v475 = vpack.c.b16 %v439, %v435
  %v476 = vpack.c.b16 %v440, %v436
  %v477 = vpack.c.b16 %v441, %v437
  %v478 = vpack.c.b16 %v442, %v438
  %v479 = vpack.c.b16 %v447, %v443
  %v480 = vpack.c.b16 %v448, %v444
  %v481 = vpack.c.b16 %v449, %v445
  %v482 = vpack.c.b16 %v450, %v446
  %515 = vmatprep.subr.bf16.mxu0 %v452
  %516 = vmatpush1.bf16.msra.mxu0 %v451
  %517 = vmatprep.subr.bf16.mxu0 %v456
  %518 = vmatpush1.bf16.msra.mxu0 %v455
  %519 = vmatprep.subr.bf16.mxu0 %v460
  %520 = vmatpush1.bf16.msra.mxu0 %v459
  %521 = vmatprep.subr.bf16.mxu0 %v464
  %522 = vmatpush1.bf16.msra.mxu0 %v463
  %523 = vmatprep.subr.bf16.mxu0 %v468
  %524 = vmatpush1.bf16.msra.mxu0 %v467
  %525 = vmatprep.subr.bf16.mxu0 %v472
  %526 = vmatpush1.bf16.msra.mxu0 %v471
  %527 = vmatprep.subr.bf16.mxu0 %v476
  %528 = vmatpush1.bf16.msra.mxu0 %v475
  %529 = vmatprep.subr.bf16.mxu0 %v480
  %530 = vmatpush1.bf16.msra.mxu0 %v479
  %531 = vmatprep.subr.bf16.mxu0 0
  %532 = vmatpush1.bf16.msra.mxu0 0
  %533 = vmatprep.subr.bf16.mxu0 0
  %534 = vmatpush1.bf16.msra.mxu0 0
  %535 = vmatprep.subr.bf16.mxu0 0
  %536 = vmatpush1.bf16.msra.mxu0 0
  %537 = vmatprep.subr.bf16.mxu0 0
  %538 = vmatpush1.bf16.msra.mxu0 0
  %539 = vmatprep.subr.bf16.mxu0 0
  %540 = vmatpush1.bf16.msra.mxu0 0
  %541 = vmatprep.subr.bf16.mxu0 0
  %542 = vmatpush1.bf16.msra.mxu0 0
  %543 = vmatprep.subr.bf16.mxu0 0
  %544 = vmatpush1.bf16.msra.mxu0 0
  %545 = vmatprep.subr.bf16.mxu0 0
  %546 = vmatpush1.bf16.msra.mxu0 0
  %547 = vmatprep.mubr.bf16.mxu0 0
  %548 = vmatmul.mubr.bf16.gmra.mrb[0].mxu0 0
  %v549 = vpop.f32.mrb[0].mxu0
  %v550 = vadd.f32 0.0, %v549
  %v551 = vpop.f32.mrb[0].mxu0
  %v552 = vadd.f32 0.0, %v551
  %v553 = vpop.f32.mrb[0].mxu0
  %v554 = vpop.f32.mrb[0].mxu0
  %555 = vdwg.mxu0
  %556 = vmatprep.subr.bf16.mxu0 %v454
  %557 = vmatpush1.bf16.msra.mxu0 %v453
  %558 = vmatprep.subr.bf16.mxu0 %v458
  %559 = vmatpush1.bf16.msra.mxu0 %v457
  %560 = vmatprep.subr.bf16.mxu0 %v462
  %561 = vmatpush1.bf16.msra.mxu0 %v461
  %562 = vmatprep.subr.bf16.mxu0 %v466
  %563 = vmatpush1.bf16.msra.mxu0 %v465
  %564 = vmatprep.subr.bf16.mxu0 %v470
  %565 = vmatpush1.bf16.msra.mxu0 %v469
  %566 = vmatprep.subr.bf16.mxu0 %v474
  %567 = vmatpush1.bf16.msra.mxu0 %v473
  %568 = vmatprep.subr.bf16.mxu0 %v478
  %569 = vmatpush1.bf16.msra.mxu0 %v477
  %570 = vmatprep.subr.bf16.mxu0 %v482
  %571 = vmatpush1.bf16.msra.mxu0 %v481
  %572 = vmatprep.subr.bf16.mxu0 0
  %573 = vmatpush1.bf16.msra.mxu0 0
  %574 = vmatprep.subr.bf16.mxu0 0
  %575 = vmatpush1.bf16.msra.mxu0 0
  %576 = vmatprep.subr.bf16.mxu0 0
  %577 = vmatpush1.bf16.msra.mxu0 0
  %578 = vmatprep.subr.bf16.mxu0 0
  %579 = vmatpush1.bf16.msra.mxu0 0
  %580 = vmatprep.subr.bf16.mxu0 0
  %581 = vmatpush1.bf16.msra.mxu0 0
  %582 = vmatprep.subr.bf16.mxu0 0
  %583 = vmatpush1.bf16.msra.mxu0 0
  %584 = vmatprep.subr.bf16.mxu0 0
  %585 = vmatpush1.bf16.msra.mxu0 0
  %586 = vmatprep.subr.bf16.mxu0 0
  %587 = vmatpush1.bf16.msra.mxu0 0
  %588 = vmatprep.mubr.bf16.mxu0 0
  %589 = vmatmul.mubr.bf16.gmra.mrb[0].mxu0 0
  %v590 = vpop.f32.mrb[0].mxu0
  %v591 = vadd.f32 0.0, %v590
  %v592 = vpop.f32.mrb[0].mxu0
  %v593 = vadd.f32 0.0, %v592
  %v594 = vpop.f32.mrb[0].mxu0
  %v595 = vpop.f32.mrb[0].mxu0
  %596 = vdwg.mxu0
  %v597 = vadd.f32 %v319, %v550
  %v598 = vadd.f32 %v320, %v552
  %v599 = vadd.f32 %v321, %v591
  %v600 = vadd.f32 %v322, %v593
  %v601 = vxor.u32 %v597, 2147483648
  %v602 = vmul.f32 %v601, 1.442695
  %v603 = vpow.pop %v602
  %v604 = vadd.f32 %v603, 1.0
  %v605 = vrcp.pop %v604
  %v606 = vmul.f32 1.0, %v605
  %v607 = vxor.u32 %v598, 2147483648
  %v608 = vmul.f32 %v607, 1.442695
  %v609 = vpow.pop %v608
  %v610 = vadd.f32 %v609, 1.0
  %v611 = vrcp.pop %v610
  %v612 = vmul.f32 1.0, %v611
  %v613 = vtanh.pop %v599
  %v614 = vxor.u32 %v600, 2147483648
  %v615 = vmul.f32 %v614, 1.442695
  %v616 = vpow.pop %v615
  %v617 = vadd.f32 %v616, 1.0
  %v618 = vrcp.pop %v617
  %v619 = vmul.f32 1.0, %v618
  %v620 = vmul.f32 %v612, 0.0
  %v621 = vmul.f32 %v606, %v613
  %v622 = vadd.f32 %v620, %v621
  %v623 = vtanh.pop %v622
  %v624 = vmul.f32 %v619, %v623
  %v625 = vld [vmem:[%s284] sm:$0xff]
  %v626 = vld [vmem:[%s284 + $0x8] sm:$0xff]
  %v627 = vld [vmem:[%s284 + $0x10] sm:$0xff]
  %v628 = vld [vmem:[%s284 + $0x18] sm:$0xff]
  %v629 = vpack.c.bf16 %v624, %v624
  %630 = vmatprep.subr.bf16.mxu0 %v452
  %631 = vmatpush1.bf16.msra.mxu0 %v451
  %632 = vmatprep.subr.bf16.mxu0 %v456
  %633 = vmatpush1.bf16.msra.mxu0 %v455
  %634 = vmatprep.subr.bf16.mxu0 %v460
  %635 = vmatpush1.bf16.msra.mxu0 %v459
  %636 = vmatprep.subr.bf16.mxu0 %v464
  %637 = vmatpush1.bf16.msra.mxu0 %v463
  %638 = vmatprep.subr.bf16.mxu0 %v468
  %639 = vmatpush1.bf16.msra.mxu0 %v467
  %640 = vmatprep.subr.bf16.mxu0 %v472
  %641 = vmatpush1.bf16.msra.mxu0 %v471
  %642 = vmatprep.subr.bf16.mxu0 %v476
  %643 = vmatpush1.bf16.msra.mxu0 %v475
  %644 = vmatprep.subr.bf16.mxu0 %v480
  %645 = vmatpush1.bf16.msra.mxu0 %v479
  %646 = vmatprep.subr.bf16.mxu0 0
  %647 = vmatpush1.bf16.msra.mxu0 0
  %648 = vmatprep.subr.bf16.mxu0 0
  %649 = vmatpush1.bf16.msra.mxu0 0
  %650 = vmatprep.subr.bf16.mxu0 0
  %651 = vmatpush1.bf16.msra.mxu0 0
  %652 = vmatprep.subr.bf16.mxu0 0
  %653 = vmatpush1.bf16.msra.mxu0 0
  %654 = vmatprep.subr.bf16.mxu0 0
  %655 = vmatpush1.bf16.msra.mxu0 0
  %656 = vmatprep.subr.bf16.mxu0 0
  %657 = vmatpush1.bf16.msra.mxu0 0
  %658 = vmatprep.subr.bf16.mxu0 0
  %659 = vmatpush1.bf16.msra.mxu0 0
  %660 = vmatprep.subr.bf16.mxu0 0
  %661 = vmatpush1.bf16.msra.mxu0 0
  %662 = vmatprep.mubr.bf16.mxu0 0
  %663 = vmatmul.mubr.bf16.gmra.mrb[0].mxu0 %v629
  %v664 = vpop.f32.mrb[0].mxu0
  %v665 = vadd.f32 0.0, %v664
  %v666 = vpop.f32.mrb[0].mxu0
  %v667 = vadd.f32 0.0, %v666
  %v668 = vpop.f32.mrb[0].mxu0
  %v669 = vpop.f32.mrb[0].mxu0
  %670 = vdwg.mxu0
  %671 = vmatprep.subr.bf16.mxu0 %v454
  %672 = vmatpush1.bf16.msra.mxu0 %v453
  %673 = vmatprep.subr.bf16.mxu0 %v458
  %674 = vmatpush1.bf16.msra.mxu0 %v457
  %675 = vmatprep.subr.bf16.mxu0 %v462
  %676 = vmatpush1.bf16.msra.mxu0 %v461
  %677 = vmatprep.subr.bf16.mxu0 %v466
  %678 = vmatpush1.bf16.msra.mxu0 %v465
  %679 = vmatprep.subr.bf16.mxu0 %v470
  %680 = vmatpush1.bf16.msra.mxu0 %v469
  %681 = vmatprep.subr.bf16.mxu0 %v474
  %682 = vmatpush1.bf16.msra.mxu0 %v473
  %683 = vmatprep.subr.bf16.mxu0 %v478
  %684 = vmatpush1.bf16.msra.mxu0 %v477
  %685 = vmatprep.subr.bf16.mxu0 %v482
  %686 = vmatpush1.bf16.msra.mxu0 %v481
  %687 = vmatprep.subr.bf16.mxu0 0
  %688 = vmatpush1.bf16.msra.mxu0 0
  %689 = vmatprep.subr.bf16.mxu0 0
  %690 = vmatpush1.bf16.msra.mxu0 0
  %691 = vmatprep.subr.bf16.mxu0 0
  %692 = vmatpush1.bf16.msra.mxu0 0
  %693 = vmatprep.subr.bf16.mxu0 0
  %694 = vmatpush1.bf16.msra.mxu0 0
  %695 = vmatprep.subr.bf16.mxu0 0
  %696 = vmatpush1.bf16.msra.mxu0 0
  %697 = vmatprep.subr.bf16.mxu0 0
  %698 = vmatpush1.bf16.msra.mxu0 0
  %699 = vmatprep.subr.bf16.mxu0 0
  %700 = vmatpush1.bf16.msra.mxu0 0
  %701 = vmatprep.subr.bf16.mxu0 0
  %702 = vmatpush1.bf16.msra.mxu0 0
  %703 = vmatprep.mubr.bf16.mxu0 0
  %704 = vmatmul.mubr.bf16.gmra.mrb[0].mxu0 %v629
  %v705 = vpop.f32.mrb[0].mxu0
  %v706 = vadd.f32 0.0, %v705
  %v707 = vpop.f32.mrb[0].mxu0
  %v708 = vadd.f32 0.0, %v707
  %v709 = vpop.f32.mrb[0].mxu0
  %v710 = vpop.f32.mrb[0].mxu0
  %711 = vdwg.mxu0
  %v712 = vadd.f32 %v625, %v665
  %v713 = vadd.f32 %v626, %v667
  %v714 = vadd.f32 %v627, %v706
  %v715 = vadd.f32 %v628, %v708
  %v716 = vxor.u32 %v712, 2147483648
  %v717 = vmul.f32 %v716, 1.442695
  %v718 = vpow.pop %v717
  %v719 = vadd.f32 %v718, 1.0
  %v720 = vrcp.pop %v719
  %v721 = vmul.f32 1.0, %v720
  %v722 = vxor.u32 %v713, 2147483648
  %v723 = vmul.f32 %v722, 1.442695
  %v724 = vpow.pop %v723
  %v725 = vadd.f32 %v724, 1.0
  %v726 = vrcp.pop %v725
  %v727 = vmul.f32 1.0, %v726
  %v728 = vtanh.pop %v714
  %v729 = vxor.u32 %v715, 2147483648
  %v730 = vmul.f32 %v729, 1.442695
  %v731 = vpow.pop %v730
  %v732 = vadd.f32 %v731, 1.0
  %v733 = vrcp.pop %v732
  %v734 = vmul.f32 1.0, %v733
  %v735 = vmul.f32 %v727, %v622
  %v736 = vmul.f32 %v721, %v728
  %v737 = vadd.f32 %v735, %v736
  %v738 = vtanh.pop %v737
  %v739 = vmul.f32 %v734, %v738
  %v740 = vld [vmem:[%s289] sm:$0xff]
  %v741 = vld [vmem:[%s289 + $0x8] sm:$0xff]
  %v742 = vld [vmem:[%s289 + $0x10] sm:$0xff]
  %v743 = vld [vmem:[%s289 + $0x18] sm:$0xff]
  %v744 = vpack.c.bf16 %v739, %v739
  %745 = vmatprep.subr.bf16.mxu0 %v452
  %746 = vmatpush1.bf16.msra.mxu0 %v451
  %747 = vmatprep.subr.bf16.mxu0 %v456
  %748 = vmatpush1.bf16.msra.mxu0 %v455
  %749 = vmatprep.subr.bf16.mxu0 %v460
  %750 = vmatpush1.bf16.msra.mxu0 %v459
  %751 = vmatprep.subr.bf16.mxu0 %v464
  %752 = vmatpush1.bf16.msra.mxu0 %v463
  %753 = vmatprep.subr.bf16.mxu0 %v468
  %754 = vmatpush1.bf16.msra.mxu0 %v467
  %755 = vmatprep.subr.bf16.mxu0 %v472
  %756 = vmatpush1.bf16.msra.mxu0 %v471
  %757 = vmatprep.subr.bf16.mxu0 %v476
  %758 = vmatpush1.bf16.msra.mxu0 %v475
  %759 = vmatprep.subr.bf16.mxu0 %v480
  %760 = vmatpush1.bf16.msra.mxu0 %v479
  %761 = vmatprep.subr.bf16.mxu0 0
  %762 = vmatpush1.bf16.msra.mxu0 0
  %763 = vmatprep.subr.bf16.mxu0 0
  %764 = vmatpush1.bf16.msra.mxu0 0
  %765 = vmatprep.subr.bf16.mxu0 0
  %766 = vmatpush1.bf16.msra.mxu0 0
  %767 = vmatprep.subr.bf16.mxu0 0
  %768 = vmatpush1.bf16.msra.mxu0 0
  %769 = vmatprep.subr.bf16.mxu0 0
  %770 = vmatpush1.bf16.msra.mxu0 0
  %771 = vmatprep.subr.bf16.mxu0 0
  %772 = vmatpush1.bf16.msra.mxu0 0
  %773 = vmatprep.subr.bf16.mxu0 0
  %774 = vmatpush1.bf16.msra.mxu0 0
  %775 = vmatprep.subr.bf16.mxu0 0
  %776 = vmatpush1.bf16.msra.mxu0 0
  %777 = vmatprep.mubr.bf16.mxu0 0
  %778 = vmatmul.mubr.bf16.gmra.mrb[0].mxu0 %v744
  %v779 = vpop.f32.mrb[0].mxu0
  %v780 = vadd.f32 0.0, %v779
  %v781 = vpop.f32.mrb[0].mxu0
  %v782 = vadd.f32 0.0, %v781
  %v783 = vpop.f32.mrb[0].mxu0
  %v784 = vpop.f32.mrb[0].mxu0
  %785 = vdwg.mxu0
  %786 = vmatprep.subr.bf16.mxu0 %v454
  %787 = vmatpush1.bf16.msra.mxu0 %v453
  %788 = vmatprep.subr.bf16.mxu0 %v458
  %789 = vmatpush1.bf16.msra.mxu0 %v457
  %790 = vmatprep.subr.bf16.mxu0 %v462
  %791 = vmatpush1.bf16.msra.mxu0 %v461
  %792 = vmatprep.subr.bf16.mxu0 %v466
  %793 = vmatpush1.bf16.msra.mxu0 %v465
  %794 = vmatprep.subr.bf16.mxu0 %v470
  %795 = vmatpush1.bf16.msra.mxu0 %v469
  %796 = vmatprep.subr.bf16.mxu0 %v474
  %797 = vmatpush1.bf16.msra.mxu0 %v473
  %798 = vmatprep.subr.bf16.mxu0 %v478
  %799 = vmatpush1.bf16.msra.mxu0 %v477
  %800 = vmatprep.subr.bf16.mxu0 %v482
  %801 = vmatpush1.bf16.msra.mxu0 %v481
  %802 = vmatprep.subr.bf16.mxu0 0
  %803 = vmatpush1.bf16.msra.mxu0 0
  %804 = vmatprep.subr.bf16.mxu0 0
  %805 = vmatpush1.bf16.msra.mxu0 0
  %806 = vmatprep.subr.bf16.mxu0 0
  %807 = vmatpush1.bf16.msra.mxu0 0
  %808 = vmatprep.subr.bf16.mxu0 0
  %809 = vmatpush1.bf16.msra.mxu0 0
  %810 = vmatprep.subr.bf16.mxu0 0
  %811 = vmatpush1.bf16.msra.mxu0 0
  %812 = vmatprep.subr.bf16.mxu0 0
  %813 = vmatpush1.bf16.msra.mxu0 0
  %814 = vmatprep.subr.bf16.mxu0 0
  %815 = vmatpush1.bf16.msra.mxu0 0
  %816 = vmatprep.subr.bf16.mxu0 0
  %817 = vmatpush1.bf16.msra.mxu0 0
  %818 = vmatprep.mubr.bf16.mxu0 0
  %819 = vmatmul.mubr.bf16.gmra.mrb[0].mxu0 %v744
  %v820 = vpop.f32.mrb[0].mxu0
  %v821 = vadd.f32 0.0, %v820
  %v822 = vpop.f32.mrb[0].mxu0
  %v823 = vadd.f32 0.0, %v822
  %v824 = vpop.f32.mrb[0].mxu0
  %v825 = vpop.f32.mrb[0].mxu0
  %826 = vdwg.mxu0
  %v827 = vadd.f32 %v740, %v780
  %v828 = vadd.f32 %v741, %v782
  %v829 = vadd.f32 %v742, %v821
  %v830 = vadd.f32 %v743, %v823
  %v831 = vxor.u32 %v827, 2147483648
  %v832 = vmul.f32 %v831, 1.442695
  %v833 = vpow.pop %v832
  %v834 = vadd.f32 %v833, 1.0
  %v835 = vrcp.pop %v834
  %v836 = vmul.f32 1.0, %v835
  %v837 = vxor.u32 %v828, 2147483648
  %v838 = vmul.f32 %v837, 1.442695
  %v839 = vpow.pop %v838
  %v840 = vadd.f32 %v839, 1.0
  %v841 = vrcp.pop %v840
  %v842 = vmul.f32 1.0, %v841
  %v843 = vtanh.pop %v829
  %v844 = vxor.u32 %v830, 2147483648
  %v845 = vmul.f32 %v844, 1.442695
  %v846 = vpow.pop %v845
  %v847 = vadd.f32 %v846, 1.0
  %v848 = vrcp.pop %v847
  %v849 = vmul.f32 1.0, %v848
  %v850 = vmul.f32 %v842, %v737
  %v851 = vmul.f32 %v836, %v843
  %v852 = vadd.f32 %v850, %v851
  %v853 = vtanh.pop %v852
  %v854 = vmul.f32 %v849, %v853
  %v855 = vld [vmem:[%s294] sm:$0xff]
  %v856 = vld [vmem:[%s294 + $0x8] sm:$0xff]
  %v857 = vld [vmem:[%s294 + $0x10] sm:$0xff]
  %v858 = vld [vmem:[%s294 + $0x18] sm:$0xff]
  %v859 = vpack.c.bf16 %v854, %v854
  %860 = vmatprep.subr.bf16.mxu0 %v452
  %861 = vmatpush1.bf16.msra.mxu0 %v451
  %862 = vmatprep.subr.bf16.mxu0 %v456
  %863 = vmatpush1.bf16.msra.mxu0 %v455
  %864 = vmatprep.subr.bf16.mxu0 %v460
  %865 = vmatpush1.bf16.msra.mxu0 %v459
  %866 = vmatprep.subr.bf16.mxu0 %v464
  %867 = vmatpush1.bf16.msra.mxu0 %v463
  %868 = vmatprep.subr.bf16.mxu0 %v468
  %869 = vmatpush1.bf16.msra.mxu0 %v467
  %870 = vmatprep.subr.bf16.mxu0 %v472
  %871 = vmatpush1.bf16.msra.mxu0 %v471
  %872 = vmatprep.subr.bf16.mxu0 %v476
  %873 = vmatpush1.bf16.msra.mxu0 %v475
  %874 = vmatprep.subr.bf16.mxu0 %v480
  %875 = vmatpush1.bf16.msra.mxu0 %v479
  %876 = vmatprep.subr.bf16.mxu0 0
  %877 = vmatpush1.bf16.msra.mxu0 0
  %878 = vmatprep.subr.bf16.mxu0 0
  %879 = vmatpush1.bf16.msra.mxu0 0
  %880 = vmatprep.subr.bf16.mxu0 0
  %881 = vmatpush1.bf16.msra.mxu0 0
  %882 = vmatprep.subr.bf16.mxu0 0
  %883 = vmatpush1.bf16.msra.mxu0 0
  %884 = vmatprep.subr.bf16.mxu0 0
  %885 = vmatpush1.bf16.msra.mxu0 0
  %886 = vmatprep.subr.bf16.mxu0 0
  %887 = vmatpush1.bf16.msra.mxu0 0
  %888 = vmatprep.subr.bf16.mxu0 0
  %889 = vmatpush1.bf16.msra.mxu0 0
  %890 = vmatprep.subr.bf16.mxu0 0
  %891 = vmatpush1.bf16.msra.mxu0 0
  %892 = vmatprep.mubr.bf16.mxu0 0
  %893 = vmatmul.mubr.bf16.gmra.mrb[0].mxu0 %v859
  %v894 = vpop.f32.mrb[0].mxu0
  %v895 = vadd.f32 0.0, %v894
  %v896 = vpop.f32.mrb[0].mxu0
  %v897 = vadd.f32 0.0, %v896
  %v898 = vpop.f32.mrb[0].mxu0
  %v899 = vpop.f32.mrb[0].mxu0
  %900 = vdwg.mxu0
  %901 = vmatprep.subr.bf16.mxu0 %v454
  %902 = vmatpush1.bf16.msra.mxu0 %v453
  %903 = vmatprep.subr.bf16.mxu0 %v458
  %904 = vmatpush1.bf16.msra.mxu0 %v457
  %905 = vmatprep.subr.bf16.mxu0 %v462
  %906 = vmatpush1.bf16.msra.mxu0 %v461
  %907 = vmatprep.subr.bf16.mxu0 %v466
  %908 = vmatpush1.bf16.msra.mxu0 %v465
  %909 = vmatprep.subr.bf16.mxu0 %v470
  %910 = vmatpush1.bf16.msra.mxu0 %v469
  %911 = vmatprep.subr.bf16.mxu0 %v474
  %912 = vmatpush1.bf16.msra.mxu0 %v473
  %913 = vmatprep.subr.bf16.mxu0 %v478
  %914 = vmatpush1.bf16.msra.mxu0 %v477
  %915 = vmatprep.subr.bf16.mxu0 %v482
  %916 = vmatpush1.bf16.msra.mxu0 %v481
  %917 = vmatprep.subr.bf16.mxu0 0
  %918 = vmatpush1.bf16.msra.mxu0 0
  %919 = vmatprep.subr.bf16.mxu0 0
  %920 = vmatpush1.bf16.msra.mxu0 0
  %921 = vmatprep.subr.bf16.mxu0 0
  %922 = vmatpush1.bf16.msra.mxu0 0
  %923 = vmatprep.subr.bf16.mxu0 0
  %924 = vmatpush1.bf16.msra.mxu0 0
  %925 = vmatprep.subr.bf16.mxu0 0
  %926 = vmatpush1.bf16.msra.mxu0 0
  %927 = vmatprep.subr.bf16.mxu0 0
  %928 = vmatpush1.bf16.msra.mxu0 0
  %929 = vmatprep.subr.bf16.mxu0 0
  %930 = vmatpush1.bf16.msra.mxu0 0
  %931 = vmatprep.subr.bf16.mxu0 0
  %932 = vmatpush1.bf16.msra.mxu0 0
  %933 = vmatprep.mubr.bf16.mxu0 0
  %934 = vmatmul.mubr.bf16.gmra.mrb[0].mxu0 %v859
  %v935 = vpop.f32.mrb[0].mxu0
  %v936 = vadd.f32 0.0, %v935
  %v937 = vpop.f32.mrb[0].mxu0
  %v938 = vadd.f32 0.0, %v937
  %v939 = vpop.f32.mrb[0].mxu0
  %v940 = vpop.f32.mrb[0].mxu0
  %941 = vdwg.mxu0
  %v942 = vadd.f32 %v855, %v895
  %v943 = vadd.f32 %v856, %v897
  %v944 = vadd.f32 %v857, %v936
  %v945 = vadd.f32 %v858, %v938
  %v946 = vxor.u32 %v942, 2147483648
  %v947 = vmul.f32 %v946, 1.442695
  %v948 = vpow.pop %v947
  %v949 = vadd.f32 %v948, 1.0
  %v950 = vrcp.pop %v949
  %v951 = vmul.f32 1.0, %v950
  %v952 = vxor.u32 %v943, 2147483648
  %v953 = vmul.f32 %v952, 1.442695
  %v954 = vpow.pop %v953
  %v955 = vadd.f32 %v954, 1.0
  %v956 = vrcp.pop %v955
  %v957 = vmul.f32 1.0, %v956
  %v958 = vtanh.pop %v944
  %v959 = vxor.u32 %v945, 2147483648
  %v960 = vmul.f32 %v959, 1.442695
  %v961 = vpow.pop %v960
  %v962 = vadd.f32 %v961, 1.0
  %v963 = vrcp.pop %v962
  %v964 = vmul.f32 1.0, %v963
  %v965 = vmul.f32 %v957, %v852
  %v966 = vmul.f32 %v951, %v958
  %v967 = vadd.f32 %v965, %v966
  %v968 = vtanh.pop %v967
  %v969 = vmul.f32 %v964, %v968
  %v970 = vld [vmem:[%s299] sm:$0xff]
  %v971 = vld [vmem:[%s299 + $0x8] sm:$0xff]
  %v972 = vld [vmem:[%s299 + $0x10] sm:$0xff]
  %v973 = vld [vmem:[%s299 + $0x18] sm:$0xff]
  %v974 = vpack.c.bf16 %v969, %v969
  %975 = vmatprep.subr.bf16.mxu0 %v452
  %976 = vmatpush1.bf16.msra.mxu0 %v451
  %977 = vmatprep.subr.bf16.mxu0 %v456
  %978 = vmatpush1.bf16.msra.mxu0 %v455
  %979 = vmatprep.subr.bf16.mxu0 %v460
  %980 = vmatpush1.bf16.msra.mxu0 %v459
  %981 = vmatprep.subr.bf16.mxu0 %v464
  %982 = vmatpush1.bf16.msra.mxu0 %v463
  %983 = vmatprep.subr.bf16.mxu0 %v468
  %984 = vmatpush1.bf16.msra.mxu0 %v467
  %985 = vmatprep.subr.bf16.mxu0 %v472
  %986 = vmatpush1.bf16.msra.mxu0 %v471
  %987 = vmatprep.subr.bf16.mxu0 %v476
  %988 = vmatpush1.bf16.msra.mxu0 %v475
  %989 = vmatprep.subr.bf16.mxu0 %v480
  %990 = vmatpush1.bf16.msra.mxu0 %v479
  %991 = vmatprep.subr.bf16.mxu0 0
  %992 = vmatpush1.bf16.msra.mxu0 0
  %993 = vmatprep.subr.bf16.mxu0 0
  %994 = vmatpush1.bf16.msra.mxu0 0
  %995 = vmatprep.subr.bf16.mxu0 0
  %996 = vmatpush1.bf16.msra.mxu0 0
  %997 = vmatprep.subr.bf16.mxu0 0
  %998 = vmatpush1.bf16.msra.mxu0 0
  %999 = vmatprep.subr.bf16.mxu0 0
  %1000 = vmatpush1.bf16.msra.mxu0 0
  %1001 = vmatprep.subr.bf16.mxu0 0
  %1002 = vmatpush1.bf16.msra.mxu0 0
  %1003 = vmatprep.subr.bf16.mxu0 0
  %1004 = vmatpush1.bf16.msra.mxu0 0
  %1005 = vmatprep.subr.bf16.mxu0 0
  %1006 = vmatpush1.bf16.msra.mxu0 0
  %1007 = vmatprep.mubr.bf16.mxu0 0
  %1008 = vmatmul.mubr.bf16.gmra.mrb[0].mxu0 %v974
  %v1009 = vpop.f32.mrb[0].mxu0
  %v1010 = vadd.f32 0.0, %v1009
  %v1011 = vpop.f32.mrb[0].mxu0
  %v1012 = vadd.f32 0.0, %v1011
  %v1013 = vpop.f32.mrb[0].mxu0
  %v1014 = vpop.f32.mrb[0].mxu0
  %1015 = vdwg.mxu0
  %1016 = vmatprep.subr.bf16.mxu0 %v454
  %1017 = vmatpush1.bf16.msra.mxu0 %v453
  %1018 = vmatprep.subr.bf16.mxu0 %v458
  %1019 = vmatpush1.bf16.msra.mxu0 %v457
  %1020 = vmatprep.subr.bf16.mxu0 %v462
  %1021 = vmatpush1.bf16.msra.mxu0 %v461
  %1022 = vmatprep.subr.bf16.mxu0 %v466
  %1023 = vmatpush1.bf16.msra.mxu0 %v465
  %1024 = vmatprep.subr.bf16.mxu0 %v470
  %1025 = vmatpush1.bf16.msra.mxu0 %v469
  %1026 = vmatprep.subr.bf16.mxu0 %v474
  %1027 = vmatpush1.bf16.msra.mxu0 %v473
  %1028 = vmatprep.subr.bf16.mxu0 %v478
  %1029 = vmatpush1.bf16.msra.mxu0 %v477
  %1030 = vmatprep.subr.bf16.mxu0 %v482
  %1031 = vmatpush1.bf16.msra.mxu0 %v481
  %1032 = vmatprep.subr.bf16.mxu0 0
  %1033 = vmatpush1.bf16.msra.mxu0 0
  %1034 = vmatprep.subr.bf16.mxu0 0
  %1035 = vmatpush1.bf16.msra.mxu0 0
  %1036 = vmatprep.subr.bf16.mxu0 0
  %1037 = vmatpush1.bf16.msra.mxu0 0
  %1038 = vmatprep.subr.bf16.mxu0 0
  %1039 = vmatpush1.bf16.msra.mxu0 0
  %1040 = vmatprep.subr.bf16.mxu0 0
  %1041 = vmatpush1.bf16.msra.mxu0 0
  %1042 = vmatprep.subr.bf16.mxu0 0
  %1043 = vmatpush1.bf16.msra.mxu0 0
  %1044 = vmatprep.subr.bf16.mxu0 0
  %1045 = vmatpush1.bf16.msra.mxu0 0
  %1046 = vmatprep.subr.bf16.mxu0 0
  %1047 = vmatpush1.bf16.msra.mxu0 0
  %1048 = vmatprep.mubr.bf16.mxu0 0
  %1049 = vmatmul.mubr.bf16.gmra.mrb[0].mxu0 %v974
  %v1050 = vpop.f32.mrb[0].mxu0
  %v1051 = vadd.f32 0.0, %v1050
  %v1052 = vpop.f32.mrb[0].mxu0
  %v1053 = vadd.f32 0.0, %v1052
  %v1054 = vpop.f32.mrb[0].mxu0
  %v1055 = vpop.f32.mrb[0].mxu0
  %1056 = vdwg.mxu0
  %v1057 = vadd.f32 %v970, %v1010
  %v1058 = vadd.f32 %v971, %v1012
  %v1059 = vadd.f32 %v972, %v1051
  %v1060 = vadd.f32 %v973, %v1053
  %v1061 = vxor.u32 %v1057, 2147483648
  %v1062 = vmul.f32 %v1061, 1.442695
  %v1063 = vpow.pop %v1062
  %v1064 = vadd.f32 %v1063, 1.0
  %v1065 = vrcp.pop %v1064
  %v1066 = vmul.f32 1.0, %v1065
  %v1067 = vxor.u32 %v1058, 2147483648
  %v1068 = vmul.f32 %v1067, 1.442695
  %v1069 = vpow.pop %v1068
  %v1070 = vadd.f32 %v1069, 1.0
  %v1071 = vrcp.pop %v1070
  %v1072 = vmul.f32 1.0, %v1071
  %v1073 = vtanh.pop %v1059
  %v1074 = vxor.u32 %v1060, 2147483648
  %v1075 = vmul.f32 %v1074, 1.442695
  %v1076 = vpow.pop %v1075
  %v1077 = vadd.f32 %v1076, 1.0
  %v1078 = vrcp.pop %v1077
  %v1079 = vmul.f32 1.0, %v1078
  %v1080 = vmul.f32 %v1072, %v967
  %v1081 = vmul.f32 %v1066, %v1073
  %v1082 = vadd.f32 %v1080, %v1081
  %v1083 = vtanh.pop %v1082
  %v1084 = vmul.f32 %v1079, %v1083
  %v1085 = vld [vmem:[%s304] sm:$0xff]
  %v1086 = vld [vmem:[%s304 + $0x8] sm:$0xff]
  %v1087 = vld [vmem:[%s304 + $0x10] sm:$0xff]
  %v1088 = vld [vmem:[%s304 + $0x18] sm:$0xff]
  %v1089 = vpack.c.bf16 %v1084, %v1084
  %1090 = vmatprep.subr.bf16.mxu0 %v452
  %1091 = vmatpush1.bf16.msra.mxu0 %v451
  %1092 = vmatprep.subr.bf16.mxu0 %v456
  %1093 = vmatpush1.bf16.msra.mxu0 %v455
  %1094 = vmatprep.subr.bf16.mxu0 %v460
  %1095 = vmatpush1.bf16.msra.mxu0 %v459
  %1096 = vmatprep.subr.bf16.mxu0 %v464
  %1097 = vmatpush1.bf16.msra.mxu0 %v463
  %1098 = vmatprep.subr.bf16.mxu0 %v468
  %1099 = vmatpush1.bf16.msra.mxu0 %v467
  %1100 = vmatprep.subr.bf16.mxu0 %v472
  %1101 = vmatpush1.bf16.msra.mxu0 %v471
  %1102 = vmatprep.subr.bf16.mxu0 %v476
  %1103 = vmatpush1.bf16.msra.mxu0 %v475
  %1104 = vmatprep.subr.bf16.mxu0 %v480
  %1105 = vmatpush1.bf16.msra.mxu0 %v479
  %1106 = vmatprep.subr.bf16.mxu0 0
  %1107 = vmatpush1.bf16.msra.mxu0 0
  %1108 = vmatprep.subr.bf16.mxu0 0
  %1109 = vmatpush1.bf16.msra.mxu0 0
  %1110 = vmatprep.subr.bf16.mxu0 0
  %1111 = vmatpush1.bf16.msra.mxu0 0
  %1112 = vmatprep.subr.bf16.mxu0 0
  %1113 = vmatpush1.bf16.msra.mxu0 0
  %1114 = vmatprep.subr.bf16.mxu0 0
  %1115 = vmatpush1.bf16.msra.mxu0 0
  %1116 = vmatprep.subr.bf16.mxu0 0
  %1117 = vmatpush1.bf16.msra.mxu0 0
  %1118 = vmatprep.subr.bf16.mxu0 0
  %1119 = vmatpush1.bf16.msra.mxu0 0
  %1120 = vmatprep.subr.bf16.mxu0 0
  %1121 = vmatpush1.bf16.msra.mxu0 0
  %1122 = vmatprep.mubr.bf16.mxu0 0
  %1123 = vmatmul.mubr.bf16.gmra.mrb[0].mxu0 %v1089
  %v1124 = vpop.f32.mrb[0].mxu0
  %v1125 = vadd.f32 0.0, %v1124
  %v1126 = vpop.f32.mrb[0].mxu0
  %v1127 = vadd.f32 0.0, %v1126
  %v1128 = vpop.f32.mrb[0].mxu0
  %v1129 = vpop.f32.mrb[0].mxu0
  %1130 = vdwg.mxu0
  %1131 = vmatprep.subr.bf16.mxu0 %v454
  %1132 = vmatpush1.bf16.msra.mxu0 %v453
  %1133 = vmatprep.subr.bf16.mxu0 %v458
  %1134 = vmatpush1.bf16.msra.mxu0 %v457
  %1135 = vmatprep.subr.bf16.mxu0 %v462
  %1136 = vmatpush1.bf16.msra.mxu0 %v461
  %1137 = vmatprep.subr.bf16.mxu0 %v466
  %1138 = vmatpush1.bf16.msra.mxu0 %v465
  %1139 = vmatprep.subr.bf16.mxu0 %v470
  %1140 = vmatpush1.bf16.msra.mxu0 %v469
  %1141 = vmatprep.subr.bf16.mxu0 %v474
  %1142 = vmatpush1.bf16.msra.mxu0 %v473
  %1143 = vmatprep.subr.bf16.mxu0 %v478
  %1144 = vmatpush1.bf16.msra.mxu0 %v477
  %1145 = vmatprep.subr.bf16.mxu0 %v482
  %1146 = vmatpush1.bf16.msra.mxu0 %v481
  %1147 = vmatprep.subr.bf16.mxu0 0
  %1148 = vmatpush1.bf16.msra.mxu0 0
  %1149 = vmatprep.subr.bf16.mxu0 0
  %1150 = vmatpush1.bf16.msra.mxu0 0
  %1151 = vmatprep.subr.bf16.mxu0 0
  %1152 = vmatpush1.bf16.msra.mxu0 0
  %1153 = vmatprep.subr.bf16.mxu0 0
  %1154 = vmatpush1.bf16.msra.mxu0 0
  %1155 = vmatprep.subr.bf16.mxu0 0
  %1156 = vmatpush1.bf16.msra.mxu0 0
  %1157 = vmatprep.subr.bf16.mxu0 0
  %1158 = vmatpush1.bf16.msra.mxu0 0
  %1159 = vmatprep.subr.bf16.mxu0 0
  %1160 = vmatpush1.bf16.msra.mxu0 0
  %1161 = vmatprep.subr.bf16.mxu0 0
  %1162 = vmatpush1.bf16.msra.mxu0 0
  %1163 = vmatprep.mubr.bf16.mxu0 0
  %1164 = vmatmul.mubr.bf16.gmra.mrb[0].mxu0 %v1089
  %v1165 = vpop.f32.mrb[0].mxu0
  %v1166 = vadd.f32 0.0, %v1165
  %v1167 = vpop.f32.mrb[0].mxu0
  %v1168 = vadd.f32 0.0, %v1167
  %v1169 = vpop.f32.mrb[0].mxu0
  %v1170 = vpop.f32.mrb[0].mxu0
  %1171 = vdwg.mxu0
  %v1172 = vadd.f32 %v1085, %v1125
  %v1173 = vadd.f32 %v1086, %v1127
  %v1174 = vadd.f32 %v1087, %v1166
  %v1175 = vadd.f32 %v1088, %v1168
  %v1176 = vxor.u32 %v1172, 2147483648
  %v1177 = vmul.f32 %v1176, 1.442695
  %v1178 = vpow.pop %v1177
  %v1179 = vadd.f32 %v1178, 1.0
  %v1180 = vrcp.pop %v1179
  %v1181 = vmul.f32 1.0, %v1180
  %v1182 = vxor.u32 %v1173, 2147483648
  %v1183 = vmul.f32 %v1182, 1.442695
  %v1184 = vpow.pop %v1183
  %v1185 = vadd.f32 %v1184, 1.0
  %v1186 = vrcp.pop %v1185
  %v1187 = vmul.f32 1.0, %v1186
  %v1188 = vtanh.pop %v1174
  %v1189 = vxor.u32 %v1175, 2147483648
  %v1190 = vmul.f32 %v1189, 1.442695
  %v1191 = vpow.pop %v1190
  %v1192 = vadd.f32 %v1191, 1.0
  %v1193 = vrcp.pop %v1192
  %v1194 = vmul.f32 1.0, %v1193
  %v1195 = vmul.f32 %v1187, %v1082
  %v1196 = vmul.f32 %v1181, %v1188
  %v1197 = vadd.f32 %v1195, %v1196
  %v1198 = vtanh.pop %v1197
  %v1199 = vmul.f32 %v1194, %v1198
  %v1200 = vld [vmem:[%s309] sm:$0xff]
  %v1201 = vld [vmem:[%s309 + $0x8] sm:$0xff]
  %v1202 = vld [vmem:[%s309 + $0x10] sm:$0xff]
  %v1203 = vld [vmem:[%s309 + $0x18] sm:$0xff]
  %v1204 = vpack.c.bf16 %v1199, %v1199
  %1205 = vmatprep.subr.bf16.mxu0 %v452
  %1206 = vmatpush1.bf16.msra.mxu0 %v451
  %1207 = vmatprep.subr.bf16.mxu0 %v456
  %1208 = vmatpush1.bf16.msra.mxu0 %v455
  %1209 = vmatprep.subr.bf16.mxu0 %v460
  %1210 = vmatpush1.bf16.msra.mxu0 %v459
  %1211 = vmatprep.subr.bf16.mxu0 %v464
  %1212 = vmatpush1.bf16.msra.mxu0 %v463
  %1213 = vmatprep.subr.bf16.mxu0 %v468
  %1214 = vmatpush1.bf16.msra.mxu0 %v467
  %1215 = vmatprep.subr.bf16.mxu0 %v472
  %1216 = vmatpush1.bf16.msra.mxu0 %v471
  %1217 = vmatprep.subr.bf16.mxu0 %v476
  %1218 = vmatpush1.bf16.msra.mxu0 %v475
  %1219 = vmatprep.subr.bf16.mxu0 %v480
  %1220 = vmatpush1.bf16.msra.mxu0 %v479
  %1221 = vmatprep.subr.bf16.mxu0 0
  %1222 = vmatpush1.bf16.msra.mxu0 0
  %1223 = vmatprep.subr.bf16.mxu0 0
  %1224 = vmatpush1.bf16.msra.mxu0 0
  %1225 = vmatprep.subr.bf16.mxu0 0
  %1226 = vmatpush1.bf16.msra.mxu0 0
  %1227 = vmatprep.subr.bf16.mxu0 0
  %1228 = vmatpush1.bf16.msra.mxu0 0
  %1229 = vmatprep.subr.bf16.mxu0 0
  %1230 = vmatpush1.bf16.msra.mxu0 0
  %1231 = vmatprep.subr.bf16.mxu0 0
  %1232 = vmatpush1.bf16.msra.mxu0 0
  %1233 = vmatprep.subr.bf16.mxu0 0
  %1234 = vmatpush1.bf16.msra.mxu0 0
  %1235 = vmatprep.subr.bf16.mxu0 0
  %1236 = vmatpush1.bf16.msra.mxu0 0
  %1237 = vmatprep.mubr.bf16.mxu0 0
  %1238 = vmatmul.mubr.bf16.gmra.mrb[0].mxu0 %v1204
  %v1239 = vpop.f32.mrb[0].mxu0
  %v1240 = vadd.f32 0.0, %v1239
  %v1241 = vpop.f32.mrb[0].mxu0
  %v1242 = vadd.f32 0.0, %v1241
  %v1243 = vpop.f32.mrb[0].mxu0
  %v1244 = vpop.f32.mrb[0].mxu0
  %1245 = vdwg.mxu0
  %1246 = vmatprep.subr.bf16.mxu0 %v454
  %1247 = vmatpush1.bf16.msra.mxu0 %v453
  %1248 = vmatprep.subr.bf16.mxu0 %v458
  %1249 = vmatpush1.bf16.msra.mxu0 %v457
  %1250 = vmatprep.subr.bf16.mxu0 %v462
  %1251 = vmatpush1.bf16.msra.mxu0 %v461
  %1252 = vmatprep.subr.bf16.mxu0 %v466
  %1253 = vmatpush1.bf16.msra.mxu0 %v465
  %1254 = vmatprep.subr.bf16.mxu0 %v470
  %1255 = vmatpush1.bf16.msra.mxu0 %v469
  %1256 = vmatprep.subr.bf16.mxu0 %v474
  %1257 = vmatpush1.bf16.msra.mxu0 %v473
  %1258 = vmatprep.subr.bf16.mxu0 %v478
  %1259 = vmatpush1.bf16.msra.mxu0 %v477
  %1260 = vmatprep.subr.bf16.mxu0 %v482
  %1261 = vmatpush1.bf16.msra.mxu0 %v481
  %1262 = vmatprep.subr.bf16.mxu0 0
  %1263 = vmatpush1.bf16.msra.mxu0 0
  %1264 = vmatprep.subr.bf16.mxu0 0
  %1265 = vmatpush1.bf16.msra.mxu0 0
  %1266 = vmatprep.subr.bf16.mxu0 0
  %1267 = vmatpush1.bf16.msra.mxu0 0
  %1268 = vmatprep.subr.bf16.mxu0 0
  %1269 = vmatpush1.bf16.msra.mxu0 0
  %1270 = vmatprep.subr.bf16.mxu0 0
  %1271 = vmatpush1.bf16.msra.mxu0 0
  %1272 = vmatprep.subr.bf16.mxu0 0
  %1273 = vmatpush1.bf16.msra.mxu0 0
  %1274 = vmatprep.subr.bf16.mxu0 0
  %1275 = vmatpush1.bf16.msra.mxu0 0
  %1276 = vmatprep.subr.bf16.mxu0 0
  %1277 = vmatpush1.bf16.msra.mxu0 0
  %1278 = vmatprep.mubr.bf16.mxu0 0
  %1279 = vmatmul.mubr.bf16.gmra.mrb[0].mxu0 %v1204
  %v1280 = vpop.f32.mrb[0].mxu0
  %v1281 = vadd.f32 0.0, %v1280
  %v1282 = vpop.f32.mrb[0].mxu0
  %v1283 = vadd.f32 0.0, %v1282
  %v1284 = vpop.f32.mrb[0].mxu0
  %v1285 = vpop.f32.mrb[0].mxu0
  %1286 = vdwg.mxu0
  %v1287 = vadd.f32 %v1200, %v1240
  %v1288 = vadd.f32 %v1201, %v1242
  %v1289 = vadd.f32 %v1202, %v1281
  %v1290 = vadd.f32 %v1203, %v1283
  %v1291 = vxor.u32 %v1287, 2147483648
  %v1292 = vmul.f32 %v1291, 1.442695
  %v1293 = vpow.pop %v1292
  %v1294 = vadd.f32 %v1293, 1.0
  %v1295 = vrcp.pop %v1294
  %v1296 = vmul.f32 1.0, %v1295
  %v1297 = vxor.u32 %v1288, 2147483648
  %v1298 = vmul.f32 %v1297, 1.442695
  %v1299 = vpow.pop %v1298
  %v1300 = vadd.f32 %v1299, 1.0
  %v1301 = vrcp.pop %v1300
  %v1302 = vmul.f32 1.0, %v1301
  %v1303 = vtanh.pop %v1289
  %v1304 = vxor.u32 %v1290, 2147483648
  %v1305 = vmul.f32 %v1304, 1.442695
  %v1306 = vpow.pop %v1305
  %v1307 = vadd.f32 %v1306, 1.0
  %v1308 = vrcp.pop %v1307
  %v1309 = vmul.f32 1.0, %v1308
  %v1310 = vmul.f32 %v1302, %v1197
  %v1311 = vmul.f32 %v1296, %v1303
  %v1312 = vadd.f32 %v1310, %v1311
  %v1313 = vtanh.pop %v1312
  %v1314 = vmul.f32 %v1309, %v1313
  %v1315 = vld [vmem:[%s314] sm:$0xff]
  %v1316 = vld [vmem:[%s314 + $0x8] sm:$0xff]
  %v1317 = vld [vmem:[%s314 + $0x10] sm:$0xff]
  %v1318 = vld [vmem:[%s314 + $0x18] sm:$0xff]
  %v1319 = vpack.c.bf16 %v1314, %v1314
  %1320 = vmatprep.subr.bf16.mxu0 %v452
  %1321 = vmatpush1.bf16.msra.mxu0 %v451
  %1322 = vmatprep.subr.bf16.mxu0 %v456
  %1323 = vmatpush1.bf16.msra.mxu0 %v455
  %1324 = vmatprep.subr.bf16.mxu0 %v460
  %1325 = vmatpush1.bf16.msra.mxu0 %v459
  %1326 = vmatprep.subr.bf16.mxu0 %v464
  %1327 = vmatpush1.bf16.msra.mxu0 %v463
  %1328 = vmatprep.subr.bf16.mxu0 %v468
  %1329 = vmatpush1.bf16.msra.mxu0 %v467
  %1330 = vmatprep.subr.bf16.mxu0 %v472
  %1331 = vmatpush1.bf16.msra.mxu0 %v471
  %1332 = vmatprep.subr.bf16.mxu0 %v476
  %1333 = vmatpush1.bf16.msra.mxu0 %v475
  %1334 = vmatprep.subr.bf16.mxu0 %v480
  %1335 = vmatpush1.bf16.msra.mxu0 %v479
  %1336 = vmatprep.subr.bf16.mxu0 0
  %1337 = vmatpush1.bf16.msra.mxu0 0
  %1338 = vmatprep.subr.bf16.mxu0 0
  %1339 = vmatpush1.bf16.msra.mxu0 0
  %1340 = vmatprep.subr.bf16.mxu0 0
  %1341 = vmatpush1.bf16.msra.mxu0 0
  %1342 = vmatprep.subr.bf16.mxu0 0
  %1343 = vmatpush1.bf16.msra.mxu0 0
  %1344 = vmatprep.subr.bf16.mxu0 0
  %1345 = vmatpush1.bf16.msra.mxu0 0
  %1346 = vmatprep.subr.bf16.mxu0 0
  %1347 = vmatpush1.bf16.msra.mxu0 0
  %1348 = vmatprep.subr.bf16.mxu0 0
  %1349 = vmatpush1.bf16.msra.mxu0 0
  %1350 = vmatprep.subr.bf16.mxu0 0
  %1351 = vmatpush1.bf16.msra.mxu0 0
  %1352 = vmatprep.mubr.bf16.mxu0 0
  %1353 = vmatmul.mubr.bf16.gmra.mrb[0].mxu0 %v1319
  %v1354 = vpop.f32.mrb[0].mxu0
  %v1355 = vadd.f32 0.0, %v1354
  %v1356 = vpop.f32.mrb[0].mxu0
  %v1357 = vadd.f32 0.0, %v1356
  %v1358 = vpop.f32.mrb[0].mxu0
  %v1359 = vpop.f32.mrb[0].mxu0
  %1360 = vdwg.mxu0
  %1361 = vmatprep.subr.bf16.mxu0 %v454
  %1362 = vmatpush1.bf16.msra.mxu0 %v453
  %1363 = vmatprep.subr.bf16.mxu0 %v458
  %1364 = vmatpush1.bf16.msra.mxu0 %v457
  %1365 = vmatprep.subr.bf16.mxu0 %v462
  %1366 = vmatpush1.bf16.msra.mxu0 %v461
  %1367 = vmatprep.subr.bf16.mxu0 %v466
  %1368 = vmatpush1.bf16.msra.mxu0 %v465
  %1369 = vmatprep.subr.bf16.mxu0 %v470
  %1370 = vmatpush1.bf16.msra.mxu0 %v469
  %1371 = vmatprep.subr.bf16.mxu0 %v474
  %1372 = vmatpush1.bf16.msra.mxu0 %v473
  %1373 = vmatprep.subr.bf16.mxu0 %v478
  %1374 = vmatpush1.bf16.msra.mxu0 %v477
  %1375 = vmatprep.subr.bf16.mxu0 %v482
  %1376 = vmatpush1.bf16.msra.mxu0 %v481
  %1377 = vmatprep.subr.bf16.mxu0 0
  %1378 = vmatpush1.bf16.msra.mxu0 0
  %1379 = vmatprep.subr.bf16.mxu0 0
  %1380 = vmatpush1.bf16.msra.mxu0 0
  %1381 = vmatprep.subr.bf16.mxu0 0
  %1382 = vmatpush1.bf16.msra.mxu0 0
  %1383 = vmatprep.subr.bf16.mxu0 0
  %1384 = vmatpush1.bf16.msra.mxu0 0
  %1385 = vmatprep.subr.bf16.mxu0 0
  %1386 = vmatpush1.bf16.msra.mxu0 0
  %1387 = vmatprep.subr.bf16.mxu0 0
  %1388 = vmatpush1.bf16.msra.mxu0 0
  %1389 = vmatprep.subr.bf16.mxu0 0
  %1390 = vmatpush1.bf16.msra.mxu0 0
  %1391 = vmatprep.subr.bf16.mxu0 0
  %1392 = vmatpush1.bf16.msra.mxu0 0
  %1393 = vmatprep.mubr.bf16.mxu0 0
  %1394 = vmatmul.mubr.bf16.gmra.mrb[0].mxu0 %v1319
  %v1395 = vpop.f32.mrb[0].mxu0
  %v1396 = vadd.f32 0.0, %v1395
  %v1397 = vpop.f32.mrb[0].mxu0
  %v1398 = vadd.f32 0.0, %v1397
  %v1399 = vpop.f32.mrb[0].mxu0
  %v1400 = vpop.f32.mrb[0].mxu0
  %1401 = vdwg.mxu0
  %v1402 = vadd.f32 %v1315, %v1355
  %v1403 = vadd.f32 %v1316, %v1357
  %v1404 = vadd.f32 %v1317, %v1396
  %v1405 = vadd.f32 %v1318, %v1398
  %v1406 = vxor.u32 %v1402, 2147483648
  %v1407 = vmul.f32 %v1406, 1.442695
  %v1408 = vpow.pop %v1407
  %v1409 = vadd.f32 %v1408, 1.0
  %v1410 = vrcp.pop %v1409
  %v1411 = vmul.f32 1.0, %v1410
  %v1412 = vxor.u32 %v1403, 2147483648
  %v1413 = vmul.f32 %v1412, 1.442695
  %v1414 = vpow.pop %v1413
  %v1415 = vadd.f32 %v1414, 1.0
  %v1416 = vrcp.pop %v1415
  %v1417 = vmul.f32 1.0, %v1416
  %v1418 = vtanh.pop %v1404
  %v1419 = vxor.u32 %v1405, 2147483648
  %v1420 = vmul.f32 %v1419, 1.442695
  %v1421 = vpow.pop %v1420
  %v1422 = vadd.f32 %v1421, 1.0
  %v1423 = vrcp.pop %v1422
  %v1424 = vmul.f32 1.0, %v1423
  %v1425 = vmul.f32 %v1417, %v1312
  %v1426 = vmul.f32 %v1411, %v1418
  %v1427 = vadd.f32 %v1425, %v1426
  %v1428 = vtanh.pop %v1427
  %v1429 = vmul.f32 %v1424, %v1428
  %v1430 = vpack.c.bf16 %v1429, %v1429
  %v1431 = vld [vmem:[%s5] sm:$0xf]
  %v1432 = vld [vmem:[%s5 + $0x4] sm:$0xf]
  %v1433 = vld [vmem:[%s5 + $0x8] sm:$0xf]
  %v1434 = vld [vmem:[%s5 + $0xc] sm:$0xf]
  %v1435 = vld [vmem:[%s5 + $0x10] sm:$0xf]
  %v1436 = vld [vmem:[%s5 + $0x14] sm:$0xf]
  %v1437 = vld [vmem:[%s5 + $0x18] sm:$0xf]
  %v1438 = vld [vmem:[%s5 + $0x1c] sm:$0xf]
  %v1439 = vld [vmem:[%s5 + $0x20] sm:$0xf]
  %v1440 = vld [vmem:[%s5 + $0x24] sm:$0xf]
  %v1441 = vld [vmem:[%s5 + $0x28] sm:$0xf]
  %v1442 = vld [vmem:[%s5 + $0x2c] sm:$0xf]
  %v1443 = vld [vmem:[%s5 + $0x30] sm:$0xf]
  %v1444 = vld [vmem:[%s5 + $0x34] sm:$0xf]
  %v1445 = vld [vmem:[%s5 + $0x38] sm:$0xf]
  %v1446 = vld [vmem:[%s5 + $0x3c] sm:$0xf]
  %v1447 = vld [vmem:[%s6] sm:$0x1]
  %v1449 = vlaneseq
  %v1450 = vshrl.u32 %v1449, 7
  %v1451 = vsub.s32 0, %v1450
  %v1452 = vrot.slane %v1447, %v1451
  %v1470 = vunpack.c.l.b16 %v1431
  %v1471 = vunpack.c.l.b16 %v1432
  %v1472 = vunpack.c.l.b16 %v1433
  %v1473 = vunpack.c.l.b16 %v1434
  %v1474 = vunpack.c.l.b16 %v1435
  %v1475 = vunpack.c.l.b16 %v1436
  %v1476 = vunpack.c.l.b16 %v1437
  %v1477 = vunpack.c.l.b16 %v1438
  %v1478 = vunpack.c.l.b16 %v1439
  %v1479 = vunpack.c.l.b16 %v1440
  %v1480 = vunpack.c.l.b16 %v1441
  %v1481 = vunpack.c.l.b16 %v1442
  %v1482 = vunpack.c.l.b16 %v1443
  %v1483 = vunpack.c.l.b16 %v1444
  %v1484 = vunpack.c.l.b16 %v1445
  %v1485 = vunpack.c.l.b16 %v1446
  %v1486 = vpack.c.b16 %v1471, %v1470
  %v1487 = vpack.c.b16 %v1473, %v1472
  %v1488 = vpack.c.b16 %v1475, %v1474
  %v1489 = vpack.c.b16 %v1477, %v1476
  %v1490 = vpack.c.b16 %v1479, %v1478
  %v1491 = vpack.c.b16 %v1481, %v1480
  %v1492 = vpack.c.b16 %v1483, %v1482
  %v1493 = vpack.c.b16 %v1485, %v1484
  %1502 = vmatprep.subr.bf16.mxu0 0
  %1503 = vmatpush1.bf16.msra.mxu0 %v1486
  %1504 = vmatprep.subr.bf16.mxu0 0
  %1505 = vmatpush1.bf16.msra.mxu0 %v1487
  %1506 = vmatprep.subr.bf16.mxu0 0
  %1507 = vmatpush1.bf16.msra.mxu0 %v1488
  %1508 = vmatprep.subr.bf16.mxu0 0
  %1509 = vmatpush1.bf16.msra.mxu0 %v1489
  %1510 = vmatprep.subr.bf16.mxu0 0
  %1511 = vmatpush1.bf16.msra.mxu0 %v1490
  %1512 = vmatprep.subr.bf16.mxu0 0
  %1513 = vmatpush1.bf16.msra.mxu0 %v1491
  %1514 = vmatprep.subr.bf16.mxu0 0
  %1515 = vmatpush1.bf16.msra.mxu0 %v1492
  %1516 = vmatprep.subr.bf16.mxu0 0
  %1517 = vmatpush1.bf16.msra.mxu0 %v1493
  %1518 = vmatprep.subr.bf16.mxu0 0
  %1519 = vmatpush1.bf16.msra.mxu0 0
  %1520 = vmatprep.subr.bf16.mxu0 0
  %1521 = vmatpush1.bf16.msra.mxu0 0
  %1522 = vmatprep.subr.bf16.mxu0 0
  %1523 = vmatpush1.bf16.msra.mxu0 0
  %1524 = vmatprep.subr.bf16.mxu0 0
  %1525 = vmatpush1.bf16.msra.mxu0 0
  %1526 = vmatprep.subr.bf16.mxu0 0
  %1527 = vmatpush1.bf16.msra.mxu0 0
  %1528 = vmatprep.subr.bf16.mxu0 0
  %1529 = vmatpush1.bf16.msra.mxu0 0
  %1530 = vmatprep.subr.bf16.mxu0 0
  %1531 = vmatpush1.bf16.msra.mxu0 0
  %1532 = vmatprep.subr.bf16.mxu0 0
  %1533 = vmatpush1.bf16.msra.mxu0 0
  %1534 = vmatprep.mubr.bf16.mxu0 0
  %1535 = vmatmul.mubr.bf16.gmra.mrb[0].mxu0 %v1430
  %v1536 = vpop.f32.mrb[0].mxu0
  %v1537 = vadd.f32 %v1452, %v1536
  %v1538 = vpop.f32.mrb[0].mxu0
  %v1539 = vpop.f32.mrb[0].mxu0
  %v1540 = vpop.f32.mrb[0].mxu0
  %1541 = vdwg.mxu0
  %v1542 = vxor.u32 %v1537, 2147483648
  %v1543 = vmul.f32 %v1542, 1.442695
  %v1544 = vpow.pop %v1543
  %v1545 = vadd.f32 %v1544, 1.0
  %v1546 = vrcp.pop %v1545
  %v1547 = vmul.f32 1.0, %v1546
  %v1548 = vld [vmem:[%s1] sm:$0xff]
  %v1549 = vmul.f32 %v1548, %v1547
  %v1550 = vpack.c.bf16 %v1549, %v1549
  %v1551 = vld [vmem:[%s7] sm:$0xff]
  %v1552 = vld [vmem:[%s7 + $0x8] sm:$0xff]
  %v1553 = vld [vmem:[%s7 + $0x10] sm:$0xff]
  %v1554 = vld [vmem:[%s7 + $0x18] sm:$0xff]
  %v1555 = vld [vmem:[%s7 + $0x20] sm:$0xff]
  %v1556 = vld [vmem:[%s7 + $0x28] sm:$0xff]
  %v1557 = vld [vmem:[%s7 + $0x30] sm:$0xff]
  %v1558 = vld [vmem:[%s7 + $0x38] sm:$0xff]
  %v1559 = vld [vmem:[%s7 + $0x40] sm:$0xff]
  %v1560 = vld [vmem:[%s7 + $0x48] sm:$0xff]
  %v1561 = vld [vmem:[%s7 + $0x50] sm:$0xff]
  %v1562 = vld [vmem:[%s7 + $0x58] sm:$0xff]
  %v1563 = vld [vmem:[%s7 + $0x60] sm:$0xff]
  %v1564 = vld [vmem:[%s7 + $0x68] sm:$0xff]
  %v1565 = vld [vmem:[%s7 + $0x70] sm:$0xff]
  %v1566 = vld [vmem:[%s7 + $0x78] sm:$0xff]
  %v1567 = vld [vmem:[%s8] sm:$0x3]
  %v1569 = vlaneseq
  %v1570 = vshrl.u32 %v1569, 7
  %v1571 = vsub.s32 0, %v1570
  %v1572 = vrot.slane %v1567, %v1571
  %v1573 = vlaneseq
  %v1574 = vshrl.u32 %v1573, 7
  %v1575 = vsub.s32 1, %v1574
  %v1576 = vrot.slane %v1567, %v1575
  %v1595 = vunpack.c.l.b16 %v1551
  %v1596 = vunpack.c.h.b16 %v1551
  %v1597 = vunpack.c.l.b16 %v1552
  %v1598 = vunpack.c.h.b16 %v1552
  %v1599 = vunpack.c.l.b16 %v1553
  %v1600 = vunpack.c.h.b16 %v1553
  %v1601 = vunpack.c.l.b16 %v1554
  %v1602 = vunpack.c.h.b16 %v1554
  %v1603 = vunpack.c.l.b16 %v1555
  %v1604 = vunpack.c.h.b16 %v1555
  %v1605 = vunpack.c.l.b16 %v1556
  %v1606 = vunpack.c.h.b16 %v1556
  %v1607 = vunpack.c.l.b16 %v1557
  %v1608 = vunpack.c.h.b16 %v1557
  %v1609 = vunpack.c.l.b16 %v1558
  %v1610 = vunpack.c.h.b16 %v1558
  %v1611 = vunpack.c.l.b16 %v1559
  %v1612 = vunpack.c.h.b16 %v1559
  %v1613 = vunpack.c.l.b16 %v1560
  %v1614 = vunpack.c.h.b16 %v1560
  %v1615 = vunpack.c.l.b16 %v1561
  %v1616 = vunpack.c.h.b16 %v1561
  %v1617 = vunpack.c.l.b16 %v1562
  %v1618 = vunpack.c.h.b16 %v1562
  %v1619 = vunpack.c.l.b16 %v1563
  %v1620 = vunpack.c.h.b16 %v1563
  %v1621 = vunpack.c.l.b16 %v1564
  %v1622 = vunpack.c.h.b16 %v1564
  %v1623 = vunpack.c.l.b16 %v1565
  %v1624 = vunpack.c.h.b16 %v1565
  %v1625 = vunpack.c.l.b16 %v1566
  %v1626 = vunpack.c.h.b16 %v1566
  %v1627 = vpack.c.b16 %v1597, %v1595
  %v1628 = vpack.c.b16 %v1598, %v1596
  %v1629 = vpack.c.b16 %v1601, %v1599
  %v1630 = vpack.c.b16 %v1602, %v1600
  %v1631 = vpack.c.b16 %v1605, %v1603
  %v1632 = vpack.c.b16 %v1606, %v1604
  %v1633 = vpack.c.b16 %v1609, %v1607
  %v1634 = vpack.c.b16 %v1610, %v1608
  %v1635 = vpack.c.b16 %v1613, %v1611
  %v1636 = vpack.c.b16 %v1614, %v1612
  %v1637 = vpack.c.b16 %v1617, %v1615
  %v1638 = vpack.c.b16 %v1618, %v1616
  %v1639 = vpack.c.b16 %v1621, %v1619
  %v1640 = vpack.c.b16 %v1622, %v1620
  %v1641 = vpack.c.b16 %v1625, %v1623
  %v1642 = vpack.c.b16 %v1626, %v1624
  %1659 = vmatprep.subr.bf16.mxu0 %v1628
  %1660 = vmatpush1.bf16.msra.mxu0 %v1627
  %1661 = vmatprep.subr.bf16.mxu0 %v1630
  %1662 = vmatpush1.bf16.msra.mxu0 %v1629
  %1663 = vmatprep.subr.bf16.mxu0 %v1632
  %1664 = vmatpush1.bf16.msra.mxu0 %v1631
  %1665 = vmatprep.subr.bf16.mxu0 %v1634
  %1666 = vmatpush1.bf16.msra.mxu0 %v1633
  %1667 = vmatprep.subr.bf16.mxu0 %v1636
  %1668 = vmatpush1.bf16.msra.mxu0 %v1635
  %1669 = vmatprep.subr.bf16.mxu0 %v1638
  %1670 = vmatpush1.bf16.msra.mxu0 %v1637
  %1671 = vmatprep.subr.bf16.mxu0 %v1640
  %1672 = vmatpush1.bf16.msra.mxu0 %v1639
  %1673 = vmatprep.subr.bf16.mxu0 %v1642
  %1674 = vmatpush1.bf16.msra.mxu0 %v1641
  %1675 = vmatprep.subr.bf16.mxu0 0
  %1676 = vmatpush1.bf16.msra.mxu0 0
  %1677 = vmatprep.subr.bf16.mxu0 0
  %1678 = vmatpush1.bf16.msra.mxu0 0
  %1679 = vmatprep.subr.bf16.mxu0 0
  %1680 = vmatpush1.bf16.msra.mxu0 0
  %1681 = vmatprep.subr.bf16.mxu0 0
  %1682 = vmatpush1.bf16.msra.mxu0 0
  %1683 = vmatprep.subr.bf16.mxu0 0
  %1684 = vmatpush1.bf16.msra.mxu0 0
  %1685 = vmatprep.subr.bf16.mxu0 0
  %1686 = vmatpush1.bf16.msra.mxu0 0
  %1687 = vmatprep.subr.bf16.mxu0 0
  %1688 = vmatpush1.bf16.msra.mxu0 0
  %1689 = vmatprep.subr.bf16.mxu0 0
  %1690 = vmatpush1.bf16.msra.mxu0 0
  %1691 = vmatprep.mubr.bf16.mxu0 0
  %1692 = vmatmul.mubr.bf16.gmra.mrb[0].mxu0 %v1550
  %v1693 = vpop.f32.mrb[0].mxu0
  %v1694 = vadd.f32 %v1572, %v1693
  %v1695 = vpop.f32.mrb[0].mxu0
  %v1696 = vadd.f32 %v1576, %v1695
  %v1697 = vpop.f32.mrb[0].mxu0
  %v1698 = vpop.f32.mrb[0].mxu0
  %1699 = vdwg.mxu0
  %v1700 = vmax.f32 %v1694, 0.0
  %v1701 = vmax.f32 %v1696, 0.0
  %v1702 = vpack.c.bf16 %v1700, %v1700
  %v1703 = vpack.c.bf16 %v1701, %v1701
  %v1704 = vld [vmem:[%s9] sm:$0xf]
  %v1705 = vld [vmem:[%s9 + $0x4] sm:$0xf]
  %v1706 = vld [vmem:[%s9 + $0x8] sm:$0xf]
  %v1707 = vld [vmem:[%s9 + $0xc] sm:$0xf]
  %v1708 = vld [vmem:[%s9 + $0x10] sm:$0xf]
  %v1709 = vld [vmem:[%s9 + $0x14] sm:$0xf]
  %v1710 = vld [vmem:[%s9 + $0x18] sm:$0xf]
  %v1711 = vld [vmem:[%s9 + $0x1c] sm:$0xf]
  %v1712 = vld [vmem:[%s9 + $0x20] sm:$0xf]
  %v1713 = vld [vmem:[%s9 + $0x24] sm:$0xf]
  %v1714 = vld [vmem:[%s9 + $0x28] sm:$0xf]
  %v1715 = vld [vmem:[%s9 + $0x2c] sm:$0xf]
  %v1716 = vld [vmem:[%s9 + $0x30] sm:$0xf]
  %v1717 = vld [vmem:[%s9 + $0x34] sm:$0xf]
  %v1718 = vld [vmem:[%s9 + $0x38] sm:$0xf]
  %v1719 = vld [vmem:[%s9 + $0x3c] sm:$0xf]
  %v1720 = vld [vmem:[%s9 + $0x40] sm:$0xf]
  %v1721 = vld [vmem:[%s9 + $0x44] sm:$0xf]
  %v1722 = vld [vmem:[%s9 + $0x48] sm:$0xf]
  %v1723 = vld [vmem:[%s9 + $0x4c] sm:$0xf]
  %v1724 = vld [vmem:[%s9 + $0x50] sm:$0xf]
  %v1725 = vld [vmem:[%s9 + $0x54] sm:$0xf]
  %v1726 = vld [vmem:[%s9 + $0x58] sm:$0xf]
  %v1727 = vld [vmem:[%s9 + $0x5c] sm:$0xf]
  %v1728 = vld [vmem:[%s9 + $0x60] sm:$0xf]
  %v1729 = vld [vmem:[%s9 + $0x64] sm:$0xf]
  %v1730 = vld [vmem:[%s9 + $0x68] sm:$0xf]
  %v1731 = vld [vmem:[%s9 + $0x6c] sm:$0xf]
  %v1732 = vld [vmem:[%s9 + $0x70] sm:$0xf]
  %v1733 = vld [vmem:[%s9 + $0x74] sm:$0xf]
  %v1734 = vld [vmem:[%s9 + $0x78] sm:$0xf]
  %v1735 = vld [vmem:[%s9 + $0x7c] sm:$0xf]
  %v1736 = vld [vmem:[%s10] sm:$0x1]
  %v1738 = vlaneseq
  %v1739 = vshrl.u32 %v1738, 7
  %v1740 = vsub.s32 0, %v1739
  %v1741 = vrot.slane %v1736, %v1740
  %v1775 = vunpack.c.l.b16 %v1704
  %v1776 = vunpack.c.l.b16 %v1705
  %v1777 = vunpack.c.l.b16 %v1706
  %v1778 = vunpack.c.l.b16 %v1707
  %v1779 = vunpack.c.l.b16 %v1708
  %v1780 = vunpack.c.l.b16 %v1709
  %v1781 = vunpack.c.l.b16 %v1710
  %v1782 = vunpack.c.l.b16 %v1711
  %v1783 = vunpack.c.l.b16 %v1712
  %v1784 = vunpack.c.l.b16 %v1713
  %v1785 = vunpack.c.l.b16 %v1714
  %v1786 = vunpack.c.l.b16 %v1715
  %v1787 = vunpack.c.l.b16 %v1716
  %v1788 = vunpack.c.l.b16 %v1717
  %v1789 = vunpack.c.l.b16 %v1718
  %v1790 = vunpack.c.l.b16 %v1719
  %v1791 = vunpack.c.l.b16 %v1720
  %v1792 = vunpack.c.l.b16 %v1721
  %v1793 = vunpack.c.l.b16 %v1722
  %v1794 = vunpack.c.l.b16 %v1723
  %v1795 = vunpack.c.l.b16 %v1724
  %v1796 = vunpack.c.l.b16 %v1725
  %v1797 = vunpack.c.l.b16 %v1726
  %v1798 = vunpack.c.l.b16 %v1727
  %v1799 = vunpack.c.l.b16 %v1728
  %v1800 = vunpack.c.l.b16 %v1729
  %v1801 = vunpack.c.l.b16 %v1730
  %v1802 = vunpack.c.l.b16 %v1731
  %v1803 = vunpack.c.l.b16 %v1732
  %v1804 = vunpack.c.l.b16 %v1733
  %v1805 = vunpack.c.l.b16 %v1734
  %v1806 = vunpack.c.l.b16 %v1735
  %v1807 = vpack.c.b16 %v1776, %v1775
  %v1808 = vpack.c.b16 %v1778, %v1777
  %v1809 = vpack.c.b16 %v1780, %v1779
  %v1810 = vpack.c.b16 %v1782, %v1781
  %v1811 = vpack.c.b16 %v1784, %v1783
  %v1812 = vpack.c.b16 %v1786, %v1785
  %v1813 = vpack.c.b16 %v1788, %v1787
  %v1814 = vpack.c.b16 %v1790, %v1789
  %v1815 = vpack.c.b16 %v1792, %v1791
  %v1816 = vpack.c.b16 %v1794, %v1793
  %v1817 = vpack.c.b16 %v1796, %v1795
  %v1818 = vpack.c.b16 %v1798, %v1797
  %v1819 = vpack.c.b16 %v1800, %v1799
  %v1820 = vpack.c.b16 %v1802, %v1801
  %v1821 = vpack.c.b16 %v1804, %v1803
  %v1822 = vpack.c.b16 %v1806, %v1805
  %1839 = vmatprep.subr.bf16.mxu0 0
  %1840 = vmatpush1.bf16.msra.mxu0 %v1807
  %1841 = vmatprep.subr.bf16.mxu0 0
  %1842 = vmatpush1.bf16.msra.mxu0 %v1808
  %1843 = vmatprep.subr.bf16.mxu0 0
  %1844 = vmatpush1.bf16.msra.mxu0 %v1809
  %1845 = vmatprep.subr.bf16.mxu0 0
  %1846 = vmatpush1.bf16.msra.mxu0 %v1810
  %1847 = vmatprep.subr.bf16.mxu0 0
  %1848 = vmatpush1.bf16.msra.mxu0 %v1811
  %1849 = vmatprep.subr.bf16.mxu0 0
  %1850 = vmatpush1.bf16.msra.mxu0 %v1812
  %1851 = vmatprep.subr.bf16.mxu0 0
  %1852 = vmatpush1.bf16.msra.mxu0 %v1813
  %1853 = vmatprep.subr.bf16.mxu0 0
  %1854 = vmatpush1.bf16.msra.mxu0 %v1814
  %1855 = vmatprep.subr.bf16.mxu0 0
  %1856 = vmatpush1.bf16.msra.mxu0 %v1815
  %1857 = vmatprep.subr.bf16.mxu0 0
  %1858 = vmatpush1.bf16.msra.mxu0 %v1816
  %1859 = vmatprep.subr.bf16.mxu0 0
  %1860 = vmatpush1.bf16.msra.mxu0 %v1817
  %1861 = vmatprep.subr.bf16.mxu0 0
  %1862 = vmatpush1.bf16.msra.mxu0 %v1818
  %1863 = vmatprep.subr.bf16.mxu0 0
  %1864 = vmatpush1.bf16.msra.mxu0 %v1819
  %1865 = vmatprep.subr.bf16.mxu0 0
  %1866 = vmatpush1.bf16.msra.mxu0 %v1820
  %1867 = vmatprep.subr.bf16.mxu0 0
  %1868 = vmatpush1.bf16.msra.mxu0 %v1821
  %1869 = vmatprep.subr.bf16.mxu0 0
  %1870 = vmatpush1.bf16.msra.mxu0 %v1822
  %1871 = vmatprep.mubr.bf16.mxu0 %v1703
  %1872 = vmatmul.mubr.bf16.gmra.mrb[0].mxu0 %v1702
  %v1873 = vpop.f32.mrb[0].mxu0
  %v1874 = vadd.f32 %v1741, %v1873
  %v1875 = vpop.f32.mrb[0].mxu0
  %v1876 = vpop.f32.mrb[0].mxu0
  %v1877 = vpop.f32.mrb[0].mxu0
  %1878 = vdwg.mxu0
  %1879 = vst [vmem:[%s11] sm:$0xff] %v1874
  // Predicated region
  $region46: #{dqn_forward.3} parent=0 // pred_check
    _
  $region47: #{dqn_forward.3} parent=0 // pred_check_branch
    %1881 = sbr.rel (0) target = $region49
  $region48: #{dqn_forward.3} parent=0 // pred_region
    _
  $region49: #{dqn_forward.3} parent=0 // pred_fallthru
    _
  // Predicated region
  $region50: #{dqn_forward.3} parent=0 // pred_check
    _
  $region51: #{dqn_forward.3} parent=0 // pred_check_branch
    %1883 = sbr.rel (0) target = $region53
  $region52: #{dqn_forward.3} parent=0 // pred_region
    _
  $region53: #{dqn_forward.3} parent=0 // pred_fallthru
    _

// kernel: dqn_forward.2
$region0: #{dqn_forward.2}
  #allocation0 [shape = 'u32[]', space=smem, size = 0x4, offset = 0x4, fixed_abs, tag = 'smem constant byte address 0x4 - core index']
  #allocation1 [shape = 'u32[144,128]{1,0:T(1,128)}', space=vmem, size = 0x12000, scoped, tag = 'internal scratch']
  #allocation2 [shape = 'f32[196,36]{1,0:T(8,128)}', space=vmem, size = 0x19000, scoped, tag = 'scratch operand']
  #allocation3 [shape = 'f32[36,1152]{1,0:T(8,128)}', space=vmem, size = 0x2d000, scoped, tag = 'scratch operand']
  #allocation4 [shape = 'f32[16,1152]{1,0:T(8,128)}', space=vmem, size = 0x12000, scoped, tag = 'scratch operand']
  #allocation5 [shape = 'f32[1,1152]{1,0:T(1,128)}', space=vmem, size = 0x1200, scoped, tag = 'scratch operand']
  #allocation6 [shape = 'f32[196,128]{1,0:T(8,128)}', space=vmem, size = 0x19000, scoped, tag = 'scratch operand']
  #allocation7 [shape = 'f32[36,128]{1,0:T(8,128)}', space=vmem, size = 0x5000, scoped, tag = 'scratch operand']
  #allocation8 [shape = 'f32[16,128]{1,0:T(8,128)}', space=vmem, size = 0x2000, scoped, tag = 'scratch operand']
  %s0 = inlined_call_operand.vmem [shape: f32[2,256,4], index: 0, kind: input, shape index: {}]
  %s1 = inlined_call_operand.vmem [shape: bf16[36,128], index: 1, kind: input, shape index: {}]
  %s2 = inlined_call_operand.vmem [shape: f32[1,128], index: 2, kind: input, shape index: {}]
  %s3 = inlined_call_operand.vmem [shape: bf16[1152,128], index: 3, kind: input, shape index: {}]
  %s4 = inlined_call_operand.vmem [shape: f32[1,128], index: 4, kind: input, shape index: {}]
  %s5 = inlined_call_operand.hbm [shape: bf16[1152,128], index: 5, kind: input, shape index: {}]
  %s6 = inlined_call_operand.vmem [shape: f32[1,128], index: 6, kind: input, shape index: {}]
  %s7 = inlined_call_operand.hbm [shape: bf16[1152,128], index: 7, kind: input, shape index: {}]
  %s8 = inlined_call_operand.vmem [shape: f32[1,128], index: 8, kind: input, shape index: {}]
  %s9 = inlined_call_operand.vmem [shape: f32[2,1,128], index: 9, kind: output, shape index: {}]
  %s10 = sld [smem:[#allocation0]]
  $region77: #{dqn_forward.2} parent=0
    _
  %s12 = ssub.s32 1, %s10
  %s13 = scalar_select 0, %s12, %s10
  $region1: #{dqn_forward.2} parent=0
    #allocation9 [shape = 'u8[294912]{0}', space=vmem, size = 0x48000, scoped, tag = 'input window, operand 5, single buffered']
    #allocation10 [shape = 's32[2]{0}', space=sflag, size = 0x8, scoped, tag = 'scoped memory for dqn_forward.2']
    #allocation11 [shape = 'u8[294912]{0}', space=vmem, size = 0x48000, scoped, tag = 'input window, operand 7, single buffered']
    #allocation12 [shape = 's32[1]{0}', space=sflag, size = 0x4, scoped, tag = 'scoped memory for dqn_forward.2']
    %14 = vsyncpa [#allocation10], 0
    %15 = vsyncpa [#allocation12], 0
    loop: start=0, step=1, limit=4
    $region2: #{dqn_forward.2} parent=1 // loop_pre_header
      _
    $region3: #{dqn_forward.2} parent=1 // loop_header
      %s17 = sphi 0, %s21
      %p18 = scmp.ge.s32.totalorder %s17, 4
      %s27 = sphi 0, %s29
      %s30 = sphi 0, %s27
      %s31 = sphi 0, %s30
      %s47 = sphi 0, %s31
      %s51 = sphi 0, %s51
      %s53 = sphi 0, %s51
      %s54 = sphi 0, %s53
      %s68 = sphi 0, %s54
      %s72 = sphi 0, %s72
      %s74 = sphi 0, %s72
      %s75 = sphi 0, %s74
      %s89 = sphi 0, %s75
      %s93 = sphi 0, %s93
      %s95 = sphi 0, %s93
      %s96 = sphi 0, %s95
      %s110 = sphi 0, %s96
      %s114 = sphi 0, %s114
      %s116 = sphi 0, %s114
      %s117 = sphi 0, %s116
      %s131 = sphi 0, %s117
      %s135 = sphi 0, %s135
      %s137 = sphi 0, %s135
      %s138 = sphi 0, %s137
      %s152 = sphi 0, %s138
      %s156 = sphi 0, %s156
      %s158 = sphi 0, %s156
      %s159 = sphi 0, %s158
      %s173 = sphi 0, %s159
      %s177 = sphi 0, %s177
      %s179 = sphi 0, %s177
      %s180 = sphi 0, %s179
      %s194 = sphi 0, %s180
      %s198 = sphi 0, %s198
      %s200 = sphi 0, %s198
      %s201 = sphi 0, %s200
      %s215 = sphi 0, %s201
      %s221 = sphi 0, %s223
      %s224 = sphi 0, %s221
      %s225 = sphi 0, %s224
      %s241 = sphi 0, %s225
    $region4: #{dqn_forward.2} parent=1 // loop_header_branch
      %20 = sbr.rel (%p18) target = $region8
    $region5: #{dqn_forward.2} parent=1 // loop_body
      %s22 = ssub.s32 %s17, 1
      %s23 = ssub.s32 %s17, 2
      %s24 = sadd.s32 %s17, 1
      %s25 = ssub.s32 %s17, %s24
      %p26 = scmp.eq.s32.totalorder %s25, 0
      %s28 = sadd.s32 %s27, 1
      %s29 = scalar_select %p26, %s27, %s28
      %p32 = pneg %p26
      %p33 = scmp.eq.s32.totalorder %s17, 1
      %p34 = por %p32, %p33
      %p35 = scmp.ne.s32.totalorder %s27, %s30
      %p36 = scmp.eq.s32.totalorder %s17, 0
      %p37 = por %p35, %p36
      %p38 = scmp.ne.s32.totalorder %s27, %s30
      %p39 = scmp.eq.s32.totalorder %s22, 1
      %p40 = por %p38, %p39
      %p41 = scmp.ne.s32.totalorder %s30, %s31
      %p42 = scmp.eq.s32.totalorder %s22, 0
      %p43 = por %p41, %p42
      %p44 = scmp.ne.s32.totalorder %s30, %s31
      %p45 = scmp.eq.s32.totalorder %s23, 1
      %p46 = por %p44, %p45
      %p48 = scmp.ne.s32.totalorder %s31, %s47
      %p49 = scmp.eq.s32.totalorder %s23, 0
      %p50 = por %p48, %p49
      %s52 = sadd.s32 %s51, 1
      %p55 = scmp.eq.s32.totalorder %s17, 1
      %p56 = scmp.ne.s32.totalorder %s51, %s53
      %p57 = scmp.eq.s32.totalorder %s17, 0
      %p58 = por %p56, %p57
      %p59 = scmp.ne.s32.totalorder %s51, %s53
      %p60 = scmp.eq.s32.totalorder %s22, 1
      %p61 = por %p59, %p60
      %p62 = scmp.ne.s32.totalorder %s53, %s54
      %p63 = scmp.eq.s32.totalorder %s22, 0
      %p64 = por %p62, %p63
      %p65 = scmp.ne.s32.totalorder %s53, %s54
      %p66 = scmp.eq.s32.totalorder %s23, 1
      %p67 = por %p65, %p66
      %p69 = scmp.ne.s32.totalorder %s54, %s68
      %p70 = scmp.eq.s32.totalorder %s23, 0
      %p71 = por %p69, %p70
      %s73 = sadd.s32 %s72, 1
      %p76 = scmp.eq.s32.totalorder %s17, 1
      %p77 = scmp.ne.s32.totalorder %s72, %s74
      %p78 = scmp.eq.s32.totalorder %s17, 0
      %p79 = por %p77, %p78
      %p80 = scmp.ne.s32.totalorder %s72, %s74
      %p81 = scmp.eq.s32.totalorder %s22, 1
      %p82 = por %p80, %p81
      %p83 = scmp.ne.s32.totalorder %s74, %s75
      %p84 = scmp.eq.s32.totalorder %s22, 0
      %p85 = por %p83, %p84
      %p86 = scmp.ne.s32.totalorder %s74, %s75
      %p87 = scmp.eq.s32.totalorder %s23, 1
      %p88 = por %p86, %p87
      %p90 = scmp.ne.s32.totalorder %s75, %s89
      %p91 = scmp.eq.s32.totalorder %s23, 0
      %p92 = por %p90, %p91
      %s94 = sadd.s32 %s93, 1
      %p97 = scmp.eq.s32.totalorder %s17, 1
      %p98 = scmp.ne.s32.totalorder %s93, %s95
      %p99 = scmp.eq.s32.totalorder %s17, 0
      %p100 = por %p98, %p99
      %p101 = scmp.ne.s32.totalorder %s93, %s95
      %p102 = scmp.eq.s32.totalorder %s22, 1
      %p103 = por %p101, %p102
      %p104 = scmp.ne.s32.totalorder %s95, %s96
      %p105 = scmp.eq.s32.totalorder %s22, 0
      %p106 = por %p104, %p105
      %p107 = scmp.ne.s32.totalorder %s95, %s96
      %p108 = scmp.eq.s32.totalorder %s23, 1
      %p109 = por %p107, %p108
      %p111 = scmp.ne.s32.totalorder %s96, %s110
      %p112 = scmp.eq.s32.totalorder %s23, 0
      %p113 = por %p111, %p112
      %s115 = sadd.s32 %s114, 1
      %p118 = scmp.eq.s32.totalorder %s17, 1
      %p119 = scmp.ne.s32.totalorder %s114, %s116
      %p120 = scmp.eq.s32.totalorder %s17, 0
      %p121 = por %p119, %p120
      %p122 = scmp.ne.s32.totalorder %s114, %s116
      %p123 = scmp.eq.s32.totalorder %s22, 1
      %p124 = por %p122, %p123
      %p125 = scmp.ne.s32.totalorder %s116, %s117
      %p126 = scmp.eq.s32.totalorder %s22, 0
      %p127 = por %p125, %p126
      %p128 = scmp.ne.s32.totalorder %s116, %s117
      %p129 = scmp.eq.s32.totalorder %s23, 1
      %p130 = por %p128, %p129
      %p132 = scmp.ne.s32.totalorder %s117, %s131
      %p133 = scmp.eq.s32.totalorder %s23, 0
      %p134 = por %p132, %p133
      %s136 = sadd.s32 %s135, 1
      %p139 = scmp.eq.s32.totalorder %s17, 1
      %p140 = scmp.ne.s32.totalorder %s135, %s137
      %p141 = scmp.eq.s32.totalorder %s17, 0
      %p142 = por %p140, %p141
      %p143 = scmp.ne.s32.totalorder %s135, %s137
      %p144 = scmp.eq.s32.totalorder %s22, 1
      %p145 = por %p143, %p144
      %p146 = scmp.ne.s32.totalorder %s137, %s138
      %p147 = scmp.eq.s32.totalorder %s22, 0
      %p148 = por %p146, %p147
      %p149 = scmp.ne.s32.totalorder %s137, %s138
      %p150 = scmp.eq.s32.totalorder %s23, 1
      %p151 = por %p149, %p150
      %p153 = scmp.ne.s32.totalorder %s138, %s152
      %p154 = scmp.eq.s32.totalorder %s23, 0
      %p155 = por %p153, %p154
      %s157 = sadd.s32 %s156, 1
      %p160 = scmp.eq.s32.totalorder %s17, 1
      %p161 = scmp.ne.s32.totalorder %s156, %s158
      %p162 = scmp.eq.s32.totalorder %s17, 0
      %p163 = por %p161, %p162
      %p164 = scmp.ne.s32.totalorder %s156, %s158
      %p165 = scmp.eq.s32.totalorder %s22, 1
      %p166 = por %p164, %p165
      %p167 = scmp.ne.s32.totalorder %s158, %s159
      %p168 = scmp.eq.s32.totalorder %s22, 0
      %p169 = por %p167, %p168
      %p170 = scmp.ne.s32.totalorder %s158, %s159
      %p171 = scmp.eq.s32.totalorder %s23, 1
      %p172 = por %p170, %p171
      %p174 = scmp.ne.s32.totalorder %s159, %s173
      %p175 = scmp.eq.s32.totalorder %s23, 0
      %p176 = por %p174, %p175
      %s178 = sadd.s32 %s177, 1
      %p181 = scmp.eq.s32.totalorder %s17, 1
      %p182 = scmp.ne.s32.totalorder %s177, %s179
      %p183 = scmp.eq.s32.totalorder %s17, 0
      %p184 = por %p182, %p183
      %p185 = scmp.ne.s32.totalorder %s177, %s179
      %p186 = scmp.eq.s32.totalorder %s22, 1
      %p187 = por %p185, %p186
      %p188 = scmp.ne.s32.totalorder %s179, %s180
      %p189 = scmp.eq.s32.totalorder %s22, 0
      %p190 = por %p188, %p189
      %p191 = scmp.ne.s32.totalorder %s179, %s180
      %p192 = scmp.eq.s32.totalorder %s23, 1
      %p193 = por %p191, %p192
      %p195 = scmp.ne.s32.totalorder %s180, %s194
      %p196 = scmp.eq.s32.totalorder %s23, 0
      %p197 = por %p195, %p196
      %s199 = sadd.s32 %s198, 1
      %p202 = scmp.eq.s32.totalorder %s17, 1
      %p203 = scmp.ne.s32.totalorder %s198, %s200
      %p204 = scmp.eq.s32.totalorder %s17, 0
      %p205 = por %p203, %p204
      %p206 = scmp.ne.s32.totalorder %s198, %s200
      %p207 = scmp.eq.s32.totalorder %s22, 1
      %p208 = por %p206, %p207
      %p209 = scmp.ne.s32.totalorder %s200, %s201
      %p210 = scmp.eq.s32.totalorder %s22, 0
      %p211 = por %p209, %p210
      %p212 = scmp.ne.s32.totalorder %s200, %s201
      %p213 = scmp.eq.s32.totalorder %s23, 1
      %p214 = por %p212, %p213
      %p216 = scmp.ne.s32.totalorder %s201, %s215
      %p217 = scmp.eq.s32.totalorder %s23, 0
      %p218 = por %p216, %p217
      %s219 = ssub.s32 %s17, %s24
      %p220 = scmp.eq.s32.totalorder %s219, 0
      %s222 = sadd.s32 %s221, 1
      %s223 = scalar_select %p220, %s221, %s222
      %p226 = pneg %p220
      %p227 = scmp.eq.s32.totalorder %s17, 1
      %p228 = por %p226, %p227
      %p229 = scmp.ne.s32.totalorder %s221, %s224
      %p230 = scmp.eq.s32.totalorder %s17, 0
      %p231 = por %p229, %p230
      %p232 = scmp.ne.s32.totalorder %s221, %s224
      %p233 = scmp.eq.s32.totalorder %s22, 1
      %p234 = por %p232, %p233
      %p235 = scmp.ne.s32.totalorder %s224, %s225
      %p236 = scmp.eq.s32.totalorder %s22, 0
      %p237 = por %p235, %p236
      %p238 = scmp.ne.s32.totalorder %s224, %s225
      %p239 = scmp.eq.s32.totalorder %s23, 1
      %p240 = por %p238, %p239
      %p242 = scmp.ne.s32.totalorder %s225, %s241
      %p243 = scmp.eq.s32.totalorder %s23, 0
      %p244 = por %p242, %p243
      %p245 = scmp.le.s32.totalorder 1, %s17
      %p246 = scmp.lt.s32.totalorder %s17, 3
      %p247 = pnand %p245, %p246
      %p248 = pneg %p247
      // Predicated region
      $region9: #{dqn_forward.2} parent=5 // pred_check
        _
      $region10: #{dqn_forward.2} parent=5 // pred_check_branch
        %250 = sbr.rel (%p247) target = $region12
      $region11: #{dqn_forward.2} parent=5 // pred_region
        %s251 = ssub.s32 %s17, 1
        // Predicated region
        $region13: #{dqn_forward.2} parent=11 // pred_check
          %p252 = pneg %p64
        $region14: #{dqn_forward.2} parent=11 // pred_check_branch
          %254 = sbr.rel (%p252) target = $region16
        $region15: #{dqn_forward.2} parent=11 // pred_region
          _
        $region16: #{dqn_forward.2} parent=11 // pred_fallthru
          _
        // Predicated region
        $region17: #{dqn_forward.2} parent=11 // pred_check
          %p255 = pneg %p85
        $region18: #{dqn_forward.2} parent=11 // pred_check_branch
          %257 = sbr.rel (%p255) target = $region20
        $region19: #{dqn_forward.2} parent=11 // pred_region
          _
        $region20: #{dqn_forward.2} parent=11 // pred_fallthru
          _
        // Predicated region
        $region21: #{dqn_forward.2} parent=11 // pred_check
          %p258 = pneg %p106
        $region22: #{dqn_forward.2} parent=11 // pred_check_branch
          %260 = sbr.rel (%p258) target = $region24
        $region23: #{dqn_forward.2} parent=11 // pred_region
          _
        $region24: #{dqn_forward.2} parent=11 // pred_fallthru
          _
        // Predicated region
        $region25: #{dqn_forward.2} parent=11 // pred_check
          %p261 = pneg %p127
        $region26: #{dqn_forward.2} parent=11 // pred_check_branch
          %263 = sbr.rel (%p261) target = $region28
        $region27: #{dqn_forward.2} parent=11 // pred_region
          _
        $region28: #{dqn_forward.2} parent=11 // pred_fallthru
          _
        // Predicated region
        $region29: #{dqn_forward.2} parent=11 // pred_check
          %p264 = pneg %p148
        $region30: #{dqn_forward.2} parent=11 // pred_check_branch
          %266 = sbr.rel (%p264) target = $region32
        $region31: #{dqn_forward.2} parent=11 // pred_region
          %s268 = ssub.s32 9216, 9216
          %269 = vsyncadd [#allocation10], %s268
          %s270 = sshll.u32 [#allocation9], 4
          %s271 = int_to_ptr.vmem [resolvable:$true] %s270
          %276 = dma.hbm_to_vmem [thread:$0]  %s5, 9216, %s271, [#allocation10], 64, 64, 4
        $region32: #{dqn_forward.2} parent=11 // pred_fallthru
          _
        // Predicated region
        $region33: #{dqn_forward.2} parent=11 // pred_check
          %p277 = pneg %p169
        $region34: #{dqn_forward.2} parent=11 // pred_check_branch
          %279 = sbr.rel (%p277) target = $region36
        $region35: #{dqn_forward.2} parent=11 // pred_region
          _
        $region36: #{dqn_forward.2} parent=11 // pred_fallthru
          _
        // Predicated region
        $region37: #{dqn_forward.2} parent=11 // pred_check
          %p280 = pneg %p190
        $region38: #{dqn_forward.2} parent=11 // pred_check_branch
          %282 = sbr.rel (%p280) target = $region40
        $region39: #{dqn_forward.2} parent=11 // pred_region
          %s284 = ssub.s32 9216, 9216
          %285 = vsyncadd [#allocation12], %s284
          %s286 = sshll.u32 [#allocation11], 4
          %s287 = int_to_ptr.vmem [resolvable:$true] %s286
          %292 = dma.hbm_to_vmem [thread:$0]  %s7, 9216, %s287, [#allocation12], 64, 64, 4
        $region40: #{dqn_forward.2} parent=11 // pred_fallthru
          _
        // Predicated region
        $region41: #{dqn_forward.2} parent=11 // pred_check
          %p293 = pneg %p211
        $region42: #{dqn_forward.2} parent=11 // pred_check_branch
          %295 = sbr.rel (%p293) target = $region44
        $region43: #{dqn_forward.2} parent=11 // pred_region
          _
        $region44: #{dqn_forward.2} parent=11 // pred_fallthru
          _
      $region12: #{dqn_forward.2} parent=5 // pred_fallthru
        _
      %p296 = scmp.lt.s32.totalorder %s17, 2
      // Predicated region
      $region45: #{dqn_forward.2} parent=5 // pred_check
        %p297 = pneg %p296
      $region46: #{dqn_forward.2} parent=5 // pred_check_branch
        %299 = sbr.rel (%p297) target = $region48
      $region47: #{dqn_forward.2} parent=5 // pred_region
        // Predicated region
        $region49: #{dqn_forward.2} parent=47 // pred_check
          %p300 = pneg %p37
        $region50: #{dqn_forward.2} parent=47 // pred_check_branch
          %302 = sbr.rel (%p300) target = $region52
        $region51: #{dqn_forward.2} parent=47 // pred_region
          %p303 = scmp.lt.s32.totalorder %s17, 1
          %s304 = scalar_select %p303, %s17, 1
          %s305 = smul.addr %s304, 32
          %s306 = smul.addr %s305, 8
          %s307 = scalar_lea.vmem %s0, %s306
        $region52: #{dqn_forward.2} parent=47 // pred_fallthru
          _
      $region48: #{dqn_forward.2} parent=5 // pred_fallthru
        _
      %p308 = scmp.le.s32.totalorder 1, %s17
      %p309 = scmp.lt.s32.totalorder %s17, 3
      %p310 = pnand %p308, %p309
      %p311 = pneg %p310
      // Predicated region
      $region53: #{dqn_forward.2} parent=5 // pred_check
        _
      $region54: #{dqn_forward.2} parent=5 // pred_check_branch
        %313 = sbr.rel (%p310) target = $region56
      $region55: #{dqn_forward.2} parent=5 // pred_region
        %s314 = ssub.s32 %s17, 1
        // Predicated region
        $region57: #{dqn_forward.2} parent=55 // pred_check
          %p315 = pneg %p148
        $region58: #{dqn_forward.2} parent=55 // pred_check_branch
          %317 = sbr.rel (%p315) target = $region60
        $region59: #{dqn_forward.2} parent=55 // pred_region
          %318 = dma.done [#allocation10], 9216
        $region60: #{dqn_forward.2} parent=55 // pred_fallthru
          _
        // Predicated region
        $region61: #{dqn_forward.2} parent=55 // pred_check
          %p319 = pneg %p190
        $region62: #{dqn_forward.2} parent=55 // pred_check_branch
          %321 = sbr.rel (%p319) target = $region64
        $region63: #{dqn_forward.2} parent=55 // pred_region
          %322 = dma.done [#allocation12], 9216
        $region64: #{dqn_forward.2} parent=55 // pred_fallthru
          _
        %p323 = scmp.lt.s32.totalorder %s22, 1
        %s324 = scalar_select %p323, %s22, 1
        %s325 = smul.addr %s324, 32
        %s326 = smul.addr %s325, 8
        %s327 = scalar_lea.vmem %s0, %s326
        %p328 = pneg %p43
        %p329 = pneg %p40
        %p330 = pneg %p64
        %p331 = pneg %p61
        %p332 = pneg %p85
        %p333 = pneg %p82
        %p334 = pneg %p106
        %p335 = pneg %p103
        %p336 = pneg %p127
        %p337 = pneg %p124
        %p338 = pneg %p148
        %p339 = pneg %p145
        %p340 = pneg %p169
        %p341 = pneg %p166
        %p342 = pneg %p190
        %p343 = pneg %p187
        %p344 = pneg %p211
        %p345 = pneg %p208
        %p346 = pneg %p237
        %p347 = pneg %p234
        %p348 = scmp.lt.s32.totalorder %s22, 1
        %s349 = scalar_select %p348, %s22, 1
        %s350 = scalar_lea.vmem %s9, %s349
        %p351 = scmp.lt.s32.totalorder %s22, 1
        %s352 = scalar_select %p351, %s22, 1
        %s353 = smul.addr %s352, 32
        %s354 = smul.addr %s353, 8
        %s355 = scalar_lea.vmem %s0, %s354
        %p356 = scmp.lt.s32.totalorder %s22, 1
        %s357 = scalar_select %p356, %s22, 1
        %s358 = scalar_lea.vmem %s9, %s357
        %v360 = vld [vmem:[%s355] sm:$0xff]
        %v361 = vld [vmem:[%s355 + $0x8] sm:$0x3f]
        %vm362 = vcmask 31744
        %363 = vst.msk [vmem:[#allocation2] sm:$0xff] %vm362, %v360
        %vm364 = vcmask 29696
        %365 = vst.msk [vmem:[#allocation2 + $0x8] sm:$0x3f] %vm364, %v361
        %v366 = vld [vmem:[%s355 + $0x1] sm:$0xff]
        %v367 = vld [vmem:[%s355 + $0x9] sm:$0x3f]
        %370 = vrot.lane.b32.xlu0 %v366, 4
        %v371 = vpop.permute.xlu0 %370
        %372 = vrot.lane.b32.xlu0 %v367, 4
        %v373 = vpop.permute.xlu0 %372
        %vm376 = vcmask 64544
        %377 = vst.msk [vmem:[#allocation2] sm:$0xff] %vm376, %v371
        %vm378 = vcmask 62496
        %379 = vst.msk [vmem:[#allocation2 + $0x8] sm:$0x3f] %vm378, %v373
        %v380 = vld [vmem:[%s355 + $0x2] sm:$0xff]
        %v381 = vld [vmem:[%s355 + $0xa] sm:$0x3f]
        %384 = vrot.lane.b32.xlu0 %v380, 8
        %v385 = vpop.permute.xlu0 %384
        %386 = vrot.lane.b32.xlu0 %v381, 8
        %v387 = vpop.permute.xlu0 %386
        %vm390 = vcmask 97344
        %391 = vst.msk [vmem:[#allocation2] sm:$0xff] %vm390, %v385
        %vm392 = vcmask 95296
        %393 = vst.msk [vmem:[#allocation2 + $0x8] sm:$0x3f] %vm392, %v387
        %v394 = vld [vmem:[%s355 + $0x10] sm:$0xff]
        %v395 = vld [vmem:[%s355 + $0x18] sm:$0x3f]
        %398 = vrot.lane.b32.xlu0 %v394, 12
        %v399 = vpop.permute.xlu0 %398
        %400 = vrot.lane.b32.xlu0 %v395, 12
        %v401 = vpop.permute.xlu0 %400
        %vm404 = vcmask 130144
        %405 = vst.msk [vmem:[#allocation2] sm:$0xff] %vm404, %v399
        %vm406 = vcmask 128096
        %407 = vst.msk [vmem:[#allocation2 + $0x8] sm:$0x3f] %vm406, %v401
        %v408 = vld [vmem:[%s355 + $0x11] sm:$0xff]
        %v409 = vld [vmem:[%s355 + $0x19] sm:$0x3f]
        %412 = vrot.lane.b32.xlu0 %v408, 16
        %v413 = vpop.permute.xlu0 %412
        %414 = vrot.lane.b32.xlu0 %v409, 16
        %v415 = vpop.permute.xlu0 %414
        %vm418 = vcmask 162944
        %419 = vst.msk [vmem:[#allocation2] sm:$0xff] %vm418, %v413
        %vm420 = vcmask 160896
        %421 = vst.msk [vmem:[#allocation2 + $0x8] sm:$0x3f] %vm420, %v415
        %v422 = vld [vmem:[%s355 + $0x12] sm:$0xff]
        %v423 = vld [vmem:[%s355 + $0x1a] sm:$0x3f]
        %426 = vrot.lane.b32.xlu0 %v422, 20
        %v427 = vpop.permute.xlu0 %426
        %428 = vrot.lane.b32.xlu0 %v423, 20
        %v429 = vpop.permute.xlu0 %428
        %vm432 = vcmask 195744
        %433 = vst.msk [vmem:[#allocation2] sm:$0xff] %vm432, %v427
        %vm434 = vcmask 193696
        %435 = vst.msk [vmem:[#allocation2 + $0x8] sm:$0x3f] %vm434, %v429
        %v436 = vld [vmem:[%s355 + $0x20] sm:$0xff]
        %v437 = vld [vmem:[%s355 + $0x28] sm:$0x3f]
        %440 = vrot.lane.b32.xlu0 %v436, 24
        %v441 = vpop.permute.xlu0 %440
        %442 = vrot.lane.b32.xlu0 %v437, 24
        %v443 = vpop.permute.xlu0 %442
        %vm446 = vcmask 228544
        %447 = vst.msk [vmem:[#allocation2] sm:$0xff] %vm446, %v441
        %vm448 = vcmask 226496
        %449 = vst.msk [vmem:[#allocation2 + $0x8] sm:$0x3f] %vm448, %v443
        %v450 = vld [vmem:[%s355 + $0x21] sm:$0xff]
        %v451 = vld [vmem:[%s355 + $0x29] sm:$0x3f]
        %454 = vrot.lane.b32.xlu0 %v450, 28
        %v455 = vpop.permute.xlu0 %454
        %456 = vrot.lane.b32.xlu0 %v451, 28
        %v457 = vpop.permute.xlu0 %456
        %vm460 = vcmask 261344
        %461 = vst.msk [vmem:[#allocation2] sm:$0xff] %vm460, %v455
        %vm462 = vcmask 259296
        %463 = vst.msk [vmem:[#allocation2 + $0x8] sm:$0x3f] %vm462, %v457
        %v464 = vld [vmem:[%s355 + $0x22] sm:$0xff]
        %v465 = vld [vmem:[%s355 + $0x2a] sm:$0x3f]
        %468 = vrot.lane.b32.xlu0 %v464, 32
        %v469 = vpop.permute.xlu0 %468
        %470 = vrot.lane.b32.xlu0 %v465, 32
        %v471 = vpop.permute.xlu0 %470
        %vm474 = vcmask 294144
        %475 = vst.msk [vmem:[#allocation2] sm:$0xff] %vm474, %v469
        %vm476 = vcmask 292096
        %477 = vst.msk [vmem:[#allocation2 + $0x8] sm:$0x3f] %vm476, %v471
        %v478 = vld [vmem:[%s355 + $0x10] sm:$0xff]
        %v479 = vld [vmem:[%s355 + $0x18] sm:$0x3f]
        %480 = vst.msk [vmem:[#allocation2 + $0xe] sm:$0xff] %vm362, %v478
        %481 = vst.msk [vmem:[#allocation2 + $0x16] sm:$0x3f] %vm364, %v479
        %v482 = vld [vmem:[%s355 + $0x11] sm:$0xff]
        %v483 = vld [vmem:[%s355 + $0x19] sm:$0x3f]
        %486 = vrot.lane.b32.xlu0 %v482, 4
        %v487 = vpop.permute.xlu0 %486
        %488 = vrot.lane.b32.xlu0 %v483, 4
        %v489 = vpop.permute.xlu0 %488
        %492 = vst.msk [vmem:[#allocation2 + $0xe] sm:$0xff] %vm376, %v487
        %493 = vst.msk [vmem:[#allocation2 + $0x16] sm:$0x3f] %vm378, %v489
        %v494 = vld [vmem:[%s355 + $0x12] sm:$0xff]
        %v495 = vld [vmem:[%s355 + $0x1a] sm:$0x3f]
        %498 = vrot.lane.b32.xlu0 %v494, 8
        %v499 = vpop.permute.xlu0 %498
        %500 = vrot.lane.b32.xlu0 %v495, 8
        %v501 = vpop.permute.xlu0 %500
        %504 = vst.msk [vmem:[#allocation2 + $0xe] sm:$0xff] %vm390, %v499
        %505 = vst.msk [vmem:[#allocation2 + $0x16] sm:$0x3f] %vm392, %v501
        %v506 = vld [vmem:[%s355 + $0x20] sm:$0xff]
        %v507 = vld [vmem:[%s355 + $0x28] sm:$0x3f]
        %510 = vrot.lane.b32.xlu0 %v506, 12
        %v511 = vpop.permute.xlu0 %510
        %512 = vrot.lane.b32.xlu0 %v507, 12
        %v513 = vpop.permute.xlu0 %512
        %516 = vst.msk [vmem:[#allocation2 + $0xe] sm:$0xff] %vm404, %v511
        %517 = vst.msk [vmem:[#allocation2 + $0x16] sm:$0x3f] %vm406, %v513
        %v518 = vld [vmem:[%s355 + $0x21] sm:$0xff]
        %v519 = vld [vmem:[%s355 + $0x29] sm:$0x3f]
        %522 = vrot.lane.b32.xlu0 %v518, 16
        %v523 = vpop.permute.xlu0 %522
        %524 = vrot.lane.b32.xlu0 %v519, 16
        %v525 = vpop.permute.xlu0 %524
        %528 = vst.msk [vmem:[#allocation2 + $0xe] sm:$0xff] %vm418, %v523
        %529 = vst.msk [vmem:[#allocation2 + $0x16] sm:$0x3f] %vm420, %v525
        %v530 = vld [vmem:[%s355 + $0x22] sm:$0xff]
        %v531 = vld [vmem:[%s355 + $0x2a] sm:$0x3f]
        %534 = vrot.lane.b32.xlu0 %v530, 20
        %v535 = vpop.permute.xlu0 %534
        %536 = vrot.lane.b32.xlu0 %v531, 20
        %v537 = vpop.permute.xlu0 %536
        %540 = vst.msk [vmem:[#allocation2 + $0xe] sm:$0xff] %vm432, %v535
        %541 = vst.msk [vmem:[#allocation2 + $0x16] sm:$0x3f] %vm434, %v537
        %v542 = vld [vmem:[%s355 + $0x30] sm:$0xff]
        %v543 = vld [vmem:[%s355 + $0x38] sm:$0x3f]
        %546 = vrot.lane.b32.xlu0 %v542, 24
        %v547 = vpop.permute.xlu0 %546
        %548 = vrot.lane.b32.xlu0 %v543, 24
        %v549 = vpop.permute.xlu0 %548
        %552 = vst.msk [vmem:[#allocation2 + $0xe] sm:$0xff] %vm446, %v547
        %553 = vst.msk [vmem:[#allocation2 + $0x16] sm:$0x3f] %vm448, %v549
        %v554 = vld [vmem:[%s355 + $0x31] sm:$0xff]
        %v555 = vld [vmem:[%s355 + $0x39] sm:$0x3f]
        %558 = vrot.lane.b32.xlu0 %v554, 28
        %v559 = vpop.permute.xlu0 %558
        %560 = vrot.lane.b32.xlu0 %v555, 28
        %v561 = vpop.permute.xlu0 %560
        %564 = vst.msk [vmem:[#allocation2 + $0xe] sm:$0xff] %vm460, %v559
        %565 = vst.msk [vmem:[#allocation2 + $0x16] sm:$0x3f] %vm462, %v561
        %v566 = vld [vmem:[%s355 + $0x32] sm:$0xff]
        %v567 = vld [vmem:[%s355 + $0x3a] sm:$0x3f]
        %570 = vrot.lane.b32.xlu0 %v566, 32
        %v571 = vpop.permute.xlu0 %570
        %572 = vrot.lane.b32.xlu0 %v567, 32
        %v573 = vpop.permute.xlu0 %572
        %576 = vst.msk [vmem:[#allocation2 + $0xe] sm:$0xff] %vm474, %v571
        %577 = vst.msk [vmem:[#allocation2 + $0x16] sm:$0x3f] %vm476, %v573
        %v578 = vld [vmem:[%s355 + $0x20] sm:$0xff]
        %v579 = vld [vmem:[%s355 + $0x28] sm:$0x3f]
        %580 = vst.msk [vmem:[#allocation2 + $0x1c] sm:$0xff] %vm362, %v578
        %581 = vst.msk [vmem:[#allocation2 + $0x24] sm:$0x3f] %vm364, %v579
        %v582 = vld [vmem:[%s355 + $0x21] sm:$0xff]
        %v583 = vld [vmem:[%s355 + $0x29] sm:$0x3f]
        %586 = vrot.lane.b32.xlu0 %v582, 4
        %v587 = vpop.permute.xlu0 %586
        %588 = vrot.lane.b32.xlu0 %v583, 4
        %v589 = vpop.permute.xlu0 %588
        %592 = vst.msk [vmem:[#allocation2 + $0x1c] sm:$0xff] %vm376, %v587
        %593 = vst.msk [vmem:[#allocation2 + $0x24] sm:$0x3f] %vm378, %v589
        %v594 = vld [vmem:[%s355 + $0x22] sm:$0xff]
        %v595 = vld [vmem:[%s355 + $0x2a] sm:$0x3f]
        %598 = vrot.lane.b32.xlu0 %v594, 8
        %v599 = vpop.permute.xlu0 %598
        %600 = vrot.lane.b32.xlu0 %v595, 8
        %v601 = vpop.permute.xlu0 %600
        %604 = vst.msk [vmem:[#allocation2 + $0x1c] sm:$0xff] %vm390, %v599
        %605 = vst.msk [vmem:[#allocation2 + $0x24] sm:$0x3f] %vm392, %v601
        %v606 = vld [vmem:[%s355 + $0x30] sm:$0xff]
        %v607 = vld [vmem:[%s355 + $0x38] sm:$0x3f]
        %610 = vrot.lane.b32.xlu0 %v606, 12
        %v611 = vpop.permute.xlu0 %610
        %612 = vrot.lane.b32.xlu0 %v607, 12
        %v613 = vpop.permute.xlu0 %612
        %616 = vst.msk [vmem:[#allocation2 + $0x1c] sm:$0xff] %vm404, %v611
        %617 = vst.msk [vmem:[#allocation2 + $0x24] sm:$0x3f] %vm406, %v613
        %v618 = vld [vmem:[%s355 + $0x31] sm:$0xff]
        %v619 = vld [vmem:[%s355 + $0x39] sm:$0x3f]
        %622 = vrot.lane.b32.xlu0 %v618, 16
        %v623 = vpop.permute.xlu0 %622
        %624 = vrot.lane.b32.xlu0 %v619, 16
        %v625 = vpop.permute.xlu0 %624
        %628 = vst.msk [vmem:[#allocation2 + $0x1c] sm:$0xff] %vm418, %v623
        %629 = vst.msk [vmem:[#allocation2 + $0x24] sm:$0x3f] %vm420, %v625
        %v630 = vld [vmem:[%s355 + $0x32] sm:$0xff]
        %v631 = vld [vmem:[%s355 + $0x3a] sm:$0x3f]
        %634 = vrot.lane.b32.xlu0 %v630, 20
        %v635 = vpop.permute.xlu0 %634
        %636 = vrot.lane.b32.xlu0 %v631, 20
        %v637 = vpop.permute.xlu0 %636
        %640 = vst.msk [vmem:[#allocation2 + $0x1c] sm:$0xff] %vm432, %v635
        %641 = vst.msk [vmem:[#allocation2 + $0x24] sm:$0x3f] %vm434, %v637
        %v642 = vld [vmem:[%s355 + $0x40] sm:$0xff]
        %v643 = vld [vmem:[%s355 + $0x48] sm:$0x3f]
        %646 = vrot.lane.b32.xlu0 %v642, 24
        %v647 = vpop.permute.xlu0 %646
        %648 = vrot.lane.b32.xlu0 %v643, 24
        %v649 = vpop.permute.xlu0 %648
        %652 = vst.msk [vmem:[#allocation2 + $0x1c] sm:$0xff] %vm446, %v647
        %653 = vst.msk [vmem:[#allocation2 + $0x24] sm:$0x3f] %vm448, %v649
        %v654 = vld [vmem:[%s355 + $0x41] sm:$0xff]
        %v655 = vld [vmem:[%s355 + $0x49] sm:$0x3f]
        %658 = vrot.lane.b32.xlu0 %v654, 28
        %v659 = vpop.permute.xlu0 %658
        %660 = vrot.lane.b32.xlu0 %v655, 28
        %v661 = vpop.permute.xlu0 %660
        %664 = vst.msk [vmem:[#allocation2 + $0x1c] sm:$0xff] %vm460, %v659
        %665 = vst.msk [vmem:[#allocation2 + $0x24] sm:$0x3f] %vm462, %v661
        %v666 = vld [vmem:[%s355 + $0x42] sm:$0xff]
        %v667 = vld [vmem:[%s355 + $0x4a] sm:$0x3f]
        %670 = vrot.lane.b32.xlu0 %v666, 32
        %v671 = vpop.permute.xlu0 %670
        %672 = vrot.lane.b32.xlu0 %v667, 32
        %v673 = vpop.permute.xlu0 %672
        %676 = vst.msk [vmem:[#allocation2 + $0x1c] sm:$0xff] %vm474, %v671
        %677 = vst.msk [vmem:[#allocation2 + $0x24] sm:$0x3f] %vm476, %v673
        %v678 = vld [vmem:[%s355 + $0x30] sm:$0xff]
        %v679 = vld [vmem:[%s355 + $0x38] sm:$0x3f]
        %680 = vst.msk [vmem:[#allocation2 + $0x2a] sm:$0xff] %vm362, %v678
        %681 = vst.msk [vmem:[#allocation2 + $0x32] sm:$0x3f] %vm364, %v679
        %v682 = vld [vmem:[%s355 + $0x31] sm:$0xff]
        %v683 = vld [vmem:[%s355 + $0x39] sm:$0x3f]
        %686 = vrot.lane.b32.xlu0 %v682, 4
        %v687 = vpop.permute.xlu0 %686
        %688 = vrot.lane.b32.xlu0 %v683, 4
        %v689 = vpop.permute.xlu0 %688
        %692 = vst.msk [vmem:[#allocation2 + $0x2a] sm:$0xff] %vm376, %v687
        %693 = vst.msk [vmem:[#allocation2 + $0x32] sm:$0x3f] %vm378, %v689
        %v694 = vld [vmem:[%s355 + $0x32] sm:$0xff]
        %v695 = vld [vmem:[%s355 + $0x3a] sm:$0x3f]
        %698 = vrot.lane.b32.xlu0 %v694, 8
        %v699 = vpop.permute.xlu0 %698
        %700 = vrot.lane.b32.xlu0 %v695, 8
        %v701 = vpop.permute.xlu0 %700
        %704 = vst.msk [vmem:[#allocation2 + $0x2a] sm:$0xff] %vm390, %v699
        %705 = vst.msk [vmem:[#allocation2 + $0x32] sm:$0x3f] %vm392, %v701
        %v706 = vld [vmem:[%s355 + $0x40] sm:$0xff]
        %v707 = vld [vmem:[%s355 + $0x48] sm:$0x3f]
        %710 = vrot.lane.b32.xlu0 %v706, 12
        %v711 = vpop.permute.xlu0 %710
        %712 = vrot.lane.b32.xlu0 %v707, 12
        %v713 = vpop.permute.xlu0 %712
        %716 = vst.msk [vmem:[#allocation2 + $0x2a] sm:$0xff] %vm404, %v711
        %717 = vst.msk [vmem:[#allocation2 + $0x32] sm:$0x3f] %vm406, %v713
        %v718 = vld [vmem:[%s355 + $0x41] sm:$0xff]
        %v719 = vld [vmem:[%s355 + $0x49] sm:$0x3f]
        %722 = vrot.lane.b32.xlu0 %v718, 16
        %v723 = vpop.permute.xlu0 %722
        %724 = vrot.lane.b32.xlu0 %v719, 16
        %v725 = vpop.permute.xlu0 %724
        %728 = vst.msk [vmem:[#allocation2 + $0x2a] sm:$0xff] %vm418, %v723
        %729 = vst.msk [vmem:[#allocation2 + $0x32] sm:$0x3f] %vm420, %v725
        %v730 = vld [vmem:[%s355 + $0x42] sm:$0xff]
        %v731 = vld [vmem:[%s355 + $0x4a] sm:$0x3f]
        %734 = vrot.lane.b32.xlu0 %v730, 20
        %v735 = vpop.permute.xlu0 %734
        %736 = vrot.lane.b32.xlu0 %v731, 20
        %v737 = vpop.permute.xlu0 %736
        %740 = vst.msk [vmem:[#allocation2 + $0x2a] sm:$0xff] %vm432, %v735
        %741 = vst.msk [vmem:[#allocation2 + $0x32] sm:$0x3f] %vm434, %v737
        %v742 = vld [vmem:[%s355 + $0x50] sm:$0xff]
        %v743 = vld [vmem:[%s355 + $0x58] sm:$0x3f]
        %746 = vrot.lane.b32.xlu0 %v742, 24
        %v747 = vpop.permute.xlu0 %746
        %748 = vrot.lane.b32.xlu0 %v743, 24
        %v749 = vpop.permute.xlu0 %748
        %752 = vst.msk [vmem:[#allocation2 + $0x2a] sm:$0xff] %vm446, %v747
        %753 = vst.msk [vmem:[#allocation2 + $0x32] sm:$0x3f] %vm448, %v749
        %v754 = vld [vmem:[%s355 + $0x51] sm:$0xff]
        %v755 = vld [vmem:[%s355 + $0x59] sm:$0x3f]
        %758 = vrot.lane.b32.xlu0 %v754, 28
        %v759 = vpop.permute.xlu0 %758
        %760 = vrot.lane.b32.xlu0 %v755, 28
        %v761 = vpop.permute.xlu0 %760
        %764 = vst.msk [vmem:[#allocation2 + $0x2a] sm:$0xff] %vm460, %v759
        %765 = vst.msk [vmem:[#allocation2 + $0x32] sm:$0x3f] %vm462, %v761
        %v766 = vld [vmem:[%s355 + $0x52] sm:$0xff]
        %v767 = vld [vmem:[%s355 + $0x5a] sm:$0x3f]
        %770 = vrot.lane.b32.xlu0 %v766, 32
        %v771 = vpop.permute.xlu0 %770
        %772 = vrot.lane.b32.xlu0 %v767, 32
        %v773 = vpop.permute.xlu0 %772
        %776 = vst.msk [vmem:[#allocation2 + $0x2a] sm:$0xff] %vm474, %v771
        %777 = vst.msk [vmem:[#allocation2 + $0x32] sm:$0x3f] %vm476, %v773
        %v778 = vld [vmem:[%s355 + $0x40] sm:$0xff]
        %v779 = vld [vmem:[%s355 + $0x48] sm:$0x3f]
        %780 = vst.msk [vmem:[#allocation2 + $0x38] sm:$0xff] %vm362, %v778
        %781 = vst.msk [vmem:[#allocation2 + $0x40] sm:$0x3f] %vm364, %v779
        %v782 = vld [vmem:[%s355 + $0x41] sm:$0xff]
        %v783 = vld [vmem:[%s355 + $0x49] sm:$0x3f]
        %786 = vrot.lane.b32.xlu0 %v782, 4
        %v787 = vpop.permute.xlu0 %786
        %788 = vrot.lane.b32.xlu0 %v783, 4
        %v789 = vpop.permute.xlu0 %788
        %792 = vst.msk [vmem:[#allocation2 + $0x38] sm:$0xff] %vm376, %v787
        %793 = vst.msk [vmem:[#allocation2 + $0x40] sm:$0x3f] %vm378, %v789
        %v794 = vld [vmem:[%s355 + $0x42] sm:$0xff]
        %v795 = vld [vmem:[%s355 + $0x4a] sm:$0x3f]
        %798 = vrot.lane.b32.xlu0 %v794, 8
        %v799 = vpop.permute.xlu0 %798
        %800 = vrot.lane.b32.xlu0 %v795, 8
        %v801 = vpop.permute.xlu0 %800
        %804 = vst.msk [vmem:[#allocation2 + $0x38] sm:$0xff] %vm390, %v799
        %805 = vst.msk [vmem:[#allocation2 + $0x40] sm:$0x3f] %vm392, %v801
        %v806 = vld [vmem:[%s355 + $0x50] sm:$0xff]
        %v807 = vld [vmem:[%s355 + $0x58] sm:$0x3f]
        %810 = vrot.lane.b32.xlu0 %v806, 12
        %v811 = vpop.permute.xlu0 %810
        %812 = vrot.lane.b32.xlu0 %v807, 12
        %v813 = vpop.permute.xlu0 %812
        %816 = vst.msk [vmem:[#allocation2 + $0x38] sm:$0xff] %vm404, %v811
        %817 = vst.msk [vmem:[#allocation2 + $0x40] sm:$0x3f] %vm406, %v813
        %v818 = vld [vmem:[%s355 + $0x51] sm:$0xff]
        %v819 = vld [vmem:[%s355 + $0x59] sm:$0x3f]
        %822 = vrot.lane.b32.xlu0 %v818, 16
        %v823 = vpop.permute.xlu0 %822
        %824 = vrot.lane.b32.xlu0 %v819, 16
        %v825 = vpop.permute.xlu0 %824
        %828 = vst.msk [vmem:[#allocation2 + $0x38] sm:$0xff] %vm418, %v823
        %829 = vst.msk [vmem:[#allocation2 + $0x40] sm:$0x3f] %vm420, %v825
        %v830 = vld [vmem:[%s355 + $0x52] sm:$0xff]
        %v831 = vld [vmem:[%s355 + $0x5a] sm:$0x3f]
        %834 = vrot.lane.b32.xlu0 %v830, 20
        %v835 = vpop.permute.xlu0 %834
        %836 = vrot.lane.b32.xlu0 %v831, 20
        %v837 = vpop.permute.xlu0 %836
        %840 = vst.msk [vmem:[#allocation2 + $0x38] sm:$0xff] %vm432, %v835
        %841 = vst.msk [vmem:[#allocation2 + $0x40] sm:$0x3f] %vm434, %v837
        %v842 = vld [vmem:[%s355 + $0x60] sm:$0xff]
        %v843 = vld [vmem:[%s355 + $0x68] sm:$0x3f]
        %846 = vrot.lane.b32.xlu0 %v842, 24
        %v847 = vpop.permute.xlu0 %846
        %848 = vrot.lane.b32.xlu0 %v843, 24
        %v849 = vpop.permute.xlu0 %848
        %852 = vst.msk [vmem:[#allocation2 + $0x38] sm:$0xff] %vm446, %v847
        %853 = vst.msk [vmem:[#allocation2 + $0x40] sm:$0x3f] %vm448, %v849
        %v854 = vld [vmem:[%s355 + $0x61] sm:$0xff]
        %v855 = vld [vmem:[%s355 + $0x69] sm:$0x3f]
        %858 = vrot.lane.b32.xlu0 %v854, 28
        %v859 = vpop.permute.xlu0 %858
        %860 = vrot.lane.b32.xlu0 %v855, 28
        %v861 = vpop.permute.xlu0 %860
        %864 = vst.msk [vmem:[#allocation2 + $0x38] sm:$0xff] %vm460, %v859
        %865 = vst.msk [vmem:[#allocation2 + $0x40] sm:$0x3f] %vm462, %v861
        %v866 = vld [vmem:[%s355 + $0x62] sm:$0xff]
        %v867 = vld [vmem:[%s355 + $0x6a] sm:$0x3f]
        %870 = vrot.lane.b32.xlu0 %v866, 32
        %v871 = vpop.permute.xlu0 %870
        %872 = vrot.lane.b32.xlu0 %v867, 32
        %v873 = vpop.permute.xlu0 %872
        %876 = vst.msk [vmem:[#allocation2 + $0x38] sm:$0xff] %vm474, %v871
        %877 = vst.msk [vmem:[#allocation2 + $0x40] sm:$0x3f] %vm476, %v873
        %v878 = vld [vmem:[%s355 + $0x50] sm:$0xff]
        %v879 = vld [vmem:[%s355 + $0x58] sm:$0x3f]
        %880 = vst.msk [vmem:[#allocation2 + $0x46] sm:$0xff] %vm362, %v878
        %881 = vst.msk [vmem:[#allocation2 + $0x4e] sm:$0x3f] %vm364, %v879
        %v882 = vld [vmem:[%s355 + $0x51] sm:$0xff]
        %v883 = vld [vmem:[%s355 + $0x59] sm:$0x3f]
        %886 = vrot.lane.b32.xlu0 %v882, 4
        %v887 = vpop.permute.xlu0 %886
        %888 = vrot.lane.b32.xlu0 %v883, 4
        %v889 = vpop.permute.xlu0 %888
        %892 = vst.msk [vmem:[#allocation2 + $0x46] sm:$0xff] %vm376, %v887
        %893 = vst.msk [vmem:[#allocation2 + $0x4e] sm:$0x3f] %vm378, %v889
        %v894 = vld [vmem:[%s355 + $0x52] sm:$0xff]
        %v895 = vld [vmem:[%s355 + $0x5a] sm:$0x3f]
        %898 = vrot.lane.b32.xlu0 %v894, 8
        %v899 = vpop.permute.xlu0 %898
        %900 = vrot.lane.b32.xlu0 %v895, 8
        %v901 = vpop.permute.xlu0 %900
        %904 = vst.msk [vmem:[#allocation2 + $0x46] sm:$0xff] %vm390, %v899
        %905 = vst.msk [vmem:[#allocation2 + $0x4e] sm:$0x3f] %vm392, %v901
        %v906 = vld [vmem:[%s355 + $0x60] sm:$0xff]
        %v907 = vld [vmem:[%s355 + $0x68] sm:$0x3f]
        %910 = vrot.lane.b32.xlu0 %v906, 12
        %v911 = vpop.permute.xlu0 %910
        %912 = vrot.lane.b32.xlu0 %v907, 12
        %v913 = vpop.permute.xlu0 %912
        %916 = vst.msk [vmem:[#allocation2 + $0x46] sm:$0xff] %vm404, %v911
        %917 = vst.msk [vmem:[#allocation2 + $0x4e] sm:$0x3f] %vm406, %v913
        %v918 = vld [vmem:[%s355 + $0x61] sm:$0xff]
        %v919 = vld [vmem:[%s355 + $0x69] sm:$0x3f]
        %922 = vrot.lane.b32.xlu0 %v918, 16
        %v923 = vpop.permute.xlu0 %922
        %924 = vrot.lane.b32.xlu0 %v919, 16
        %v925 = vpop.permute.xlu0 %924
        %928 = vst.msk [vmem:[#allocation2 + $0x46] sm:$0xff] %vm418, %v923
        %929 = vst.msk [vmem:[#allocation2 + $0x4e] sm:$0x3f] %vm420, %v925
        %v930 = vld [vmem:[%s355 + $0x62] sm:$0xff]
        %v931 = vld [vmem:[%s355 + $0x6a] sm:$0x3f]
        %934 = vrot.lane.b32.xlu0 %v930, 20
        %v935 = vpop.permute.xlu0 %934
        %936 = vrot.lane.b32.xlu0 %v931, 20
        %v937 = vpop.permute.xlu0 %936
        %940 = vst.msk [vmem:[#allocation2 + $0x46] sm:$0xff] %vm432, %v935
        %941 = vst.msk [vmem:[#allocation2 + $0x4e] sm:$0x3f] %vm434, %v937
        %v942 = vld [vmem:[%s355 + $0x70] sm:$0xff]
        %v943 = vld [vmem:[%s355 + $0x78] sm:$0x3f]
        %946 = vrot.lane.b32.xlu0 %v942, 24
        %v947 = vpop.permute.xlu0 %946
        %948 = vrot.lane.b32.xlu0 %v943, 24
        %v949 = vpop.permute.xlu0 %948
        %952 = vst.msk [vmem:[#allocation2 + $0x46] sm:$0xff] %vm446, %v947
        %953 = vst.msk [vmem:[#allocation2 + $0x4e] sm:$0x3f] %vm448, %v949
        %v954 = vld [vmem:[%s355 + $0x71] sm:$0xff]
        %v955 = vld [vmem:[%s355 + $0x79] sm:$0x3f]
        %958 = vrot.lane.b32.xlu0 %v954, 28
        %v959 = vpop.permute.xlu0 %958
        %960 = vrot.lane.b32.xlu0 %v955, 28
        %v961 = vpop.permute.xlu0 %960
        %964 = vst.msk [vmem:[#allocation2 + $0x46] sm:$0xff] %vm460, %v959
        %965 = vst.msk [vmem:[#allocation2 + $0x4e] sm:$0x3f] %vm462, %v961
        %v966 = vld [vmem:[%s355 + $0x72] sm:$0xff]
        %v967 = vld [vmem:[%s355 + $0x7a] sm:$0x3f]
        %970 = vrot.lane.b32.xlu0 %v966, 32
        %v971 = vpop.permute.xlu0 %970
        %972 = vrot.lane.b32.xlu0 %v967, 32
        %v973 = vpop.permute.xlu0 %972
        %976 = vst.msk [vmem:[#allocation2 + $0x46] sm:$0xff] %vm474, %v971
        %977 = vst.msk [vmem:[#allocation2 + $0x4e] sm:$0x3f] %vm476, %v973
        %v978 = vld [vmem:[%s355 + $0x60] sm:$0xff]
        %v979 = vld [vmem:[%s355 + $0x68] sm:$0x3f]
        %980 = vst.msk [vmem:[#allocation2 + $0x54] sm:$0xff] %vm362, %v978
        %981 = vst.msk [vmem:[#allocation2 + $0x5c] sm:$0x3f] %vm364, %v979
        %v982 = vld [vmem:[%s355 + $0x61] sm:$0xff]
        %v983 = vld [vmem:[%s355 + $0x69] sm:$0x3f]
        %986 = vrot.lane.b32.xlu0 %v982, 4
        %v987 = vpop.permute.xlu0 %986
        %988 = vrot.lane.b32.xlu0 %v983, 4
        %v989 = vpop.permute.xlu0 %988
        %992 = vst.msk [vmem:[#allocation2 + $0x54] sm:$0xff] %vm376, %v987
        %993 = vst.msk [vmem:[#allocation2 + $0x5c] sm:$0x3f] %vm378, %v989
        %v994 = vld [vmem:[%s355 + $0x62] sm:$0xff]
        %v995 = vld [vmem:[%s355 + $0x6a] sm:$0x3f]
        %998 = vrot.lane.b32.xlu0 %v994, 8
        %v999 = vpop.permute.xlu0 %998
        %1000 = vrot.lane.b32.xlu0 %v995, 8
        %v1001 = vpop.permute.xlu0 %1000
        %1004 = vst.msk [vmem:[#allocation2 + $0x54] sm:$0xff] %vm390, %v999
        %1005 = vst.msk [vmem:[#allocation2 + $0x5c] sm:$0x3f] %vm392, %v1001
        %v1006 = vld [vmem:[%s355 + $0x70] sm:$0xff]
        %v1007 = vld [vmem:[%s355 + $0x78] sm:$0x3f]
        %1010 = vrot.lane.b32.xlu0 %v1006, 12
        %v1011 = vpop.permute.xlu0 %1010
        %1012 = vrot.lane.b32.xlu0 %v1007, 12
        %v1013 = vpop.permute.xlu0 %1012
        %1016 = vst.msk [vmem:[#allocation2 + $0x54] sm:$0xff] %vm404, %v1011
        %1017 = vst.msk [vmem:[#allocation2 + $0x5c] sm:$0x3f] %vm406, %v1013
        %v1018 = vld [vmem:[%s355 + $0x71] sm:$0xff]
        %v1019 = vld [vmem:[%s355 + $0x79] sm:$0x3f]
        %1022 = vrot.lane.b32.xlu0 %v1018, 16
        %v1023 = vpop.permute.xlu0 %1022
        %1024 = vrot.lane.b32.xlu0 %v1019, 16
        %v1025 = vpop.permute.xlu0 %1024
        %1028 = vst.msk [vmem:[#allocation2 + $0x54] sm:$0xff] %vm418, %v1023
        %1029 = vst.msk [vmem:[#allocation2 + $0x5c] sm:$0x3f] %vm420, %v1025
        %v1030 = vld [vmem:[%s355 + $0x72] sm:$0xff]
        %v1031 = vld [vmem:[%s355 + $0x7a] sm:$0x3f]
        %1034 = vrot.lane.b32.xlu0 %v1030, 20
        %v1035 = vpop.permute.xlu0 %1034
        %1036 = vrot.lane.b32.xlu0 %v1031, 20
        %v1037 = vpop.permute.xlu0 %1036
        %1040 = vst.msk [vmem:[#allocation2 + $0x54] sm:$0xff] %vm432, %v1035
        %1041 = vst.msk [vmem:[#allocation2 + $0x5c] sm:$0x3f] %vm434, %v1037
        %v1042 = vld [vmem:[%s355 + $0x80] sm:$0xff]
        %v1043 = vld [vmem:[%s355 + $0x88] sm:$0x3f]
        %1046 = vrot.lane.b32.xlu0 %v1042, 24
        %v1047 = vpop.permute.xlu0 %1046
        %1048 = vrot.lane.b32.xlu0 %v1043, 24
        %v1049 = vpop.permute.xlu0 %1048
        %1052 = vst.msk [vmem:[#allocation2 + $0x54] sm:$0xff] %vm446, %v1047
        %1053 = vst.msk [vmem:[#allocation2 + $0x5c] sm:$0x3f] %vm448, %v1049
        %v1054 = vld [vmem:[%s355 + $0x81] sm:$0xff]
        %v1055 = vld [vmem:[%s355 + $0x89] sm:$0x3f]
        %1058 = vrot.lane.b32.xlu0 %v1054, 28
        %v1059 = vpop.permute.xlu0 %1058
        %1060 = vrot.lane.b32.xlu0 %v1055, 28
        %v1061 = vpop.permute.xlu0 %1060
        %1064 = vst.msk [vmem:[#allocation2 + $0x54] sm:$0xff] %vm460, %v1059
        %1065 = vst.msk [vmem:[#allocation2 + $0x5c] sm:$0x3f] %vm462, %v1061
        %v1066 = vld [vmem:[%s355 + $0x82] sm:$0xff]
        %v1067 = vld [vmem:[%s355 + $0x8a] sm:$0x3f]
        %1070 = vrot.lane.b32.xlu0 %v1066, 32
        %v1071 = vpop.permute.xlu0 %1070
        %1072 = vrot.lane.b32.xlu0 %v1067, 32
        %v1073 = vpop.permute.xlu0 %1072
        %1076 = vst.msk [vmem:[#allocation2 + $0x54] sm:$0xff] %vm474, %v1071
        %1077 = vst.msk [vmem:[#allocation2 + $0x5c] sm:$0x3f] %vm476, %v1073
        %v1078 = vld [vmem:[%s355 + $0x70] sm:$0xff]
        %v1079 = vld [vmem:[%s355 + $0x78] sm:$0x3f]
        %1080 = vst.msk [vmem:[#allocation2 + $0x62] sm:$0xff] %vm362, %v1078
        %1081 = vst.msk [vmem:[#allocation2 + $0x6a] sm:$0x3f] %vm364, %v1079
        %v1082 = vld [vmem:[%s355 + $0x71] sm:$0xff]
        %v1083 = vld [vmem:[%s355 + $0x79] sm:$0x3f]
        %1086 = vrot.lane.b32.xlu0 %v1082, 4
        %v1087 = vpop.permute.xlu0 %1086
        %1088 = vrot.lane.b32.xlu0 %v1083, 4
        %v1089 = vpop.permute.xlu0 %1088
        %1092 = vst.msk [vmem:[#allocation2 + $0x62] sm:$0xff] %vm376, %v1087
        %1093 = vst.msk [vmem:[#allocation2 + $0x6a] sm:$0x3f] %vm378, %v1089
        %v1094 = vld [vmem:[%s355 + $0x72] sm:$0xff]
        %v1095 = vld [vmem:[%s355 + $0x7a] sm:$0x3f]
        %1098 = vrot.lane.b32.xlu0 %v1094, 8
        %v1099 = vpop.permute.xlu0 %1098
        %1100 = vrot.lane.b32.xlu0 %v1095, 8
        %v1101 = vpop.permute.xlu0 %1100
        %1104 = vst.msk [vmem:[#allocation2 + $0x62] sm:$0xff] %vm390, %v1099
        %1105 = vst.msk [vmem:[#allocation2 + $0x6a] sm:$0x3f] %vm392, %v1101
        %v1106 = vld [vmem:[%s355 + $0x80] sm:$0xff]
        %v1107 = vld [vmem:[%s355 + $0x88] sm:$0x3f]
        %1110 = vrot.lane.b32.xlu0 %v1106, 12
        %v1111 = vpop.permute.xlu0 %1110
        %1112 = vrot.lane.b32.xlu0 %v1107, 12
        %v1113 = vpop.permute.xlu0 %1112
        %1116 = vst.msk [vmem:[#allocation2 + $0x62] sm:$0xff] %vm404, %v1111
        %1117 = vst.msk [vmem:[#allocation2 + $0x6a] sm:$0x3f] %vm406, %v1113
        %v1118 = vld [vmem:[%s355 + $0x81] sm:$0xff]
        %v1119 = vld [vmem:[%s355 + $0x89] sm:$0x3f]
        %1122 = vrot.lane.b32.xlu0 %v1118, 16
        %v1123 = vpop.permute.xlu0 %1122
        %1124 = vrot.lane.b32.xlu0 %v1119, 16
        %v1125 = vpop.permute.xlu0 %1124
        %1128 = vst.msk [vmem:[#allocation2 + $0x62] sm:$0xff] %vm418, %v1123
        %1129 = vst.msk [vmem:[#allocation2 + $0x6a] sm:$0x3f] %vm420, %v1125
        %v1130 = vld [vmem:[%s355 + $0x82] sm:$0xff]
        %v1131 = vld [vmem:[%s355 + $0x8a] sm:$0x3f]
        %1134 = vrot.lane.b32.xlu0 %v1130, 20
        %v1135 = vpop.permute.xlu0 %1134
        %1136 = vrot.lane.b32.xlu0 %v1131, 20
        %v1137 = vpop.permute.xlu0 %1136
        %1140 = vst.msk [vmem:[#allocation2 + $0x62] sm:$0xff] %vm432, %v1135
        %1141 = vst.msk [vmem:[#allocation2 + $0x6a] sm:$0x3f] %vm434, %v1137
        %v1142 = vld [vmem:[%s355 + $0x90] sm:$0xff]
        %v1143 = vld [vmem:[%s355 + $0x98] sm:$0x3f]
        %1146 = vrot.lane.b32.xlu0 %v1142, 24
        %v1147 = vpop.permute.xlu0 %1146
        %1148 = vrot.lane.b32.xlu0 %v1143, 24
        %v1149 = vpop.permute.xlu0 %1148
        %1152 = vst.msk [vmem:[#allocation2 + $0x62] sm:$0xff] %vm446, %v1147
        %1153 = vst.msk [vmem:[#allocation2 + $0x6a] sm:$0x3f] %vm448, %v1149
        %v1154 = vld [vmem:[%s355 + $0x91] sm:$0xff]
        %v1155 = vld [vmem:[%s355 + $0x99] sm:$0x3f]
        %1158 = vrot.lane.b32.xlu0 %v1154, 28
        %v1159 = vpop.permute.xlu0 %1158
        %1160 = vrot.lane.b32.xlu0 %v1155, 28
        %v1161 = vpop.permute.xlu0 %1160
        %1164 = vst.msk [vmem:[#allocation2 + $0x62] sm:$0xff] %vm460, %v1159
        %1165 = vst.msk [vmem:[#allocation2 + $0x6a] sm:$0x3f] %vm462, %v1161
        %v1166 = vld [vmem:[%s355 + $0x92] sm:$0xff]
        %v1167 = vld [vmem:[%s355 + $0x9a] sm:$0x3f]
        %1170 = vrot.lane.b32.xlu0 %v1166, 32
        %v1171 = vpop.permute.xlu0 %1170
        %1172 = vrot.lane.b32.xlu0 %v1167, 32
        %v1173 = vpop.permute.xlu0 %1172
        %1176 = vst.msk [vmem:[#allocation2 + $0x62] sm:$0xff] %vm474, %v1171
        %1177 = vst.msk [vmem:[#allocation2 + $0x6a] sm:$0x3f] %vm476, %v1173
        %v1178 = vld [vmem:[%s355 + $0x80] sm:$0xff]
        %v1179 = vld [vmem:[%s355 + $0x88] sm:$0x3f]
        %1180 = vst.msk [vmem:[#allocation2 + $0x70] sm:$0xff] %vm362, %v1178
        %1181 = vst.msk [vmem:[#allocation2 + $0x78] sm:$0x3f] %vm364, %v1179
        %v1182 = vld [vmem:[%s355 + $0x81] sm:$0xff]
        %v1183 = vld [vmem:[%s355 + $0x89] sm:$0x3f]
        %1186 = vrot.lane.b32.xlu0 %v1182, 4
        %v1187 = vpop.permute.xlu0 %1186
        %1188 = vrot.lane.b32.xlu0 %v1183, 4
        %v1189 = vpop.permute.xlu0 %1188
        %1192 = vst.msk [vmem:[#allocation2 + $0x70] sm:$0xff] %vm376, %v1187
        %1193 = vst.msk [vmem:[#allocation2 + $0x78] sm:$0x3f] %vm378, %v1189
        %v1194 = vld [vmem:[%s355 + $0x82] sm:$0xff]
        %v1195 = vld [vmem:[%s355 + $0x8a] sm:$0x3f]
        %1198 = vrot.lane.b32.xlu0 %v1194, 8
        %v1199 = vpop.permute.xlu0 %1198
        %1200 = vrot.lane.b32.xlu0 %v1195, 8
        %v1201 = vpop.permute.xlu0 %1200
        %1204 = vst.msk [vmem:[#allocation2 + $0x70] sm:$0xff] %vm390, %v1199
        %1205 = vst.msk [vmem:[#allocation2 + $0x78] sm:$0x3f] %vm392, %v1201
        %v1206 = vld [vmem:[%s355 + $0x90] sm:$0xff]
        %v1207 = vld [vmem:[%s355 + $0x98] sm:$0x3f]
        %1210 = vrot.lane.b32.xlu0 %v1206, 12
        %v1211 = vpop.permute.xlu0 %1210
        %1212 = vrot.lane.b32.xlu0 %v1207, 12
        %v1213 = vpop.permute.xlu0 %1212
        %1216 = vst.msk [vmem:[#allocation2 + $0x70] sm:$0xff] %vm404, %v1211
        %1217 = vst.msk [vmem:[#allocation2 + $0x78] sm:$0x3f] %vm406, %v1213
        %v1218 = vld [vmem:[%s355 + $0x91] sm:$0xff]
        %v1219 = vld [vmem:[%s355 + $0x99] sm:$0x3f]
        %1222 = vrot.lane.b32.xlu0 %v1218, 16
        %v1223 = vpop.permute.xlu0 %1222
        %1224 = vrot.lane.b32.xlu0 %v1219, 16
        %v1225 = vpop.permute.xlu0 %1224
        %1228 = vst.msk [vmem:[#allocation2 + $0x70] sm:$0xff] %vm418, %v1223
        %1229 = vst.msk [vmem:[#allocation2 + $0x78] sm:$0x3f] %vm420, %v1225
        %v1230 = vld [vmem:[%s355 + $0x92] sm:$0xff]
        %v1231 = vld [vmem:[%s355 + $0x9a] sm:$0x3f]
        %1234 = vrot.lane.b32.xlu0 %v1230, 20
        %v1235 = vpop.permute.xlu0 %1234
        %1236 = vrot.lane.b32.xlu0 %v1231, 20
        %v1237 = vpop.permute.xlu0 %1236
        %1240 = vst.msk [vmem:[#allocation2 + $0x70] sm:$0xff] %vm432, %v1235
        %1241 = vst.msk [vmem:[#allocation2 + $0x78] sm:$0x3f] %vm434, %v1237
        %v1242 = vld [vmem:[%s355 + $0xa0] sm:$0xff]
        %v1243 = vld [vmem:[%s355 + $0xa8] sm:$0x3f]
        %1246 = vrot.lane.b32.xlu0 %v1242, 24
        %v1247 = vpop.permute.xlu0 %1246
        %1248 = vrot.lane.b32.xlu0 %v1243, 24
        %v1249 = vpop.permute.xlu0 %1248
        %1252 = vst.msk [vmem:[#allocation2 + $0x70] sm:$0xff] %vm446, %v1247
        %1253 = vst.msk [vmem:[#allocation2 + $0x78] sm:$0x3f] %vm448, %v1249
        %v1254 = vld [vmem:[%s355 + $0xa1] sm:$0xff]
        %v1255 = vld [vmem:[%s355 + $0xa9] sm:$0x3f]
        %1258 = vrot.lane.b32.xlu0 %v1254, 28
        %v1259 = vpop.permute.xlu0 %1258
        %1260 = vrot.lane.b32.xlu0 %v1255, 28
        %v1261 = vpop.permute.xlu0 %1260
        %1264 = vst.msk [vmem:[#allocation2 + $0x70] sm:$0xff] %vm460, %v1259
        %1265 = vst.msk [vmem:[#allocation2 + $0x78] sm:$0x3f] %vm462, %v1261
        %v1266 = vld [vmem:[%s355 + $0xa2] sm:$0xff]
        %v1267 = vld [vmem:[%s355 + $0xaa] sm:$0x3f]
        %1270 = vrot.lane.b32.xlu0 %v1266, 32
        %v1271 = vpop.permute.xlu0 %1270
        %1272 = vrot.lane.b32.xlu0 %v1267, 32
        %v1273 = vpop.permute.xlu0 %1272
        %1276 = vst.msk [vmem:[#allocation2 + $0x70] sm:$0xff] %vm474, %v1271
        %1277 = vst.msk [vmem:[#allocation2 + $0x78] sm:$0x3f] %vm476, %v1273
        %v1278 = vld [vmem:[%s355 + $0x90] sm:$0xff]
        %v1279 = vld [vmem:[%s355 + $0x98] sm:$0x3f]
        %1280 = vst.msk [vmem:[#allocation2 + $0x7e] sm:$0xff] %vm362, %v1278
        %1281 = vst.msk [vmem:[#allocation2 + $0x86] sm:$0x3f] %vm364, %v1279
        %v1282 = vld [vmem:[%s355 + $0x91] sm:$0xff]
        %v1283 = vld [vmem:[%s355 + $0x99] sm:$0x3f]
        %1286 = vrot.lane.b32.xlu0 %v1282, 4
        %v1287 = vpop.permute.xlu0 %1286
        %1288 = vrot.lane.b32.xlu0 %v1283, 4
        %v1289 = vpop.permute.xlu0 %1288
        %1292 = vst.msk [vmem:[#allocation2 + $0x7e] sm:$0xff] %vm376, %v1287
        %1293 = vst.msk [vmem:[#allocation2 + $0x86] sm:$0x3f] %vm378, %v1289
        %v1294 = vld [vmem:[%s355 + $0x92] sm:$0xff]
        %v1295 = vld [vmem:[%s355 + $0x9a] sm:$0x3f]
        %1298 = vrot.lane.b32.xlu0 %v1294, 8
        %v1299 = vpop.permute.xlu0 %1298
        %1300 = vrot.lane.b32.xlu0 %v1295, 8
        %v1301 = vpop.permute.xlu0 %1300
        %1304 = vst.msk [vmem:[#allocation2 + $0x7e] sm:$0xff] %vm390, %v1299
        %1305 = vst.msk [vmem:[#allocation2 + $0x86] sm:$0x3f] %vm392, %v1301
        %v1306 = vld [vmem:[%s355 + $0xa0] sm:$0xff]
        %v1307 = vld [vmem:[%s355 + $0xa8] sm:$0x3f]
        %1310 = vrot.lane.b32.xlu0 %v1306, 12
        %v1311 = vpop.permute.xlu0 %1310
        %1312 = vrot.lane.b32.xlu0 %v1307, 12
        %v1313 = vpop.permute.xlu0 %1312
        %1316 = vst.msk [vmem:[#allocation2 + $0x7e] sm:$0xff] %vm404, %v1311
        %1317 = vst.msk [vmem:[#allocation2 + $0x86] sm:$0x3f] %vm406, %v1313
        %v1318 = vld [vmem:[%s355 + $0xa1] sm:$0xff]
        %v1319 = vld [vmem:[%s355 + $0xa9] sm:$0x3f]
        %1322 = vrot.lane.b32.xlu0 %v1318, 16
        %v1323 = vpop.permute.xlu0 %1322
        %1324 = vrot.lane.b32.xlu0 %v1319, 16
        %v1325 = vpop.permute.xlu0 %1324
        %1328 = vst.msk [vmem:[#allocation2 + $0x7e] sm:$0xff] %vm418, %v1323
        %1329 = vst.msk [vmem:[#allocation2 + $0x86] sm:$0x3f] %vm420, %v1325
        %v1330 = vld [vmem:[%s355 + $0xa2] sm:$0xff]
        %v1331 = vld [vmem:[%s355 + $0xaa] sm:$0x3f]
        %1334 = vrot.lane.b32.xlu0 %v1330, 20
        %v1335 = vpop.permute.xlu0 %1334
        %1336 = vrot.lane.b32.xlu0 %v1331, 20
        %v1337 = vpop.permute.xlu0 %1336
        %1340 = vst.msk [vmem:[#allocation2 + $0x7e] sm:$0xff] %vm432, %v1335
        %1341 = vst.msk [vmem:[#allocation2 + $0x86] sm:$0x3f] %vm434, %v1337
        %v1342 = vld [vmem:[%s355 + $0xb0] sm:$0xff]
        %v1343 = vld [vmem:[%s355 + $0xb8] sm:$0x3f]
        %1346 = vrot.lane.b32.xlu0 %v1342, 24
        %v1347 = vpop.permute.xlu0 %1346
        %1348 = vrot.lane.b32.xlu0 %v1343, 24
        %v1349 = vpop.permute.xlu0 %1348
        %1352 = vst.msk [vmem:[#allocation2 + $0x7e] sm:$0xff] %vm446, %v1347
        %1353 = vst.msk [vmem:[#allocation2 + $0x86] sm:$0x3f] %vm448, %v1349
        %v1354 = vld [vmem:[%s355 + $0xb1] sm:$0xff]
        %v1355 = vld [vmem:[%s355 + $0xb9] sm:$0x3f]
        %1358 = vrot.lane.b32.xlu0 %v1354, 28
        %v1359 = vpop.permute.xlu0 %1358
        %1360 = vrot.lane.b32.xlu0 %v1355, 28
        %v1361 = vpop.permute.xlu0 %1360
        %1364 = vst.msk [vmem:[#allocation2 + $0x7e] sm:$0xff] %vm460, %v1359
        %1365 = vst.msk [vmem:[#allocation2 + $0x86] sm:$0x3f] %vm462, %v1361
        %v1366 = vld [vmem:[%s355 + $0xb2] sm:$0xff]
        %v1367 = vld [vmem:[%s355 + $0xba] sm:$0x3f]
        %1370 = vrot.lane.b32.xlu0 %v1366, 32
        %v1371 = vpop.permute.xlu0 %1370
        %1372 = vrot.lane.b32.xlu0 %v1367, 32
        %v1373 = vpop.permute.xlu0 %1372
        %1376 = vst.msk [vmem:[#allocation2 + $0x7e] sm:$0xff] %vm474, %v1371
        %1377 = vst.msk [vmem:[#allocation2 + $0x86] sm:$0x3f] %vm476, %v1373
        %v1378 = vld [vmem:[%s355 + $0xa0] sm:$0xff]
        %v1379 = vld [vmem:[%s355 + $0xa8] sm:$0x3f]
        %1380 = vst.msk [vmem:[#allocation2 + $0x8c] sm:$0xff] %vm362, %v1378
        %1381 = vst.msk [vmem:[#allocation2 + $0x94] sm:$0x3f] %vm364, %v1379
        %v1382 = vld [vmem:[%s355 + $0xa1] sm:$0xff]
        %v1383 = vld [vmem:[%s355 + $0xa9] sm:$0x3f]
        %1386 = vrot.lane.b32.xlu0 %v1382, 4
        %v1387 = vpop.permute.xlu0 %1386
        %1388 = vrot.lane.b32.xlu0 %v1383, 4
        %v1389 = vpop.permute.xlu0 %1388
        %1392 = vst.msk [vmem:[#allocation2 + $0x8c] sm:$0xff] %vm376, %v1387
        %1393 = vst.msk [vmem:[#allocation2 + $0x94] sm:$0x3f] %vm378, %v1389
        %v1394 = vld [vmem:[%s355 + $0xa2] sm:$0xff]
        %v1395 = vld [vmem:[%s355 + $0xaa] sm:$0x3f]
        %1398 = vrot.lane.b32.xlu0 %v1394, 8
        %v1399 = vpop.permute.xlu0 %1398
        %1400 = vrot.lane.b32.xlu0 %v1395, 8
        %v1401 = vpop.permute.xlu0 %1400
        %1404 = vst.msk [vmem:[#allocation2 + $0x8c] sm:$0xff] %vm390, %v1399
        %1405 = vst.msk [vmem:[#allocation2 + $0x94] sm:$0x3f] %vm392, %v1401
        %v1406 = vld [vmem:[%s355 + $0xb0] sm:$0xff]
        %v1407 = vld [vmem:[%s355 + $0xb8] sm:$0x3f]
        %1410 = vrot.lane.b32.xlu0 %v1406, 12
        %v1411 = vpop.permute.xlu0 %1410
        %1412 = vrot.lane.b32.xlu0 %v1407, 12
        %v1413 = vpop.permute.xlu0 %1412
        %1416 = vst.msk [vmem:[#allocation2 + $0x8c] sm:$0xff] %vm404, %v1411
        %1417 = vst.msk [vmem:[#allocation2 + $0x94] sm:$0x3f] %vm406, %v1413
        %v1418 = vld [vmem:[%s355 + $0xb1] sm:$0xff]
        %v1419 = vld [vmem:[%s355 + $0xb9] sm:$0x3f]
        %1422 = vrot.lane.b32.xlu0 %v1418, 16
        %v1423 = vpop.permute.xlu0 %1422
        %1424 = vrot.lane.b32.xlu0 %v1419, 16
        %v1425 = vpop.permute.xlu0 %1424
        %1428 = vst.msk [vmem:[#allocation2 + $0x8c] sm:$0xff] %vm418, %v1423
        %1429 = vst.msk [vmem:[#allocation2 + $0x94] sm:$0x3f] %vm420, %v1425
        %v1430 = vld [vmem:[%s355 + $0xb2] sm:$0xff]
        %v1431 = vld [vmem:[%s355 + $0xba] sm:$0x3f]
        %1434 = vrot.lane.b32.xlu0 %v1430, 20
        %v1435 = vpop.permute.xlu0 %1434
        %1436 = vrot.lane.b32.xlu0 %v1431, 20
        %v1437 = vpop.permute.xlu0 %1436
        %1440 = vst.msk [vmem:[#allocation2 + $0x8c] sm:$0xff] %vm432, %v1435
        %1441 = vst.msk [vmem:[#allocation2 + $0x94] sm:$0x3f] %vm434, %v1437
        %v1442 = vld [vmem:[%s355 + $0xc0] sm:$0xff]
        %v1443 = vld [vmem:[%s355 + $0xc8] sm:$0x3f]
        %1446 = vrot.lane.b32.xlu0 %v1442, 24
        %v1447 = vpop.permute.xlu0 %1446
        %1448 = vrot.lane.b32.xlu0 %v1443, 24
        %v1449 = vpop.permute.xlu0 %1448
        %1452 = vst.msk [vmem:[#allocation2 + $0x8c] sm:$0xff] %vm446, %v1447
        %1453 = vst.msk [vmem:[#allocation2 + $0x94] sm:$0x3f] %vm448, %v1449
        %v1454 = vld [vmem:[%s355 + $0xc1] sm:$0xff]
        %v1455 = vld [vmem:[%s355 + $0xc9] sm:$0x3f]
        %1458 = vrot.lane.b32.xlu0 %v1454, 28
        %v1459 = vpop.permute.xlu0 %1458
        %1460 = vrot.lane.b32.xlu0 %v1455, 28
        %v1461 = vpop.permute.xlu0 %1460
        %1464 = vst.msk [vmem:[#allocation2 + $0x8c] sm:$0xff] %vm460, %v1459
        %1465 = vst.msk [vmem:[#allocation2 + $0x94] sm:$0x3f] %vm462, %v1461
        %v1466 = vld [vmem:[%s355 + $0xc2] sm:$0xff]
        %v1467 = vld [vmem:[%s355 + $0xca] sm:$0x3f]
        %1470 = vrot.lane.b32.xlu0 %v1466, 32
        %v1471 = vpop.permute.xlu0 %1470
        %1472 = vrot.lane.b32.xlu0 %v1467, 32
        %v1473 = vpop.permute.xlu0 %1472
        %1476 = vst.msk [vmem:[#allocation2 + $0x8c] sm:$0xff] %vm474, %v1471
        %1477 = vst.msk [vmem:[#allocation2 + $0x94] sm:$0x3f] %vm476, %v1473
        %v1478 = vld [vmem:[%s355 + $0xb0] sm:$0xff]
        %v1479 = vld [vmem:[%s355 + $0xb8] sm:$0x3f]
        %1480 = vst.msk [vmem:[#allocation2 + $0x9a] sm:$0xff] %vm362, %v1478
        %1481 = vst.msk [vmem:[#allocation2 + $0xa2] sm:$0x3f] %vm364, %v1479
        %v1482 = vld [vmem:[%s355 + $0xb1] sm:$0xff]
        %v1483 = vld [vmem:[%s355 + $0xb9] sm:$0x3f]
        %1486 = vrot.lane.b32.xlu0 %v1482, 4
        %v1487 = vpop.permute.xlu0 %1486
        %1488 = vrot.lane.b32.xlu0 %v1483, 4
        %v1489 = vpop.permute.xlu0 %1488
        %1492 = vst.msk [vmem:[#allocation2 + $0x9a] sm:$0xff] %vm376, %v1487
        %1493 = vst.msk [vmem:[#allocation2 + $0xa2] sm:$0x3f] %vm378, %v1489
        %v1494 = vld [vmem:[%s355 + $0xb2] sm:$0xff]
        %v1495 = vld [vmem:[%s355 + $0xba] sm:$0x3f]
        %1498 = vrot.lane.b32.xlu0 %v1494, 8
        %v1499 = vpop.permute.xlu0 %1498
        %1500 = vrot.lane.b32.xlu0 %v1495, 8
        %v1501 = vpop.permute.xlu0 %1500
        %1504 = vst.msk [vmem:[#allocation2 + $0x9a] sm:$0xff] %vm390, %v1499
        %1505 = vst.msk [vmem:[#allocation2 + $0xa2] sm:$0x3f] %vm392, %v1501
        %v1506 = vld [vmem:[%s355 + $0xc0] sm:$0xff]
        %v1507 = vld [vmem:[%s355 + $0xc8] sm:$0x3f]
        %1510 = vrot.lane.b32.xlu0 %v1506, 12
        %v1511 = vpop.permute.xlu0 %1510
        %1512 = vrot.lane.b32.xlu0 %v1507, 12
        %v1513 = vpop.permute.xlu0 %1512
        %1516 = vst.msk [vmem:[#allocation2 + $0x9a] sm:$0xff] %vm404, %v1511
        %1517 = vst.msk [vmem:[#allocation2 + $0xa2] sm:$0x3f] %vm406, %v1513
        %v1518 = vld [vmem:[%s355 + $0xc1] sm:$0xff]
        %v1519 = vld [vmem:[%s355 + $0xc9] sm:$0x3f]
        %1522 = vrot.lane.b32.xlu0 %v1518, 16
        %v1523 = vpop.permute.xlu0 %1522
        %1524 = vrot.lane.b32.xlu0 %v1519, 16
        %v1525 = vpop.permute.xlu0 %1524
        %1528 = vst.msk [vmem:[#allocation2 + $0x9a] sm:$0xff] %vm418, %v1523
        %1529 = vst.msk [vmem:[#allocation2 + $0xa2] sm:$0x3f] %vm420, %v1525
        %v1530 = vld [vmem:[%s355 + $0xc2] sm:$0xff]
        %v1531 = vld [vmem:[%s355 + $0xca] sm:$0x3f]
        %1534 = vrot.lane.b32.xlu0 %v1530, 20
        %v1535 = vpop.permute.xlu0 %1534
        %1536 = vrot.lane.b32.xlu0 %v1531, 20
        %v1537 = vpop.permute.xlu0 %1536
        %1540 = vst.msk [vmem:[#allocation2 + $0x9a] sm:$0xff] %vm432, %v1535
        %1541 = vst.msk [vmem:[#allocation2 + $0xa2] sm:$0x3f] %vm434, %v1537
        %v1542 = vld [vmem:[%s355 + $0xd0] sm:$0xff]
        %v1543 = vld [vmem:[%s355 + $0xd8] sm:$0x3f]
        %1546 = vrot.lane.b32.xlu0 %v1542, 24
        %v1547 = vpop.permute.xlu0 %1546
        %1548 = vrot.lane.b32.xlu0 %v1543, 24
        %v1549 = vpop.permute.xlu0 %1548
        %1552 = vst.msk [vmem:[#allocation2 + $0x9a] sm:$0xff] %vm446, %v1547
        %1553 = vst.msk [vmem:[#allocation2 + $0xa2] sm:$0x3f] %vm448, %v1549
        %v1554 = vld [vmem:[%s355 + $0xd1] sm:$0xff]
        %v1555 = vld [vmem:[%s355 + $0xd9] sm:$0x3f]
        %1558 = vrot.lane.b32.xlu0 %v1554, 28
        %v1559 = vpop.permute.xlu0 %1558
        %1560 = vrot.lane.b32.xlu0 %v1555, 28
        %v1561 = vpop.permute.xlu0 %1560
        %1564 = vst.msk [vmem:[#allocation2 + $0x9a] sm:$0xff] %vm460, %v1559
        %1565 = vst.msk [vmem:[#allocation2 + $0xa2] sm:$0x3f] %vm462, %v1561
        %v1566 = vld [vmem:[%s355 + $0xd2] sm:$0xff]
        %v1567 = vld [vmem:[%s355 + $0xda] sm:$0x3f]
        %1570 = vrot.lane.b32.xlu0 %v1566, 32
        %v1571 = vpop.permute.xlu0 %1570
        %1572 = vrot.lane.b32.xlu0 %v1567, 32
        %v1573 = vpop.permute.xlu0 %1572
        %1576 = vst.msk [vmem:[#allocation2 + $0x9a] sm:$0xff] %vm474, %v1571
        %1577 = vst.msk [vmem:[#allocation2 + $0xa2] sm:$0x3f] %vm476, %v1573
        %v1578 = vld [vmem:[%s355 + $0xc0] sm:$0xff]
        %v1579 = vld [vmem:[%s355 + $0xc8] sm:$0x3f]
        %1580 = vst.msk [vmem:[#allocation2 + $0xa8] sm:$0xff] %vm362, %v1578
        %1581 = vst.msk [vmem:[#allocation2 + $0xb0] sm:$0x3f] %vm364, %v1579
        %v1582 = vld [vmem:[%s355 + $0xc1] sm:$0xff]
        %v1583 = vld [vmem:[%s355 + $0xc9] sm:$0x3f]
        %1586 = vrot.lane.b32.xlu0 %v1582, 4
        %v1587 = vpop.permute.xlu0 %1586
        %1588 = vrot.lane.b32.xlu0 %v1583, 4
        %v1589 = vpop.permute.xlu0 %1588
        %1592 = vst.msk [vmem:[#allocation2 + $0xa8] sm:$0xff] %vm376, %v1587
        %1593 = vst.msk [vmem:[#allocation2 + $0xb0] sm:$0x3f] %vm378, %v1589
        %v1594 = vld [vmem:[%s355 + $0xc2] sm:$0xff]
        %v1595 = vld [vmem:[%s355 + $0xca] sm:$0x3f]
        %1598 = vrot.lane.b32.xlu0 %v1594, 8
        %v1599 = vpop.permute.xlu0 %1598
        %1600 = vrot.lane.b32.xlu0 %v1595, 8
        %v1601 = vpop.permute.xlu0 %1600
        %1604 = vst.msk [vmem:[#allocation2 + $0xa8] sm:$0xff] %vm390, %v1599
        %1605 = vst.msk [vmem:[#allocation2 + $0xb0] sm:$0x3f] %vm392, %v1601
        %v1606 = vld [vmem:[%s355 + $0xd0] sm:$0xff]
        %v1607 = vld [vmem:[%s355 + $0xd8] sm:$0x3f]
        %1610 = vrot.lane.b32.xlu0 %v1606, 12
        %v1611 = vpop.permute.xlu0 %1610
        %1612 = vrot.lane.b32.xlu0 %v1607, 12
        %v1613 = vpop.permute.xlu0 %1612
        %1616 = vst.msk [vmem:[#allocation2 + $0xa8] sm:$0xff] %vm404, %v1611
        %1617 = vst.msk [vmem:[#allocation2 + $0xb0] sm:$0x3f] %vm406, %v1613
        %v1618 = vld [vmem:[%s355 + $0xd1] sm:$0xff]
        %v1619 = vld [vmem:[%s355 + $0xd9] sm:$0x3f]
        %1622 = vrot.lane.b32.xlu0 %v1618, 16
        %v1623 = vpop.permute.xlu0 %1622
        %1624 = vrot.lane.b32.xlu0 %v1619, 16
        %v1625 = vpop.permute.xlu0 %1624
        %1628 = vst.msk [vmem:[#allocation2 + $0xa8] sm:$0xff] %vm418, %v1623
        %1629 = vst.msk [vmem:[#allocation2 + $0xb0] sm:$0x3f] %vm420, %v1625
        %v1630 = vld [vmem:[%s355 + $0xd2] sm:$0xff]
        %v1631 = vld [vmem:[%s355 + $0xda] sm:$0x3f]
        %1634 = vrot.lane.b32.xlu0 %v1630, 20
        %v1635 = vpop.permute.xlu0 %1634
        %1636 = vrot.lane.b32.xlu0 %v1631, 20
        %v1637 = vpop.permute.xlu0 %1636
        %1640 = vst.msk [vmem:[#allocation2 + $0xa8] sm:$0xff] %vm432, %v1635
        %1641 = vst.msk [vmem:[#allocation2 + $0xb0] sm:$0x3f] %vm434, %v1637
        %v1642 = vld [vmem:[%s355 + $0xe0] sm:$0xff]
        %v1643 = vld [vmem:[%s355 + $0xe8] sm:$0x3f]
        %1646 = vrot.lane.b32.xlu0 %v1642, 24
        %v1647 = vpop.permute.xlu0 %1646
        %1648 = vrot.lane.b32.xlu0 %v1643, 24
        %v1649 = vpop.permute.xlu0 %1648
        %1652 = vst.msk [vmem:[#allocation2 + $0xa8] sm:$0xff] %vm446, %v1647
        %1653 = vst.msk [vmem:[#allocation2 + $0xb0] sm:$0x3f] %vm448, %v1649
        %v1654 = vld [vmem:[%s355 + $0xe1] sm:$0xff]
        %v1655 = vld [vmem:[%s355 + $0xe9] sm:$0x3f]
        %1658 = vrot.lane.b32.xlu0 %v1654, 28
        %v1659 = vpop.permute.xlu0 %1658
        %1660 = vrot.lane.b32.xlu0 %v1655, 28
        %v1661 = vpop.permute.xlu0 %1660
        %1664 = vst.msk [vmem:[#allocation2 + $0xa8] sm:$0xff] %vm460, %v1659
        %1665 = vst.msk [vmem:[#allocation2 + $0xb0] sm:$0x3f] %vm462, %v1661
        %v1666 = vld [vmem:[%s355 + $0xe2] sm:$0xff]
        %v1667 = vld [vmem:[%s355 + $0xea] sm:$0x3f]
        %1670 = vrot.lane.b32.xlu0 %v1666, 32
        %v1671 = vpop.permute.xlu0 %1670
        %1672 = vrot.lane.b32.xlu0 %v1667, 32
        %v1673 = vpop.permute.xlu0 %1672
        %1676 = vst.msk [vmem:[#allocation2 + $0xa8] sm:$0xff] %vm474, %v1671
        %1677 = vst.msk [vmem:[#allocation2 + $0xb0] sm:$0x3f] %vm476, %v1673
        %v1678 = vld [vmem:[%s355 + $0xd0] sm:$0xff]
        %v1679 = vld [vmem:[%s355 + $0xd8] sm:$0x3f]
        %1680 = vst.msk [vmem:[#allocation2 + $0xb6] sm:$0xff] %vm362, %v1678
        %1681 = vst.msk [vmem:[#allocation2 + $0xbe] sm:$0x3f] %vm364, %v1679
        %v1682 = vld [vmem:[%s355 + $0xd1] sm:$0xff]
        %v1683 = vld [vmem:[%s355 + $0xd9] sm:$0x3f]
        %1686 = vrot.lane.b32.xlu0 %v1682, 4
        %v1687 = vpop.permute.xlu0 %1686
        %1688 = vrot.lane.b32.xlu0 %v1683, 4
        %v1689 = vpop.permute.xlu0 %1688
        %1692 = vst.msk [vmem:[#allocation2 + $0xb6] sm:$0xff] %vm376, %v1687
        %1693 = vst.msk [vmem:[#allocation2 + $0xbe] sm:$0x3f] %vm378, %v1689
        %v1694 = vld [vmem:[%s355 + $0xd2] sm:$0xff]
        %v1695 = vld [vmem:[%s355 + $0xda] sm:$0x3f]
        %1698 = vrot.lane.b32.xlu0 %v1694, 8
        %v1699 = vpop.permute.xlu0 %1698
        %1700 = vrot.lane.b32.xlu0 %v1695, 8
        %v1701 = vpop.permute.xlu0 %1700
        %1704 = vst.msk [vmem:[#allocation2 + $0xb6] sm:$0xff] %vm390, %v1699
        %1705 = vst.msk [vmem:[#allocation2 + $0xbe] sm:$0x3f] %vm392, %v1701
        %v1706 = vld [vmem:[%s355 + $0xe0] sm:$0xff]
        %v1707 = vld [vmem:[%s355 + $0xe8] sm:$0x3f]
        %1710 = vrot.lane.b32.xlu0 %v1706, 12
        %v1711 = vpop.permute.xlu0 %1710
        %1712 = vrot.lane.b32.xlu0 %v1707, 12
        %v1713 = vpop.permute.xlu0 %1712
        %1716 = vst.msk [vmem:[#allocation2 + $0xb6] sm:$0xff] %vm404, %v1711
        %1717 = vst.msk [vmem:[#allocation2 + $0xbe] sm:$0x3f] %vm406, %v1713
        %v1718 = vld [vmem:[%s355 + $0xe1] sm:$0xff]
        %v1719 = vld [vmem:[%s355 + $0xe9] sm:$0x3f]
        %1722 = vrot.lane.b32.xlu0 %v1718, 16
        %v1723 = vpop.permute.xlu0 %1722
        %1724 = vrot.lane.b32.xlu0 %v1719, 16
        %v1725 = vpop.permute.xlu0 %1724
        %1728 = vst.msk [vmem:[#allocation2 + $0xb6] sm:$0xff] %vm418, %v1723
        %1729 = vst.msk [vmem:[#allocation2 + $0xbe] sm:$0x3f] %vm420, %v1725
        %v1730 = vld [vmem:[%s355 + $0xe2] sm:$0xff]
        %v1731 = vld [vmem:[%s355 + $0xea] sm:$0x3f]
        %1734 = vrot.lane.b32.xlu0 %v1730, 20
        %v1735 = vpop.permute.xlu0 %1734
        %1736 = vrot.lane.b32.xlu0 %v1731, 20
        %v1737 = vpop.permute.xlu0 %1736
        %1740 = vst.msk [vmem:[#allocation2 + $0xb6] sm:$0xff] %vm432, %v1735
        %1741 = vst.msk [vmem:[#allocation2 + $0xbe] sm:$0x3f] %vm434, %v1737
        %v1742 = vld [vmem:[%s355 + $0xf0] sm:$0xff]
        %v1743 = vld [vmem:[%s355 + $0xf8] sm:$0x3f]
        %1746 = vrot.lane.b32.xlu0 %v1742, 24
        %v1747 = vpop.permute.xlu0 %1746
        %1748 = vrot.lane.b32.xlu0 %v1743, 24
        %v1749 = vpop.permute.xlu0 %1748
        %1752 = vst.msk [vmem:[#allocation2 + $0xb6] sm:$0xff] %vm446, %v1747
        %1753 = vst.msk [vmem:[#allocation2 + $0xbe] sm:$0x3f] %vm448, %v1749
        %v1754 = vld [vmem:[%s355 + $0xf1] sm:$0xff]
        %v1755 = vld [vmem:[%s355 + $0xf9] sm:$0x3f]
        %1758 = vrot.lane.b32.xlu0 %v1754, 28
        %v1759 = vpop.permute.xlu0 %1758
        %1760 = vrot.lane.b32.xlu0 %v1755, 28
        %v1761 = vpop.permute.xlu0 %1760
        %1764 = vst.msk [vmem:[#allocation2 + $0xb6] sm:$0xff] %vm460, %v1759
        %1765 = vst.msk [vmem:[#allocation2 + $0xbe] sm:$0x3f] %vm462, %v1761
        %v1766 = vld [vmem:[%s355 + $0xf2] sm:$0xff]
        %v1767 = vld [vmem:[%s355 + $0xfa] sm:$0x3f]
        %1770 = vrot.lane.b32.xlu0 %v1766, 32
        %v1771 = vpop.permute.xlu0 %1770
        %1772 = vrot.lane.b32.xlu0 %v1767, 32
        %v1773 = vpop.permute.xlu0 %1772
        %1776 = vst.msk [vmem:[#allocation2 + $0xb6] sm:$0xff] %vm474, %v1771
        %1777 = vst.msk [vmem:[#allocation2 + $0xbe] sm:$0x3f] %vm476, %v1773
        %v1778 = vld [vmem:[#allocation2] sm:$0xff]
        %v1779 = vld [vmem:[#allocation2 + $0x8] sm:$0xff]
        %v1780 = vld [vmem:[#allocation2 + $0x10] sm:$0xff]
        %v1781 = vld [vmem:[#allocation2 + $0x18] sm:$0xff]
        %v1782 = vld [vmem:[#allocation2 + $0x20] sm:$0xff]
        %v1783 = vld [vmem:[#allocation2 + $0x28] sm:$0xff]
        %v1784 = vld [vmem:[#allocation2 + $0x30] sm:$0xff]
        %v1785 = vld [vmem:[#allocation2 + $0x38] sm:$0xff]
        %v1786 = vld [vmem:[#allocation2 + $0x40] sm:$0xff]
        %v1787 = vld [vmem:[#allocation2 + $0x48] sm:$0xff]
        %v1788 = vld [vmem:[#allocation2 + $0x50] sm:$0xff]
        %v1789 = vld [vmem:[#allocation2 + $0x58] sm:$0xff]
        %v1790 = vld [vmem:[#allocation2 + $0x60] sm:$0xff]
        %v1791 = vld [vmem:[#allocation2 + $0x68] sm:$0xff]
        %v1792 = vld [vmem:[#allocation2 + $0x70] sm:$0xff]
        %v1793 = vld [vmem:[#allocation2 + $0x78] sm:$0xff]
        %v1794 = vld [vmem:[#allocation2 + $0x80] sm:$0xff]
        %v1795 = vld [vmem:[#allocation2 + $0x88] sm:$0xff]
        %v1796 = vld [vmem:[#allocation2 + $0x90] sm:$0xff]
        %v1797 = vld [vmem:[#allocation2 + $0x98] sm:$0xff]
        %v1798 = vld [vmem:[#allocation2 + $0xa0] sm:$0xff]
        %v1799 = vld [vmem:[#allocation2 + $0xa8] sm:$0xff]
        %v1800 = vld [vmem:[#allocation2 + $0xb0] sm:$0xff]
        %v1801 = vld [vmem:[#allocation2 + $0xb8] sm:$0xff]
        %v1802 = vld [vmem:[#allocation2 + $0xc0] sm:$0xf]
        %v1803 = vpack.c.bf16 %v1779, %v1778
        %v1804 = vpack.c.bf16 %v1781, %v1780
        %v1805 = vpack.c.bf16 %v1783, %v1782
        %v1806 = vpack.c.bf16 %v1785, %v1784
        %v1807 = vpack.c.bf16 %v1787, %v1786
        %v1808 = vpack.c.bf16 %v1789, %v1788
        %v1809 = vpack.c.bf16 %v1791, %v1790
        %v1810 = vpack.c.bf16 %v1793, %v1792
        %v1811 = vpack.c.bf16 %v1795, %v1794
        %v1812 = vpack.c.bf16 %v1797, %v1796
        %v1813 = vpack.c.bf16 %v1799, %v1798
        %v1814 = vpack.c.bf16 %v1801, %v1800
        %v1815 = vpack.c.bf16 %v1802, %v1802
        %v1816 = vld [vmem:[%s1] sm:$0xf]
        %v1817 = vld [vmem:[%s1 + $0x4] sm:$0xf]
        %v1818 = vld [vmem:[%s1 + $0x8] sm:$0xf]
        %v1819 = vld [vmem:[%s1 + $0xc] sm:$0xf]
        %v1820 = vld [vmem:[%s1 + $0x10] sm:$0x3]
        %v1821 = vld [vmem:[%s2] sm:$0x1]
        %v1823 = vlaneseq
        %v1824 = vshrl.u32 %v1823, 7
        %v1825 = vsub.s32 0, %v1824
        %v1826 = vrot.slane %v1821, %v1825
        %v1833 = vunpack.c.l.b16 %v1816
        %v1834 = vunpack.c.l.b16 %v1817
        %v1835 = vunpack.c.l.b16 %v1818
        %v1836 = vunpack.c.l.b16 %v1819
        %v1837 = vunpack.c.l.b16 %v1820
        %v1838 = vpack.c.b16 %v1834, %v1833
        %v1839 = vpack.c.b16 %v1836, %v1835
        %v1840 = vpack.c.b16 %v1837, %v1837
        %vm1843 = vcmask 293888
        %v1845 = vsel %vm1843, %v1803, 0
        %v1848 = vsel %vm1843, %v1804, 0
        %v1851 = vsel %vm1843, %v1805, 0
        %v1854 = vsel %vm1843, %v1806, 0
        %v1857 = vsel %vm1843, %v1807, 0
        %v1860 = vsel %vm1843, %v1808, 0
        %v1863 = vsel %vm1843, %v1809, 0
        %v1866 = vsel %vm1843, %v1810, 0
        %v1869 = vsel %vm1843, %v1811, 0
        %v1872 = vsel %vm1843, %v1812, 0
        %v1875 = vsel %vm1843, %v1813, 0
        %v1878 = vsel %vm1843, %v1814, 0
        %v1881 = vsel %vm1843, %v1815, 0
        %vm1883 = vcmask 1041408
        %v1885 = vsel %vm1883, %v1840, 0
        %1887 = vmatprep.subr.bf16.mxu0 0
        %1888 = vmatpush1.bf16.msra.mxu0 %v1838
        %1889 = vmatprep.subr.bf16.mxu0 0
        %1890 = vmatpush1.bf16.msra.mxu0 %v1839
        %1891 = vmatprep.subr.bf16.mxu0 0
        %1892 = vmatpush1.bf16.msra.mxu0 %v1885
        %1893 = vmatprep.subr.bf16.mxu0 0
        %1894 = vmatpush1.bf16.msra.mxu0 0
        %1895 = vmatprep.subr.bf16.mxu0 0
        %1896 = vmatpush1.bf16.msra.mxu0 0
        %1897 = vmatprep.subr.bf16.mxu0 0
        %1898 = vmatpush1.bf16.msra.mxu0 0
        %1899 = vmatprep.subr.bf16.mxu0 0
        %1900 = vmatpush1.bf16.msra.mxu0 0
        %1901 = vmatprep.subr.bf16.mxu0 0
        %1902 = vmatpush1.bf16.msra.mxu0 0
        %1903 = vmatprep.subr.bf16.mxu0 0
        %1904 = vmatpush1.bf16.msra.mxu0 0
        %1905 = vmatprep.subr.bf16.mxu0 0
        %1906 = vmatpush1.bf16.msra.mxu0 0
        %1907 = vmatprep.subr.bf16.mxu0 0
        %1908 = vmatpush1.bf16.msra.mxu0 0
        %1909 = vmatprep.subr.bf16.mxu0 0
        %1910 = vmatpush1.bf16.msra.mxu0 0
        %1911 = vmatprep.subr.bf16.mxu0 0
        %1912 = vmatpush1.bf16.msra.mxu0 0
        %1913 = vmatprep.subr.bf16.mxu0 0
        %1914 = vmatpush1.bf16.msra.mxu0 0
        %1915 = vmatprep.subr.bf16.mxu0 0
        %1916 = vmatpush1.bf16.msra.mxu0 0
        %1917 = vmatprep.subr.bf16.mxu0 0
        %1918 = vmatpush1.bf16.msra.mxu0 0
        %1919 = vmatprep.mubr.bf16.mxu0 0
        %1920 = vmatmul.mubr.bf16.gmra.mrb[0].mxu0 %v1845
        %v1921 = vpop.f32.mrb[0].mxu0
        %v1922 = vadd.f32 %v1826, %v1921
        %v1923 = vpop.f32.mrb[0].mxu0
        %v1924 = vpop.f32.mrb[0].mxu0
        %v1925 = vadd.f32 %v1826, %v1924
        %v1926 = vpop.f32.mrb[0].mxu0
        %1927 = vmatprep.mubr.bf16.mxu0 0
        %1928 = vmatmul.mubr.bf16.gmra.mrb[0].mxu0 %v1848
        %v1929 = vpop.f32.mrb[0].mxu0
        %v1930 = vadd.f32 %v1826, %v1929
        %v1931 = vpop.f32.mrb[0].mxu0
        %v1932 = vpop.f32.mrb[0].mxu0
        %v1933 = vadd.f32 %v1826, %v1932
        %v1934 = vpop.f32.mrb[0].mxu0
        %1935 = vmatprep.mubr.bf16.mxu0 0
        %1936 = vmatmul.mubr.bf16.gmra.mrb[0].mxu0 %v1851
        %v1937 = vpop.f32.mrb[0].mxu0
        %v1938 = vadd.f32 %v1826, %v1937
        %v1939 = vpop.f32.mrb[0].mxu0
        %v1940 = vpop.f32.mrb[0].mxu0
        %v1941 = vadd.f32 %v1826, %v1940
        %v1942 = vpop.f32.mrb[0].mxu0
        %1943 = vmatprep.mubr.bf16.mxu0 0
        %1944 = vmatmul.mubr.bf16.gmra.mrb[0].mxu0 %v1854
        %v1945 = vpop.f32.mrb[0].mxu0
        %v1946 = vadd.f32 %v1826, %v1945
        %v1947 = vpop.f32.mrb[0].mxu0
        %v1948 = vpop.f32.mrb[0].mxu0
        %v1949 = vadd.f32 %v1826, %v1948
        %v1950 = vpop.f32.mrb[0].mxu0
        %1951 = vmatprep.mubr.bf16.mxu0 0
        %1952 = vmatmul.mubr.bf16.gmra.mrb[0].mxu0 %v1857
        %v1953 = vpop.f32.mrb[0].mxu0
        %v1954 = vadd.f32 %v1826, %v1953
        %v1955 = vpop.f32.mrb[0].mxu0
        %v1956 = vpop.f32.mrb[0].mxu0
        %v1957 = vadd.f32 %v1826, %v1956
        %v1958 = vpop.f32.mrb[0].mxu0
        %1959 = vmatprep.mubr.bf16.mxu0 0
        %1960 = vmatmul.mubr.bf16.gmra.mrb[0].mxu0 %v1860
        %v1961 = vpop.f32.mrb[0].mxu0
        %v1962 = vadd.f32 %v1826, %v1961
        %v1963 = vpop.f32.mrb[0].mxu0
        %v1964 = vpop.f32.mrb[0].mxu0
        %v1965 = vadd.f32 %v1826, %v1964
        %v1966 = vpop.f32.mrb[0].mxu0
        %1967 = vmatprep.mubr.bf16.mxu0 0
        %1968 = vmatmul.mubr.bf16.gmra.mrb[0].mxu0 %v1863
        %v1969 = vpop.f32.mrb[0].mxu0
        %v1970 = vadd.f32 %v1826, %v1969
        %v1971 = vpop.f32.mrb[0].mxu0
        %v1972 = vpop.f32.mrb[0].mxu0
        %v1973 = vadd.f32 %v1826, %v1972
        %v1974 = vpop.f32.mrb[0].mxu0
        %1975 = vmatprep.mubr.bf16.mxu0 0
        %1976 = vmatmul.mubr.bf16.gmra.mrb[0].mxu0 %v1866
        %v1977 = vpop.f32.mrb[0].mxu0
        %v1978 = vadd.f32 %v1826, %v1977
        %v1979 = vpop.f32.mrb[0].mxu0
        %v1980 = vpop.f32.mrb[0].mxu0
        %v1981 = vadd.f32 %v1826, %v1980
        %v1982 = vpop.f32.mrb[0].mxu0
        %1983 = vmatprep.mubr.bf16.mxu0 0
        %1984 = vmatmul.mubr.bf16.gmra.mrb[0].mxu0 %v1869
        %v1985 = vpop.f32.mrb[0].mxu0
        %v1986 = vadd.f32 %v1826, %v1985
        %v1987 = vpop.f32.mrb[0].mxu0
        %v1988 = vpop.f32.mrb[0].mxu0
        %v1989 = vadd.f32 %v1826, %v1988
        %v1990 = vpop.f32.mrb[0].mxu0
        %1991 = vmatprep.mubr.bf16.mxu0 0
        %1992 = vmatmul.mubr.bf16.gmra.mrb[0].mxu0 %v1872
        %v1993 = vpop.f32.mrb[0].mxu0
        %v1994 = vadd.f32 %v1826, %v1993
        %v1995 = vpop.f32.mrb[0].mxu0
        %v1996 = vpop.f32.mrb[0].mxu0
        %v1997 = vadd.f32 %v1826, %v1996
        %v1998 = vpop.f32.mrb[0].mxu0
        %1999 = vmatprep.mubr.bf16.mxu0 0
        %2000 = vmatmul.mubr.bf16.gmra.mrb[0].mxu0 %v1875
        %v2001 = vpop.f32.mrb[0].mxu0
        %v2002 = vadd.f32 %v1826, %v2001
        %v2003 = vpop.f32.mrb[0].mxu0
        %v2004 = vpop.f32.mrb[0].mxu0
        %v2005 = vadd.f32 %v1826, %v2004
        %v2006 = vpop.f32.mrb[0].mxu0
        %2007 = vmatprep.mubr.bf16.mxu0 0
        %2008 = vmatmul.mubr.bf16.gmra.mrb[0].mxu0 %v1878
        %v2009 = vpop.f32.mrb[0].mxu0
        %v2010 = vadd.f32 %v1826, %v2009
        %v2011 = vpop.f32.mrb[0].mxu0
        %v2012 = vpop.f32.mrb[0].mxu0
        %v2013 = vadd.f32 %v1826, %v2012
        %v2014 = vpop.f32.mrb[0].mxu0
        %2015 = vmatprep.mubr.bf16.mxu0 0
        %2016 = vmatmul.mubr.bf16.gmra.mrb[0].mxu0 %v1881
        %v2017 = vpop.f32.mrb[0].mxu0
        %v2018 = vadd.f32 %v1826, %v2017
        %v2019 = vpop.f32.mrb[0].mxu0
        %v2020 = vpop.f32.mrb[0].mxu0
        %v2021 = vpop.f32.mrb[0].mxu0
        %2022 = vdwg.mxu0
        %v2023 = vmax.f32 %v1922, 0.0
        %v2024 = vmax.f32 %v1925, 0.0
        %v2025 = vmax.f32 %v1930, 0.0
        %v2026 = vmax.f32 %v1933, 0.0
        %v2027 = vmax.f32 %v1938, 0.0
        %v2028 = vmax.f32 %v1941, 0.0
        %v2029 = vmax.f32 %v1946, 0.0
        %v2030 = vmax.f32 %v1949, 0.0
        %v2031 = vmax.f32 %v1954, 0.0
        %v2032 = vmax.f32 %v1957, 0.0
        %v2033 = vmax.f32 %v1962, 0.0
        %v2034 = vmax.f32 %v1965, 0.0
        %v2035 = vmax.f32 %v1970, 0.0
        %v2036 = vmax.f32 %v1973, 0.0
        %v2037 = vmax.f32 %v1978, 0.0
        %v2038 = vmax.f32 %v1981, 0.0
        %v2039 = vmax.f32 %v1986, 0.0
        %v2040 = vmax.f32 %v1989, 0.0
        %v2041 = vmax.f32 %v1994, 0.0
        %v2042 = vmax.f32 %v1997, 0.0
        %v2043 = vmax.f32 %v2002, 0.0
        %v2044 = vmax.f32 %v2005, 0.0
        %v2045 = vmax.f32 %v2010, 0.0
        %v2046 = vmax.f32 %v2013, 0.0
        %v2047 = vmax.f32 %v2018, 0.0
        %2048 = vst [vmem:[#allocation6] sm:$0xff] %v2023
        %2049 = vst [vmem:[#allocation6 + $0x8] sm:$0xff] %v2024
        %2050 = vst [vmem:[#allocation6 + $0x10] sm:$0xff] %v2025
        %2051 = vst [vmem:[#allocation6 + $0x18] sm:$0xff] %v2026
        %2052 = vst [vmem:[#allocation6 + $0x20] sm:$0xff] %v2027
        %2053 = vst [vmem:[#allocation6 + $0x28] sm:$0xff] %v2028
        %2054 = vst [vmem:[#allocation6 + $0x30] sm:$0xff] %v2029
        %2055 = vst [vmem:[#allocation6 + $0x38] sm:$0xff] %v2030
        %2056 = vst [vmem:[#allocation6 + $0x40] sm:$0xff] %v2031
        %2057 = vst [vmem:[#allocation6 + $0x48] sm:$0xff] %v2032
        %2058 = vst [vmem:[#allocation6 + $0x50] sm:$0xff] %v2033
        %2059 = vst [vmem:[#allocation6 + $0x58] sm:$0xff] %v2034
        %2060 = vst [vmem:[#allocation6 + $0x60] sm:$0xff] %v2035
        %2061 = vst [vmem:[#allocation6 + $0x68] sm:$0xff] %v2036
        %2062 = vst [vmem:[#allocation6 + $0x70] sm:$0xff] %v2037
        %2063 = vst [vmem:[#allocation6 + $0x78] sm:$0xff] %v2038
        %2064 = vst [vmem:[#allocation6 + $0x80] sm:$0xff] %v2039
        %2065 = vst [vmem:[#allocation6 + $0x88] sm:$0xff] %v2040
        %2066 = vst [vmem:[#allocation6 + $0x90] sm:$0xff] %v2041
        %2067 = vst [vmem:[#allocation6 + $0x98] sm:$0xff] %v2042
        %2068 = vst [vmem:[#allocation6 + $0xa0] sm:$0xff] %v2043
        %2069 = vst [vmem:[#allocation6 + $0xa8] sm:$0xff] %v2044
        %2070 = vst [vmem:[#allocation6 + $0xb0] sm:$0xff] %v2045
        %2071 = vst [vmem:[#allocation6 + $0xb8] sm:$0xff] %v2046
        %2072 = vst [vmem:[#allocation6 + $0xc0] sm:$0xf] %v2047
        %v2073 = vld [vmem:[#allocation6] ss:$2 sm:$0x3f]
        %2074 = vst [vmem:[#allocation3] sm:$0x3f] %v2073
        %s2075 = scalar_lea.vmem [#allocation6], 1
        %v2076 = vld [vmem:[%s2075] ss:$2 sm:$0x3f]
        %2077 = vst [vmem:[#allocation3 + $0x8] sm:$0x3f] %v2076
        %s2078 = scalar_lea.vmem [#allocation6], 2
        %v2079 = vld [vmem:[%s2078] ss:$2 sm:$0x3f]
        %2080 = vst [vmem:[#allocation3 + $0x10] sm:$0x3f] %v2079
        %s2081 = scalar_lea.vmem [#allocation6], 14
        %v2082 = vld [vmem:[%s2081] ss:$2 sm:$0x3f]
        %2083 = vst [vmem:[#allocation3 + $0x18] sm:$0x3f] %v2082
        %s2084 = scalar_lea.vmem [#allocation6], 15
        %v2085 = vld [vmem:[%s2084] ss:$2 sm:$0x3f]
        %2086 = vst [vmem:[#allocation3 + $0x20] sm:$0x3f] %v2085
        %s2087 = scalar_lea.vmem [#allocation6], 16
        %v2088 = vld [vmem:[%s2087] ss:$2 sm:$0x3f]
        %2089 = vst [vmem:[#allocation3 + $0x28] sm:$0x3f] %v2088
        %s2090 = scalar_lea.vmem [#allocation6], 28
        %v2091 = vld [vmem:[%s2090] ss:$2 sm:$0x3f]
        %2092 = vst [vmem:[#allocation3 + $0x30] sm:$0x3f] %v2091
        %s2093 = scalar_lea.vmem [#allocation6], 29
        %v2094 = vld [vmem:[%s2093] ss:$2 sm:$0x3f]
        %2095 = vst [vmem:[#allocation3 + $0x38] sm:$0x3f] %v2094
        %s2096 = scalar_lea.vmem [#allocation6], 30
        %v2097 = vld [vmem:[%s2096] ss:$2 sm:$0x3f]
        %2098 = vst [vmem:[#allocation3 + $0x40] sm:$0x3f] %v2097
        %v2099 = vld [vmem:[%s2090] ss:$2 sm:$0x3f]
        %v2101 = vrot.slane %v2099, 2
        %2103 = vst [vmem:[#allocation3] sm:$0xc0] %v2101
        %2104 = vst [vmem:[#allocation3 + $0x48] sm:$0xf] %v2101
        %v2105 = vld [vmem:[%s2093] ss:$2 sm:$0x3f]
        %v2107 = vrot.slane %v2105, 2
        %2109 = vst [vmem:[#allocation3 + $0x8] sm:$0xc0] %v2107
        %2110 = vst [vmem:[#allocation3 + $0x50] sm:$0xf] %v2107
        %v2111 = vld [vmem:[%s2096] ss:$2 sm:$0x3f]
        %v2113 = vrot.slane %v2111, 2
        %2115 = vst [vmem:[#allocation3 + $0x10] sm:$0xc0] %v2113
        %2116 = vst [vmem:[#allocation3 + $0x58] sm:$0xf] %v2113
        %s2117 = scalar_lea.vmem [#allocation6], 42
        %v2118 = vld [vmem:[%s2117] ss:$2 sm:$0x3f]
        %v2120 = vrot.slane %v2118, 2
        %2122 = vst [vmem:[#allocation3 + $0x18] sm:$0xc0] %v2120
        %2123 = vst [vmem:[#allocation3 + $0x60] sm:$0xf] %v2120
        %s2124 = scalar_lea.vmem [#allocation6], 43
        %v2125 = vld [vmem:[%s2124] ss:$2 sm:$0x3f]
        %v2127 = vrot.slane %v2125, 2
        %2129 = vst [vmem:[#allocation3 + $0x20] sm:$0xc0] %v2127
        %2130 = vst [vmem:[#allocation3 + $0x68] sm:$0xf] %v2127
        %s2131 = scalar_lea.vmem [#allocation6], 44
        %v2132 = vld [vmem:[%s2131] ss:$2 sm:$0x3f]
        %v2134 = vrot.slane %v2132, 2
        %2136 = vst [vmem:[#allocation3 + $0x28] sm:$0xc0] %v2134
        %2137 = vst [vmem:[#allocation3 + $0x70] sm:$0xf] %v2134
        %s2138 = scalar_lea.vmem [#allocation6], 56
        %v2139 = vld [vmem:[%s2138] ss:$2 sm:$0x3f]
        %v2141 = vrot.slane %v2139, 2
        %2143 = vst [vmem:[#allocation3 + $0x30] sm:$0xc0] %v2141
        %2144 = vst [vmem:[#allocation3 + $0x78] sm:$0xf] %v2141
        %s2145 = scalar_lea.vmem [#allocation6], 57
        %v2146 = vld [vmem:[%s2145] ss:$2 sm:$0x3f]
        %v2148 = vrot.slane %v2146, 2
        %2150 = vst [vmem:[#allocation3 + $0x38] sm:$0xc0] %v2148
        %2151 = vst [vmem:[#allocation3 + $0x80] sm:$0xf] %v2148
        %s2152 = scalar_lea.vmem [#allocation6], 58
        %v2153 = vld [vmem:[%s2152] ss:$2 sm:$0x3f]
        %v2155 = vrot.slane %v2153, 2
        %2157 = vst [vmem:[#allocation3 + $0x40] sm:$0xc0] %v2155
        %2158 = vst [vmem:[#allocation3 + $0x88] sm:$0xf] %v2155
        %v2159 = vld [vmem:[%s2138] ss:$2 sm:$0x3f]
        %v2161 = vrot.slane %v2159, 4
        %2163 = vst [vmem:[#allocation3 + $0x48] sm:$0xf0] %v2161
        %2164 = vst [vmem:[#allocation3 + $0x90] sm:$0x3] %v2161
        %v2165 = vld [vmem:[%s2145] ss:$2 sm:$0x3f]
        %v2167 = vrot.slane %v2165, 4
        %2169 = vst [vmem:[#allocation3 + $0x50] sm:$0xf0] %v2167
        %2170 = vst [vmem:[#allocation3 + $0x98] sm:$0x3] %v2167
        %v2171 = vld [vmem:[%s2152] ss:$2 sm:$0x3f]
        %v2173 = vrot.slane %v2171, 4
        %2175 = vst [vmem:[#allocation3 + $0x58] sm:$0xf0] %v2173
        %2176 = vst [vmem:[#allocation3 + $0xa0] sm:$0x3] %v2173
        %s2177 = scalar_lea.vmem [#allocation6], 70
        %v2178 = vld [vmem:[%s2177] ss:$2 sm:$0x3f]
        %v2180 = vrot.slane %v2178, 4
        %2182 = vst [vmem:[#allocation3 + $0x60] sm:$0xf0] %v2180
        %2183 = vst [vmem:[#allocation3 + $0xa8] sm:$0x3] %v2180
        %s2184 = scalar_lea.vmem [#allocation6], 71
        %v2185 = vld [vmem:[%s2184] ss:$2 sm:$0x3f]
        %v2187 = vrot.slane %v2185, 4
        %2189 = vst [vmem:[#allocation3 + $0x68] sm:$0xf0] %v2187
        %2190 = vst [vmem:[#allocation3 + $0xb0] sm:$0x3] %v2187
        %s2191 = scalar_lea.vmem [#allocation6], 72
        %v2192 = vld [vmem:[%s2191] ss:$2 sm:$0x3f]
        %v2194 = vrot.slane %v2192, 4
        %2196 = vst [vmem:[#allocation3 + $0x70] sm:$0xf0] %v2194
        %2197 = vst [vmem:[#allocation3 + $0xb8] sm:$0x3] %v2194
        %s2198 = scalar_lea.vmem [#allocation6], 84
        %v2199 = vld [vmem:[%s2198] ss:$2 sm:$0x3f]
        %v2201 = vrot.slane %v2199, 4
        %2203 = vst [vmem:[#allocation3 + $0x78] sm:$0xf0] %v2201
        %2204 = vst [vmem:[#allocation3 + $0xc0] sm:$0x3] %v2201
        %s2205 = scalar_lea.vmem [#allocation6], 85
        %v2206 = vld [vmem:[%s2205] ss:$2 sm:$0x3f]
        %v2208 = vrot.slane %v2206, 4
        %2210 = vst [vmem:[#allocation3 + $0x80] sm:$0xf0] %v2208
        %2211 = vst [vmem:[#allocation3 + $0xc8] sm:$0x3] %v2208
        %s2212 = scalar_lea.vmem [#allocation6], 86
        %v2213 = vld [vmem:[%s2212] ss:$2 sm:$0x3f]
        %v2215 = vrot.slane %v2213, 4
        %2217 = vst [vmem:[#allocation3 + $0x88] sm:$0xf0] %v2215
        %2218 = vst [vmem:[#allocation3 + $0xd0] sm:$0x3] %v2215
        %v2219 = vld [vmem:[%s2198] ss:$2 sm:$0x3f]
        %v2221 = vrot.slane %v2219, 6
        %2223 = vst [vmem:[#allocation3 + $0x90] sm:$0xfc] %v2221
        %v2224 = vld [vmem:[%s2205] ss:$2 sm:$0x3f]
        %v2226 = vrot.slane %v2224, 6
        %2228 = vst [vmem:[#allocation3 + $0x98] sm:$0xfc] %v2226
        %v2229 = vld [vmem:[%s2212] ss:$2 sm:$0x3f]
        %v2231 = vrot.slane %v2229, 6
        %2233 = vst [vmem:[#allocation3 + $0xa0] sm:$0xfc] %v2231
        %s2234 = scalar_lea.vmem [#allocation6], 98
        %v2235 = vld [vmem:[%s2234] ss:$2 sm:$0x3f]
        %v2237 = vrot.slane %v2235, 6
        %2239 = vst [vmem:[#allocation3 + $0xa8] sm:$0xfc] %v2237
        %s2240 = scalar_lea.vmem [#allocation6], 99
        %v2241 = vld [vmem:[%s2240] ss:$2 sm:$0x3f]
        %v2243 = vrot.slane %v2241, 6
        %2245 = vst [vmem:[#allocation3 + $0xb0] sm:$0xfc] %v2243
        %s2246 = scalar_lea.vmem [#allocation6], 100
        %v2247 = vld [vmem:[%s2246] ss:$2 sm:$0x3f]
        %v2249 = vrot.slane %v2247, 6
        %2251 = vst [vmem:[#allocation3 + $0xb8] sm:$0xfc] %v2249
        %s2252 = scalar_lea.vmem [#allocation6], 112
        %v2253 = vld [vmem:[%s2252] ss:$2 sm:$0x3f]
        %v2255 = vrot.slane %v2253, 6
        %2257 = vst [vmem:[#allocation3 + $0xc0] sm:$0xfc] %v2255
        %s2258 = scalar_lea.vmem [#allocation6], 113
        %v2259 = vld [vmem:[%s2258] ss:$2 sm:$0x3f]
        %v2261 = vrot.slane %v2259, 6
        %2263 = vst [vmem:[#allocation3 + $0xc8] sm:$0xfc] %v2261
        %s2264 = scalar_lea.vmem [#allocation6], 114
        %v2265 = vld [vmem:[%s2264] ss:$2 sm:$0x3f]
        %v2267 = vrot.slane %v2265, 6
        %2269 = vst [vmem:[#allocation3 + $0xd0] sm:$0xfc] %v2267
        %v2270 = vld [vmem:[%s2252] ss:$2 sm:$0x3f]
        %2271 = vst [vmem:[#allocation3 + $0xd8] sm:$0x3f] %v2270
        %v2272 = vld [vmem:[%s2258] ss:$2 sm:$0x3f]
        %2273 = vst [vmem:[#allocation3 + $0xe0] sm:$0x3f] %v2272
        %v2274 = vld [vmem:[%s2264] ss:$2 sm:$0x3f]
        %2275 = vst [vmem:[#allocation3 + $0xe8] sm:$0x3f] %v2274
        %s2276 = scalar_lea.vmem [#allocation6], 126
        %v2277 = vld [vmem:[%s2276] ss:$2 sm:$0x3f]
        %2278 = vst [vmem:[#allocation3 + $0xf0] sm:$0x3f] %v2277
        %s2279 = scalar_lea.vmem [#allocation6], 127
        %v2280 = vld [vmem:[%s2279] ss:$2 sm:$0x3f]
        %2281 = vst [vmem:[#allocation3 + $0xf8] sm:$0x3f] %v2280
        %s2282 = scalar_lea.vmem [#allocation6], 128
        %v2283 = vld [vmem:[%s2282] ss:$2 sm:$0x3f]
        %2284 = vst [vmem:[#allocation3 + $0x100] sm:$0x3f] %v2283
        %s2285 = scalar_lea.vmem [#allocation6], 140
        %v2286 = vld [vmem:[%s2285] ss:$2 sm:$0x3f]
        %2287 = vst [vmem:[#allocation3 + $0x108] sm:$0x3f] %v2286
        %s2288 = scalar_lea.vmem [#allocation6], 141
        %v2289 = vld [vmem:[%s2288] ss:$2 sm:$0x3f]
        %2290 = vst [vmem:[#allocation3 + $0x110] sm:$0x3f] %v2289
        %s2291 = scalar_lea.vmem [#allocation6], 142
        %v2292 = vld [vmem:[%s2291] ss:$2 sm:$0x3f]
        %2293 = vst [vmem:[#allocation3 + $0x118] sm:$0x3f] %v2292
        %v2294 = vld [vmem:[%s2285] ss:$2 sm:$0x3f]
        %v2296 = vrot.slane %v2294, 2
        %2298 = vst [vmem:[#allocation3 + $0xd8] sm:$0xc0] %v2296
        %2299 = vst [vmem:[#allocation3 + $0x120] sm:$0xf] %v2296
        %v2300 = vld [vmem:[%s2288] ss:$2 sm:$0x3f]
        %v2302 = vrot.slane %v2300, 2
        %2304 = vst [vmem:[#allocation3 + $0xe0] sm:$0xc0] %v2302
        %2305 = vst [vmem:[#allocation3 + $0x128] sm:$0xf] %v2302
        %v2306 = vld [vmem:[%s2291] ss:$2 sm:$0x3f]
        %v2308 = vrot.slane %v2306, 2
        %2310 = vst [vmem:[#allocation3 + $0xe8] sm:$0xc0] %v2308
        %2311 = vst [vmem:[#allocation3 + $0x130] sm:$0xf] %v2308
        %s2312 = scalar_lea.vmem [#allocation6], 154
        %v2313 = vld [vmem:[%s2312] ss:$2 sm:$0x3f]
        %v2315 = vrot.slane %v2313, 2
        %2317 = vst [vmem:[#allocation3 + $0xf0] sm:$0xc0] %v2315
        %2318 = vst [vmem:[#allocation3 + $0x138] sm:$0xf] %v2315
        %s2319 = scalar_lea.vmem [#allocation6], 155
        %v2320 = vld [vmem:[%s2319] ss:$2 sm:$0x3f]
        %v2322 = vrot.slane %v2320, 2
        %2324 = vst [vmem:[#allocation3 + $0xf8] sm:$0xc0] %v2322
        %2325 = vst [vmem:[#allocation3 + $0x140] sm:$0xf] %v2322
        %s2326 = scalar_lea.vmem [#allocation6], 156
        %v2327 = vld [vmem:[%s2326] ss:$2 sm:$0x3f]
        %v2329 = vrot.slane %v2327, 2
        %2331 = vst [vmem:[#allocation3 + $0x100] sm:$0xc0] %v2329
        %2332 = vst [vmem:[#allocation3 + $0x148] sm:$0xf] %v2329
        %s2333 = scalar_lea.vmem [#allocation6], 168
        %v2334 = vld [vmem:[%s2333] ss:$2 sm:$0x3f]
        %v2336 = vrot.slane %v2334, 2
        %2338 = vst [vmem:[#allocation3 + $0x108] sm:$0xc0] %v2336
        %2339 = vst [vmem:[#allocation3 + $0x150] sm:$0xf] %v2336
        %s2340 = scalar_lea.vmem [#allocation6], 169
        %v2341 = vld [vmem:[%s2340] ss:$2 sm:$0x3f]
        %v2343 = vrot.slane %v2341, 2
        %2345 = vst [vmem:[#allocation3 + $0x110] sm:$0xc0] %v2343
        %2346 = vst [vmem:[#allocation3 + $0x158] sm:$0xf] %v2343
        %s2347 = scalar_lea.vmem [#allocation6], 170
        %v2348 = vld [vmem:[%s2347] ss:$2 sm:$0x3f]
        %v2350 = vrot.slane %v2348, 2
        %2352 = vst [vmem:[#allocation3 + $0x118] sm:$0xc0] %v2350
        %2353 = vst [vmem:[#allocation3 + $0x160] sm:$0xf] %v2350
        %v2354 = vld [vmem:[#allocation3] sm:$0xff]
        %v2355 = vld [vmem:[#allocation3 + $0x8] sm:$0xff]
        %v2356 = vld [vmem:[#allocation3 + $0x10] sm:$0xff]
        %v2357 = vld [vmem:[#allocation3 + $0x18] sm:$0xff]
        %v2358 = vld [vmem:[#allocation3 + $0x20] sm:$0xff]
        %v2359 = vld [vmem:[#allocation3 + $0x28] sm:$0xff]
        %v2360 = vld [vmem:[#allocation3 + $0x30] sm:$0xff]
        %v2361 = vld [vmem:[#allocation3 + $0x38] sm:$0xff]
        %v2362 = vld [vmem:[#allocation3 + $0x40] sm:$0xff]
        %v2363 = vld [vmem:[#allocation3 + $0x48] sm:$0xff]
        %v2364 = vld [vmem:[#allocation3 + $0x50] sm:$0xff]
        %v2365 = vld [vmem:[#allocation3 + $0x58] sm:$0xff]
        %v2366 = vld [vmem:[#allocation3 + $0x60] sm:$0xff]
        %v2367 = vld [vmem:[#allocation3 + $0x68] sm:$0xff]
        %v2368 = vld [vmem:[#allocation3 + $0x70] sm:$0xff]
        %v2369 = vld [vmem:[#allocation3 + $0x78] sm:$0xff]
        %v2370 = vld [vmem:[#allocation3 + $0x80] sm:$0xff]
        %v2371 = vld [vmem:[#allocation3 + $0x88] sm:$0xff]
        %v2372 = vld [vmem:[#allocation3 + $0x90] sm:$0xff]
        %v2373 = vld [vmem:[#allocation3 + $0x98] sm:$0xff]
        %v2374 = vld [vmem:[#allocation3 + $0xa0] sm:$0xff]
        %v2375 = vld [vmem:[#allocation3 + $0xa8] sm:$0xff]
        %v2376 = vld [vmem:[#allocation3 + $0xb0] sm:$0xff]
        %v2377 = vld [vmem:[#allocation3 + $0xb8] sm:$0xff]
        %v2378 = vld [vmem:[#allocation3 + $0xc0] sm:$0xff]
        %v2379 = vld [vmem:[#allocation3 + $0xc8] sm:$0xff]
        %v2380 = vld [vmem:[#allocation3 + $0xd0] sm:$0xff]
        %v2381 = vld [vmem:[#allocation3 + $0xd8] sm:$0xff]
        %v2382 = vld [vmem:[#allocation3 + $0xe0] sm:$0xff]
        %v2383 = vld [vmem:[#allocation3 + $0xe8] sm:$0xff]
        %v2384 = vld [vmem:[#allocation3 + $0xf0] sm:$0xff]
        %v2385 = vld [vmem:[#allocation3 + $0xf8] sm:$0xff]
        %v2386 = vld [vmem:[#allocation3 + $0x100] sm:$0xff]
        %v2387 = vld [vmem:[#allocation3 + $0x108] sm:$0xff]
        %v2388 = vld [vmem:[#allocation3 + $0x110] sm:$0xff]
        %v2389 = vld [vmem:[#allocation3 + $0x118] sm:$0xff]
        %v2390 = vld [vmem:[#allocation3 + $0x120] sm:$0xf]
        %v2391 = vld [vmem:[#allocation3 + $0x128] sm:$0xf]
        %v2392 = vld [vmem:[#allocation3 + $0x130] sm:$0xf]
        %v2393 = vld [vmem:[#allocation3 + $0x138] sm:$0xf]
        %v2394 = vld [vmem:[#allocation3 + $0x140] sm:$0xf]
        %v2395 = vld [vmem:[#allocation3 + $0x148] sm:$0xf]
        %v2396 = vld [vmem:[#allocation3 + $0x150] sm:$0xf]
        %v2397 = vld [vmem:[#allocation3 + $0x158] sm:$0xf]
        %v2398 = vld [vmem:[#allocation3 + $0x160] sm:$0xf]
        %v2399 = vpack.c.bf16 %v2363, %v2354
        %v2400 = vpack.c.bf16 %v2364, %v2355
        %v2401 = vpack.c.bf16 %v2365, %v2356
        %v2402 = vpack.c.bf16 %v2366, %v2357
        %v2403 = vpack.c.bf16 %v2367, %v2358
        %v2404 = vpack.c.bf16 %v2368, %v2359
        %v2405 = vpack.c.bf16 %v2369, %v2360
        %v2406 = vpack.c.bf16 %v2370, %v2361
        %v2407 = vpack.c.bf16 %v2371, %v2362
        %v2408 = vpack.c.bf16 %v2381, %v2372
        %v2409 = vpack.c.bf16 %v2382, %v2373
        %v2410 = vpack.c.bf16 %v2383, %v2374
        %v2411 = vpack.c.bf16 %v2384, %v2375
        %v2412 = vpack.c.bf16 %v2385, %v2376
        %v2413 = vpack.c.bf16 %v2386, %v2377
        %v2414 = vpack.c.bf16 %v2387, %v2378
        %v2415 = vpack.c.bf16 %v2388, %v2379
        %v2416 = vpack.c.bf16 %v2389, %v2380
        %v2417 = vpack.c.bf16 %v2390, %v2390
        %v2418 = vpack.c.bf16 %v2391, %v2391
        %v2419 = vpack.c.bf16 %v2392, %v2392
        %v2420 = vpack.c.bf16 %v2393, %v2393
        %v2421 = vpack.c.bf16 %v2394, %v2394
        %v2422 = vpack.c.bf16 %v2395, %v2395
        %v2423 = vpack.c.bf16 %v2396, %v2396
        %v2424 = vpack.c.bf16 %v2397, %v2397
        %v2425 = vpack.c.bf16 %v2398, %v2398
        %v2426 = vld [vmem:[%s3] sm:$0xf]
        %v2427 = vld [vmem:[%s3 + $0x4] sm:$0xf]
        %v2428 = vld [vmem:[%s3 + $0x8] sm:$0xf]
        %v2429 = vld [vmem:[%s3 + $0xc] sm:$0xf]
        %v2430 = vld [vmem:[%s3 + $0x10] sm:$0xf]
        %v2431 = vld [vmem:[%s3 + $0x14] sm:$0xf]
        %v2432 = vld [vmem:[%s3 + $0x18] sm:$0xf]
        %v2433 = vld [vmem:[%s3 + $0x1c] sm:$0xf]
        %v2434 = vld [vmem:[%s3 + $0x20] sm:$0xf]
        %v2435 = vld [vmem:[%s3 + $0x24] sm:$0xf]
        %v2436 = vld [vmem:[%s3 + $0x28] sm:$0xf]
        %v2437 = vld [vmem:[%s3 + $0x2c] sm:$0xf]
        %v2438 = vld [vmem:[%s3 + $0x30] sm:$0xf]
        %v2439 = vld [vmem:[%s3 + $0x34] sm:$0xf]
        %v2440 = vld [vmem:[%s3 + $0x38] sm:$0xf]
        %v2441 = vld [vmem:[%s3 + $0x3c] sm:$0xf]
        %v2442 = vld [vmem:[%s3 + $0x40] sm:$0xf]
        %v2443 = vld [vmem:[%s3 + $0x44] sm:$0xf]
        %v2444 = vld [vmem:[%s3 + $0x48] sm:$0xf]
        %v2445 = vld [vmem:[%s3 + $0x4c] sm:$0xf]
        %v2446 = vld [vmem:[%s3 + $0x50] sm:$0xf]
        %v2447 = vld [vmem:[%s3 + $0x54] sm:$0xf]
        %v2448 = vld [vmem:[%s3 + $0x58] sm:$0xf]
        %v2449 = vld [vmem:[%s3 + $0x5c] sm:$0xf]
        %v2450 = vld [vmem:[%s3 + $0x60] sm:$0xf]
        %v2451 = vld [vmem:[%s3 + $0x64] sm:$0xf]
        %v2452 = vld [vmem:[%s3 + $0x68] sm:$0xf]
        %v2453 = vld [vmem:[%s3 + $0x6c] sm:$0xf]
        %v2454 = vld [vmem:[%s3 + $0x70] sm:$0xf]
        %v2455 = vld [vmem:[%s3 + $0x74] sm:$0xf]
        %v2456 = vld [vmem:[%s3 + $0x78] sm:$0xf]
        %v2457 = vld [vmem:[%s3 + $0x7c] sm:$0xf]
        %v2458 = vld [vmem:[%s3 + $0x80] sm:$0xf]
        %v2459 = vld [vmem:[%s3 + $0x84] sm:$0xf]
        %v2460 = vld [vmem:[%s3 + $0x88] sm:$0xf]
        %v2461 = vld [vmem:[%s3 + $0x8c] sm:$0xf]
        %v2462 = vld [vmem:[%s3 + $0x90] sm:$0xf]
        %v2463 = vld [vmem:[%s3 + $0x94] sm:$0xf]
        %v2464 = vld [vmem:[%s3 + $0x98] sm:$0xf]
        %v2465 = vld [vmem:[%s3 + $0x9c] sm:$0xf]
        %v2466 = vld [vmem:[%s3 + $0xa0] sm:$0xf]
        %v2467 = vld [vmem:[%s3 + $0xa4] sm:$0xf]
        %v2468 = vld [vmem:[%s3 + $0xa8] sm:$0xf]
        %v2469 = vld [vmem:[%s3 + $0xac] sm:$0xf]
        %v2470 = vld [vmem:[%s3 + $0xb0] sm:$0xf]
        %v2471 = vld [vmem:[%s3 + $0xb4] sm:$0xf]
        %v2472 = vld [vmem:[%s3 + $0xb8] sm:$0xf]
        %v2473 = vld [vmem:[%s3 + $0xbc] sm:$0xf]
        %v2474 = vld [vmem:[%s3 + $0xc0] sm:$0xf]
        %v2475 = vld [vmem:[%s3 + $0xc4] sm:$0xf]
        %v2476 = vld [vmem:[%s3 + $0xc8] sm:$0xf]
        %v2477 = vld [vmem:[%s3 + $0xcc] sm:$0xf]
        %v2478 = vld [vmem:[%s3 + $0xd0] sm:$0xf]
        %v2479 = vld [vmem:[%s3 + $0xd4] sm:$0xf]
        %v2480 = vld [vmem:[%s3 + $0xd8] sm:$0xf]
        %v2481 = vld [vmem:[%s3 + $0xdc] sm:$0xf]
        %v2482 = vld [vmem:[%s3 + $0xe0] sm:$0xf]
        %v2483 = vld [vmem:[%s3 + $0xe4] sm:$0xf]
        %v2484 = vld [vmem:[%s3 + $0xe8] sm:$0xf]
        %v2485 = vld [vmem:[%s3 + $0xec] sm:$0xf]
        %v2486 = vld [vmem:[%s3 + $0xf0] sm:$0xf]
        %v2487 = vld [vmem:[%s3 + $0xf4] sm:$0xf]
        %v2488 = vld [vmem:[%s3 + $0xf8] sm:$0xf]
        %v2489 = vld [vmem:[%s3 + $0xfc] sm:$0xf]
        %v2490 = vld [vmem:[%s3 + $0x100] sm:$0xf]
        %v2491 = vld [vmem:[%s3 + $0x104] sm:$0xf]
        %v2492 = vld [vmem:[%s3 + $0x108] sm:$0xf]
        %v2493 = vld [vmem:[%s3 + $0x10c] sm:$0xf]
        %v2494 = vld [vmem:[%s3 + $0x110] sm:$0xf]
        %v2495 = vld [vmem:[%s3 + $0x114] sm:$0xf]
        %v2496 = vld [vmem:[%s3 + $0x118] sm:$0xf]
        %v2497 = vld [vmem:[%s3 + $0x11c] sm:$0xf]
        %v2498 = vld [vmem:[%s3 + $0x120] sm:$0xf]
        %v2499 = vld [vmem:[%s3 + $0x124] sm:$0xf]
        %v2500 = vld [vmem:[%s3 + $0x128] sm:$0xf]
        %v2501 = vld [vmem:[%s3 + $0x12c] sm:$0xf]
        %v2502 = vld [vmem:[%s3 + $0x130] sm:$0xf]
        %v2503 = vld [vmem:[%s3 + $0x134] sm:$0xf]
        %v2504 = vld [vmem:[%s3 + $0x138] sm:$0xf]
        %v2505 = vld [vmem:[%s3 + $0x13c] sm:$0xf]
        %v2506 = vld [vmem:[%s3 + $0x140] sm:$0xf]
        %v2507 = vld [vmem:[%s3 + $0x144] sm:$0xf]
        %v2508 = vld [vmem:[%s3 + $0x148] sm:$0xf]
        %v2509 = vld [vmem:[%s3 + $0x14c] sm:$0xf]
        %v2510 = vld [vmem:[%s3 + $0x150] sm:$0xf]
        %v2511 = vld [vmem:[%s3 + $0x154] sm:$0xf]
        %v2512 = vld [vmem:[%s3 + $0x158] sm:$0xf]
        %v2513 = vld [vmem:[%s3 + $0x15c] sm:$0xf]
        %v2514 = vld [vmem:[%s3 + $0x160] sm:$0xf]
        %v2515 = vld [vmem:[%s3 + $0x164] sm:$0xf]
        %v2516 = vld [vmem:[%s3 + $0x168] sm:$0xf]
        %v2517 = vld [vmem:[%s3 + $0x16c] sm:$0xf]
        %v2518 = vld [vmem:[%s3 + $0x170] sm:$0xf]
        %v2519 = vld [vmem:[%s3 + $0x174] sm:$0xf]
        %v2520 = vld [vmem:[%s3 + $0x178] sm:$0xf]
        %v2521 = vld [vmem:[%s3 + $0x17c] sm:$0xf]
        %v2522 = vld [vmem:[%s3 + $0x180] sm:$0xf]
        %v2523 = vld [vmem:[%s3 + $0x184] sm:$0xf]
        %v2524 = vld [vmem:[%s3 + $0x188] sm:$0xf]
        %v2525 = vld [vmem:[%s3 + $0x18c] sm:$0xf]
        %v2526 = vld [vmem:[%s3 + $0x190] sm:$0xf]
        %v2527 = vld [vmem:[%s3 + $0x194] sm:$0xf]
        %v2528 = vld [vmem:[%s3 + $0x198] sm:$0xf]
        %v2529 = vld [vmem:[%s3 + $0x19c] sm:$0xf]
        %v2530 = vld [vmem:[%s3 + $0x1a0] sm:$0xf]
        %v2531 = vld [vmem:[%s3 + $0x1a4] sm:$0xf]
        %v2532 = vld [vmem:[%s3 + $0x1a8] sm:$0xf]
        %v2533 = vld [vmem:[%s3 + $0x1ac] sm:$0xf]
        %v2534 = vld [vmem:[%s3 + $0x1b0] sm:$0xf]
        %v2535 = vld [vmem:[%s3 + $0x1b4] sm:$0xf]
        %v2536 = vld [vmem:[%s3 + $0x1b8] sm:$0xf]
        %v2537 = vld [vmem:[%s3 + $0x1bc] sm:$0xf]
        %v2538 = vld [vmem:[%s3 + $0x1c0] sm:$0xf]
        %v2539 = vld [vmem:[%s3 + $0x1c4] sm:$0xf]
        %v2540 = vld [vmem:[%s3 + $0x1c8] sm:$0xf]
        %v2541 = vld [vmem:[%s3 + $0x1cc] sm:$0xf]
        %v2542 = vld [vmem:[%s3 + $0x1d0] sm:$0xf]
        %v2543 = vld [vmem:[%s3 + $0x1d4] sm:$0xf]
        %v2544 = vld [vmem:[%s3 + $0x1d8] sm:$0xf]
        %v2545 = vld [vmem:[%s3 + $0x1dc] sm:$0xf]
        %v2546 = vld [vmem:[%s3 + $0x1e0] sm:$0xf]
        %v2547 = vld [vmem:[%s3 + $0x1e4] sm:$0xf]
        %v2548 = vld [vmem:[%s3 + $0x1e8] sm:$0xf]
        %v2549 = vld [vmem:[%s3 + $0x1ec] sm:$0xf]
        %v2550 = vld [vmem:[%s3 + $0x1f0] sm:$0xf]
        %v2551 = vld [vmem:[%s3 + $0x1f4] sm:$0xf]
        %v2552 = vld [vmem:[%s3 + $0x1f8] sm:$0xf]
        %v2553 = vld [vmem:[%s3 + $0x1fc] sm:$0xf]
        %v2554 = vld [vmem:[%s3 + $0x200] sm:$0xf]
        %v2555 = vld [vmem:[%s3 + $0x204] sm:$0xf]
        %v2556 = vld [vmem:[%s3 + $0x208] sm:$0xf]
        %v2557 = vld [vmem:[%s3 + $0x20c] sm:$0xf]
        %v2558 = vld [vmem:[%s3 + $0x210] sm:$0xf]
        %v2559 = vld [vmem:[%s3 + $0x214] sm:$0xf]
        %v2560 = vld [vmem:[%s3 + $0x218] sm:$0xf]
        %v2561 = vld [vmem:[%s3 + $0x21c] sm:$0xf]
        %v2562 = vld [vmem:[%s3 + $0x220] sm:$0xf]
        %v2563 = vld [vmem:[%s3 + $0x224] sm:$0xf]
        %v2564 = vld [vmem:[%s3 + $0x228] sm:$0xf]
        %v2565 = vld [vmem:[%s3 + $0x22c] sm:$0xf]
        %v2566 = vld [vmem:[%s3 + $0x230] sm:$0xf]
        %v2567 = vld [vmem:[%s3 + $0x234] sm:$0xf]
        %v2568 = vld [vmem:[%s3 + $0x238] sm:$0xf]
        %v2569 = vld [vmem:[%s3 + $0x23c] sm:$0xf]
        %v2570 = vld [vmem:[%s4] sm:$0x1]
        %v2572 = vlaneseq
        %v2573 = vshrl.u32 %v2572, 7
        %v2574 = vsub.s32 0, %v2573
        %v2575 = vrot.slane %v2570, %v2574
        %v2721 = vunpack.c.l.b16 %v2426
        %v2722 = vunpack.c.l.b16 %v2427
        %v2723 = vunpack.c.l.b16 %v2428
        %v2724 = vunpack.c.l.b16 %v2429
        %v2725 = vunpack.c.l.b16 %v2430
        %v2726 = vunpack.c.l.b16 %v2431
        %v2727 = vunpack.c.l.b16 %v2432
        %v2728 = vunpack.c.l.b16 %v2433
        %v2729 = vunpack.c.l.b16 %v2434
        %v2730 = vunpack.c.l.b16 %v2435
        %v2731 = vunpack.c.l.b16 %v2436
        %v2732 = vunpack.c.l.b16 %v2437
        %v2733 = vunpack.c.l.b16 %v2438
        %v2734 = vunpack.c.l.b16 %v2439
        %v2735 = vunpack.c.l.b16 %v2440
        %v2736 = vunpack.c.l.b16 %v2441
        %v2737 = vunpack.c.l.b16 %v2442
        %v2738 = vunpack.c.l.b16 %v2443
        %v2739 = vunpack.c.l.b16 %v2444
        %v2740 = vunpack.c.l.b16 %v2445
        %v2741 = vunpack.c.l.b16 %v2446
        %v2742 = vunpack.c.l.b16 %v2447
        %v2743 = vunpack.c.l.b16 %v2448
        %v2744 = vunpack.c.l.b16 %v2449
        %v2745 = vunpack.c.l.b16 %v2450
        %v2746 = vunpack.c.l.b16 %v2451
        %v2747 = vunpack.c.l.b16 %v2452
        %v2748 = vunpack.c.l.b16 %v2453
        %v2749 = vunpack.c.l.b16 %v2454
        %v2750 = vunpack.c.l.b16 %v2455
        %v2751 = vunpack.c.l.b16 %v2456
        %v2752 = vunpack.c.l.b16 %v2457
        %v2753 = vunpack.c.l.b16 %v2458
        %v2754 = vunpack.c.l.b16 %v2459
        %v2755 = vunpack.c.l.b16 %v2460
        %v2756 = vunpack.c.l.b16 %v2461
        %v2757 = vunpack.c.l.b16 %v2462
        %v2758 = vunpack.c.l.b16 %v2463
        %v2759 = vunpack.c.l.b16 %v2464
        %v2760 = vunpack.c.l.b16 %v2465
        %v2761 = vunpack.c.l.b16 %v2466
        %v2762 = vunpack.c.l.b16 %v2467
        %v2763 = vunpack.c.l.b16 %v2468
        %v2764 = vunpack.c.l.b16 %v2469
        %v2765 = vunpack.c.l.b16 %v2470
        %v2766 = vunpack.c.l.b16 %v2471
        %v2767 = vunpack.c.l.b16 %v2472
        %v2768 = vunpack.c.l.b16 %v2473
        %v2769 = vunpack.c.l.b16 %v2474
        %v2770 = vunpack.c.l.b16 %v2475
        %v2771 = vunpack.c.l.b16 %v2476
        %v2772 = vunpack.c.l.b16 %v2477
        %v2773 = vunpack.c.l.b16 %v2478
        %v2774 = vunpack.c.l.b16 %v2479
        %v2775 = vunpack.c.l.b16 %v2480
        %v2776 = vunpack.c.l.b16 %v2481
        %v2777 = vunpack.c.l.b16 %v2482
        %v2778 = vunpack.c.l.b16 %v2483
        %v2779 = vunpack.c.l.b16 %v2484
        %v2780 = vunpack.c.l.b16 %v2485
        %v2781 = vunpack.c.l.b16 %v2486
        %v2782 = vunpack.c.l.b16 %v2487
        %v2783 = vunpack.c.l.b16 %v2488
        %v2784 = vunpack.c.l.b16 %v2489
        %v2785 = vunpack.c.l.b16 %v2490
        %v2786 = vunpack.c.l.b16 %v2491
        %v2787 = vunpack.c.l.b16 %v2492
        %v2788 = vunpack.c.l.b16 %v2493
        %v2789 = vunpack.c.l.b16 %v2494
        %v2790 = vunpack.c.l.b16 %v2495
        %v2791 = vunpack.c.l.b16 %v2496
        %v2792 = vunpack.c.l.b16 %v2497
        %v2793 = vunpack.c.l.b16 %v2498
        %v2794 = vunpack.c.l.b16 %v2499
        %v2795 = vunpack.c.l.b16 %v2500
        %v2796 = vunpack.c.l.b16 %v2501
        %v2797 = vunpack.c.l.b16 %v2502
        %v2798 = vunpack.c.l.b16 %v2503
        %v2799 = vunpack.c.l.b16 %v2504
        %v2800 = vunpack.c.l.b16 %v2505
        %v2801 = vunpack.c.l.b16 %v2506
        %v2802 = vunpack.c.l.b16 %v2507
        %v2803 = vunpack.c.l.b16 %v2508
        %v2804 = vunpack.c.l.b16 %v2509
        %v2805 = vunpack.c.l.b16 %v2510
        %v2806 = vunpack.c.l.b16 %v2511
        %v2807 = vunpack.c.l.b16 %v2512
        %v2808 = vunpack.c.l.b16 %v2513
        %v2809 = vunpack.c.l.b16 %v2514
        %v2810 = vunpack.c.l.b16 %v2515
        %v2811 = vunpack.c.l.b16 %v2516
        %v2812 = vunpack.c.l.b16 %v2517
        %v2813 = vunpack.c.l.b16 %v2518
        %v2814 = vunpack.c.l.b16 %v2519
        %v2815 = vunpack.c.l.b16 %v2520
        %v2816 = vunpack.c.l.b16 %v2521
        %v2817 = vunpack.c.l.b16 %v2522
        %v2818 = vunpack.c.l.b16 %v2523
        %v2819 = vunpack.c.l.b16 %v2524
        %v2820 = vunpack.c.l.b16 %v2525
        %v2821 = vunpack.c.l.b16 %v2526
        %v2822 = vunpack.c.l.b16 %v2527
        %v2823 = vunpack.c.l.b16 %v2528
        %v2824 = vunpack.c.l.b16 %v2529
        %v2825 = vunpack.c.l.b16 %v2530
        %v2826 = vunpack.c.l.b16 %v2531
        %v2827 = vunpack.c.l.b16 %v2532
        %v2828 = vunpack.c.l.b16 %v2533
        %v2829 = vunpack.c.l.b16 %v2534
        %v2830 = vunpack.c.l.b16 %v2535
        %v2831 = vunpack.c.l.b16 %v2536
        %v2832 = vunpack.c.l.b16 %v2537
        %v2833 = vunpack.c.l.b16 %v2538
        %v2834 = vunpack.c.l.b16 %v2539
        %v2835 = vunpack.c.l.b16 %v2540
        %v2836 = vunpack.c.l.b16 %v2541
        %v2837 = vunpack.c.l.b16 %v2542
        %v2838 = vunpack.c.l.b16 %v2543
        %v2839 = vunpack.c.l.b16 %v2544
        %v2840 = vunpack.c.l.b16 %v2545
        %v2841 = vunpack.c.l.b16 %v2546
        %v2842 = vunpack.c.l.b16 %v2547
        %v2843 = vunpack.c.l.b16 %v2548
        %v2844 = vunpack.c.l.b16 %v2549
        %v2845 = vunpack.c.l.b16 %v2550
        %v2846 = vunpack.c.l.b16 %v2551
        %v2847 = vunpack.c.l.b16 %v2552
        %v2848 = vunpack.c.l.b16 %v2553
        %v2849 = vunpack.c.l.b16 %v2554
        %v2850 = vunpack.c.l.b16 %v2555
        %v2851 = vunpack.c.l.b16 %v2556
        %v2852 = vunpack.c.l.b16 %v2557
        %v2853 = vunpack.c.l.b16 %v2558
        %v2854 = vunpack.c.l.b16 %v2559
        %v2855 = vunpack.c.l.b16 %v2560
        %v2856 = vunpack.c.l.b16 %v2561
        %v2857 = vunpack.c.l.b16 %v2562
        %v2858 = vunpack.c.l.b16 %v2563
        %v2859 = vunpack.c.l.b16 %v2564
        %v2860 = vunpack.c.l.b16 %v2565
        %v2861 = vunpack.c.l.b16 %v2566
        %v2862 = vunpack.c.l.b16 %v2567
        %v2863 = vunpack.c.l.b16 %v2568
        %v2864 = vunpack.c.l.b16 %v2569
        %v2865 = vpack.c.b16 %v2722, %v2721
        %v2866 = vpack.c.b16 %v2724, %v2723
        %v2867 = vpack.c.b16 %v2726, %v2725
        %v2868 = vpack.c.b16 %v2728, %v2727
        %v2869 = vpack.c.b16 %v2730, %v2729
        %v2870 = vpack.c.b16 %v2732, %v2731
        %v2871 = vpack.c.b16 %v2734, %v2733
        %v2872 = vpack.c.b16 %v2736, %v2735
        %v2873 = vpack.c.b16 %v2738, %v2737
        %v2874 = vpack.c.b16 %v2740, %v2739
        %v2875 = vpack.c.b16 %v2742, %v2741
        %v2876 = vpack.c.b16 %v2744, %v2743
        %v2877 = vpack.c.b16 %v2746, %v2745
        %v2878 = vpack.c.b16 %v2748, %v2747
        %v2879 = vpack.c.b16 %v2750, %v2749
        %v2880 = vpack.c.b16 %v2752, %v2751
        %v2881 = vpack.c.b16 %v2754, %v2753
        %v2882 = vpack.c.b16 %v2756, %v2755
        %v2883 = vpack.c.b16 %v2758, %v2757
        %v2884 = vpack.c.b16 %v2760, %v2759
        %v2885 = vpack.c.b16 %v2762, %v2761
        %v2886 = vpack.c.b16 %v2764, %v2763
        %v2887 = vpack.c.b16 %v2766, %v2765
        %v2888 = vpack.c.b16 %v2768, %v2767
        %v2889 = vpack.c.b16 %v2770, %v2769
        %v2890 = vpack.c.b16 %v2772, %v2771
        %v2891 = vpack.c.b16 %v2774, %v2773
        %v2892 = vpack.c.b16 %v2776, %v2775
        %v2893 = vpack.c.b16 %v2778, %v2777
        %v2894 = vpack.c.b16 %v2780, %v2779
        %v2895 = vpack.c.b16 %v2782, %v2781
        %v2896 = vpack.c.b16 %v2784, %v2783
        %v2897 = vpack.c.b16 %v2786, %v2785
        %v2898 = vpack.c.b16 %v2788, %v2787
        %v2899 = vpack.c.b16 %v2790, %v2789
        %v2900 = vpack.c.b16 %v2792, %v2791
        %v2901 = vpack.c.b16 %v2794, %v2793
        %v2902 = vpack.c.b16 %v2796, %v2795
        %v2903 = vpack.c.b16 %v2798, %v2797
        %v2904 = vpack.c.b16 %v2800, %v2799
        %v2905 = vpack.c.b16 %v2802, %v2801
        %v2906 = vpack.c.b16 %v2804, %v2803
        %v2907 = vpack.c.b16 %v2806, %v2805
        %v2908 = vpack.c.b16 %v2808, %v2807
        %v2909 = vpack.c.b16 %v2810, %v2809
        %v2910 = vpack.c.b16 %v2812, %v2811
        %v2911 = vpack.c.b16 %v2814, %v2813
        %v2912 = vpack.c.b16 %v2816, %v2815
        %v2913 = vpack.c.b16 %v2818, %v2817
        %v2914 = vpack.c.b16 %v2820, %v2819
        %v2915 = vpack.c.b16 %v2822, %v2821
        %v2916 = vpack.c.b16 %v2824, %v2823
        %v2917 = vpack.c.b16 %v2826, %v2825
        %v2918 = vpack.c.b16 %v2828, %v2827
        %v2919 = vpack.c.b16 %v2830, %v2829
        %v2920 = vpack.c.b16 %v2832, %v2831
        %v2921 = vpack.c.b16 %v2834, %v2833
        %v2922 = vpack.c.b16 %v2836, %v2835
        %v2923 = vpack.c.b16 %v2838, %v2837
        %v2924 = vpack.c.b16 %v2840, %v2839
        %v2925 = vpack.c.b16 %v2842, %v2841
        %v2926 = vpack.c.b16 %v2844, %v2843
        %v2927 = vpack.c.b16 %v2846, %v2845
        %v2928 = vpack.c.b16 %v2848, %v2847
        %v2929 = vpack.c.b16 %v2850, %v2849
        %v2930 = vpack.c.b16 %v2852, %v2851
        %v2931 = vpack.c.b16 %v2854, %v2853
        %v2932 = vpack.c.b16 %v2856, %v2855
        %v2933 = vpack.c.b16 %v2858, %v2857
        %v2934 = vpack.c.b16 %v2860, %v2859
        %v2935 = vpack.c.b16 %v2862, %v2861
        %v2936 = vpack.c.b16 %v2864, %v2863
        %3009 = vmatprep.subr.bf16.mxu0 0
        %3010 = vmatpush1.bf16.msra.mxu0 %v2865
        %3011 = vmatprep.subr.bf16.mxu0 0
        %3012 = vmatpush1.bf16.msra.mxu0 %v2866
        %3013 = vmatprep.subr.bf16.mxu0 0
        %3014 = vmatpush1.bf16.msra.mxu0 %v2867
        %3015 = vmatprep.subr.bf16.mxu0 0
        %3016 = vmatpush1.bf16.msra.mxu0 %v2868
        %3017 = vmatprep.subr.bf16.mxu0 0
        %3018 = vmatpush1.bf16.msra.mxu0 %v2869
        %3019 = vmatprep.subr.bf16.mxu0 0
        %3020 = vmatpush1.bf16.msra.mxu0 %v2870
        %3021 = vmatprep.subr.bf16.mxu0 0
        %3022 = vmatpush1.bf16.msra.mxu0 %v2871
        %3023 = vmatprep.subr.bf16.mxu0 0
        %3024 = vmatpush1.bf16.msra.mxu0 %v2872
        %3025 = vmatprep.subr.bf16.mxu0 0
        %3026 = vmatpush1.bf16.msra.mxu0 %v2873
        %3027 = vmatprep.subr.bf16.mxu0 0
        %3028 = vmatpush1.bf16.msra.mxu0 %v2874
        %3029 = vmatprep.subr.bf16.mxu0 0
        %3030 = vmatpush1.bf16.msra.mxu0 %v2875
        %3031 = vmatprep.subr.bf16.mxu0 0
        %3032 = vmatpush1.bf16.msra.mxu0 %v2876
        %3033 = vmatprep.subr.bf16.mxu0 0
        %3034 = vmatpush1.bf16.msra.mxu0 %v2877
        %3035 = vmatprep.subr.bf16.mxu0 0
        %3036 = vmatpush1.bf16.msra.mxu0 %v2878
        %3037 = vmatprep.subr.bf16.mxu0 0
        %3038 = vmatpush1.bf16.msra.mxu0 %v2879
        %3039 = vmatprep.subr.bf16.mxu0 0
        %3040 = vmatpush1.bf16.msra.mxu0 %v2880
        %3041 = vmatprep.mubr.bf16.mxu0 %v2400
        %3042 = vmatmul.mubr.bf16.gmra.mrb[0].mxu0 %v2399
        %v3043 = vpop.f32.mrb[0].mxu0
        %v3044 = vadd.f32 %v2575, %v3043
        %v3045 = vpop.f32.mrb[0].mxu0
        %v3046 = vpop.f32.mrb[0].mxu0
        %v3047 = vadd.f32 %v2575, %v3046
        %v3048 = vpop.f32.mrb[0].mxu0
        %3049 = vmatprep.mubr.bf16.mxu0 %v2409
        %3050 = vmatmul.mubr.bf16.gmra.mrb[0].mxu0 %v2408
        %v3051 = vpop.f32.mrb[0].mxu0
        %v3052 = vadd.f32 %v2575, %v3051
        %v3053 = vpop.f32.mrb[0].mxu0
        %v3054 = vpop.f32.mrb[0].mxu0
        %v3055 = vadd.f32 %v2575, %v3054
        %v3056 = vpop.f32.mrb[0].mxu0
        %3057 = vmatprep.mubr.bf16.mxu0 %v2418
        %3058 = vmatmul.mubr.bf16.gmra.mrb[0].mxu0 %v2417
        %v3059 = vpop.f32.mrb[0].mxu0
        %v3060 = vadd.f32 %v2575, %v3059
        %v3061 = vpop.f32.mrb[0].mxu0
        %v3062 = vpop.f32.mrb[0].mxu0
        %v3063 = vpop.f32.mrb[0].mxu0
        %3064 = vdwg.mxu0
        %3065 = vmatprep.subr.bf16.mxu0 0
        %3066 = vmatpush1.bf16.msra.mxu0 %v2881
        %3067 = vmatprep.subr.bf16.mxu0 0
        %3068 = vmatpush1.bf16.msra.mxu0 %v2882
        %3069 = vmatprep.subr.bf16.mxu0 0
        %3070 = vmatpush1.bf16.msra.mxu0 %v2883
        %3071 = vmatprep.subr.bf16.mxu0 0
        %3072 = vmatpush1.bf16.msra.mxu0 %v2884
        %3073 = vmatprep.subr.bf16.mxu0 0
        %3074 = vmatpush1.bf16.msra.mxu0 %v2885
        %3075 = vmatprep.subr.bf16.mxu0 0
        %3076 = vmatpush1.bf16.msra.mxu0 %v2886
        %3077 = vmatprep.subr.bf16.mxu0 0
        %3078 = vmatpush1.bf16.msra.mxu0 %v2887
        %3079 = vmatprep.subr.bf16.mxu0 0
        %3080 = vmatpush1.bf16.msra.mxu0 %v2888
        %3081 = vmatprep.subr.bf16.mxu0 0
        %3082 = vmatpush1.bf16.msra.mxu0 %v2889
        %3083 = vmatprep.subr.bf16.mxu0 0
        %3084 = vmatpush1.bf16.msra.mxu0 %v2890
        %3085 = vmatprep.subr.bf16.mxu0 0
        %3086 = vmatpush1.bf16.msra.mxu0 %v2891
        %3087 = vmatprep.subr.bf16.mxu0 0
        %3088 = vmatpush1.bf16.msra.mxu0 %v2892
        %3089 = vmatprep.subr.bf16.mxu0 0
        %3090 = vmatpush1.bf16.msra.mxu0 %v2893
        %3091 = vmatprep.subr.bf16.mxu0 0
        %3092 = vmatpush1.bf16.msra.mxu0 %v2894
        %3093 = vmatprep.subr.bf16.mxu0 0
        %3094 = vmatpush1.bf16.msra.mxu0 %v2895
        %3095 = vmatprep.subr.bf16.mxu0 0
        %3096 = vmatpush1.bf16.msra.mxu0 %v2896
        %3097 = vmatprep.mubr.bf16.mxu0 %v2402
        %3098 = vmatmul.mubr.bf16.gmra.mrb[0].mxu0 %v2401
        %v3099 = vpop.f32.mrb[0].mxu0
        %v3100 = vadd.f32 %v3044, %v3099
        %v3101 = vpop.f32.mrb[0].mxu0
        %v3102 = vpop.f32.mrb[0].mxu0
        %v3103 = vadd.f32 %v3047, %v3102
        %v3104 = vpop.f32.mrb[0].mxu0
        %3105 = vmatprep.mubr.bf16.mxu0 %v2411
        %3106 = vmatmul.mubr.bf16.gmra.mrb[0].mxu0 %v2410
        %v3107 = vpop.f32.mrb[0].mxu0
        %v3108 = vadd.f32 %v3052, %v3107
        %v3109 = vpop.f32.mrb[0].mxu0
        %v3110 = vpop.f32.mrb[0].mxu0
        %v3111 = vadd.f32 %v3055, %v3110
        %v3112 = vpop.f32.mrb[0].mxu0
        %3113 = vmatprep.mubr.bf16.mxu0 %v2420
        %3114 = vmatmul.mubr.bf16.gmra.mrb[0].mxu0 %v2419
        %v3115 = vpop.f32.mrb[0].mxu0
        %v3116 = vadd.f32 %v3060, %v3115
        %v3117 = vpop.f32.mrb[0].mxu0
        %v3118 = vpop.f32.mrb[0].mxu0
        %v3119 = vpop.f32.mrb[0].mxu0
        %3120 = vdwg.mxu0
        %3121 = vmatprep.subr.bf16.mxu0 0
        %3122 = vmatpush1.bf16.msra.mxu0 %v2897
        %3123 = vmatprep.subr.bf16.mxu0 0
        %3124 = vmatpush1.bf16.msra.mxu0 %v2898
        %3125 = vmatprep.subr.bf16.mxu0 0
        %3126 = vmatpush1.bf16.msra.mxu0 %v2899
        %3127 = vmatprep.subr.bf16.mxu0 0
        %3128 = vmatpush1.bf16.msra.mxu0 %v2900
        %3129 = vmatprep.subr.bf16.mxu0 0
        %3130 = vmatpush1.bf16.msra.mxu0 %v2901
        %3131 = vmatprep.subr.bf16.mxu0 0
        %3132 = vmatpush1.bf16.msra.mxu0 %v2902
        %3133 = vmatprep.subr.bf16.mxu0 0
        %3134 = vmatpush1.bf16.msra.mxu0 %v2903
        %3135 = vmatprep.subr.bf16.mxu0 0
        %3136 = vmatpush1.bf16.msra.mxu0 %v2904
        %3137 = vmatprep.subr.bf16.mxu0 0
        %3138 = vmatpush1.bf16.msra.mxu0 %v2905
        %3139 = vmatprep.subr.bf16.mxu0 0
        %3140 = vmatpush1.bf16.msra.mxu0 %v2906
        %3141 = vmatprep.subr.bf16.mxu0 0
        %3142 = vmatpush1.bf16.msra.mxu0 %v2907
        %3143 = vmatprep.subr.bf16.mxu0 0
        %3144 = vmatpush1.bf16.msra.mxu0 %v2908
        %3145 = vmatprep.subr.bf16.mxu0 0
        %3146 = vmatpush1.bf16.msra.mxu0 %v2909
        %3147 = vmatprep.subr.bf16.mxu0 0
        %3148 = vmatpush1.bf16.msra.mxu0 %v2910
        %3149 = vmatprep.subr.bf16.mxu0 0
        %3150 = vmatpush1.bf16.msra.mxu0 %v2911
        %3151 = vmatprep.subr.bf16.mxu0 0
        %3152 = vmatpush1.bf16.msra.mxu0 %v2912
        %3153 = vmatprep.mubr.bf16.mxu0 %v2404
        %3154 = vmatmul.mubr.bf16.gmra.mrb[0].mxu0 %v2403
        %v3155 = vpop.f32.mrb[0].mxu0
        %v3156 = vadd.f32 %v3100, %v3155
        %v3157 = vpop.f32.mrb[0].mxu0
        %v3158 = vpop.f32.mrb[0].mxu0
        %v3159 = vadd.f32 %v3103, %v3158
        %v3160 = vpop.f32.mrb[0].mxu0
        %3161 = vmatprep.mubr.bf16.mxu0 %v2413
        %3162 = vmatmul.mubr.bf16.gmra.mrb[0].mxu0 %v2412
        %v3163 = vpop.f32.mrb[0].mxu0
        %v3164 = vadd.f32 %v3108, %v3163
        %v3165 = vpop.f32.mrb[0].mxu0
        %v3166 = vpop.f32.mrb[0].mxu0
        %v3167 = vadd.f32 %v3111, %v3166
        %v3168 = vpop.f32.mrb[0].mxu0
        %3169 = vmatprep.mubr.bf16.mxu0 %v2422
        %3170 = vmatmul.mubr.bf16.gmra.mrb[0].mxu0 %v2421
        %v3171 = vpop.f32.mrb[0].mxu0
        %v3172 = vadd.f32 %v3116, %v3171
        %v3173 = vpop.f32.mrb[0].mxu0
        %v3174 = vpop.f32.mrb[0].mxu0
        %v3175 = vpop.f32.mrb[0].mxu0
        %3176 = vdwg.mxu0
        %3177 = vmatprep.subr.bf16.mxu0 0
        %3178 = vmatpush1.bf16.msra.mxu0 %v2913
        %3179 = vmatprep.subr.bf16.mxu0 0
        %3180 = vmatpush1.bf16.msra.mxu0 %v2914
        %3181 = vmatprep.subr.bf16.mxu0 0
        %3182 = vmatpush1.bf16.msra.mxu0 %v2915
        %3183 = vmatprep.subr.bf16.mxu0 0
        %3184 = vmatpush1.bf16.msra.mxu0 %v2916
        %3185 = vmatprep.subr.bf16.mxu0 0
        %3186 = vmatpush1.bf16.msra.mxu0 %v2917
        %3187 = vmatprep.subr.bf16.mxu0 0
        %3188 = vmatpush1.bf16.msra.mxu0 %v2918
        %3189 = vmatprep.subr.bf16.mxu0 0
        %3190 = vmatpush1.bf16.msra.mxu0 %v2919
        %3191 = vmatprep.subr.bf16.mxu0 0
        %3192 = vmatpush1.bf16.msra.mxu0 %v2920
        %3193 = vmatprep.subr.bf16.mxu0 0
        %3194 = vmatpush1.bf16.msra.mxu0 %v2921
        %3195 = vmatprep.subr.bf16.mxu0 0
        %3196 = vmatpush1.bf16.msra.mxu0 %v2922
        %3197 = vmatprep.subr.bf16.mxu0 0
        %3198 = vmatpush1.bf16.msra.mxu0 %v2923
        %3199 = vmatprep.subr.bf16.mxu0 0
        %3200 = vmatpush1.bf16.msra.mxu0 %v2924
        %3201 = vmatprep.subr.bf16.mxu0 0
        %3202 = vmatpush1.bf16.msra.mxu0 %v2925
        %3203 = vmatprep.subr.bf16.mxu0 0
        %3204 = vmatpush1.bf16.msra.mxu0 %v2926
        %3205 = vmatprep.subr.bf16.mxu0 0
        %3206 = vmatpush1.bf16.msra.mxu0 %v2927
        %3207 = vmatprep.subr.bf16.mxu0 0
        %3208 = vmatpush1.bf16.msra.mxu0 %v2928
        %3209 = vmatprep.mubr.bf16.mxu0 %v2406
        %3210 = vmatmul.mubr.bf16.gmra.mrb[0].mxu0 %v2405
        %v3211 = vpop.f32.mrb[0].mxu0
        %v3212 = vadd.f32 %v3156, %v3211
        %v3213 = vpop.f32.mrb[0].mxu0
        %v3214 = vpop.f32.mrb[0].mxu0
        %v3215 = vadd.f32 %v3159, %v3214
        %v3216 = vpop.f32.mrb[0].mxu0
        %3217 = vmatprep.mubr.bf16.mxu0 %v2415
        %3218 = vmatmul.mubr.bf16.gmra.mrb[0].mxu0 %v2414
        %v3219 = vpop.f32.mrb[0].mxu0
        %v3220 = vadd.f32 %v3164, %v3219
        %v3221 = vpop.f32.mrb[0].mxu0
        %v3222 = vpop.f32.mrb[0].mxu0
        %v3223 = vadd.f32 %v3167, %v3222
        %v3224 = vpop.f32.mrb[0].mxu0
        %3225 = vmatprep.mubr.bf16.mxu0 %v2424
        %3226 = vmatmul.mubr.bf16.gmra.mrb[0].mxu0 %v2423
        %v3227 = vpop.f32.mrb[0].mxu0
        %v3228 = vadd.f32 %v3172, %v3227
        %v3229 = vpop.f32.mrb[0].mxu0
        %v3230 = vpop.f32.mrb[0].mxu0
        %v3231 = vpop.f32.mrb[0].mxu0
        %3232 = vdwg.mxu0
        %3233 = vmatprep.subr.bf16.mxu0 0
        %3234 = vmatpush1.bf16.msra.mxu0 %v2929
        %3235 = vmatprep.subr.bf16.mxu0 0
        %3236 = vmatpush1.bf16.msra.mxu0 %v2930
        %3237 = vmatprep.subr.bf16.mxu0 0
        %3238 = vmatpush1.bf16.msra.mxu0 %v2931
        %3239 = vmatprep.subr.bf16.mxu0 0
        %3240 = vmatpush1.bf16.msra.mxu0 %v2932
        %3241 = vmatprep.subr.bf16.mxu0 0
        %3242 = vmatpush1.bf16.msra.mxu0 %v2933
        %3243 = vmatprep.subr.bf16.mxu0 0
        %3244 = vmatpush1.bf16.msra.mxu0 %v2934
        %3245 = vmatprep.subr.bf16.mxu0 0
        %3246 = vmatpush1.bf16.msra.mxu0 %v2935
        %3247 = vmatprep.subr.bf16.mxu0 0
        %3248 = vmatpush1.bf16.msra.mxu0 %v2936
        %3249 = vmatprep.subr.bf16.mxu0 0
        %3250 = vmatpush1.bf16.msra.mxu0 0
        %3251 = vmatprep.subr.bf16.mxu0 0
        %3252 = vmatpush1.bf16.msra.mxu0 0
        %3253 = vmatprep.subr.bf16.mxu0 0
        %3254 = vmatpush1.bf16.msra.mxu0 0
        %3255 = vmatprep.subr.bf16.mxu0 0
        %3256 = vmatpush1.bf16.msra.mxu0 0
        %3257 = vmatprep.subr.bf16.mxu0 0
        %3258 = vmatpush1.bf16.msra.mxu0 0
        %3259 = vmatprep.subr.bf16.mxu0 0
        %3260 = vmatpush1.bf16.msra.mxu0 0
        %3261 = vmatprep.subr.bf16.mxu0 0
        %3262 = vmatpush1.bf16.msra.mxu0 0
        %3263 = vmatprep.subr.bf16.mxu0 0
        %3264 = vmatpush1.bf16.msra.mxu0 0
        %3265 = vmatprep.mubr.bf16.mxu0 0
        %3266 = vmatmul.mubr.bf16.gmra.mrb[0].mxu0 %v2407
        %v3267 = vpop.f32.mrb[0].mxu0
        %v3268 = vadd.f32 %v3212, %v3267
        %v3269 = vpop.f32.mrb[0].mxu0
        %v3270 = vpop.f32.mrb[0].mxu0
        %v3271 = vadd.f32 %v3215, %v3270
        %v3272 = vpop.f32.mrb[0].mxu0
        %3273 = vmatprep.mubr.bf16.mxu0 0
        %3274 = vmatmul.mubr.bf16.gmra.mrb[0].mxu0 %v2416
        %v3275 = vpop.f32.mrb[0].mxu0
        %v3276 = vadd.f32 %v3220, %v3275
        %v3277 = vpop.f32.mrb[0].mxu0
        %v3278 = vpop.f32.mrb[0].mxu0
        %v3279 = vadd.f32 %v3223, %v3278
        %v3280 = vpop.f32.mrb[0].mxu0
        %3281 = vmatprep.mubr.bf16.mxu0 0
        %3282 = vmatmul.mubr.bf16.gmra.mrb[0].mxu0 %v2425
        %v3283 = vpop.f32.mrb[0].mxu0
        %v3284 = vadd.f32 %v3228, %v3283
        %v3285 = vpop.f32.mrb[0].mxu0
        %v3286 = vpop.f32.mrb[0].mxu0
        %v3287 = vpop.f32.mrb[0].mxu0
        %3288 = vdwg.mxu0
        %v3289 = vmax.f32 %v3268, 0.0
        %v3290 = vmax.f32 %v3271, 0.0
        %v3291 = vmax.f32 %v3276, 0.0
        %v3292 = vmax.f32 %v3279, 0.0
        %v3293 = vmax.f32 %v3284, 0.0
        %3294 = vst [vmem:[#allocation7] sm:$0xff] %v3289
        %3295 = vst [vmem:[#allocation7 + $0x8] sm:$0xff] %v3290
        %3296 = vst [vmem:[#allocation7 + $0x10] sm:$0xff] %v3291
        %3297 = vst [vmem:[#allocation7 + $0x18] sm:$0xff] %v3292
        %3298 = vst [vmem:[#allocation7 + $0x20] sm:$0xf] %v3293
        %v3299 = vld [vmem:[#allocation7] sm:$0xf]
        %3300 = vst [vmem:[#allocation4] sm:$0xf] %v3299
        %v3301 = vld [vmem:[#allocation7 + $0x1] sm:$0xf]
        %3302 = vst [vmem:[#allocation4 + $0x8] sm:$0xf] %v3301
        %v3303 = vld [vmem:[#allocation7 + $0x2] sm:$0xf]
        %3304 = vst [vmem:[#allocation4 + $0x10] sm:$0xf] %v3303
        %v3305 = vld [vmem:[#allocation7 + $0x6] sm:$0xf]
        %3306 = vst [vmem:[#allocation4 + $0x18] sm:$0xf] %v3305
        %v3307 = vld [vmem:[#allocation7 + $0x7] sm:$0xf]
        %3308 = vst [vmem:[#allocation4 + $0x20] sm:$0xf] %v3307
        %v3309 = vld [vmem:[#allocation7 + $0x8] sm:$0xf]
        %3310 = vst [vmem:[#allocation4 + $0x28] sm:$0xf] %v3309
        %v3311 = vld [vmem:[#allocation7 + $0xc] sm:$0xf]
        %3312 = vst [vmem:[#allocation4 + $0x30] sm:$0xf] %v3311
        %v3313 = vld [vmem:[#allocation7 + $0xd] sm:$0xf]
        %3314 = vst [vmem:[#allocation4 + $0x38] sm:$0xf] %v3313
        %v3315 = vld [vmem:[#allocation7 + $0xe] sm:$0xf]
        %3316 = vst [vmem:[#allocation4 + $0x40] sm:$0xf] %v3315
        %v3317 = vld [vmem:[#allocation7 + $0x6] sm:$0xf]
        %v3319 = vrot.slane %v3317, 4
        %3321 = vst [vmem:[#allocation4] sm:$0xf0] %v3319
        %v3322 = vld [vmem:[#allocation7 + $0x7] sm:$0xf]
        %v3324 = vrot.slane %v3322, 4
        %3326 = vst [vmem:[#allocation4 + $0x8] sm:$0xf0] %v3324
        %v3327 = vld [vmem:[#allocation7 + $0x8] sm:$0xf]
        %v3329 = vrot.slane %v3327, 4
        %3331 = vst [vmem:[#allocation4 + $0x10] sm:$0xf0] %v3329
        %v3332 = vld [vmem:[#allocation7 + $0xc] sm:$0xf]
        %v3334 = vrot.slane %v3332, 4
        %3336 = vst [vmem:[#allocation4 + $0x18] sm:$0xf0] %v3334
        %v3337 = vld [vmem:[#allocation7 + $0xd] sm:$0xf]
        %v3339 = vrot.slane %v3337, 4
        %3341 = vst [vmem:[#allocation4 + $0x20] sm:$0xf0] %v3339
        %v3342 = vld [vmem:[#allocation7 + $0xe] sm:$0xf]
        %v3344 = vrot.slane %v3342, 4
        %3346 = vst [vmem:[#allocation4 + $0x28] sm:$0xf0] %v3344
        %v3347 = vld [vmem:[#allocation7 + $0x12] sm:$0xf]
        %v3349 = vrot.slane %v3347, 4
        %3351 = vst [vmem:[#allocation4 + $0x30] sm:$0xf0] %v3349
        %v3352 = vld [vmem:[#allocation7 + $0x13] sm:$0xf]
        %v3354 = vrot.slane %v3352, 4
        %3356 = vst [vmem:[#allocation4 + $0x38] sm:$0xf0] %v3354
        %v3357 = vld [vmem:[#allocation7 + $0x14] sm:$0xf]
        %v3359 = vrot.slane %v3357, 4
        %3361 = vst [vmem:[#allocation4 + $0x40] sm:$0xf0] %v3359
        %v3362 = vld [vmem:[#allocation7 + $0xc] sm:$0xf]
        %3363 = vst [vmem:[#allocation4 + $0x48] sm:$0xf] %v3362
        %v3364 = vld [vmem:[#allocation7 + $0xd] sm:$0xf]
        %3365 = vst [vmem:[#allocation4 + $0x50] sm:$0xf] %v3364
        %v3366 = vld [vmem:[#allocation7 + $0xe] sm:$0xf]
        %3367 = vst [vmem:[#allocation4 + $0x58] sm:$0xf] %v3366
        %v3368 = vld [vmem:[#allocation7 + $0x12] sm:$0xf]
        %3369 = vst [vmem:[#allocation4 + $0x60] sm:$0xf] %v3368
        %v3370 = vld [vmem:[#allocation7 + $0x13] sm:$0xf]
        %3371 = vst [vmem:[#allocation4 + $0x68] sm:$0xf] %v3370
        %v3372 = vld [vmem:[#allocation7 + $0x14] sm:$0xf]
        %3373 = vst [vmem:[#allocation4 + $0x70] sm:$0xf] %v3372
        %v3374 = vld [vmem:[#allocation7 + $0x18] sm:$0xf]
        %3375 = vst [vmem:[#allocation4 + $0x78] sm:$0xf] %v3374
        %v3376 = vld [vmem:[#allocation7 + $0x19] sm:$0xf]
        %3377 = vst [vmem:[#allocation4 + $0x80] sm:$0xf] %v3376
        %v3378 = vld [vmem:[#allocation7 + $0x1a] sm:$0xf]
        %3379 = vst [vmem:[#allocation4 + $0x88] sm:$0xf] %v3378
        %v3380 = vld [vmem:[#allocation7 + $0x12] sm:$0xf]
        %v3382 = vrot.slane %v3380, 4
        %3384 = vst [vmem:[#allocation4 + $0x48] sm:$0xf0] %v3382
        %v3385 = vld [vmem:[#allocation7 + $0x13] sm:$0xf]
        %v3387 = vrot.slane %v3385, 4
        %3389 = vst [vmem:[#allocation4 + $0x50] sm:$0xf0] %v3387
        %v3390 = vld [vmem:[#allocation7 + $0x14] sm:$0xf]
        %v3392 = vrot.slane %v3390, 4
        %3394 = vst [vmem:[#allocation4 + $0x58] sm:$0xf0] %v3392
        %v3395 = vld [vmem:[#allocation7 + $0x18] sm:$0xf]
        %v3397 = vrot.slane %v3395, 4
        %3399 = vst [vmem:[#allocation4 + $0x60] sm:$0xf0] %v3397
        %v3400 = vld [vmem:[#allocation7 + $0x19] sm:$0xf]
        %v3402 = vrot.slane %v3400, 4
        %3404 = vst [vmem:[#allocation4 + $0x68] sm:$0xf0] %v3402
        %v3405 = vld [vmem:[#allocation7 + $0x1a] sm:$0xf]
        %v3407 = vrot.slane %v3405, 4
        %3409 = vst [vmem:[#allocation4 + $0x70] sm:$0xf0] %v3407
        %v3410 = vld [vmem:[#allocation7 + $0x1e] sm:$0xf]
        %v3412 = vrot.slane %v3410, 4
        %3414 = vst [vmem:[#allocation4 + $0x78] sm:$0xf0] %v3412
        %v3415 = vld [vmem:[#allocation7 + $0x1f] sm:$0xf]
        %v3417 = vrot.slane %v3415, 4
        %3419 = vst [vmem:[#allocation4 + $0x80] sm:$0xf0] %v3417
        %v3420 = vld [vmem:[#allocation7 + $0x20] sm:$0xf]
        %v3422 = vrot.slane %v3420, 4
        %3424 = vst [vmem:[#allocation4 + $0x88] sm:$0xf0] %v3422
        %v3425 = vld [vmem:[#allocation4] sm:$0xff]
        %v3426 = vld [vmem:[#allocation4 + $0x8] sm:$0xff]
        %v3427 = vld [vmem:[#allocation4 + $0x10] sm:$0xff]
        %v3428 = vld [vmem:[#allocation4 + $0x18] sm:$0xff]
        %v3429 = vld [vmem:[#allocation4 + $0x20] sm:$0xff]
        %v3430 = vld [vmem:[#allocation4 + $0x28] sm:$0xff]
        %v3431 = vld [vmem:[#allocation4 + $0x30] sm:$0xff]
        %v3432 = vld [vmem:[#allocation4 + $0x38] sm:$0xff]
        %v3433 = vld [vmem:[#allocation4 + $0x40] sm:$0xff]
        %v3434 = vld [vmem:[#allocation4 + $0x48] sm:$0xff]
        %v3435 = vld [vmem:[#allocation4 + $0x50] sm:$0xff]
        %v3436 = vld [vmem:[#allocation4 + $0x58] sm:$0xff]
        %v3437 = vld [vmem:[#allocation4 + $0x60] sm:$0xff]
        %v3438 = vld [vmem:[#allocation4 + $0x68] sm:$0xff]
        %v3439 = vld [vmem:[#allocation4 + $0x70] sm:$0xff]
        %v3440 = vld [vmem:[#allocation4 + $0x78] sm:$0xff]
        %v3441 = vld [vmem:[#allocation4 + $0x80] sm:$0xff]
        %v3442 = vld [vmem:[#allocation4 + $0x88] sm:$0xff]
        %v3443 = vpack.c.bf16 %v3434, %v3425
        %v3444 = vpack.c.bf16 %v3435, %v3426
        %v3445 = vpack.c.bf16 %v3436, %v3427
        %v3446 = vpack.c.bf16 %v3437, %v3428
        %v3447 = vpack.c.bf16 %v3438, %v3429
        %v3448 = vpack.c.bf16 %v3439, %v3430
        %v3449 = vpack.c.bf16 %v3440, %v3431
        %v3450 = vpack.c.bf16 %v3441, %v3432
        %v3451 = vpack.c.bf16 %v3442, %v3433
        %v3452 = vld [vmem:[#allocation9] sm:$0xf]
        %v3453 = vld [vmem:[#allocation9 + $0x4] sm:$0xf]
        %v3454 = vld [vmem:[#allocation9 + $0x8] sm:$0xf]
        %v3455 = vld [vmem:[#allocation9 + $0xc] sm:$0xf]
        %v3456 = vld [vmem:[#allocation9 + $0x10] sm:$0xf]
        %v3457 = vld [vmem:[#allocation9 + $0x14] sm:$0xf]
        %v3458 = vld [vmem:[#allocation9 + $0x18] sm:$0xf]
        %v3459 = vld [vmem:[#allocation9 + $0x1c] sm:$0xf]
        %v3460 = vld [vmem:[#allocation9 + $0x20] sm:$0xf]
        %v3461 = vld [vmem:[#allocation9 + $0x24] sm:$0xf]
        %v3462 = vld [vmem:[#allocation9 + $0x28] sm:$0xf]
        %v3463 = vld [vmem:[#allocation9 + $0x2c] sm:$0xf]
        %v3464 = vld [vmem:[#allocation9 + $0x30] sm:$0xf]
        %v3465 = vld [vmem:[#allocation9 + $0x34] sm:$0xf]
        %v3466 = vld [vmem:[#allocation9 + $0x38] sm:$0xf]
        %v3467 = vld [vmem:[#allocation9 + $0x3c] sm:$0xf]
        %v3468 = vld [vmem:[#allocation9 + $0x40] sm:$0xf]
        %v3469 = vld [vmem:[#allocation9 + $0x44] sm:$0xf]
        %v3470 = vld [vmem:[#allocation9 + $0x48] sm:$0xf]
        %v3471 = vld [vmem:[#allocation9 + $0x4c] sm:$0xf]
        %v3472 = vld [vmem:[#allocation9 + $0x50] sm:$0xf]
        %v3473 = vld [vmem:[#allocation9 + $0x54] sm:$0xf]
        %v3474 = vld [vmem:[#allocation9 + $0x58] sm:$0xf]
        %v3475 = vld [vmem:[#allocation9 + $0x5c] sm:$0xf]
        %v3476 = vld [vmem:[#allocation9 + $0x60] sm:$0xf]
        %v3477 = vld [vmem:[#allocation9 + $0x64] sm:$0xf]
        %v3478 = vld [vmem:[#allocation9 + $0x68] sm:$0xf]
        %v3479 = vld [vmem:[#allocation9 + $0x6c] sm:$0xf]
        %v3480 = vld [vmem:[#allocation9 + $0x70] sm:$0xf]
        %v3481 = vld [vmem:[#allocation9 + $0x74] sm:$0xf]
        %v3482 = vld [vmem:[#allocation9 + $0x78] sm:$0xf]
        %v3483 = vld [vmem:[#allocation9 + $0x7c] sm:$0xf]
        %v3484 = vld [vmem:[#allocation9 + $0x80] sm:$0xf]
        %v3485 = vld [vmem:[#allocation9 + $0x84] sm:$0xf]
        %v3486 = vld [vmem:[#allocation9 + $0x88] sm:$0xf]
        %v3487 = vld [vmem:[#allocation9 + $0x8c] sm:$0xf]
        %v3488 = vld [vmem:[#allocation9 + $0x90] sm:$0xf]
        %v3489 = vld [vmem:[#allocation9 + $0x94] sm:$0xf]
        %v3490 = vld [vmem:[#allocation9 + $0x98] sm:$0xf]
        %v3491 = vld [vmem:[#allocation9 + $0x9c] sm:$0xf]
        %v3492 = vld [vmem:[#allocation9 + $0xa0] sm:$0xf]
        %v3493 = vld [vmem:[#allocation9 + $0xa4] sm:$0xf]
        %v3494 = vld [vmem:[#allocation9 + $0xa8] sm:$0xf]
        %v3495 = vld [vmem:[#allocation9 + $0xac] sm:$0xf]
        %v3496 = vld [vmem:[#allocation9 + $0xb0] sm:$0xf]
        %v3497 = vld [vmem:[#allocation9 + $0xb4] sm:$0xf]
        %v3498 = vld [vmem:[#allocation9 + $0xb8] sm:$0xf]
        %v3499 = vld [vmem:[#allocation9 + $0xbc] sm:$0xf]
        %v3500 = vld [vmem:[#allocation9 + $0xc0] sm:$0xf]
        %v3501 = vld [vmem:[#allocation9 + $0xc4] sm:$0xf]
        %v3502 = vld [vmem:[#allocation9 + $0xc8] sm:$0xf]
        %v3503 = vld [vmem:[#allocation9 + $0xcc] sm:$0xf]
        %v3504 = vld [vmem:[#allocation9 + $0xd0] sm:$0xf]
        %v3505 = vld [vmem:[#allocation9 + $0xd4] sm:$0xf]
        %v3506 = vld [vmem:[#allocation9 + $0xd8] sm:$0xf]
        %v3507 = vld [vmem:[#allocation9 + $0xdc] sm:$0xf]
        %v3508 = vld [vmem:[#allocation9 + $0xe0] sm:$0xf]
        %v3509 = vld [vmem:[#allocation9 + $0xe4] sm:$0xf]
        %v3510 = vld [vmem:[#allocation9 + $0xe8] sm:$0xf]
        %v3511 = vld [vmem:[#allocation9 + $0xec] sm:$0xf]
        %v3512 = vld [vmem:[#allocation9 + $0xf0] sm:$0xf]
        %v3513 = vld [vmem:[#allocation9 + $0xf4] sm:$0xf]
        %v3514 = vld [vmem:[#allocation9 + $0xf8] sm:$0xf]
        %v3515 = vld [vmem:[#allocation9 + $0xfc] sm:$0xf]
        %v3516 = vld [vmem:[#allocation9 + $0x100] sm:$0xf]
        %v3517 = vld [vmem:[#allocation9 + $0x104] sm:$0xf]
        %v3518 = vld [vmem:[#allocation9 + $0x108] sm:$0xf]
        %v3519 = vld [vmem:[#allocation9 + $0x10c] sm:$0xf]
        %v3520 = vld [vmem:[#allocation9 + $0x110] sm:$0xf]
        %v3521 = vld [vmem:[#allocation9 + $0x114] sm:$0xf]
        %v3522 = vld [vmem:[#allocation9 + $0x118] sm:$0xf]
        %v3523 = vld [vmem:[#allocation9 + $0x11c] sm:$0xf]
        %v3524 = vld [vmem:[#allocation9 + $0x120] sm:$0xf]
        %v3525 = vld [vmem:[#allocation9 + $0x124] sm:$0xf]
        %v3526 = vld [vmem:[#allocation9 + $0x128] sm:$0xf]
        %v3527 = vld [vmem:[#allocation9 + $0x12c] sm:$0xf]
        %v3528 = vld [vmem:[#allocation9 + $0x130] sm:$0xf]
        %v3529 = vld [vmem:[#allocation9 + $0x134] sm:$0xf]
        %v3530 = vld [vmem:[#allocation9 + $0x138] sm:$0xf]
        %v3531 = vld [vmem:[#allocation9 + $0x13c] sm:$0xf]
        %v3532 = vld [vmem:[#allocation9 + $0x140] sm:$0xf]
        %v3533 = vld [vmem:[#allocation9 + $0x144] sm:$0xf]
        %v3534 = vld [vmem:[#allocation9 + $0x148] sm:$0xf]
        %v3535 = vld [vmem:[#allocation9 + $0x14c] sm:$0xf]
        %v3536 = vld [vmem:[#allocation9 + $0x150] sm:$0xf]
        %v3537 = vld [vmem:[#allocation9 + $0x154] sm:$0xf]
        %v3538 = vld [vmem:[#allocation9 + $0x158] sm:$0xf]
        %v3539 = vld [vmem:[#allocation9 + $0x15c] sm:$0xf]
        %v3540 = vld [vmem:[#allocation9 + $0x160] sm:$0xf]
        %v3541 = vld [vmem:[#allocation9 + $0x164] sm:$0xf]
        %v3542 = vld [vmem:[#allocation9 + $0x168] sm:$0xf]
        %v3543 = vld [vmem:[#allocation9 + $0x16c] sm:$0xf]
        %v3544 = vld [vmem:[#allocation9 + $0x170] sm:$0xf]
        %v3545 = vld [vmem:[#allocation9 + $0x174] sm:$0xf]
        %v3546 = vld [vmem:[#allocation9 + $0x178] sm:$0xf]
        %v3547 = vld [vmem:[#allocation9 + $0x17c] sm:$0xf]
        %v3548 = vld [vmem:[#allocation9 + $0x180] sm:$0xf]
        %v3549 = vld [vmem:[#allocation9 + $0x184] sm:$0xf]
        %v3550 = vld [vmem:[#allocation9 + $0x188] sm:$0xf]
        %v3551 = vld [vmem:[#allocation9 + $0x18c] sm:$0xf]
        %v3552 = vld [vmem:[#allocation9 + $0x190] sm:$0xf]
        %v3553 = vld [vmem:[#allocation9 + $0x194] sm:$0xf]
        %v3554 = vld [vmem:[#allocation9 + $0x198] sm:$0xf]
        %v3555 = vld [vmem:[#allocation9 + $0x19c] sm:$0xf]
        %v3556 = vld [vmem:[#allocation9 + $0x1a0] sm:$0xf]
        %v3557 = vld [vmem:[#allocation9 + $0x1a4] sm:$0xf]
        %v3558 = vld [vmem:[#allocation9 + $0x1a8] sm:$0xf]
        %v3559 = vld [vmem:[#allocation9 + $0x1ac] sm:$0xf]
        %v3560 = vld [vmem:[#allocation9 + $0x1b0] sm:$0xf]
        %v3561 = vld [vmem:[#allocation9 + $0x1b4] sm:$0xf]
        %v3562 = vld [vmem:[#allocation9 + $0x1b8] sm:$0xf]
        %v3563 = vld [vmem:[#allocation9 + $0x1bc] sm:$0xf]
        %v3564 = vld [vmem:[#allocation9 + $0x1c0] sm:$0xf]
        %v3565 = vld [vmem:[#allocation9 + $0x1c4] sm:$0xf]
        %v3566 = vld [vmem:[#allocation9 + $0x1c8] sm:$0xf]
        %v3567 = vld [vmem:[#allocation9 + $0x1cc] sm:$0xf]
        %v3568 = vld [vmem:[#allocation9 + $0x1d0] sm:$0xf]
        %v3569 = vld [vmem:[#allocation9 + $0x1d4] sm:$0xf]
        %v3570 = vld [vmem:[#allocation9 + $0x1d8] sm:$0xf]
        %v3571 = vld [vmem:[#allocation9 + $0x1dc] sm:$0xf]
        %v3572 = vld [vmem:[#allocation9 + $0x1e0] sm:$0xf]
        %v3573 = vld [vmem:[#allocation9 + $0x1e4] sm:$0xf]
        %v3574 = vld [vmem:[#allocation9 + $0x1e8] sm:$0xf]
        %v3575 = vld [vmem:[#allocation9 + $0x1ec] sm:$0xf]
        %v3576 = vld [vmem:[#allocation9 + $0x1f0] sm:$0xf]
        %v3577 = vld [vmem:[#allocation9 + $0x1f4] sm:$0xf]
        %v3578 = vld [vmem:[#allocation9 + $0x1f8] sm:$0xf]
        %v3579 = vld [vmem:[#allocation9 + $0x1fc] sm:$0xf]
        %v3580 = vld [vmem:[#allocation9 + $0x200] sm:$0xf]
        %v3581 = vld [vmem:[#allocation9 + $0x204] sm:$0xf]
        %v3582 = vld [vmem:[#allocation9 + $0x208] sm:$0xf]
        %v3583 = vld [vmem:[#allocation9 + $0x20c] sm:$0xf]
        %v3584 = vld [vmem:[#allocation9 + $0x210] sm:$0xf]
        %v3585 = vld [vmem:[#allocation9 + $0x214] sm:$0xf]
        %v3586 = vld [vmem:[#allocation9 + $0x218] sm:$0xf]
        %v3587 = vld [vmem:[#allocation9 + $0x21c] sm:$0xf]
        %v3588 = vld [vmem:[#allocation9 + $0x220] sm:$0xf]
        %v3589 = vld [vmem:[#allocation9 + $0x224] sm:$0xf]
        %v3590 = vld [vmem:[#allocation9 + $0x228] sm:$0xf]
        %v3591 = vld [vmem:[#allocation9 + $0x22c] sm:$0xf]
        %v3592 = vld [vmem:[#allocation9 + $0x230] sm:$0xf]
        %v3593 = vld [vmem:[#allocation9 + $0x234] sm:$0xf]
        %v3594 = vld [vmem:[#allocation9 + $0x238] sm:$0xf]
        %v3595 = vld [vmem:[#allocation9 + $0x23c] sm:$0xf]
        %v3596 = vld [vmem:[%s6] sm:$0x1]
        %v3598 = vlaneseq
        %v3599 = vshrl.u32 %v3598, 7
        %v3600 = vsub.s32 0, %v3599
        %v3601 = vrot.slane %v3596, %v3600
        %v3747 = vunpack.c.l.b16 %v3452
        %v3748 = vunpack.c.l.b16 %v3453
        %v3749 = vunpack.c.l.b16 %v3454
        %v3750 = vunpack.c.l.b16 %v3455
        %v3751 = vunpack.c.l.b16 %v3456
        %v3752 = vunpack.c.l.b16 %v3457
        %v3753 = vunpack.c.l.b16 %v3458
        %v3754 = vunpack.c.l.b16 %v3459
        %v3755 = vunpack.c.l.b16 %v3460
        %v3756 = vunpack.c.l.b16 %v3461
        %v3757 = vunpack.c.l.b16 %v3462
        %v3758 = vunpack.c.l.b16 %v3463
        %v3759 = vunpack.c.l.b16 %v3464
        %v3760 = vunpack.c.l.b16 %v3465
        %v3761 = vunpack.c.l.b16 %v3466
        %v3762 = vunpack.c.l.b16 %v3467
        %v3763 = vunpack.c.l.b16 %v3468
        %v3764 = vunpack.c.l.b16 %v3469
        %v3765 = vunpack.c.l.b16 %v3470
        %v3766 = vunpack.c.l.b16 %v3471
        %v3767 = vunpack.c.l.b16 %v3472
        %v3768 = vunpack.c.l.b16 %v3473
        %v3769 = vunpack.c.l.b16 %v3474
        %v3770 = vunpack.c.l.b16 %v3475
        %v3771 = vunpack.c.l.b16 %v3476
        %v3772 = vunpack.c.l.b16 %v3477
        %v3773 = vunpack.c.l.b16 %v3478
        %v3774 = vunpack.c.l.b16 %v3479
        %v3775 = vunpack.c.l.b16 %v3480
        %v3776 = vunpack.c.l.b16 %v3481
        %v3777 = vunpack.c.l.b16 %v3482
        %v3778 = vunpack.c.l.b16 %v3483
        %v3779 = vunpack.c.l.b16 %v3484
        %v3780 = vunpack.c.l.b16 %v3485
        %v3781 = vunpack.c.l.b16 %v3486
        %v3782 = vunpack.c.l.b16 %v3487
        %v3783 = vunpack.c.l.b16 %v3488
        %v3784 = vunpack.c.l.b16 %v3489
        %v3785 = vunpack.c.l.b16 %v3490
        %v3786 = vunpack.c.l.b16 %v3491
        %v3787 = vunpack.c.l.b16 %v3492
        %v3788 = vunpack.c.l.b16 %v3493
        %v3789 = vunpack.c.l.b16 %v3494
        %v3790 = vunpack.c.l.b16 %v3495
        %v3791 = vunpack.c.l.b16 %v3496
        %v3792 = vunpack.c.l.b16 %v3497
        %v3793 = vunpack.c.l.b16 %v3498
        %v3794 = vunpack.c.l.b16 %v3499
        %v3795 = vunpack.c.l.b16 %v3500
        %v3796 = vunpack.c.l.b16 %v3501
        %v3797 = vunpack.c.l.b16 %v3502
        %v3798 = vunpack.c.l.b16 %v3503
        %v3799 = vunpack.c.l.b16 %v3504
        %v3800 = vunpack.c.l.b16 %v3505
        %v3801 = vunpack.c.l.b16 %v3506
        %v3802 = vunpack.c.l.b16 %v3507
        %v3803 = vunpack.c.l.b16 %v3508
        %v3804 = vunpack.c.l.b16 %v3509
        %v3805 = vunpack.c.l.b16 %v3510
        %v3806 = vunpack.c.l.b16 %v3511
        %v3807 = vunpack.c.l.b16 %v3512
        %v3808 = vunpack.c.l.b16 %v3513
        %v3809 = vunpack.c.l.b16 %v3514
        %v3810 = vunpack.c.l.b16 %v3515
        %v3811 = vunpack.c.l.b16 %v3516
        %v3812 = vunpack.c.l.b16 %v3517
        %v3813 = vunpack.c.l.b16 %v3518
        %v3814 = vunpack.c.l.b16 %v3519
        %v3815 = vunpack.c.l.b16 %v3520
        %v3816 = vunpack.c.l.b16 %v3521
        %v3817 = vunpack.c.l.b16 %v3522
        %v3818 = vunpack.c.l.b16 %v3523
        %v3819 = vunpack.c.l.b16 %v3524
        %v3820 = vunpack.c.l.b16 %v3525
        %v3821 = vunpack.c.l.b16 %v3526
        %v3822 = vunpack.c.l.b16 %v3527
        %v3823 = vunpack.c.l.b16 %v3528
        %v3824 = vunpack.c.l.b16 %v3529
        %v3825 = vunpack.c.l.b16 %v3530
        %v3826 = vunpack.c.l.b16 %v3531
        %v3827 = vunpack.c.l.b16 %v3532
        %v3828 = vunpack.c.l.b16 %v3533
        %v3829 = vunpack.c.l.b16 %v3534
        %v3830 = vunpack.c.l.b16 %v3535
        %v3831 = vunpack.c.l.b16 %v3536
        %v3832 = vunpack.c.l.b16 %v3537
        %v3833 = vunpack.c.l.b16 %v3538
        %v3834 = vunpack.c.l.b16 %v3539
        %v3835 = vunpack.c.l.b16 %v3540
        %v3836 = vunpack.c.l.b16 %v3541
        %v3837 = vunpack.c.l.b16 %v3542
        %v3838 = vunpack.c.l.b16 %v3543
        %v3839 = vunpack.c.l.b16 %v3544
        %v3840 = vunpack.c.l.b16 %v3545
        %v3841 = vunpack.c.l.b16 %v3546
        %v3842 = vunpack.c.l.b16 %v3547
        %v3843 = vunpack.c.l.b16 %v3548
        %v3844 = vunpack.c.l.b16 %v3549
        %v3845 = vunpack.c.l.b16 %v3550
        %v3846 = vunpack.c.l.b16 %v3551
        %v3847 = vunpack.c.l.b16 %v3552
        %v3848 = vunpack.c.l.b16 %v3553
        %v3849 = vunpack.c.l.b16 %v3554
        %v3850 = vunpack.c.l.b16 %v3555
        %v3851 = vunpack.c.l.b16 %v3556
        %v3852 = vunpack.c.l.b16 %v3557
        %v3853 = vunpack.c.l.b16 %v3558
        %v3854 = vunpack.c.l.b16 %v3559
        %v3855 = vunpack.c.l.b16 %v3560
        %v3856 = vunpack.c.l.b16 %v3561
        %v3857 = vunpack.c.l.b16 %v3562
        %v3858 = vunpack.c.l.b16 %v3563
        %v3859 = vunpack.c.l.b16 %v3564
        %v3860 = vunpack.c.l.b16 %v3565
        %v3861 = vunpack.c.l.b16 %v3566
        %v3862 = vunpack.c.l.b16 %v3567
        %v3863 = vunpack.c.l.b16 %v3568
        %v3864 = vunpack.c.l.b16 %v3569
        %v3865 = vunpack.c.l.b16 %v3570
        %v3866 = vunpack.c.l.b16 %v3571
        %v3867 = vunpack.c.l.b16 %v3572
        %v3868 = vunpack.c.l.b16 %v3573
        %v3869 = vunpack.c.l.b16 %v3574
        %v3870 = vunpack.c.l.b16 %v3575
        %v3871 = vunpack.c.l.b16 %v3576
        %v3872 = vunpack.c.l.b16 %v3577
        %v3873 = vunpack.c.l.b16 %v3578
        %v3874 = vunpack.c.l.b16 %v3579
        %v3875 = vunpack.c.l.b16 %v3580
        %v3876 = vunpack.c.l.b16 %v3581
        %v3877 = vunpack.c.l.b16 %v3582
        %v3878 = vunpack.c.l.b16 %v3583
        %v3879 = vunpack.c.l.b16 %v3584
        %v3880 = vunpack.c.l.b16 %v3585
        %v3881 = vunpack.c.l.b16 %v3586
        %v3882 = vunpack.c.l.b16 %v3587
        %v3883 = vunpack.c.l.b16 %v3588
        %v3884 = vunpack.c.l.b16 %v3589
        %v3885 = vunpack.c.l.b16 %v3590
        %v3886 = vunpack.c.l.b16 %v3591
        %v3887 = vunpack.c.l.b16 %v3592
        %v3888 = vunpack.c.l.b16 %v3593
        %v3889 = vunpack.c.l.b16 %v3594
        %v3890 = vunpack.c.l.b16 %v3595
        %v3891 = vpack.c.b16 %v3748, %v3747
        %v3892 = vpack.c.b16 %v3750, %v3749
        %v3893 = vpack.c.b16 %v3752, %v3751
        %v3894 = vpack.c.b16 %v3754, %v3753
        %v3895 = vpack.c.b16 %v3756, %v3755
        %v3896 = vpack.c.b16 %v3758, %v3757
        %v3897 = vpack.c.b16 %v3760, %v3759
        %v3898 = vpack.c.b16 %v3762, %v3761
        %v3899 = vpack.c.b16 %v3764, %v3763
        %v3900 = vpack.c.b16 %v3766, %v3765
        %v3901 = vpack.c.b16 %v3768, %v3767
        %v3902 = vpack.c.b16 %v3770, %v3769
        %v3903 = vpack.c.b16 %v3772, %v3771
        %v3904 = vpack.c.b16 %v3774, %v3773
        %v3905 = vpack.c.b16 %v3776, %v3775
        %v3906 = vpack.c.b16 %v3778, %v3777
        %v3907 = vpack.c.b16 %v3780, %v3779
        %v3908 = vpack.c.b16 %v3782, %v3781
        %v3909 = vpack.c.b16 %v3784, %v3783
        %v3910 = vpack.c.b16 %v3786, %v3785
        %v3911 = vpack.c.b16 %v3788, %v3787
        %v3912 = vpack.c.b16 %v3790, %v3789
        %v3913 = vpack.c.b16 %v3792, %v3791
        %v3914 = vpack.c.b16 %v3794, %v3793
        %v3915 = vpack.c.b16 %v3796, %v3795
        %v3916 = vpack.c.b16 %v3798, %v3797
        %v3917 = vpack.c.b16 %v3800, %v3799
        %v3918 = vpack.c.b16 %v3802, %v3801
        %v3919 = vpack.c.b16 %v3804, %v3803
        %v3920 = vpack.c.b16 %v3806, %v3805
        %v3921 = vpack.c.b16 %v3808, %v3807
        %v3922 = vpack.c.b16 %v3810, %v3809
        %v3923 = vpack.c.b16 %v3812, %v3811
        %v3924 = vpack.c.b16 %v3814, %v3813
        %v3925 = vpack.c.b16 %v3816, %v3815
        %v3926 = vpack.c.b16 %v3818, %v3817
        %v3927 = vpack.c.b16 %v3820, %v3819
        %v3928 = vpack.c.b16 %v3822, %v3821
        %v3929 = vpack.c.b16 %v3824, %v3823
        %v3930 = vpack.c.b16 %v3826, %v3825
        %v3931 = vpack.c.b16 %v3828, %v3827
        %v3932 = vpack.c.b16 %v3830, %v3829
        %v3933 = vpack.c.b16 %v3832, %v3831
        %v3934 = vpack.c.b16 %v3834, %v3833
        %v3935 = vpack.c.b16 %v3836, %v3835
        %v3936 = vpack.c.b16 %v3838, %v3837
        %v3937 = vpack.c.b16 %v3840, %v3839
        %v3938 = vpack.c.b16 %v3842, %v3841
        %v3939 = vpack.c.b16 %v3844, %v3843
        %v3940 = vpack.c.b16 %v3846, %v3845
        %v3941 = vpack.c.b16 %v3848, %v3847
        %v3942 = vpack.c.b16 %v3850, %v3849
        %v3943 = vpack.c.b16 %v3852, %v3851
        %v3944 = vpack.c.b16 %v3854, %v3853
        %v3945 = vpack.c.b16 %v3856, %v3855
        %v3946 = vpack.c.b16 %v3858, %v3857
        %v3947 = vpack.c.b16 %v3860, %v3859
        %v3948 = vpack.c.b16 %v3862, %v3861
        %v3949 = vpack.c.b16 %v3864, %v3863
        %v3950 = vpack.c.b16 %v3866, %v3865
        %v3951 = vpack.c.b16 %v3868, %v3867
        %v3952 = vpack.c.b16 %v3870, %v3869
        %v3953 = vpack.c.b16 %v3872, %v3871
        %v3954 = vpack.c.b16 %v3874, %v3873
        %v3955 = vpack.c.b16 %v3876, %v3875
        %v3956 = vpack.c.b16 %v3878, %v3877
        %v3957 = vpack.c.b16 %v3880, %v3879
        %v3958 = vpack.c.b16 %v3882, %v3881
        %v3959 = vpack.c.b16 %v3884, %v3883
        %v3960 = vpack.c.b16 %v3886, %v3885
        %v3961 = vpack.c.b16 %v3888, %v3887
        %v3962 = vpack.c.b16 %v3890, %v3889
        %4035 = vmatprep.subr.bf16.mxu0 0
        %4036 = vmatpush1.bf16.msra.mxu0 %v3891
        %4037 = vmatprep.subr.bf16.mxu0 0
        %4038 = vmatpush1.bf16.msra.mxu0 %v3892
        %4039 = vmatprep.subr.bf16.mxu0 0
        %4040 = vmatpush1.bf16.msra.mxu0 %v3893
        %4041 = vmatprep.subr.bf16.mxu0 0
        %4042 = vmatpush1.bf16.msra.mxu0 %v3894
        %4043 = vmatprep.subr.bf16.mxu0 0
        %4044 = vmatpush1.bf16.msra.mxu0 %v3895
        %4045 = vmatprep.subr.bf16.mxu0 0
        %4046 = vmatpush1.bf16.msra.mxu0 %v3896
        %4047 = vmatprep.subr.bf16.mxu0 0
        %4048 = vmatpush1.bf16.msra.mxu0 %v3897
        %4049 = vmatprep.subr.bf16.mxu0 0
        %4050 = vmatpush1.bf16.msra.mxu0 %v3898
        %4051 = vmatprep.subr.bf16.mxu0 0
        %4052 = vmatpush1.bf16.msra.mxu0 %v3899
        %4053 = vmatprep.subr.bf16.mxu0 0
        %4054 = vmatpush1.bf16.msra.mxu0 %v3900
        %4055 = vmatprep.subr.bf16.mxu0 0
        %4056 = vmatpush1.bf16.msra.mxu0 %v3901
        %4057 = vmatprep.subr.bf16.mxu0 0
        %4058 = vmatpush1.bf16.msra.mxu0 %v3902
        %4059 = vmatprep.subr.bf16.mxu0 0
        %4060 = vmatpush1.bf16.msra.mxu0 %v3903
        %4061 = vmatprep.subr.bf16.mxu0 0
        %4062 = vmatpush1.bf16.msra.mxu0 %v3904
        %4063 = vmatprep.subr.bf16.mxu0 0
        %4064 = vmatpush1.bf16.msra.mxu0 %v3905
        %4065 = vmatprep.subr.bf16.mxu0 0
        %4066 = vmatpush1.bf16.msra.mxu0 %v3906
        %4067 = vmatprep.mubr.bf16.mxu0 %v3444
        %4068 = vmatmul.mubr.bf16.gmra.mrb[0].mxu0 %v3443
        %v4069 = vpop.f32.mrb[0].mxu0
        %v4070 = vadd.f32 %v3601, %v4069
        %v4071 = vpop.f32.mrb[0].mxu0
        %v4072 = vpop.f32.mrb[0].mxu0
        %v4073 = vadd.f32 %v3601, %v4072
        %v4074 = vpop.f32.mrb[0].mxu0
        %4075 = vdwg.mxu0
        %4076 = vmatprep.subr.bf16.mxu0 0
        %4077 = vmatpush1.bf16.msra.mxu0 %v3907
        %4078 = vmatprep.subr.bf16.mxu0 0
        %4079 = vmatpush1.bf16.msra.mxu0 %v3908
        %4080 = vmatprep.subr.bf16.mxu0 0
        %4081 = vmatpush1.bf16.msra.mxu0 %v3909
        %4082 = vmatprep.subr.bf16.mxu0 0
        %4083 = vmatpush1.bf16.msra.mxu0 %v3910
        %4084 = vmatprep.subr.bf16.mxu0 0
        %4085 = vmatpush1.bf16.msra.mxu0 %v3911
        %4086 = vmatprep.subr.bf16.mxu0 0
        %4087 = vmatpush1.bf16.msra.mxu0 %v3912
        %4088 = vmatprep.subr.bf16.mxu0 0
        %4089 = vmatpush1.bf16.msra.mxu0 %v3913
        %4090 = vmatprep.subr.bf16.mxu0 0
        %4091 = vmatpush1.bf16.msra.mxu0 %v3914
        %4092 = vmatprep.subr.bf16.mxu0 0
        %4093 = vmatpush1.bf16.msra.mxu0 %v3915
        %4094 = vmatprep.subr.bf16.mxu0 0
        %4095 = vmatpush1.bf16.msra.mxu0 %v3916
        %4096 = vmatprep.subr.bf16.mxu0 0
        %4097 = vmatpush1.bf16.msra.mxu0 %v3917
        %4098 = vmatprep.subr.bf16.mxu0 0
        %4099 = vmatpush1.bf16.msra.mxu0 %v3918
        %4100 = vmatprep.subr.bf16.mxu0 0
        %4101 = vmatpush1.bf16.msra.mxu0 %v3919
        %4102 = vmatprep.subr.bf16.mxu0 0
        %4103 = vmatpush1.bf16.msra.mxu0 %v3920
        %4104 = vmatprep.subr.bf16.mxu0 0
        %4105 = vmatpush1.bf16.msra.mxu0 %v3921
        %4106 = vmatprep.subr.bf16.mxu0 0
        %4107 = vmatpush1.bf16.msra.mxu0 %v3922
        %4108 = vmatprep.mubr.bf16.mxu0 %v3446
        %4109 = vmatmul.mubr.bf16.gmra.mrb[0].mxu0 %v3445
        %v4110 = vpop.f32.mrb[0].mxu0
        %v4111 = vadd.f32 %v4070, %v4110
        %v4112 = vpop.f32.mrb[0].mxu0
        %v4113 = vpop.f32.mrb[0].mxu0
        %v4114 = vadd.f32 %v4073, %v4113
        %v4115 = vpop.f32.mrb[0].mxu0
        %4116 = vdwg.mxu0
        %4117 = vmatprep.subr.bf16.mxu0 0
        %4118 = vmatpush1.bf16.msra.mxu0 %v3923
        %4119 = vmatprep.subr.bf16.mxu0 0
        %4120 = vmatpush1.bf16.msra.mxu0 %v3924
        %4121 = vmatprep.subr.bf16.mxu0 0
        %4122 = vmatpush1.bf16.msra.mxu0 %v3925
        %4123 = vmatprep.subr.bf16.mxu0 0
        %4124 = vmatpush1.bf16.msra.mxu0 %v3926
        %4125 = vmatprep.subr.bf16.mxu0 0
        %4126 = vmatpush1.bf16.msra.mxu0 %v3927
        %4127 = vmatprep.subr.bf16.mxu0 0
        %4128 = vmatpush1.bf16.msra.mxu0 %v3928
        %4129 = vmatprep.subr.bf16.mxu0 0
        %4130 = vmatpush1.bf16.msra.mxu0 %v3929
        %4131 = vmatprep.subr.bf16.mxu0 0
        %4132 = vmatpush1.bf16.msra.mxu0 %v3930
        %4133 = vmatprep.subr.bf16.mxu0 0
        %4134 = vmatpush1.bf16.msra.mxu0 %v3931
        %4135 = vmatprep.subr.bf16.mxu0 0
        %4136 = vmatpush1.bf16.msra.mxu0 %v3932
        %4137 = vmatprep.subr.bf16.mxu0 0
        %4138 = vmatpush1.bf16.msra.mxu0 %v3933
        %4139 = vmatprep.subr.bf16.mxu0 0
        %4140 = vmatpush1.bf16.msra.mxu0 %v3934
        %4141 = vmatprep.subr.bf16.mxu0 0
        %4142 = vmatpush1.bf16.msra.mxu0 %v3935
        %4143 = vmatprep.subr.bf16.mxu0 0
        %4144 = vmatpush1.bf16.msra.mxu0 %v3936
        %4145 = vmatprep.subr.bf16.mxu0 0
        %4146 = vmatpush1.bf16.msra.mxu0 %v3937
        %4147 = vmatprep.subr.bf16.mxu0 0
        %4148 = vmatpush1.bf16.msra.mxu0 %v3938
        %4149 = vmatprep.mubr.bf16.mxu0 %v3448
        %4150 = vmatmul.mubr.bf16.gmra.mrb[0].mxu0 %v3447
        %v4151 = vpop.f32.mrb[0].mxu0
        %v4152 = vadd.f32 %v4111, %v4151
        %v4153 = vpop.f32.mrb[0].mxu0
        %v4154 = vpop.f32.mrb[0].mxu0
        %v4155 = vadd.f32 %v4114, %v4154
        %v4156 = vpop.f32.mrb[0].mxu0
        %4157 = vdwg.mxu0
        %4158 = vmatprep.subr.bf16.mxu0 0
        %4159 = vmatpush1.bf16.msra.mxu0 %v3939
        %4160 = vmatprep.subr.bf16.mxu0 0
        %4161 = vmatpush1.bf16.msra.mxu0 %v3940
        %4162 = vmatprep.subr.bf16.mxu0 0
        %4163 = vmatpush1.bf16.msra.mxu0 %v3941
        %4164 = vmatprep.subr.bf16.mxu0 0
        %4165 = vmatpush1.bf16.msra.mxu0 %v3942
        %4166 = vmatprep.subr.bf16.mxu0 0
        %4167 = vmatpush1.bf16.msra.mxu0 %v3943
        %4168 = vmatprep.subr.bf16.mxu0 0
        %4169 = vmatpush1.bf16.msra.mxu0 %v3944
        %4170 = vmatprep.subr.bf16.mxu0 0
        %4171 = vmatpush1.bf16.msra.mxu0 %v3945
        %4172 = vmatprep.subr.bf16.mxu0 0
        %4173 = vmatpush1.bf16.msra.mxu0 %v3946
        %4174 = vmatprep.subr.bf16.mxu0 0
        %4175 = vmatpush1.bf16.msra.mxu0 %v3947
        %4176 = vmatprep.subr.bf16.mxu0 0
        %4177 = vmatpush1.bf16.msra.mxu0 %v3948
        %4178 = vmatprep.subr.bf16.mxu0 0
        %4179 = vmatpush1.bf16.msra.mxu0 %v3949
        %4180 = vmatprep.subr.bf16.mxu0 0
        %4181 = vmatpush1.bf16.msra.mxu0 %v3950
        %4182 = vmatprep.subr.bf16.mxu0 0
        %4183 = vmatpush1.bf16.msra.mxu0 %v3951
        %4184 = vmatprep.subr.bf16.mxu0 0
        %4185 = vmatpush1.bf16.msra.mxu0 %v3952
        %4186 = vmatprep.subr.bf16.mxu0 0
        %4187 = vmatpush1.bf16.msra.mxu0 %v3953
        %4188 = vmatprep.subr.bf16.mxu0 0
        %4189 = vmatpush1.bf16.msra.mxu0 %v3954
        %4190 = vmatprep.mubr.bf16.mxu0 %v3450
        %4191 = vmatmul.mubr.bf16.gmra.mrb[0].mxu0 %v3449
        %v4192 = vpop.f32.mrb[0].mxu0
        %v4193 = vadd.f32 %v4152, %v4192
        %v4194 = vpop.f32.mrb[0].mxu0
        %v4195 = vpop.f32.mrb[0].mxu0
        %v4196 = vadd.f32 %v4155, %v4195
        %v4197 = vpop.f32.mrb[0].mxu0
        %4198 = vdwg.mxu0
        %4199 = vmatprep.subr.bf16.mxu0 0
        %4200 = vmatpush1.bf16.msra.mxu0 %v3955
        %4201 = vmatprep.subr.bf16.mxu0 0
        %4202 = vmatpush1.bf16.msra.mxu0 %v3956
        %4203 = vmatprep.subr.bf16.mxu0 0
        %4204 = vmatpush1.bf16.msra.mxu0 %v3957
        %4205 = vmatprep.subr.bf16.mxu0 0
        %4206 = vmatpush1.bf16.msra.mxu0 %v3958
        %4207 = vmatprep.subr.bf16.mxu0 0
        %4208 = vmatpush1.bf16.msra.mxu0 %v3959
        %4209 = vmatprep.subr.bf16.mxu0 0
        %4210 = vmatpush1.bf16.msra.mxu0 %v3960
        %4211 = vmatprep.subr.bf16.mxu0 0
        %4212 = vmatpush1.bf16.msra.mxu0 %v3961
        %4213 = vmatprep.subr.bf16.mxu0 0
        %4214 = vmatpush1.bf16.msra.mxu0 %v3962
        %4215 = vmatprep.subr.bf16.mxu0 0
        %4216 = vmatpush1.bf16.msra.mxu0 0
        %4217 = vmatprep.subr.bf16.mxu0 0
        %4218 = vmatpush1.bf16.msra.mxu0 0
        %4219 = vmatprep.subr.bf16.mxu0 0
        %4220 = vmatpush1.bf16.msra.mxu0 0
        %4221 = vmatprep.subr.bf16.mxu0 0
        %4222 = vmatpush1.bf16.msra.mxu0 0
        %4223 = vmatprep.subr.bf16.mxu0 0
        %4224 = vmatpush1.bf16.msra.mxu0 0
        %4225 = vmatprep.subr.bf16.mxu0 0
        %4226 = vmatpush1.bf16.msra.mxu0 0
        %4227 = vmatprep.subr.bf16.mxu0 0
        %4228 = vmatpush1.bf16.msra.mxu0 0
        %4229 = vmatprep.subr.bf16.mxu0 0
        %4230 = vmatpush1.bf16.msra.mxu0 0
        %4231 = vmatprep.mubr.bf16.mxu0 0
        %4232 = vmatmul.mubr.bf16.gmra.mrb[0].mxu0 %v3451
        %v4233 = vpop.f32.mrb[0].mxu0
        %v4234 = vadd.f32 %v4193, %v4233
        %v4235 = vpop.f32.mrb[0].mxu0
        %v4236 = vpop.f32.mrb[0].mxu0
        %v4237 = vadd.f32 %v4196, %v4236
        %v4238 = vpop.f32.mrb[0].mxu0
        %4239 = vdwg.mxu0
        %v4240 = vmax.f32 %v4234, 0.0
        %v4241 = vmax.f32 %v4237, 0.0
        %4242 = vst [vmem:[#allocation8] sm:$0xff] %v4240
        %4243 = vst [vmem:[#allocation8 + $0x8] sm:$0xff] %v4241
        %v4244 = vld [vmem:[#allocation8] sm:$0x1]
        %v4245 = vlaneseq
        %vm4246 = vcmp.ge.s32.totalorder %v4245, 0
        %vm4247 = vcmp.lt.s32.totalorder %v4245, 128
        %vm4248 = vmand %vm4246, %vm4247
        %4249 = vst.msk [vmem:[#allocation5] sm:$0x1] %vm4248, %v4244
        %v4250 = vld [vmem:[#allocation8 + $0x1] sm:$0x1]
        %4251 = vst.msk [vmem:[#allocation5 + $0x1] sm:$0x1] %vm4248, %v4250
        %v4252 = vld [vmem:[#allocation8 + $0x2] sm:$0x1]
        %4253 = vst.msk [vmem:[#allocation5 + $0x2] sm:$0x1] %vm4248, %v4252
        %v4254 = vld [vmem:[#allocation8 + $0x4] sm:$0x1]
        %4255 = vst.msk [vmem:[#allocation5 + $0x3] sm:$0x1] %vm4248, %v4254
        %v4256 = vld [vmem:[#allocation8 + $0x5] sm:$0x1]
        %4257 = vst.msk [vmem:[#allocation5 + $0x4] sm:$0x1] %vm4248, %v4256
        %v4258 = vld [vmem:[#allocation8 + $0x6] sm:$0x1]
        %4259 = vst.msk [vmem:[#allocation5 + $0x5] sm:$0x1] %vm4248, %v4258
        %v4260 = vld [vmem:[#allocation8 + $0x8] sm:$0x1]
        %4261 = vst.msk [vmem:[#allocation5 + $0x6] sm:$0x1] %vm4248, %v4260
        %v4262 = vld [vmem:[#allocation8 + $0x9] sm:$0x1]
        %4263 = vst.msk [vmem:[#allocation5 + $0x7] sm:$0x1] %vm4248, %v4262
        %v4264 = vld [vmem:[#allocation8 + $0xa] sm:$0x1]
        %4265 = vst.msk [vmem:[#allocation5 + $0x8] sm:$0x1] %vm4248, %v4264
        %v4266 = vld [vmem:[#allocation5] sm:$0xff]
        %v4267 = vld [vmem:[#allocation5 + $0x8] sm:$0x1]
        %v4270 = vlaneseq
        %v4271 = vshrl.u32 %v4270, 7
        %v4272 = vsub.s32 0, %v4271
        %v4273 = vrot.slane %v4266, %v4272
        %v4274 = vlaneseq
        %v4275 = vshrl.u32 %v4274, 7
        %v4276 = vsub.s32 1, %v4275
        %v4277 = vrot.slane %v4266, %v4276
        %v4278 = vlaneseq
        %v4279 = vshrl.u32 %v4278, 7
        %v4280 = vsub.s32 2, %v4279
        %v4281 = vrot.slane %v4266, %v4280
        %v4282 = vlaneseq
        %v4283 = vshrl.u32 %v4282, 7
        %v4284 = vsub.s32 3, %v4283
        %v4285 = vrot.slane %v4266, %v4284
        %v4286 = vlaneseq
        %v4287 = vshrl.u32 %v4286, 7
        %v4288 = vsub.s32 4, %v4287
        %v4289 = vrot.slane %v4266, %v4288
        %v4290 = vlaneseq
        %v4291 = vshrl.u32 %v4290, 7
        %v4292 = vsub.s32 5, %v4291
        %v4293 = vrot.slane %v4266, %v4292
        %v4294 = vlaneseq
        %v4295 = vshrl.u32 %v4294, 7
        %v4296 = vsub.s32 6, %v4295
        %v4297 = vrot.slane %v4266, %v4296
        %v4298 = vlaneseq
        %v4299 = vshrl.u32 %v4298, 7
        %v4300 = vsub.s32 7, %v4299
        %v4301 = vrot.slane %v4266, %v4300
        %v4302 = vlaneseq
        %v4303 = vshrl.u32 %v4302, 7
        %v4304 = vsub.s32 0, %v4303
        %v4305 = vrot.slane %v4267, %v4304
        %v4315 = vpack.c.bf16 %v4273, %v4273
        %v4316 = vpack.c.bf16 %v4277, %v4277
        %v4317 = vpack.c.bf16 %v4281, %v4281
        %v4318 = vpack.c.bf16 %v4285, %v4285
        %v4319 = vpack.c.bf16 %v4289, %v4289
        %v4320 = vpack.c.bf16 %v4293, %v4293
        %v4321 = vpack.c.bf16 %v4297, %v4297
        %v4322 = vpack.c.bf16 %v4301, %v4301
        %v4323 = vpack.c.bf16 %v4305, %v4305
        %v4324 = vld [vmem:[#allocation11] sm:$0xf]
        %v4325 = vld [vmem:[#allocation11 + $0x4] sm:$0xf]
        %v4326 = vld [vmem:[#allocation11 + $0x8] sm:$0xf]
        %v4327 = vld [vmem:[#allocation11 + $0xc] sm:$0xf]
        %v4328 = vld [vmem:[#allocation11 + $0x10] sm:$0xf]
        %v4329 = vld [vmem:[#allocation11 + $0x14] sm:$0xf]
        %v4330 = vld [vmem:[#allocation11 + $0x18] sm:$0xf]
        %v4331 = vld [vmem:[#allocation11 + $0x1c] sm:$0xf]
        %v4332 = vld [vmem:[#allocation11 + $0x20] sm:$0xf]
        %v4333 = vld [vmem:[#allocation11 + $0x24] sm:$0xf]
        %v4334 = vld [vmem:[#allocation11 + $0x28] sm:$0xf]
        %v4335 = vld [vmem:[#allocation11 + $0x2c] sm:$0xf]
        %v4336 = vld [vmem:[#allocation11 + $0x30] sm:$0xf]
        %v4337 = vld [vmem:[#allocation11 + $0x34] sm:$0xf]
        %v4338 = vld [vmem:[#allocation11 + $0x38] sm:$0xf]
        %v4339 = vld [vmem:[#allocation11 + $0x3c] sm:$0xf]
        %v4340 = vld [vmem:[#allocation11 + $0x40] sm:$0xf]
        %v4341 = vld [vmem:[#allocation11 + $0x44] sm:$0xf]
        %v4342 = vld [vmem:[#allocation11 + $0x48] sm:$0xf]
        %v4343 = vld [vmem:[#allocation11 + $0x4c] sm:$0xf]
        %v4344 = vld [vmem:[#allocation11 + $0x50] sm:$0xf]
        %v4345 = vld [vmem:[#allocation11 + $0x54] sm:$0xf]
        %v4346 = vld [vmem:[#allocation11 + $0x58] sm:$0xf]
        %v4347 = vld [vmem:[#allocation11 + $0x5c] sm:$0xf]
        %v4348 = vld [vmem:[#allocation11 + $0x60] sm:$0xf]
        %v4349 = vld [vmem:[#allocation11 + $0x64] sm:$0xf]
        %v4350 = vld [vmem:[#allocation11 + $0x68] sm:$0xf]
        %v4351 = vld [vmem:[#allocation11 + $0x6c] sm:$0xf]
        %v4352 = vld [vmem:[#allocation11 + $0x70] sm:$0xf]
        %v4353 = vld [vmem:[#allocation11 + $0x74] sm:$0xf]
        %v4354 = vld [vmem:[#allocation11 + $0x78] sm:$0xf]
        %v4355 = vld [vmem:[#allocation11 + $0x7c] sm:$0xf]
        %v4356 = vld [vmem:[#allocation11 + $0x80] sm:$0xf]
        %v4357 = vld [vmem:[#allocation11 + $0x84] sm:$0xf]
        %v4358 = vld [vmem:[#allocation11 + $0x88] sm:$0xf]
        %v4359 = vld [vmem:[#allocation11 + $0x8c] sm:$0xf]
        %v4360 = vld [vmem:[#allocation11 + $0x90] sm:$0xf]
        %v4361 = vld [vmem:[#allocation11 + $0x94] sm:$0xf]
        %v4362 = vld [vmem:[#allocation11 + $0x98] sm:$0xf]
        %v4363 = vld [vmem:[#allocation11 + $0x9c] sm:$0xf]
        %v4364 = vld [vmem:[#allocation11 + $0xa0] sm:$0xf]
        %v4365 = vld [vmem:[#allocation11 + $0xa4] sm:$0xf]
        %v4366 = vld [vmem:[#allocation11 + $0xa8] sm:$0xf]
        %v4367 = vld [vmem:[#allocation11 + $0xac] sm:$0xf]
        %v4368 = vld [vmem:[#allocation11 + $0xb0] sm:$0xf]
        %v4369 = vld [vmem:[#allocation11 + $0xb4] sm:$0xf]
        %v4370 = vld [vmem:[#allocation11 + $0xb8] sm:$0xf]
        %v4371 = vld [vmem:[#allocation11 + $0xbc] sm:$0xf]
        %v4372 = vld [vmem:[#allocation11 + $0xc0] sm:$0xf]
        %v4373 = vld [vmem:[#allocation11 + $0xc4] sm:$0xf]
        %v4374 = vld [vmem:[#allocation11 + $0xc8] sm:$0xf]
        %v4375 = vld [vmem:[#allocation11 + $0xcc] sm:$0xf]
        %v4376 = vld [vmem:[#allocation11 + $0xd0] sm:$0xf]
        %v4377 = vld [vmem:[#allocation11 + $0xd4] sm:$0xf]
        %v4378 = vld [vmem:[#allocation11 + $0xd8] sm:$0xf]
        %v4379 = vld [vmem:[#allocation11 + $0xdc] sm:$0xf]
        %v4380 = vld [vmem:[#allocation11 + $0xe0] sm:$0xf]
        %v4381 = vld [vmem:[#allocation11 + $0xe4] sm:$0xf]
        %v4382 = vld [vmem:[#allocation11 + $0xe8] sm:$0xf]
        %v4383 = vld [vmem:[#allocation11 + $0xec] sm:$0xf]
        %v4384 = vld [vmem:[#allocation11 + $0xf0] sm:$0xf]
        %v4385 = vld [vmem:[#allocation11 + $0xf4] sm:$0xf]
        %v4386 = vld [vmem:[#allocation11 + $0xf8] sm:$0xf]
        %v4387 = vld [vmem:[#allocation11 + $0xfc] sm:$0xf]
        %v4388 = vld [vmem:[#allocation11 + $0x100] sm:$0xf]
        %v4389 = vld [vmem:[#allocation11 + $0x104] sm:$0xf]
        %v4390 = vld [vmem:[#allocation11 + $0x108] sm:$0xf]
        %v4391 = vld [vmem:[#allocation11 + $0x10c] sm:$0xf]
        %v4392 = vld [vmem:[#allocation11 + $0x110] sm:$0xf]
        %v4393 = vld [vmem:[#allocation11 + $0x114] sm:$0xf]
        %v4394 = vld [vmem:[#allocation11 + $0x118] sm:$0xf]
        %v4395 = vld [vmem:[#allocation11 + $0x11c] sm:$0xf]
        %v4396 = vld [vmem:[#allocation11 + $0x120] sm:$0xf]
        %v4397 = vld [vmem:[#allocation11 + $0x124] sm:$0xf]
        %v4398 = vld [vmem:[#allocation11 + $0x128] sm:$0xf]
        %v4399 = vld [vmem:[#allocation11 + $0x12c] sm:$0xf]
        %v4400 = vld [vmem:[#allocation11 + $0x130] sm:$0xf]
        %v4401 = vld [vmem:[#allocation11 + $0x134] sm:$0xf]
        %v4402 = vld [vmem:[#allocation11 + $0x138] sm:$0xf]
        %v4403 = vld [vmem:[#allocation11 + $0x13c] sm:$0xf]
        %v4404 = vld [vmem:[#allocation11 + $0x140] sm:$0xf]
        %v4405 = vld [vmem:[#allocation11 + $0x144] sm:$0xf]
        %v4406 = vld [vmem:[#allocation11 + $0x148] sm:$0xf]
        %v4407 = vld [vmem:[#allocation11 + $0x14c] sm:$0xf]
        %v4408 = vld [vmem:[#allocation11 + $0x150] sm:$0xf]
        %v4409 = vld [vmem:[#allocation11 + $0x154] sm:$0xf]
        %v4410 = vld [vmem:[#allocation11 + $0x158] sm:$0xf]
        %v4411 = vld [vmem:[#allocation11 + $0x15c] sm:$0xf]
        %v4412 = vld [vmem:[#allocation11 + $0x160] sm:$0xf]
        %v4413 = vld [vmem:[#allocation11 + $0x164] sm:$0xf]
        %v4414 = vld [vmem:[#allocation11 + $0x168] sm:$0xf]
        %v4415 = vld [vmem:[#allocation11 + $0x16c] sm:$0xf]
        %v4416 = vld [vmem:[#allocation11 + $0x170] sm:$0xf]
        %v4417 = vld [vmem:[#allocation11 + $0x174] sm:$0xf]
        %v4418 = vld [vmem:[#allocation11 + $0x178] sm:$0xf]
        %v4419 = vld [vmem:[#allocation11 + $0x17c] sm:$0xf]
        %v4420 = vld [vmem:[#allocation11 + $0x180] sm:$0xf]
        %v4421 = vld [vmem:[#allocation11 + $0x184] sm:$0xf]
        %v4422 = vld [vmem:[#allocation11 + $0x188] sm:$0xf]
        %v4423 = vld [vmem:[#allocation11 + $0x18c] sm:$0xf]
        %v4424 = vld [vmem:[#allocation11 + $0x190] sm:$0xf]
        %v4425 = vld [vmem:[#allocation11 + $0x194] sm:$0xf]
        %v4426 = vld [vmem:[#allocation11 + $0x198] sm:$0xf]
        %v4427 = vld [vmem:[#allocation11 + $0x19c] sm:$0xf]
        %v4428 = vld [vmem:[#allocation11 + $0x1a0] sm:$0xf]
        %v4429 = vld [vmem:[#allocation11 + $0x1a4] sm:$0xf]
        %v4430 = vld [vmem:[#allocation11 + $0x1a8] sm:$0xf]
        %v4431 = vld [vmem:[#allocation11 + $0x1ac] sm:$0xf]
        %v4432 = vld [vmem:[#allocation11 + $0x1b0] sm:$0xf]
        %v4433 = vld [vmem:[#allocation11 + $0x1b4] sm:$0xf]
        %v4434 = vld [vmem:[#allocation11 + $0x1b8] sm:$0xf]
        %v4435 = vld [vmem:[#allocation11 + $0x1bc] sm:$0xf]
        %v4436 = vld [vmem:[#allocation11 + $0x1c0] sm:$0xf]
        %v4437 = vld [vmem:[#allocation11 + $0x1c4] sm:$0xf]
        %v4438 = vld [vmem:[#allocation11 + $0x1c8] sm:$0xf]
        %v4439 = vld [vmem:[#allocation11 + $0x1cc] sm:$0xf]
        %v4440 = vld [vmem:[#allocation11 + $0x1d0] sm:$0xf]
        %v4441 = vld [vmem:[#allocation11 + $0x1d4] sm:$0xf]
        %v4442 = vld [vmem:[#allocation11 + $0x1d8] sm:$0xf]
        %v4443 = vld [vmem:[#allocation11 + $0x1dc] sm:$0xf]
        %v4444 = vld [vmem:[#allocation11 + $0x1e0] sm:$0xf]
        %v4445 = vld [vmem:[#allocation11 + $0x1e4] sm:$0xf]
        %v4446 = vld [vmem:[#allocation11 + $0x1e8] sm:$0xf]
        %v4447 = vld [vmem:[#allocation11 + $0x1ec] sm:$0xf]
        %v4448 = vld [vmem:[#allocation11 + $0x1f0] sm:$0xf]
        %v4449 = vld [vmem:[#allocation11 + $0x1f4] sm:$0xf]
        %v4450 = vld [vmem:[#allocation11 + $0x1f8] sm:$0xf]
        %v4451 = vld [vmem:[#allocation11 + $0x1fc] sm:$0xf]
        %v4452 = vld [vmem:[#allocation11 + $0x200] sm:$0xf]
        %v4453 = vld [vmem:[#allocation11 + $0x204] sm:$0xf]
        %v4454 = vld [vmem:[#allocation11 + $0x208] sm:$0xf]
        %v4455 = vld [vmem:[#allocation11 + $0x20c] sm:$0xf]
        %v4456 = vld [vmem:[#allocation11 + $0x210] sm:$0xf]
        %v4457 = vld [vmem:[#allocation11 + $0x214] sm:$0xf]
        %v4458 = vld [vmem:[#allocation11 + $0x218] sm:$0xf]
        %v4459 = vld [vmem:[#allocation11 + $0x21c] sm:$0xf]
        %v4460 = vld [vmem:[#allocation11 + $0x220] sm:$0xf]
        %v4461 = vld [vmem:[#allocation11 + $0x224] sm:$0xf]
        %v4462 = vld [vmem:[#allocation11 + $0x228] sm:$0xf]
        %v4463 = vld [vmem:[#allocation11 + $0x22c] sm:$0xf]
        %v4464 = vld [vmem:[#allocation11 + $0x230] sm:$0xf]
        %v4465 = vld [vmem:[#allocation11 + $0x234] sm:$0xf]
        %v4466 = vld [vmem:[#allocation11 + $0x238] sm:$0xf]
        %v4467 = vld [vmem:[#allocation11 + $0x23c] sm:$0xf]
        %v4468 = vld [vmem:[%s8] sm:$0x1]
        %v4613 = vunpack.c.l.b16 %v4324
        %v4614 = vunpack.c.l.b16 %v4325
        %v4615 = vunpack.c.l.b16 %v4326
        %v4616 = vunpack.c.l.b16 %v4327
        %v4617 = vunpack.c.l.b16 %v4328
        %v4618 = vunpack.c.l.b16 %v4329
        %v4619 = vunpack.c.l.b16 %v4330
        %v4620 = vunpack.c.l.b16 %v4331
        %v4621 = vunpack.c.l.b16 %v4332
        %v4622 = vunpack.c.l.b16 %v4333
        %v4623 = vunpack.c.l.b16 %v4334
        %v4624 = vunpack.c.l.b16 %v4335
        %v4625 = vunpack.c.l.b16 %v4336
        %v4626 = vunpack.c.l.b16 %v4337
        %v4627 = vunpack.c.l.b16 %v4338
        %v4628 = vunpack.c.l.b16 %v4339
        %v4629 = vunpack.c.l.b16 %v4340
        %v4630 = vunpack.c.l.b16 %v4341
        %v4631 = vunpack.c.l.b16 %v4342
        %v4632 = vunpack.c.l.b16 %v4343
        %v4633 = vunpack.c.l.b16 %v4344
        %v4634 = vunpack.c.l.b16 %v4345
        %v4635 = vunpack.c.l.b16 %v4346
        %v4636 = vunpack.c.l.b16 %v4347
        %v4637 = vunpack.c.l.b16 %v4348
        %v4638 = vunpack.c.l.b16 %v4349
        %v4639 = vunpack.c.l.b16 %v4350
        %v4640 = vunpack.c.l.b16 %v4351
        %v4641 = vunpack.c.l.b16 %v4352
        %v4642 = vunpack.c.l.b16 %v4353
        %v4643 = vunpack.c.l.b16 %v4354
        %v4644 = vunpack.c.l.b16 %v4355
        %v4645 = vunpack.c.l.b16 %v4356
        %v4646 = vunpack.c.l.b16 %v4357
        %v4647 = vunpack.c.l.b16 %v4358
        %v4648 = vunpack.c.l.b16 %v4359
        %v4649 = vunpack.c.l.b16 %v4360
        %v4650 = vunpack.c.l.b16 %v4361
        %v4651 = vunpack.c.l.b16 %v4362
        %v4652 = vunpack.c.l.b16 %v4363
        %v4653 = vunpack.c.l.b16 %v4364
        %v4654 = vunpack.c.l.b16 %v4365
        %v4655 = vunpack.c.l.b16 %v4366
        %v4656 = vunpack.c.l.b16 %v4367
        %v4657 = vunpack.c.l.b16 %v4368
        %v4658 = vunpack.c.l.b16 %v4369
        %v4659 = vunpack.c.l.b16 %v4370
        %v4660 = vunpack.c.l.b16 %v4371
        %v4661 = vunpack.c.l.b16 %v4372
        %v4662 = vunpack.c.l.b16 %v4373
        %v4663 = vunpack.c.l.b16 %v4374
        %v4664 = vunpack.c.l.b16 %v4375
        %v4665 = vunpack.c.l.b16 %v4376
        %v4666 = vunpack.c.l.b16 %v4377
        %v4667 = vunpack.c.l.b16 %v4378
        %v4668 = vunpack.c.l.b16 %v4379
        %v4669 = vunpack.c.l.b16 %v4380
        %v4670 = vunpack.c.l.b16 %v4381
        %v4671 = vunpack.c.l.b16 %v4382
        %v4672 = vunpack.c.l.b16 %v4383
        %v4673 = vunpack.c.l.b16 %v4384
        %v4674 = vunpack.c.l.b16 %v4385
        %v4675 = vunpack.c.l.b16 %v4386
        %v4676 = vunpack.c.l.b16 %v4387
        %v4677 = vunpack.c.l.b16 %v4388
        %v4678 = vunpack.c.l.b16 %v4389
        %v4679 = vunpack.c.l.b16 %v4390
        %v4680 = vunpack.c.l.b16 %v4391
        %v4681 = vunpack.c.l.b16 %v4392
        %v4682 = vunpack.c.l.b16 %v4393
        %v4683 = vunpack.c.l.b16 %v4394
        %v4684 = vunpack.c.l.b16 %v4395
        %v4685 = vunpack.c.l.b16 %v4396
        %v4686 = vunpack.c.l.b16 %v4397
        %v4687 = vunpack.c.l.b16 %v4398
        %v4688 = vunpack.c.l.b16 %v4399
        %v4689 = vunpack.c.l.b16 %v4400
        %v4690 = vunpack.c.l.b16 %v4401
        %v4691 = vunpack.c.l.b16 %v4402
        %v4692 = vunpack.c.l.b16 %v4403
        %v4693 = vunpack.c.l.b16 %v4404
        %v4694 = vunpack.c.l.b16 %v4405
        %v4695 = vunpack.c.l.b16 %v4406
        %v4696 = vunpack.c.l.b16 %v4407
        %v4697 = vunpack.c.l.b16 %v4408
        %v4698 = vunpack.c.l.b16 %v4409
        %v4699 = vunpack.c.l.b16 %v4410
        %v4700 = vunpack.c.l.b16 %v4411
        %v4701 = vunpack.c.l.b16 %v4412
        %v4702 = vunpack.c.l.b16 %v4413
        %v4703 = vunpack.c.l.b16 %v4414
        %v4704 = vunpack.c.l.b16 %v4415
        %v4705 = vunpack.c.l.b16 %v4416
        %v4706 = vunpack.c.l.b16 %v4417
        %v4707 = vunpack.c.l.b16 %v4418
        %v4708 = vunpack.c.l.b16 %v4419
        %v4709 = vunpack.c.l.b16 %v4420
        %v4710 = vunpack.c.l.b16 %v4421
        %v4711 = vunpack.c.l.b16 %v4422
        %v4712 = vunpack.c.l.b16 %v4423
        %v4713 = vunpack.c.l.b16 %v4424
        %v4714 = vunpack.c.l.b16 %v4425
        %v4715 = vunpack.c.l.b16 %v4426
        %v4716 = vunpack.c.l.b16 %v4427
        %v4717 = vunpack.c.l.b16 %v4428
        %v4718 = vunpack.c.l.b16 %v4429
        %v4719 = vunpack.c.l.b16 %v4430
        %v4720 = vunpack.c.l.b16 %v4431
        %v4721 = vunpack.c.l.b16 %v4432
        %v4722 = vunpack.c.l.b16 %v4433
        %v4723 = vunpack.c.l.b16 %v4434
        %v4724 = vunpack.c.l.b16 %v4435
        %v4725 = vunpack.c.l.b16 %v4436
        %v4726 = vunpack.c.l.b16 %v4437
        %v4727 = vunpack.c.l.b16 %v4438
        %v4728 = vunpack.c.l.b16 %v4439
        %v4729 = vunpack.c.l.b16 %v4440
        %v4730 = vunpack.c.l.b16 %v4441
        %v4731 = vunpack.c.l.b16 %v4442
        %v4732 = vunpack.c.l.b16 %v4443
        %v4733 = vunpack.c.l.b16 %v4444
        %v4734 = vunpack.c.l.b16 %v4445
        %v4735 = vunpack.c.l.b16 %v4446
        %v4736 = vunpack.c.l.b16 %v4447
        %v4737 = vunpack.c.l.b16 %v4448
        %v4738 = vunpack.c.l.b16 %v4449
        %v4739 = vunpack.c.l.b16 %v4450
        %v4740 = vunpack.c.l.b16 %v4451
        %v4741 = vunpack.c.l.b16 %v4452
        %v4742 = vunpack.c.l.b16 %v4453
        %v4743 = vunpack.c.l.b16 %v4454
        %v4744 = vunpack.c.l.b16 %v4455
        %v4745 = vunpack.c.l.b16 %v4456
        %v4746 = vunpack.c.l.b16 %v4457
        %v4747 = vunpack.c.l.b16 %v4458
        %v4748 = vunpack.c.l.b16 %v4459
        %v4749 = vunpack.c.l.b16 %v4460
        %v4750 = vunpack.c.l.b16 %v4461
        %v4751 = vunpack.c.l.b16 %v4462
        %v4752 = vunpack.c.l.b16 %v4463
        %v4753 = vunpack.c.l.b16 %v4464
        %v4754 = vunpack.c.l.b16 %v4465
        %v4755 = vunpack.c.l.b16 %v4466
        %v4756 = vunpack.c.l.b16 %v4467
        %v4757 = vpack.c.b16 %v4614, %v4613
        %v4758 = vpack.c.b16 %v4616, %v4615
        %v4759 = vpack.c.b16 %v4618, %v4617
        %v4760 = vpack.c.b16 %v4620, %v4619
        %v4761 = vpack.c.b16 %v4622, %v4621
        %v4762 = vpack.c.b16 %v4624, %v4623
        %v4763 = vpack.c.b16 %v4626, %v4625
        %v4764 = vpack.c.b16 %v4628, %v4627
        %v4765 = vpack.c.b16 %v4630, %v4629
        %v4766 = vpack.c.b16 %v4632, %v4631
        %v4767 = vpack.c.b16 %v4634, %v4633
        %v4768 = vpack.c.b16 %v4636, %v4635
        %v4769 = vpack.c.b16 %v4638, %v4637
        %v4770 = vpack.c.b16 %v4640, %v4639
        %v4771 = vpack.c.b16 %v4642, %v4641
        %v4772 = vpack.c.b16 %v4644, %v4643
        %v4773 = vpack.c.b16 %v4646, %v4645
        %v4774 = vpack.c.b16 %v4648, %v4647
        %v4775 = vpack.c.b16 %v4650, %v4649
        %v4776 = vpack.c.b16 %v4652, %v4651
        %v4777 = vpack.c.b16 %v4654, %v4653
        %v4778 = vpack.c.b16 %v4656, %v4655
        %v4779 = vpack.c.b16 %v4658, %v4657
        %v4780 = vpack.c.b16 %v4660, %v4659
        %v4781 = vpack.c.b16 %v4662, %v4661
        %v4782 = vpack.c.b16 %v4664, %v4663
        %v4783 = vpack.c.b16 %v4666, %v4665
        %v4784 = vpack.c.b16 %v4668, %v4667
        %v4785 = vpack.c.b16 %v4670, %v4669
        %v4786 = vpack.c.b16 %v4672, %v4671
        %v4787 = vpack.c.b16 %v4674, %v4673
        %v4788 = vpack.c.b16 %v4676, %v4675
        %v4789 = vpack.c.b16 %v4678, %v4677
        %v4790 = vpack.c.b16 %v4680, %v4679
        %v4791 = vpack.c.b16 %v4682, %v4681
        %v4792 = vpack.c.b16 %v4684, %v4683
        %v4793 = vpack.c.b16 %v4686, %v4685
        %v4794 = vpack.c.b16 %v4688, %v4687
        %v4795 = vpack.c.b16 %v4690, %v4689
        %v4796 = vpack.c.b16 %v4692, %v4691
        %v4797 = vpack.c.b16 %v4694, %v4693
        %v4798 = vpack.c.b16 %v4696, %v4695
        %v4799 = vpack.c.b16 %v4698, %v4697
        %v4800 = vpack.c.b16 %v4700, %v4699
        %v4801 = vpack.c.b16 %v4702, %v4701
        %v4802 = vpack.c.b16 %v4704, %v4703
        %v4803 = vpack.c.b16 %v4706, %v4705
        %v4804 = vpack.c.b16 %v4708, %v4707
        %v4805 = vpack.c.b16 %v4710, %v4709
        %v4806 = vpack.c.b16 %v4712, %v4711
        %v4807 = vpack.c.b16 %v4714, %v4713
        %v4808 = vpack.c.b16 %v4716, %v4715
        %v4809 = vpack.c.b16 %v4718, %v4717
        %v4810 = vpack.c.b16 %v4720, %v4719
        %v4811 = vpack.c.b16 %v4722, %v4721
        %v4812 = vpack.c.b16 %v4724, %v4723
        %v4813 = vpack.c.b16 %v4726, %v4725
        %v4814 = vpack.c.b16 %v4728, %v4727
        %v4815 = vpack.c.b16 %v4730, %v4729
        %v4816 = vpack.c.b16 %v4732, %v4731
        %v4817 = vpack.c.b16 %v4734, %v4733
        %v4818 = vpack.c.b16 %v4736, %v4735
        %v4819 = vpack.c.b16 %v4738, %v4737
        %v4820 = vpack.c.b16 %v4740, %v4739
        %v4821 = vpack.c.b16 %v4742, %v4741
        %v4822 = vpack.c.b16 %v4744, %v4743
        %v4823 = vpack.c.b16 %v4746, %v4745
        %v4824 = vpack.c.b16 %v4748, %v4747
        %v4825 = vpack.c.b16 %v4750, %v4749
        %v4826 = vpack.c.b16 %v4752, %v4751
        %v4827 = vpack.c.b16 %v4754, %v4753
        %v4828 = vpack.c.b16 %v4756, %v4755
        %4901 = vmatprep.subr.bf16.mxu0 0
        %4902 = vmatpush1.bf16.msra.mxu0 %v4757
        %4903 = vmatprep.subr.bf16.mxu0 0
        %4904 = vmatpush1.bf16.msra.mxu0 %v4758
        %4905 = vmatprep.subr.bf16.mxu0 0
        %4906 = vmatpush1.bf16.msra.mxu0 %v4759
        %4907 = vmatprep.subr.bf16.mxu0 0
        %4908 = vmatpush1.bf16.msra.mxu0 %v4760
        %4909 = vmatprep.subr.bf16.mxu0 0
        %4910 = vmatpush1.bf16.msra.mxu0 %v4761
        %4911 = vmatprep.subr.bf16.mxu0 0
        %4912 = vmatpush1.bf16.msra.mxu0 %v4762
        %4913 = vmatprep.subr.bf16.mxu0 0
        %4914 = vmatpush1.bf16.msra.mxu0 %v4763
        %4915 = vmatprep.subr.bf16.mxu0 0
        %4916 = vmatpush1.bf16.msra.mxu0 %v4764
        %4917 = vmatprep.subr.bf16.mxu0 0
        %4918 = vmatpush1.bf16.msra.mxu0 %v4765
        %4919 = vmatprep.subr.bf16.mxu0 0
        %4920 = vmatpush1.bf16.msra.mxu0 %v4766
        %4921 = vmatprep.subr.bf16.mxu0 0
        %4922 = vmatpush1.bf16.msra.mxu0 %v4767
        %4923 = vmatprep.subr.bf16.mxu0 0
        %4924 = vmatpush1.bf16.msra.mxu0 %v4768
        %4925 = vmatprep.subr.bf16.mxu0 0
        %4926 = vmatpush1.bf16.msra.mxu0 %v4769
        %4927 = vmatprep.subr.bf16.mxu0 0
        %4928 = vmatpush1.bf16.msra.mxu0 %v4770
        %4929 = vmatprep.subr.bf16.mxu0 0
        %4930 = vmatpush1.bf16.msra.mxu0 %v4771
        %4931 = vmatprep.subr.bf16.mxu0 0
        %4932 = vmatpush1.bf16.msra.mxu0 %v4772
        %4933 = vmatprep.mubr.bf16.mxu0 %v4316
        %4934 = vmatmul.mubr.bf16.gmra.mrb[0].mxu0 %v4315
        %v4935 = vpop.f32.mrb[0].mxu0
        %v4936 = vadd.f32 %v4468, %v4935
        %v4937 = vpop.f32.mrb[0].mxu0
        %v4938 = vpop.f32.mrb[0].mxu0
        %v4939 = vpop.f32.mrb[0].mxu0
        %4940 = vdwg.mxu0
        %4941 = vmatprep.subr.bf16.mxu0 0
        %4942 = vmatpush1.bf16.msra.mxu0 %v4773
        %4943 = vmatprep.subr.bf16.mxu0 0
        %4944 = vmatpush1.bf16.msra.mxu0 %v4774
        %4945 = vmatprep.subr.bf16.mxu0 0
        %4946 = vmatpush1.bf16.msra.mxu0 %v4775
        %4947 = vmatprep.subr.bf16.mxu0 0
        %4948 = vmatpush1.bf16.msra.mxu0 %v4776
        %4949 = vmatprep.subr.bf16.mxu0 0
        %4950 = vmatpush1.bf16.msra.mxu0 %v4777
        %4951 = vmatprep.subr.bf16.mxu0 0
        %4952 = vmatpush1.bf16.msra.mxu0 %v4778
        %4953 = vmatprep.subr.bf16.mxu0 0
        %4954 = vmatpush1.bf16.msra.mxu0 %v4779
        %4955 = vmatprep.subr.bf16.mxu0 0
        %4956 = vmatpush1.bf16.msra.mxu0 %v4780
        %4957 = vmatprep.subr.bf16.mxu0 0
        %4958 = vmatpush1.bf16.msra.mxu0 %v4781
        %4959 = vmatprep.subr.bf16.mxu0 0
        %4960 = vmatpush1.bf16.msra.mxu0 %v4782
        %4961 = vmatprep.subr.bf16.mxu0 0
        %4962 = vmatpush1.bf16.msra.mxu0 %v4783
        %4963 = vmatprep.subr.bf16.mxu0 0
        %4964 = vmatpush1.bf16.msra.mxu0 %v4784
        %4965 = vmatprep.subr.bf16.mxu0 0
        %4966 = vmatpush1.bf16.msra.mxu0 %v4785
        %4967 = vmatprep.subr.bf16.mxu0 0
        %4968 = vmatpush1.bf16.msra.mxu0 %v4786
        %4969 = vmatprep.subr.bf16.mxu0 0
        %4970 = vmatpush1.bf16.msra.mxu0 %v4787
        %4971 = vmatprep.subr.bf16.mxu0 0
        %4972 = vmatpush1.bf16.msra.mxu0 %v4788
        %4973 = vmatprep.mubr.bf16.mxu0 %v4318
        %4974 = vmatmul.mubr.bf16.gmra.mrb[0].mxu0 %v4317
        %v4975 = vpop.f32.mrb[0].mxu0
        %v4976 = vadd.f32 %v4936, %v4975
        %v4977 = vpop.f32.mrb[0].mxu0
        %v4978 = vpop.f32.mrb[0].mxu0
        %v4979 = vpop.f32.mrb[0].mxu0
        %4980 = vdwg.mxu0
        %4981 = vmatprep.subr.bf16.mxu0 0
        %4982 = vmatpush1.bf16.msra.mxu0 %v4789
        %4983 = vmatprep.subr.bf16.mxu0 0
        %4984 = vmatpush1.bf16.msra.mxu0 %v4790
        %4985 = vmatprep.subr.bf16.mxu0 0
        %4986 = vmatpush1.bf16.msra.mxu0 %v4791
        %4987 = vmatprep.subr.bf16.mxu0 0
        %4988 = vmatpush1.bf16.msra.mxu0 %v4792
        %4989 = vmatprep.subr.bf16.mxu0 0
        %4990 = vmatpush1.bf16.msra.mxu0 %v4793
        %4991 = vmatprep.subr.bf16.mxu0 0
        %4992 = vmatpush1.bf16.msra.mxu0 %v4794
        %4993 = vmatprep.subr.bf16.mxu0 0
        %4994 = vmatpush1.bf16.msra.mxu0 %v4795
        %4995 = vmatprep.subr.bf16.mxu0 0
        %4996 = vmatpush1.bf16.msra.mxu0 %v4796
        %4997 = vmatprep.subr.bf16.mxu0 0
        %4998 = vmatpush1.bf16.msra.mxu0 %v4797
        %4999 = vmatprep.subr.bf16.mxu0 0
        %5000 = vmatpush1.bf16.msra.mxu0 %v4798
        %5001 = vmatprep.subr.bf16.mxu0 0
        %5002 = vmatpush1.bf16.msra.mxu0 %v4799
        %5003 = vmatprep.subr.bf16.mxu0 0
        %5004 = vmatpush1.bf16.msra.mxu0 %v4800
        %5005 = vmatprep.subr.bf16.mxu0 0
        %5006 = vmatpush1.bf16.msra.mxu0 %v4801
        %5007 = vmatprep.subr.bf16.mxu0 0
        %5008 = vmatpush1.bf16.msra.mxu0 %v4802
        %5009 = vmatprep.subr.bf16.mxu0 0
        %5010 = vmatpush1.bf16.msra.mxu0 %v4803
        %5011 = vmatprep.subr.bf16.mxu0 0
        %5012 = vmatpush1.bf16.msra.mxu0 %v4804
        %5013 = vmatprep.mubr.bf16.mxu0 %v4320
        %5014 = vmatmul.mubr.bf16.gmra.mrb[0].mxu0 %v4319
        %v5015 = vpop.f32.mrb[0].mxu0
        %v5016 = vadd.f32 %v4976, %v5015
        %v5017 = vpop.f32.mrb[0].mxu0
        %v5018 = vpop.f32.mrb[0].mxu0
        %v5019 = vpop.f32.mrb[0].mxu0
        %5020 = vdwg.mxu0
        %5021 = vmatprep.subr.bf16.mxu0 0
        %5022 = vmatpush1.bf16.msra.mxu0 %v4805
        %5023 = vmatprep.subr.bf16.mxu0 0
        %5024 = vmatpush1.bf16.msra.mxu0 %v4806
        %5025 = vmatprep.subr.bf16.mxu0 0
        %5026 = vmatpush1.bf16.msra.mxu0 %v4807
        %5027 = vmatprep.subr.bf16.mxu0 0
        %5028 = vmatpush1.bf16.msra.mxu0 %v4808
        %5029 = vmatprep.subr.bf16.mxu0 0
        %5030 = vmatpush1.bf16.msra.mxu0 %v4809
        %5031 = vmatprep.subr.bf16.mxu0 0
        %5032 = vmatpush1.bf16.msra.mxu0 %v4810
        %5033 = vmatprep.subr.bf16.mxu0 0
        %5034 = vmatpush1.bf16.msra.mxu0 %v4811
        %5035 = vmatprep.subr.bf16.mxu0 0
        %5036 = vmatpush1.bf16.msra.mxu0 %v4812
        %5037 = vmatprep.subr.bf16.mxu0 0
        %5038 = vmatpush1.bf16.msra.mxu0 %v4813
        %5039 = vmatprep.subr.bf16.mxu0 0
        %5040 = vmatpush1.bf16.msra.mxu0 %v4814
        %5041 = vmatprep.subr.bf16.mxu0 0
        %5042 = vmatpush1.bf16.msra.mxu0 %v4815
        %5043 = vmatprep.subr.bf16.mxu0 0
        %5044 = vmatpush1.bf16.msra.mxu0 %v4816
        %5045 = vmatprep.subr.bf16.mxu0 0
        %5046 = vmatpush1.bf16.msra.mxu0 %v4817
        %5047 = vmatprep.subr.bf16.mxu0 0
        %5048 = vmatpush1.bf16.msra.mxu0 %v4818
        %5049 = vmatprep.subr.bf16.mxu0 0
        %5050 = vmatpush1.bf16.msra.mxu0 %v4819
        %5051 = vmatprep.subr.bf16.mxu0 0
        %5052 = vmatpush1.bf16.msra.mxu0 %v4820
        %5053 = vmatprep.mubr.bf16.mxu0 %v4322
        %5054 = vmatmul.mubr.bf16.gmra.mrb[0].mxu0 %v4321
        %v5055 = vpop.f32.mrb[0].mxu0
        %v5056 = vadd.f32 %v5016, %v5055
        %v5057 = vpop.f32.mrb[0].mxu0
        %v5058 = vpop.f32.mrb[0].mxu0
        %v5059 = vpop.f32.mrb[0].mxu0
        %5060 = vdwg.mxu0
        %5061 = vmatprep.subr.bf16.mxu0 0
        %5062 = vmatpush1.bf16.msra.mxu0 %v4821
        %5063 = vmatprep.subr.bf16.mxu0 0
        %5064 = vmatpush1.bf16.msra.mxu0 %v4822
        %5065 = vmatprep.subr.bf16.mxu0 0
        %5066 = vmatpush1.bf16.msra.mxu0 %v4823
        %5067 = vmatprep.subr.bf16.mxu0 0
        %5068 = vmatpush1.bf16.msra.mxu0 %v4824
        %5069 = vmatprep.subr.bf16.mxu0 0
        %5070 = vmatpush1.bf16.msra.mxu0 %v4825
        %5071 = vmatprep.subr.bf16.mxu0 0
        %5072 = vmatpush1.bf16.msra.mxu0 %v4826
        %5073 = vmatprep.subr.bf16.mxu0 0
        %5074 = vmatpush1.bf16.msra.mxu0 %v4827
        %5075 = vmatprep.subr.bf16.mxu0 0
        %5076 = vmatpush1.bf16.msra.mxu0 %v4828
        %5077 = vmatprep.subr.bf16.mxu0 0
        %5078 = vmatpush1.bf16.msra.mxu0 0
        %5079 = vmatprep.subr.bf16.mxu0 0
        %5080 = vmatpush1.bf16.msra.mxu0 0
        %5081 = vmatprep.subr.bf16.mxu0 0
        %5082 = vmatpush1.bf16.msra.mxu0 0
        %5083 = vmatprep.subr.bf16.mxu0 0
        %5084 = vmatpush1.bf16.msra.mxu0 0
        %5085 = vmatprep.subr.bf16.mxu0 0
        %5086 = vmatpush1.bf16.msra.mxu0 0
        %5087 = vmatprep.subr.bf16.mxu0 0
        %5088 = vmatpush1.bf16.msra.mxu0 0
        %5089 = vmatprep.subr.bf16.mxu0 0
        %5090 = vmatpush1.bf16.msra.mxu0 0
        %5091 = vmatprep.subr.bf16.mxu0 0
        %5092 = vmatpush1.bf16.msra.mxu0 0
        %5093 = vmatprep.mubr.bf16.mxu0 0
        %5094 = vmatmul.mubr.bf16.gmra.mrb[0].mxu0 %v4323
        %v5095 = vpop.f32.mrb[0].mxu0
        %v5096 = vadd.f32 %v5056, %v5095
        %v5097 = vpop.f32.mrb[0].mxu0
        %v5098 = vpop.f32.mrb[0].mxu0
        %v5099 = vpop.f32.mrb[0].mxu0
        %5100 = vdwg.mxu0
        %v5101 = vmax.f32 %v5096, 0.0
        %5102 = vst [vmem:[%s358] sm:$0x1] %v5101
        %p5103 = scmp.lt.s32.totalorder %s22, 1
        %s5104 = scalar_select %p5103, %s22, 1
        %s5105 = scalar_lea.vmem %s9, %s5104
        // Predicated region
        $region65: #{dqn_forward.2} parent=55 // pred_check
          %p5106 = pneg %p234
        $region66: #{dqn_forward.2} parent=55 // pred_check_branch
          %5108 = sbr.rel (%p5106) target = $region68
        $region67: #{dqn_forward.2} parent=55 // pred_region
          _
        $region68: #{dqn_forward.2} parent=55 // pred_fallthru
          _
      $region56: #{dqn_forward.2} parent=5 // pred_fallthru
        _
      %p5109 = scmp.le.s32.totalorder 2, %s17
      // Predicated region
      $region69: #{dqn_forward.2} parent=5 // pred_check
        %p5110 = pneg %p5109
      $region70: #{dqn_forward.2} parent=5 // pred_check_branch
        %5112 = sbr.rel (%p5110) target = $region72
      $region71: #{dqn_forward.2} parent=5 // pred_region
        %s5113 = ssub.s32 %s17, 2
        // Predicated region
        $region73: #{dqn_forward.2} parent=71 // pred_check
          %p5114 = pneg %p240
        $region74: #{dqn_forward.2} parent=71 // pred_check_branch
          %5116 = sbr.rel (%p5114) target = $region76
        $region75: #{dqn_forward.2} parent=71 // pred_region
          %p5117 = scmp.lt.s32.totalorder %s23, 1
          %s5118 = scalar_select %p5117, %s23, 1
          %s5119 = scalar_lea.vmem %s9, %s5118
        $region76: #{dqn_forward.2} parent=71 // pred_fallthru
          _
      $region72: #{dqn_forward.2} parent=5 // pred_fallthru
        _
    $region6: #{dqn_forward.2} parent=1 // loop_footer
      %s21 = sadd.s32 1, %s17
    $region7: #{dqn_forward.2} parent=1 // loop_footer_branch
      %16 = sbr.rel target = $region3
    $region8: #{dqn_forward.2} parent=1 // loop_exit
      _
    %5120 = vsyncpa [#allocation10], 1
    %s5121 = scalar_lea.sflag [#allocation10], 1
    %5122 = vsyncpa %s5121, 1
    %5123 = vsyncpa [#allocation12], 1

</llo_original>
